<compile_context>
chip_gen: v6e
topology: v6e:2x2x1
jax: 0.10.0
libtpu: 0.0.40
codegen_flags: <defaults>
</compile_context>

<pallas_src>
import numpy as np
import jax
import jax.numpy as jnp
from jax import lax
from jax.experimental import pallas as pl
from jax.experimental.pallas import tpu as pltpu  # noqa: F401  (TPU backend)

EPS = 1e-5            # torch BatchNorm default eps
LEAKY_SLOPE = 0.01    # torch LeakyReLU default negative_slope
_PER_BLOCK = 9        # refs per CNNBlock: A, M, bias, gamma, beta, K, KT, EO, XO
_N_HEAD = 6           # refs for the head: w1, b1, gamma, beta, w2, b2


# ------------------------------ fused kernel --------------------------------

def _cnn_block_body(z, a_ref, m_ref, bias_ref, g_ref, b_ref,
                    k_ref, kt_ref, eo_ref, xo_ref):
    """One CNNBlock on a VMEM-resident value z = Z[(n,y), (x,cin)]."""
    def mm(a, b):
        return jnp.dot(a, b, preferred_element_type=jnp.float32)

    # 3x3 'same' conv (+ folded 1x1 skip): 3 vertical shifts, each fused with
    # the horizontal-shift-times-weights matrix M_dy.
    acc = mm(mm(a_ref[0], z), m_ref[0])
    acc = acc + mm(mm(a_ref[1], z), m_ref[1])
    acc = acc + mm(mm(a_ref[2], z), m_ref[2])
    zc = acc + bias_ref[...]                                 # [N*H, W*Cout]

    # BatchNorm2d, training-mode (biased) batch stats over (N, H, W).
    # Two-pass (mean, then centered variance) for numerical robustness.
    k = k_ref[...]                                           # [W*Cout, Cout]
    kt = kt_ref[...]                                         # [Cout, W*Cout]
    cout = g_ref.shape[1]
    inv_count = 1.0 / float(zc.shape[0] * (zc.shape[1] // cout))   # 1/(N*H*W)
    mean_c = mm(jnp.sum(zc, axis=0, keepdims=True), k) * inv_count  # [1, Cout]
    cz = zc - mm(mean_c, kt)
    var_c = mm(jnp.sum(cz * cz, axis=0, keepdims=True), k) * inv_count
    scale_c = g_ref[...] * lax.rsqrt(var_c + EPS)            # [1, Cout]
    zn = cz * mm(scale_c, kt) + mm(b_ref[...], kt)           # BN affine
    zn = jnp.maximum(zn, 0.0)                                # ReLU

    # MaxPool2d(2, 2): even/odd rows (y), then even/odd column groups (x).
    zr = jnp.maximum(mm(eo_ref[0], zn), mm(eo_ref[1], zn))   # [N*Ho, W*Cout]
    return jnp.maximum(mm(zr, xo_ref[0]), mm(zr, xo_ref[1]))  # [N*Ho, Wo*Cout]


def _fused_forward_kernel(*refs):
    """refs = (x2, <4 blocks x 9 arrays>, <6 head arrays>, out)."""
    x_ref = refs[0]
    out_ref = refs[-1]
    n_blocks = (len(refs) - 2 - _N_HEAD) // _PER_BLOCK

    def mm(a, b):
        return jnp.dot(a, b, preferred_element_type=jnp.float32)

    z = x_ref[...]                                  # [N*H0, W0]  (Cin == 1)
    i = 1
    for _ in range(n_blocks):
        z = _cnn_block_body(z, *refs[i:i + _PER_BLOCK])
        i += _PER_BLOCK

    # After the 4th block the spatial extent is 1x1 for a 16x16 input, so
    # AdaptiveMaxPool2d(1) + reshape(-1, 64) is the identity: z is [N, 64].
    # TODO(synk): generalize the global max-pool for inputs whose final
    # spatial extent is larger than 1x1.
    w1_ref, b1_ref, g1_ref, be1_ref, w2_ref, b2_ref = refs[i:i + _N_HEAD]

    h = mm(z, w1_ref[...]) + b1_ref[...]            # Linear(64, 64)
    inv_n = 1.0 / float(h.shape[0])
    mean = jnp.sum(h, axis=0, keepdims=True) * inv_n            # BatchNorm1d
    hc = h - mean
    var = jnp.sum(hc * hc, axis=0, keepdims=True) * inv_n
    hn = g1_ref[...] * hc * lax.rsqrt(var + EPS) + be1_ref[...]
    hn = jnp.where(hn > 0, hn, LEAKY_SLOPE * hn)    # LeakyReLU; Dropout(0)=id
    logits = mm(hn, w2_ref[...]) + b2_ref[...]      # Linear(64, 36)
    m = jnp.max(logits, axis=1, keepdims=True)      # Softmax(dim=1)
    e = jnp.exp(logits - m)
    out_ref[...] = e / jnp.sum(e, axis=1, keepdims=True)


# --------------------- host-side constant-matrix builders -------------------

def _shift(size, d):
    """S[i, j] = 1 iff j == i + d  (shift with zero padding)."""
    s = np.zeros((size, size), np.float32)
    for i in range(size):
        j = i + d
        if 0 <= j < size:
            s[i, j] = 1.0
    return s


def _sel(size, parity):
    """S[o, i] = 1 iff i == 2*o + parity  (even/odd down-sampling selector)."""
    s = np.zeros((size // 2, size), np.float32)
    for o in range(size // 2):
        s[o, 2 * o + parity] = 1.0
    return s


def prepare_params(params, batch, h0, w0):
    """Expand the model weights into the constant matrices used by the fused
    kernel (host-side numpy, done once).  Total ~1.5 MB f32 -> one VMEM DMA."""
    arrays = []
    h, w = h0, w0
    eye_n = np.eye(batch, dtype=np.float32)
    for bp in params['blocks']:
        wconv = np.asarray(bp['wconv'], np.float32)       # [3,3,Cin,Cout] (skip folded)
        cout = wconv.shape[3]
        eye_c = np.eye(cout, dtype=np.float32)
        a = np.stack([np.kron(eye_n, _shift(h, dy - 1)) for dy in range(3)])
        m = np.stack([
            sum(np.kron(_shift(w, dx - 1).T, wconv[dy, dx]) for dx in range(3))
            for dy in range(3)])
        bias = np.tile(np.asarray(bp['bias'], np.float32)[None, :], (1, w))
        k = np.kron(np.ones((w, 1), np.float32), eye_c)   # [W*Cout, Cout]
        eo = np.stack([np.kron(eye_n, _sel(h, p)) for p in (0, 1)])
        xo = np.stack([np.kron(_sel(w, p).T, eye_c) for p in (0, 1)])
        arrays += [a, m, bias,
                   np.asarray(bp['gamma'], np.float32)[None, :],
                   np.asarray(bp['beta'], np.float32)[None, :],
                   k, np.ascontiguousarray(k.T), eo, xo]
        h //= 2
        w //= 2
    assert h == 1 and w == 1, "fused kernel assumes 4 blocks reduce 16x16 -> 1x1"
    hd = params['head']
    arrays += [np.asarray(hd['w1'], np.float32), np.asarray(hd['b1'], np.float32),
               np.asarray(hd['gamma'], np.float32), np.asarray(hd['beta'], np.float32),
               np.asarray(hd['w2'], np.float32), np.asarray(hd['b2'], np.float32)]
    return tuple(jnp.asarray(v, jnp.float32) for v in arrays)


# ------------------------------ model forward --------------------------------

def recognition_forward(x_nchw, prepared):
    """x_nchw: [N, 1, H, W] (PyTorch layout); prepared: prepare_params(...)."""
    n, cin, h, w = x_nchw.shape
    assert cin == 1, "first CNNBlock has in_channels=1"
    # Z[(n, y), (x, c)] layout; with Cin == 1 this is a plain reshape.
    x2 = x_nchw.astype(jnp.float32).reshape(n * h, w)
    # Single no-grid pallas_call: every operand (weights ~1.5 MB + tiny
    # activations) lives whole in VMEM; only the (N, 36) result is stored to
    # HBM.  At this size launch + DMA overhead dominates, so one launch is the
    # fastest structure on v5e/v6e/v7x alike.  (For large batches, add a
    # "parallel" grid axis over N so v7x's second TensorCore is used.)
    return pl.pallas_call(
        _fused_forward_kernel,
        out_shape=jax.ShapeDtypeStruct((n, 36), jnp.float32),
    )(x2, *prepared)


# ------------------------------ parameter init -------------------------------

def init_params(key):
    """torch-default init for a freshly constructed RecognitionModel in
    .train() (BatchNorm uses batch statistics, gamma=1, beta=0).  The
    Conv2d(cin, 1, 1) skip branch -- whose single output channel is
    broadcast-added to every conv output channel -- is folded into the 3x3
    conv's centre tap and bias."""
    cfgs = [(1, 16), (16, 32), (32, 32), (32, 64)]
    blocks = []
    for cin, cout in cfgs:
        key, k1, k2, k3, k4 = jax.random.split(key, 5)
        bound = 1.0 / float(np.sqrt(9.0 * cin))
        wconv = jax.random.uniform(k1, (3, 3, cin, cout), jnp.float32, -bound, bound)
        bconv = jax.random.uniform(k2, (cout,), jnp.float32, -bound, bound)
        bs = 1.0 / float(np.sqrt(float(cin)))
        wskip = jax.random.uniform(k3, (cin, 1), jnp.float32, -bs, bs)
        bskip = jax.random.uniform(k4, (1,), jnp.float32, -bs, bs)
        wconv = wconv.at[1, 1, :, :].add(jnp.broadcast_to(wskip, (cin, cout)))
        blocks.append({
            'wconv': wconv,
            'bias': bconv + bskip[0],
            'gamma': jnp.ones((cout,), jnp.float32),
            'beta': jnp.zeros((cout,), jnp.float32),
        })
    key, k1, k2, k3, k4 = jax.random.split(key, 5)
    b64 = 1.0 / 8.0
    head = {
        'w1': jax.random.uniform(k1, (64, 64), jnp.float32, -b64, b64),
        'b1': jax.random.uniform(k2, (1, 64), jnp.float32, -b64, b64),
        'gamma': jnp.ones((1, 64), jnp.float32),
        'beta': jnp.zeros((1, 64), jnp.float32),
        'w2': jax.random.uniform(k3, (64, 36), jnp.float32, -b64, b64),
        'b2': jax.random.uniform(k4, (1, 36), jnp.float32, -b64, b64),
    }
    return {'blocks': blocks, 'head': head}


# ----------------------------------- main ------------------------------------

if __name__ == "__main__":
    key = jax.random.PRNGKey(0)
    kx, kp = jax.random.split(key)
    # Same interface as the PyTorch module: NCHW, 1 input channel, 16x16.
    x = jax.random.normal(kx, (2, 1, 16, 16), dtype=jnp.float32)
    params = init_params(kp)
    prepared = prepare_params(params, batch=2, h0=16, w0=16)

    fwd = jax.jit(recognition_forward)
    y = jax.block_until_ready(fwd(x, prepared))

    assert y.shape == (2, 36), y.shape
    assert bool(jnp.all(jnp.isfinite(y)))
    # softmax rows must sum to 1
    assert bool(jnp.allclose(jnp.sum(y, axis=1), 1.0, atol=1e-4))
    print("KERNEL_OK")
</pallas_src>

<mosaic_0001>
module attributes {stable_mosaic.version = 11 : i64} {
  func.func @_fused_forward_kernel(%arg0: memref<32x16xf32, #tpu.memory_space<vmem>>, %arg1: memref<3x32x32xf32, #tpu.memory_space<vmem>>, %arg2: memref<3x16x256xf32, #tpu.memory_space<vmem>>, %arg3: memref<1x256xf32, #tpu.memory_space<vmem>>, %arg4: memref<1x16xf32, #tpu.memory_space<vmem>>, %arg5: memref<1x16xf32, #tpu.memory_space<vmem>>, %arg6: memref<256x16xf32, #tpu.memory_space<vmem>>, %arg7: memref<16x256xf32, #tpu.memory_space<vmem>>, %arg8: memref<2x16x32xf32, #tpu.memory_space<vmem>>, %arg9: memref<2x256x128xf32, #tpu.memory_space<vmem>>, %arg10: memref<3x16x16xf32, #tpu.memory_space<vmem>>, %arg11: memref<3x128x256xf32, #tpu.memory_space<vmem>>, %arg12: memref<1x256xf32, #tpu.memory_space<vmem>>, %arg13: memref<1x32xf32, #tpu.memory_space<vmem>>, %arg14: memref<1x32xf32, #tpu.memory_space<vmem>>, %arg15: memref<256x32xf32, #tpu.memory_space<vmem>>, %arg16: memref<32x256xf32, #tpu.memory_space<vmem>>, %arg17: memref<2x8x16xf32, #tpu.memory_space<vmem>>, %arg18: memref<2x256x128xf32, #tpu.memory_space<vmem>>, %arg19: memref<3x8x8xf32, #tpu.memory_space<vmem>>, %arg20: memref<3x128x128xf32, #tpu.memory_space<vmem>>, %arg21: memref<1x128xf32, #tpu.memory_space<vmem>>, %arg22: memref<1x32xf32, #tpu.memory_space<vmem>>, %arg23: memref<1x32xf32, #tpu.memory_space<vmem>>, %arg24: memref<128x32xf32, #tpu.memory_space<vmem>>, %arg25: memref<32x128xf32, #tpu.memory_space<vmem>>, %arg26: memref<2x4x8xf32, #tpu.memory_space<vmem>>, %arg27: memref<2x128x64xf32, #tpu.memory_space<vmem>>, %arg28: memref<3x4x4xf32, #tpu.memory_space<vmem>>, %arg29: memref<3x64x128xf32, #tpu.memory_space<vmem>>, %arg30: memref<1x128xf32, #tpu.memory_space<vmem>>, %arg31: memref<1x64xf32, #tpu.memory_space<vmem>>, %arg32: memref<1x64xf32, #tpu.memory_space<vmem>>, %arg33: memref<128x64xf32, #tpu.memory_space<vmem>>, %arg34: memref<64x128xf32, #tpu.memory_space<vmem>>, %arg35: memref<2x2x4xf32, #tpu.memory_space<vmem>>, %arg36: memref<2x128x64xf32, #tpu.memory_space<vmem>>, %arg37: memref<64x64xf32, #tpu.memory_space<vmem>>, %arg38: memref<1x64xf32, #tpu.memory_space<vmem>>, %arg39: memref<1x64xf32, #tpu.memory_space<vmem>>, %arg40: memref<1x64xf32, #tpu.memory_space<vmem>>, %arg41: memref<64x36xf32, #tpu.memory_space<vmem>>, %arg42: memref<1x36xf32, #tpu.memory_space<vmem>>, %arg43: memref<2x36xf32, #tpu.memory_space<vmem>>) attributes {dimension_semantics = [], scalar_prefetch = 0 : i64, scratch_operands = 0 : i64, tpu.core_type = #tpu.core_type<tc>} {
    %c0 = arith.constant 0 : index
    %c0_0 = arith.constant 0 : index
    %0 = vector.load %arg0[%c0, %c0_0] : memref<32x16xf32, #tpu.memory_space<vmem>>, vector<32x16xf32>
    %c0_1 = arith.constant 0 : index
    %c0_2 = arith.constant 0 : index
    %c0_3 = arith.constant 0 : index
    %1 = vector.load %arg1[%c0_1, %c0_2, %c0_3] : memref<3x32x32xf32, #tpu.memory_space<vmem>>, vector<1x32x32xf32>
    %2 = vector.shape_cast %1 : vector<1x32x32xf32> to vector<32x32xf32>
    %cst = arith.constant dense<0.000000e+00> : vector<32x16xf32>
    %3 = tpu.matmul %2, %0, %cst {dimension_numbers = #tpu.dot_dimension_numbers<[1], [0], [0], [1], [0, 0, 1, 1], [], []>} : vector<32x32xf32>, vector<32x16xf32>, vector<32x16xf32> -> vector<32x16xf32>
    %c0_4 = arith.constant 0 : index
    %c0_5 = arith.constant 0 : index
    %c0_6 = arith.constant 0 : index
    %4 = vector.load %arg2[%c0_4, %c0_5, %c0_6] : memref<3x16x256xf32, #tpu.memory_space<vmem>>, vector<1x16x256xf32>
    %5 = vector.shape_cast %4 : vector<1x16x256xf32> to vector<16x256xf32>
    %cst_7 = arith.constant dense<0.000000e+00> : vector<32x256xf32>
    %6 = tpu.matmul %3, %5, %cst_7 {dimension_numbers = #tpu.dot_dimension_numbers<[1], [0], [0], [1], [0, 0, 1, 1], [], []>} : vector<32x16xf32>, vector<16x256xf32>, vector<32x256xf32> -> vector<32x256xf32>
    %c1 = arith.constant 1 : index
    %c0_8 = arith.constant 0 : index
    %c0_9 = arith.constant 0 : index
    %7 = vector.load %arg1[%c1, %c0_8, %c0_9] : memref<3x32x32xf32, #tpu.memory_space<vmem>>, vector<1x32x32xf32>
    %8 = vector.shape_cast %7 : vector<1x32x32xf32> to vector<32x32xf32>
    %cst_10 = arith.constant dense<0.000000e+00> : vector<32x16xf32>
    %9 = tpu.matmul %8, %0, %cst_10 {dimension_numbers = #tpu.dot_dimension_numbers<[1], [0], [0], [1], [0, 0, 1, 1], [], []>} : vector<32x32xf32>, vector<32x16xf32>, vector<32x16xf32> -> vector<32x16xf32>
    %c1_11 = arith.constant 1 : index
    %c0_12 = arith.constant 0 : index
    %c0_13 = arith.constant 0 : index
    %10 = vector.load %arg2[%c1_11, %c0_12, %c0_13] : memref<3x16x256xf32, #tpu.memory_space<vmem>>, vector<1x16x256xf32>
    %11 = vector.shape_cast %10 : vector<1x16x256xf32> to vector<16x256xf32>
    %cst_14 = arith.constant dense<0.000000e+00> : vector<32x256xf32>
    %12 = tpu.matmul %9, %11, %cst_14 {dimension_numbers = #tpu.dot_dimension_numbers<[1], [0], [0], [1], [0, 0, 1, 1], [], []>} : vector<32x16xf32>, vector<16x256xf32>, vector<32x256xf32> -> vector<32x256xf32>
    %13 = arith.addf %6, %12 : vector<32x256xf32>
    %c2 = arith.constant 2 : index
    %c0_15 = arith.constant 0 : index
    %c0_16 = arith.constant 0 : index
    %14 = vector.load %arg1[%c2, %c0_15, %c0_16] : memref<3x32x32xf32, #tpu.memory_space<vmem>>, vector<1x32x32xf32>
    %15 = vector.shape_cast %14 : vector<1x32x32xf32> to vector<32x32xf32>
    %cst_17 = arith.constant dense<0.000000e+00> : vector<32x16xf32>
    %16 = tpu.matmul %15, %0, %cst_17 {dimension_numbers = #tpu.dot_dimension_numbers<[1], [0], [0], [1], [0, 0, 1, 1], [], []>} : vector<32x32xf32>, vector<32x16xf32>, vector<32x16xf32> -> vector<32x16xf32>
    %c2_18 = arith.constant 2 : index
    %c0_19 = arith.constant 0 : index
    %c0_20 = arith.constant 0 : index
    %17 = vector.load %arg2[%c2_18, %c0_19, %c0_20] : memref<3x16x256xf32, #tpu.memory_space<vmem>>, vector<1x16x256xf32>
    %18 = vector.shape_cast %17 : vector<1x16x256xf32> to vector<16x256xf32>
    %cst_21 = arith.constant dense<0.000000e+00> : vector<32x256xf32>
    %19 = tpu.matmul %16, %18, %cst_21 {dimension_numbers = #tpu.dot_dimension_numbers<[1], [0], [0], [1], [0, 0, 1, 1], [], []>} : vector<32x16xf32>, vector<16x256xf32>, vector<32x256xf32> -> vector<32x256xf32>
    %20 = arith.addf %13, %19 : vector<32x256xf32>
    %c0_22 = arith.constant 0 : index
    %c0_23 = arith.constant 0 : index
    %21 = vector.load %arg3[%c0_22, %c0_23] : memref<1x256xf32, #tpu.memory_space<vmem>>, vector<1x256xf32>
    %22 = vector.broadcast %21 : vector<1x256xf32> to vector<32x256xf32>
    %23 = arith.addf %20, %22 : vector<32x256xf32>
    %c0_24 = arith.constant 0 : index
    %c0_25 = arith.constant 0 : index
    %24 = vector.load %arg6[%c0_24, %c0_25] : memref<256x16xf32, #tpu.memory_space<vmem>>, vector<256x16xf32>
    %c0_26 = arith.constant 0 : index
    %c0_27 = arith.constant 0 : index
    %25 = vector.load %arg7[%c0_26, %c0_27] : memref<16x256xf32, #tpu.memory_space<vmem>>, vector<16x256xf32>
    %cst_28 = arith.constant dense<0.000000e+00> : vector<256xf32>
    %26 = vector.multi_reduction <add>, %23, %cst_28 [0] : vector<32x256xf32> to vector<256xf32>
    %27 = vector.shape_cast %26 : vector<256xf32> to vector<1x256xf32>
    %cst_29 = arith.constant dense<0.000000e+00> : vector<1x16xf32>
    %28 = tpu.matmul %27, %24, %cst_29 {dimension_numbers = #tpu.dot_dimension_numbers<[1], [0], [0], [1], [0, 0, 1, 1], [], []>} : vector<1x256xf32>, vector<256x16xf32>, vector<1x16xf32> -> vector<1x16xf32>
    %cst_30 = arith.constant 0.001953125 : f32
    %29 = vector.broadcast %cst_30 : f32 to vector<1x16xf32>
    %30 = arith.mulf %28, %29 : vector<1x16xf32>
    %cst_31 = arith.constant dense<0.000000e+00> : vector<1x256xf32>
    %31 = tpu.matmul %30, %25, %cst_31 {dimension_numbers = #tpu.dot_dimension_numbers<[1], [0], [0], [1], [0, 0, 1, 1], [], []>} : vector<1x16xf32>, vector<16x256xf32>, vector<1x256xf32> -> vector<1x256xf32>
    %32 = vector.broadcast %31 : vector<1x256xf32> to vector<32x256xf32>
    %33 = arith.subf %23, %32 : vector<32x256xf32>
    %34 = arith.mulf %33, %33 : vector<32x256xf32>
    %cst_32 = arith.constant dense<0.000000e+00> : vector<256xf32>
    %35 = vector.multi_reduction <add>, %34, %cst_32 [0] : vector<32x256xf32> to vector<256xf32>
    %36 = vector.shape_cast %35 : vector<256xf32> to vector<1x256xf32>
    %cst_33 = arith.constant dense<0.000000e+00> : vector<1x16xf32>
    %37 = tpu.matmul %36, %24, %cst_33 {dimension_numbers = #tpu.dot_dimension_numbers<[1], [0], [0], [1], [0, 0, 1, 1], [], []>} : vector<1x256xf32>, vector<256x16xf32>, vector<1x16xf32> -> vector<1x16xf32>
    %cst_34 = arith.constant 0.001953125 : f32
    %38 = vector.broadcast %cst_34 : f32 to vector<1x16xf32>
    %39 = arith.mulf %37, %38 : vector<1x16xf32>
    %c0_35 = arith.constant 0 : index
    %c0_36 = arith.constant 0 : index
    %40 = vector.load %arg4[%c0_35, %c0_36] : memref<1x16xf32, #tpu.memory_space<vmem>>, vector<1x16xf32>
    %cst_37 = arith.constant 9.99999974E-6 : f32
    %41 = vector.broadcast %cst_37 : f32 to vector<1x16xf32>
    %42 = arith.addf %39, %41 : vector<1x16xf32>
    %43 = math.rsqrt %42 : vector<1x16xf32>
    %44 = arith.mulf %40, %43 : vector<1x16xf32>
    %cst_38 = arith.constant dense<0.000000e+00> : vector<1x256xf32>
    %45 = tpu.matmul %44, %25, %cst_38 {dimension_numbers = #tpu.dot_dimension_numbers<[1], [0], [0], [1], [0, 0, 1, 1], [], []>} : vector<1x16xf32>, vector<16x256xf32>, vector<1x256xf32> -> vector<1x256xf32>
    %46 = vector.broadcast %45 : vector<1x256xf32> to vector<32x256xf32>
    %47 = arith.mulf %33, %46 : vector<32x256xf32>
    %c0_39 = arith.constant 0 : index
    %c0_40 = arith.constant 0 : index
    %48 = vector.load %arg5[%c0_39, %c0_40] : memref<1x16xf32, #tpu.memory_space<vmem>>, vector<1x16xf32>
    %cst_41 = arith.constant dense<0.000000e+00> : vector<1x256xf32>
    %49 = tpu.matmul %48, %25, %cst_41 {dimension_numbers = #tpu.dot_dimension_numbers<[1], [0], [0], [1], [0, 0, 1, 1], [], []>} : vector<1x16xf32>, vector<16x256xf32>, vector<1x256xf32> -> vector<1x256xf32>
    %50 = vector.broadcast %49 : vector<1x256xf32> to vector<32x256xf32>
    %51 = arith.addf %47, %50 : vector<32x256xf32>
    %cst_42 = arith.constant 0.000000e+00 : f32
    %52 = vector.broadcast %cst_42 : f32 to vector<32x256xf32>
    %53 = arith.maximumf %51, %52 : vector<32x256xf32>
    %c0_43 = arith.constant 0 : index
    %c0_44 = arith.constant 0 : index
    %c0_45 = arith.constant 0 : index
    %54 = vector.load %arg8[%c0_43, %c0_44, %c0_45] : memref<2x16x32xf32, #tpu.memory_space<vmem>>, vector<1x16x32xf32>
    %55 = vector.shape_cast %54 : vector<1x16x32xf32> to vector<16x32xf32>
    %cst_46 = arith.constant dense<0.000000e+00> : vector<16x256xf32>
    %56 = tpu.matmul %55, %53, %cst_46 {dimension_numbers = #tpu.dot_dimension_numbers<[1], [0], [0], [1], [0, 0, 1, 1], [], []>} : vector<16x32xf32>, vector<32x256xf32>, vector<16x256xf32> -> vector<16x256xf32>
    %c1_47 = arith.constant 1 : index
    %c0_48 = arith.constant 0 : index
    %c0_49 = arith.constant 0 : index
    %57 = vector.load %arg8[%c1_47, %c0_48, %c0_49] : memref<2x16x32xf32, #tpu.memory_space<vmem>>, vector<1x16x32xf32>
    %58 = vector.shape_cast %57 : vector<1x16x32xf32> to vector<16x32xf32>
    %cst_50 = arith.constant dense<0.000000e+00> : vector<16x256xf32>
    %59 = tpu.matmul %58, %53, %cst_50 {dimension_numbers = #tpu.dot_dimension_numbers<[1], [0], [0], [1], [0, 0, 1, 1], [], []>} : vector<16x32xf32>, vector<32x256xf32>, vector<16x256xf32> -> vector<16x256xf32>
    %60 = arith.maximumf %56, %59 : vector<16x256xf32>
    %c0_51 = arith.constant 0 : index
    %c0_52 = arith.constant 0 : index
    %c0_53 = arith.constant 0 : index
    %61 = vector.load %arg9[%c0_51, %c0_52, %c0_53] : memref<2x256x128xf32, #tpu.memory_space<vmem>>, vector<1x256x128xf32>
    %62 = vector.shape_cast %61 : vector<1x256x128xf32> to vector<256x128xf32>
    %cst_54 = arith.constant dense<0.000000e+00> : vector<16x128xf32>
    %63 = tpu.matmul %60, %62, %cst_54 {dimension_numbers = #tpu.dot_dimension_numbers<[1], [0], [0], [1], [0, 0, 1, 1], [], []>} : vector<16x256xf32>, vector<256x128xf32>, vector<16x128xf32> -> vector<16x128xf32>
    %c1_55 = arith.constant 1 : index
    %c0_56 = arith.constant 0 : index
    %c0_57 = arith.constant 0 : index
    %64 = vector.load %arg9[%c1_55, %c0_56, %c0_57] : memref<2x256x128xf32, #tpu.memory_space<vmem>>, vector<1x256x128xf32>
    %65 = vector.shape_cast %64 : vector<1x256x128xf32> to vector<256x128xf32>
    %cst_58 = arith.constant dense<0.000000e+00> : vector<16x128xf32>
    %66 = tpu.matmul %60, %65, %cst_58 {dimension_numbers = #tpu.dot_dimension_numbers<[1], [0], [0], [1], [0, 0, 1, 1], [], []>} : vector<16x256xf32>, vector<256x128xf32>, vector<16x128xf32> -> vector<16x128xf32>
    %67 = arith.maximumf %63, %66 : vector<16x128xf32>
    %c0_59 = arith.constant 0 : index
    %c0_60 = arith.constant 0 : index
    %c0_61 = arith.constant 0 : index
    %68 = vector.load %arg10[%c0_59, %c0_60, %c0_61] : memref<3x16x16xf32, #tpu.memory_space<vmem>>, vector<1x16x16xf32>
    %69 = vector.shape_cast %68 : vector<1x16x16xf32> to vector<16x16xf32>
    %cst_62 = arith.constant dense<0.000000e+00> : vector<16x128xf32>
    %70 = tpu.matmul %69, %67, %cst_62 {dimension_numbers = #tpu.dot_dimension_numbers<[1], [0], [0], [1], [0, 0, 1, 1], [], []>} : vector<16x16xf32>, vector<16x128xf32>, vector<16x128xf32> -> vector<16x128xf32>
    %c0_63 = arith.constant 0 : index
    %c0_64 = arith.constant 0 : index
    %c0_65 = arith.constant 0 : index
    %71 = vector.load %arg11[%c0_63, %c0_64, %c0_65] : memref<3x128x256xf32, #tpu.memory_space<vmem>>, vector<1x128x256xf32>
    %72 = vector.shape_cast %71 : vector<1x128x256xf32> to vector<128x256xf32>
    %cst_66 = arith.constant dense<0.000000e+00> : vector<16x256xf32>
    %73 = tpu.matmul %70, %72, %cst_66 {dimension_numbers = #tpu.dot_dimension_numbers<[1], [0], [0], [1], [0, 0, 1, 1], [], []>} : vector<16x128xf32>, vector<128x256xf32>, vector<16x256xf32> -> vector<16x256xf32>
    %c1_67 = arith.constant 1 : index
    %c0_68 = arith.constant 0 : index
    %c0_69 = arith.constant 0 : index
    %74 = vector.load %arg10[%c1_67, %c0_68, %c0_69] : memref<3x16x16xf32, #tpu.memory_space<vmem>>, vector<1x16x16xf32>
    %75 = vector.shape_cast %74 : vector<1x16x16xf32> to vector<16x16xf32>
    %cst_70 = arith.constant dense<0.000000e+00> : vector<16x128xf32>
    %76 = tpu.matmul %75, %67, %cst_70 {dimension_numbers = #tpu.dot_dimension_numbers<[1], [0], [0], [1], [0, 0, 1, 1], [], []>} : vector<16x16xf32>, vector<16x128xf32>, vector<16x128xf32> -> vector<16x128xf32>
    %c1_71 = arith.constant 1 : index
    %c0_72 = arith.constant 0 : index
    %c0_73 = arith.constant 0 : index
    %77 = vector.load %arg11[%c1_71, %c0_72, %c0_73] : memref<3x128x256xf32, #tpu.memory_space<vmem>>, vector<1x128x256xf32>
    %78 = vector.shape_cast %77 : vector<1x128x256xf32> to vector<128x256xf32>
    %cst_74 = arith.constant dense<0.000000e+00> : vector<16x256xf32>
    %79 = tpu.matmul %76, %78, %cst_74 {dimension_numbers = #tpu.dot_dimension_numbers<[1], [0], [0], [1], [0, 0, 1, 1], [], []>} : vector<16x128xf32>, vector<128x256xf32>, vector<16x256xf32> -> vector<16x256xf32>
    %80 = arith.addf %73, %79 : vector<16x256xf32>
    %c2_75 = arith.constant 2 : index
    %c0_76 = arith.constant 0 : index
    %c0_77 = arith.constant 0 : index
    %81 = vector.load %arg10[%c2_75, %c0_76, %c0_77] : memref<3x16x16xf32, #tpu.memory_space<vmem>>, vector<1x16x16xf32>
    %82 = vector.shape_cast %81 : vector<1x16x16xf32> to vector<16x16xf32>
    %cst_78 = arith.constant dense<0.000000e+00> : vector<16x128xf32>
    %83 = tpu.matmul %82, %67, %cst_78 {dimension_numbers = #tpu.dot_dimension_numbers<[1], [0], [0], [1], [0, 0, 1, 1], [], []>} : vector<16x16xf32>, vector<16x128xf32>, vector<16x128xf32> -> vector<16x128xf32>
    %c2_79 = arith.constant 2 : index
    %c0_80 = arith.constant 0 : index
    %c0_81 = arith.constant 0 : index
    %84 = vector.load %arg11[%c2_79, %c0_80, %c0_81] : memref<3x128x256xf32, #tpu.memory_space<vmem>>, vector<1x128x256xf32>
    %85 = vector.shape_cast %84 : vector<1x128x256xf32> to vector<128x256xf32>
    %cst_82 = arith.constant dense<0.000000e+00> : vector<16x256xf32>
    %86 = tpu.matmul %83, %85, %cst_82 {dimension_numbers = #tpu.dot_dimension_numbers<[1], [0], [0], [1], [0, 0, 1, 1], [], []>} : vector<16x128xf32>, vector<128x256xf32>, vector<16x256xf32> -> vector<16x256xf32>
    %87 = arith.addf %80, %86 : vector<16x256xf32>
    %c0_83 = arith.constant 0 : index
    %c0_84 = arith.constant 0 : index
    %88 = vector.load %arg12[%c0_83, %c0_84] : memref<1x256xf32, #tpu.memory_space<vmem>>, vector<1x256xf32>
    %89 = vector.broadcast %88 : vector<1x256xf32> to vector<16x256xf32>
    %90 = arith.addf %87, %89 : vector<16x256xf32>
    %c0_85 = arith.constant 0 : index
    %c0_86 = arith.constant 0 : index
    %91 = vector.load %arg15[%c0_85, %c0_86] : memref<256x32xf32, #tpu.memory_space<vmem>>, vector<256x32xf32>
    %c0_87 = arith.constant 0 : index
    %c0_88 = arith.constant 0 : index
    %92 = vector.load %arg16[%c0_87, %c0_88] : memref<32x256xf32, #tpu.memory_space<vmem>>, vector<32x256xf32>
    %cst_89 = arith.constant dense<0.000000e+00> : vector<256xf32>
    %93 = vector.multi_reduction <add>, %90, %cst_89 [0] : vector<16x256xf32> to vector<256xf32>
    %94 = vector.shape_cast %93 : vector<256xf32> to vector<1x256xf32>
    %cst_90 = arith.constant dense<0.000000e+00> : vector<1x32xf32>
    %95 = tpu.matmul %94, %91, %cst_90 {dimension_numbers = #tpu.dot_dimension_numbers<[1], [0], [0], [1], [0, 0, 1, 1], [], []>} : vector<1x256xf32>, vector<256x32xf32>, vector<1x32xf32> -> vector<1x32xf32>
    %cst_91 = arith.constant 7.812500e-03 : f32
    %96 = vector.broadcast %cst_91 : f32 to vector<1x32xf32>
    %97 = arith.mulf %95, %96 : vector<1x32xf32>
    %cst_92 = arith.constant dense<0.000000e+00> : vector<1x256xf32>
    %98 = tpu.matmul %97, %92, %cst_92 {dimension_numbers = #tpu.dot_dimension_numbers<[1], [0], [0], [1], [0, 0, 1, 1], [], []>} : vector<1x32xf32>, vector<32x256xf32>, vector<1x256xf32> -> vector<1x256xf32>
    %99 = vector.broadcast %98 : vector<1x256xf32> to vector<16x256xf32>
    %100 = arith.subf %90, %99 : vector<16x256xf32>
    %101 = arith.mulf %100, %100 : vector<16x256xf32>
    %cst_93 = arith.constant dense<0.000000e+00> : vector<256xf32>
    %102 = vector.multi_reduction <add>, %101, %cst_93 [0] : vector<16x256xf32> to vector<256xf32>
    %103 = vector.shape_cast %102 : vector<256xf32> to vector<1x256xf32>
    %cst_94 = arith.constant dense<0.000000e+00> : vector<1x32xf32>
    %104 = tpu.matmul %103, %91, %cst_94 {dimension_numbers = #tpu.dot_dimension_numbers<[1], [0], [0], [1], [0, 0, 1, 1], [], []>} : vector<1x256xf32>, vector<256x32xf32>, vector<1x32xf32> -> vector<1x32xf32>
    %cst_95 = arith.constant 7.812500e-03 : f32
    %105 = vector.broadcast %cst_95 : f32 to vector<1x32xf32>
    %106 = arith.mulf %104, %105 : vector<1x32xf32>
    %c0_96 = arith.constant 0 : index
    %c0_97 = arith.constant 0 : index
    %107 = vector.load %arg13[%c0_96, %c0_97] : memref<1x32xf32, #tpu.memory_space<vmem>>, vector<1x32xf32>
    %cst_98 = arith.constant 9.99999974E-6 : f32
    %108 = vector.broadcast %cst_98 : f32 to vector<1x32xf32>
    %109 = arith.addf %106, %108 : vector<1x32xf32>
    %110 = math.rsqrt %109 : vector<1x32xf32>
    %111 = arith.mulf %107, %110 : vector<1x32xf32>
    %cst_99 = arith.constant dense<0.000000e+00> : vector<1x256xf32>
    %112 = tpu.matmul %111, %92, %cst_99 {dimension_numbers = #tpu.dot_dimension_numbers<[1], [0], [0], [1], [0, 0, 1, 1], [], []>} : vector<1x32xf32>, vector<32x256xf32>, vector<1x256xf32> -> vector<1x256xf32>
    %113 = vector.broadcast %112 : vector<1x256xf32> to vector<16x256xf32>
    %114 = arith.mulf %100, %113 : vector<16x256xf32>
    %c0_100 = arith.constant 0 : index
    %c0_101 = arith.constant 0 : index
    %115 = vector.load %arg14[%c0_100, %c0_101] : memref<1x32xf32, #tpu.memory_space<vmem>>, vector<1x32xf32>
    %cst_102 = arith.constant dense<0.000000e+00> : vector<1x256xf32>
    %116 = tpu.matmul %115, %92, %cst_102 {dimension_numbers = #tpu.dot_dimension_numbers<[1], [0], [0], [1], [0, 0, 1, 1], [], []>} : vector<1x32xf32>, vector<32x256xf32>, vector<1x256xf32> -> vector<1x256xf32>
    %117 = vector.broadcast %116 : vector<1x256xf32> to vector<16x256xf32>
    %118 = arith.addf %114, %117 : vector<16x256xf32>
    %cst_103 = arith.constant 0.000000e+00 : f32
    %119 = vector.broadcast %cst_103 : f32 to vector<16x256xf32>
    %120 = arith.maximumf %118, %119 : vector<16x256xf32>
    %c0_104 = arith.constant 0 : index
    %c0_105 = arith.constant 0 : index
    %c0_106 = arith.constant 0 : index
    %121 = vector.load %arg17[%c0_104, %c0_105, %c0_106] : memref<2x8x16xf32, #tpu.memory_space<vmem>>, vector<1x8x16xf32>
    %122 = vector.shape_cast %121 : vector<1x8x16xf32> to vector<8x16xf32>
    %cst_107 = arith.constant dense<0.000000e+00> : vector<8x256xf32>
    %123 = tpu.matmul %122, %120, %cst_107 {dimension_numbers = #tpu.dot_dimension_numbers<[1], [0], [0], [1], [0, 0, 1, 1], [], []>} : vector<8x16xf32>, vector<16x256xf32>, vector<8x256xf32> -> vector<8x256xf32>
    %c1_108 = arith.constant 1 : index
    %c0_109 = arith.constant 0 : index
    %c0_110 = arith.constant 0 : index
    %124 = vector.load %arg17[%c1_108, %c0_109, %c0_110] : memref<2x8x16xf32, #tpu.memory_space<vmem>>, vector<1x8x16xf32>
    %125 = vector.shape_cast %124 : vector<1x8x16xf32> to vector<8x16xf32>
    %cst_111 = arith.constant dense<0.000000e+00> : vector<8x256xf32>
    %126 = tpu.matmul %125, %120, %cst_111 {dimension_numbers = #tpu.dot_dimension_numbers<[1], [0], [0], [1], [0, 0, 1, 1], [], []>} : vector<8x16xf32>, vector<16x256xf32>, vector<8x256xf32> -> vector<8x256xf32>
    %127 = arith.maximumf %123, %126 : vector<8x256xf32>
    %c0_112 = arith.constant 0 : index
    %c0_113 = arith.constant 0 : index
    %c0_114 = arith.constant 0 : index
    %128 = vector.load %arg18[%c0_112, %c0_113, %c0_114] : memref<2x256x128xf32, #tpu.memory_space<vmem>>, vector<1x256x128xf32>
    %129 = vector.shape_cast %128 : vector<1x256x128xf32> to vector<256x128xf32>
    %cst_115 = arith.constant dense<0.000000e+00> : vector<8x128xf32>
    %130 = tpu.matmul %127, %129, %cst_115 {dimension_numbers = #tpu.dot_dimension_numbers<[1], [0], [0], [1], [0, 0, 1, 1], [], []>} : vector<8x256xf32>, vector<256x128xf32>, vector<8x128xf32> -> vector<8x128xf32>
    %c1_116 = arith.constant 1 : index
    %c0_117 = arith.constant 0 : index
    %c0_118 = arith.constant 0 : index
    %131 = vector.load %arg18[%c1_116, %c0_117, %c0_118] : memref<2x256x128xf32, #tpu.memory_space<vmem>>, vector<1x256x128xf32>
    %132 = vector.shape_cast %131 : vector<1x256x128xf32> to vector<256x128xf32>
    %cst_119 = arith.constant dense<0.000000e+00> : vector<8x128xf32>
    %133 = tpu.matmul %127, %132, %cst_119 {dimension_numbers = #tpu.dot_dimension_numbers<[1], [0], [0], [1], [0, 0, 1, 1], [], []>} : vector<8x256xf32>, vector<256x128xf32>, vector<8x128xf32> -> vector<8x128xf32>
    %134 = arith.maximumf %130, %133 : vector<8x128xf32>
    %c0_120 = arith.constant 0 : index
    %c0_121 = arith.constant 0 : index
    %c0_122 = arith.constant 0 : index
    %135 = vector.load %arg19[%c0_120, %c0_121, %c0_122] : memref<3x8x8xf32, #tpu.memory_space<vmem>>, vector<1x8x8xf32>
    %136 = vector.shape_cast %135 : vector<1x8x8xf32> to vector<8x8xf32>
    %cst_123 = arith.constant dense<0.000000e+00> : vector<8x128xf32>
    %137 = tpu.matmul %136, %134, %cst_123 {dimension_numbers = #tpu.dot_dimension_numbers<[1], [0], [0], [1], [0, 0, 1, 1], [], []>} : vector<8x8xf32>, vector<8x128xf32>, vector<8x128xf32> -> vector<8x128xf32>
    %c0_124 = arith.constant 0 : index
    %c0_125 = arith.constant 0 : index
    %c0_126 = arith.constant 0 : index
    %138 = vector.load %arg20[%c0_124, %c0_125, %c0_126] : memref<3x128x128xf32, #tpu.memory_space<vmem>>, vector<1x128x128xf32>
    %139 = vector.shape_cast %138 : vector<1x128x128xf32> to vector<128x128xf32>
    %cst_127 = arith.constant dense<0.000000e+00> : vector<8x128xf32>
    %140 = tpu.matmul %137, %139, %cst_127 {dimension_numbers = #tpu.dot_dimension_numbers<[1], [0], [0], [1], [0, 0, 1, 1], [], []>} : vector<8x128xf32>, vector<128x128xf32>, vector<8x128xf32> -> vector<8x128xf32>
    %c1_128 = arith.constant 1 : index
    %c0_129 = arith.constant 0 : index
    %c0_130 = arith.constant 0 : index
    %141 = vector.load %arg19[%c1_128, %c0_129, %c0_130] : memref<3x8x8xf32, #tpu.memory_space<vmem>>, vector<1x8x8xf32>
    %142 = vector.shape_cast %141 : vector<1x8x8xf32> to vector<8x8xf32>
    %cst_131 = arith.constant dense<0.000000e+00> : vector<8x128xf32>
    %143 = tpu.matmul %142, %134, %cst_131 {dimension_numbers = #tpu.dot_dimension_numbers<[1], [0], [0], [1], [0, 0, 1, 1], [], []>} : vector<8x8xf32>, vector<8x128xf32>, vector<8x128xf32> -> vector<8x128xf32>
    %c1_132 = arith.constant 1 : index
    %c0_133 = arith.constant 0 : index
    %c0_134 = arith.constant 0 : index
    %144 = vector.load %arg20[%c1_132, %c0_133, %c0_134] : memref<3x128x128xf32, #tpu.memory_space<vmem>>, vector<1x128x128xf32>
    %145 = vector.shape_cast %144 : vector<1x128x128xf32> to vector<128x128xf32>
    %cst_135 = arith.constant dense<0.000000e+00> : vector<8x128xf32>
    %146 = tpu.matmul %143, %145, %cst_135 {dimension_numbers = #tpu.dot_dimension_numbers<[1], [0], [0], [1], [0, 0, 1, 1], [], []>} : vector<8x128xf32>, vector<128x128xf32>, vector<8x128xf32> -> vector<8x128xf32>
    %147 = arith.addf %140, %146 : vector<8x128xf32>
    %c2_136 = arith.constant 2 : index
    %c0_137 = arith.constant 0 : index
    %c0_138 = arith.constant 0 : index
    %148 = vector.load %arg19[%c2_136, %c0_137, %c0_138] : memref<3x8x8xf32, #tpu.memory_space<vmem>>, vector<1x8x8xf32>
    %149 = vector.shape_cast %148 : vector<1x8x8xf32> to vector<8x8xf32>
    %cst_139 = arith.constant dense<0.000000e+00> : vector<8x128xf32>
    %150 = tpu.matmul %149, %134, %cst_139 {dimension_numbers = #tpu.dot_dimension_numbers<[1], [0], [0], [1], [0, 0, 1, 1], [], []>} : vector<8x8xf32>, vector<8x128xf32>, vector<8x128xf32> -> vector<8x128xf32>
    %c2_140 = arith.constant 2 : index
    %c0_141 = arith.constant 0 : index
    %c0_142 = arith.constant 0 : index
    %151 = vector.load %arg20[%c2_140, %c0_141, %c0_142] : memref<3x128x128xf32, #tpu.memory_space<vmem>>, vector<1x128x128xf32>
    %152 = vector.shape_cast %151 : vector<1x128x128xf32> to vector<128x128xf32>
    %cst_143 = arith.constant dense<0.000000e+00> : vector<8x128xf32>
    %153 = tpu.matmul %150, %152, %cst_143 {dimension_numbers = #tpu.dot_dimension_numbers<[1], [0], [0], [1], [0, 0, 1, 1], [], []>} : vector<8x128xf32>, vector<128x128xf32>, vector<8x128xf32> -> vector<8x128xf32>
    %154 = arith.addf %147, %153 : vector<8x128xf32>
    %c0_144 = arith.constant 0 : index
    %c0_145 = arith.constant 0 : index
    %155 = vector.load %arg21[%c0_144, %c0_145] : memref<1x128xf32, #tpu.memory_space<vmem>>, vector<1x128xf32>
    %156 = vector.broadcast %155 : vector<1x128xf32> to vector<8x128xf32>
    %157 = arith.addf %154, %156 : vector<8x128xf32>
    %c0_146 = arith.constant 0 : index
    %c0_147 = arith.constant 0 : index
    %158 = vector.load %arg24[%c0_146, %c0_147] : memref<128x32xf32, #tpu.memory_space<vmem>>, vector<128x32xf32>
    %c0_148 = arith.constant 0 : index
    %c0_149 = arith.constant 0 : index
    %159 = vector.load %arg25[%c0_148, %c0_149] : memref<32x128xf32, #tpu.memory_space<vmem>>, vector<32x128xf32>
    %cst_150 = arith.constant dense<0.000000e+00> : vector<128xf32>
    %160 = vector.multi_reduction <add>, %157, %cst_150 [0] : vector<8x128xf32> to vector<128xf32>
    %161 = vector.shape_cast %160 : vector<128xf32> to vector<1x128xf32>
    %cst_151 = arith.constant dense<0.000000e+00> : vector<1x32xf32>
    %162 = tpu.matmul %161, %158, %cst_151 {dimension_numbers = #tpu.dot_dimension_numbers<[1], [0], [0], [1], [0, 0, 1, 1], [], []>} : vector<1x128xf32>, vector<128x32xf32>, vector<1x32xf32> -> vector<1x32xf32>
    %cst_152 = arith.constant 3.125000e-02 : f32
    %163 = vector.broadcast %cst_152 : f32 to vector<1x32xf32>
    %164 = arith.mulf %162, %163 : vector<1x32xf32>
    %cst_153 = arith.constant dense<0.000000e+00> : vector<1x128xf32>
    %165 = tpu.matmul %164, %159, %cst_153 {dimension_numbers = #tpu.dot_dimension_numbers<[1], [0], [0], [1], [0, 0, 1, 1], [], []>} : vector<1x32xf32>, vector<32x128xf32>, vector<1x128xf32> -> vector<1x128xf32>
    %166 = vector.broadcast %165 : vector<1x128xf32> to vector<8x128xf32>
    %167 = arith.subf %157, %166 : vector<8x128xf32>
    %168 = arith.mulf %167, %167 : vector<8x128xf32>
    %cst_154 = arith.constant dense<0.000000e+00> : vector<128xf32>
    %169 = vector.multi_reduction <add>, %168, %cst_154 [0] : vector<8x128xf32> to vector<128xf32>
    %170 = vector.shape_cast %169 : vector<128xf32> to vector<1x128xf32>
    %cst_155 = arith.constant dense<0.000000e+00> : vector<1x32xf32>
    %171 = tpu.matmul %170, %158, %cst_155 {dimension_numbers = #tpu.dot_dimension_numbers<[1], [0], [0], [1], [0, 0, 1, 1], [], []>} : vector<1x128xf32>, vector<128x32xf32>, vector<1x32xf32> -> vector<1x32xf32>
    %cst_156 = arith.constant 3.125000e-02 : f32
    %172 = vector.broadcast %cst_156 : f32 to vector<1x32xf32>
    %173 = arith.mulf %171, %172 : vector<1x32xf32>
    %c0_157 = arith.constant 0 : index
    %c0_158 = arith.constant 0 : index
    %174 = vector.load %arg22[%c0_157, %c0_158] : memref<1x32xf32, #tpu.memory_space<vmem>>, vector<1x32xf32>
    %cst_159 = arith.constant 9.99999974E-6 : f32
    %175 = vector.broadcast %cst_159 : f32 to vector<1x32xf32>
    %176 = arith.addf %173, %175 : vector<1x32xf32>
    %177 = math.rsqrt %176 : vector<1x32xf32>
    %178 = arith.mulf %174, %177 : vector<1x32xf32>
    %cst_160 = arith.constant dense<0.000000e+00> : vector<1x128xf32>
    %179 = tpu.matmul %178, %159, %cst_160 {dimension_numbers = #tpu.dot_dimension_numbers<[1], [0], [0], [1], [0, 0, 1, 1], [], []>} : vector<1x32xf32>, vector<32x128xf32>, vector<1x128xf32> -> vector<1x128xf32>
    %180 = vector.broadcast %179 : vector<1x128xf32> to vector<8x128xf32>
    %181 = arith.mulf %167, %180 : vector<8x128xf32>
    %c0_161 = arith.constant 0 : index
    %c0_162 = arith.constant 0 : index
    %182 = vector.load %arg23[%c0_161, %c0_162] : memref<1x32xf32, #tpu.memory_space<vmem>>, vector<1x32xf32>
    %cst_163 = arith.constant dense<0.000000e+00> : vector<1x128xf32>
    %183 = tpu.matmul %182, %159, %cst_163 {dimension_numbers = #tpu.dot_dimension_numbers<[1], [0], [0], [1], [0, 0, 1, 1], [], []>} : vector<1x32xf32>, vector<32x128xf32>, vector<1x128xf32> -> vector<1x128xf32>
    %184 = vector.broadcast %183 : vector<1x128xf32> to vector<8x128xf32>
    %185 = arith.addf %181, %184 : vector<8x128xf32>
    %cst_164 = arith.constant 0.000000e+00 : f32
    %186 = vector.broadcast %cst_164 : f32 to vector<8x128xf32>
    %187 = arith.maximumf %185, %186 : vector<8x128xf32>
    %c0_165 = arith.constant 0 : index
    %c0_166 = arith.constant 0 : index
    %c0_167 = arith.constant 0 : index
    %188 = vector.load %arg26[%c0_165, %c0_166, %c0_167] : memref<2x4x8xf32, #tpu.memory_space<vmem>>, vector<1x4x8xf32>
    %189 = vector.shape_cast %188 : vector<1x4x8xf32> to vector<4x8xf32>
    %cst_168 = arith.constant dense<0.000000e+00> : vector<4x128xf32>
    %190 = tpu.matmul %189, %187, %cst_168 {dimension_numbers = #tpu.dot_dimension_numbers<[1], [0], [0], [1], [0, 0, 1, 1], [], []>} : vector<4x8xf32>, vector<8x128xf32>, vector<4x128xf32> -> vector<4x128xf32>
    %c1_169 = arith.constant 1 : index
    %c0_170 = arith.constant 0 : index
    %c0_171 = arith.constant 0 : index
    %191 = vector.load %arg26[%c1_169, %c0_170, %c0_171] : memref<2x4x8xf32, #tpu.memory_space<vmem>>, vector<1x4x8xf32>
    %192 = vector.shape_cast %191 : vector<1x4x8xf32> to vector<4x8xf32>
    %cst_172 = arith.constant dense<0.000000e+00> : vector<4x128xf32>
    %193 = tpu.matmul %192, %187, %cst_172 {dimension_numbers = #tpu.dot_dimension_numbers<[1], [0], [0], [1], [0, 0, 1, 1], [], []>} : vector<4x8xf32>, vector<8x128xf32>, vector<4x128xf32> -> vector<4x128xf32>
    %194 = arith.maximumf %190, %193 : vector<4x128xf32>
    %c0_173 = arith.constant 0 : index
    %c0_174 = arith.constant 0 : index
    %c0_175 = arith.constant 0 : index
    %195 = vector.load %arg27[%c0_173, %c0_174, %c0_175] : memref<2x128x64xf32, #tpu.memory_space<vmem>>, vector<1x128x64xf32>
    %196 = vector.shape_cast %195 : vector<1x128x64xf32> to vector<128x64xf32>
    %cst_176 = arith.constant dense<0.000000e+00> : vector<4x64xf32>
    %197 = tpu.matmul %194, %196, %cst_176 {dimension_numbers = #tpu.dot_dimension_numbers<[1], [0], [0], [1], [0, 0, 1, 1], [], []>} : vector<4x128xf32>, vector<128x64xf32>, vector<4x64xf32> -> vector<4x64xf32>
    %c1_177 = arith.constant 1 : index
    %c0_178 = arith.constant 0 : index
    %c0_179 = arith.constant 0 : index
    %198 = vector.load %arg27[%c1_177, %c0_178, %c0_179] : memref<2x128x64xf32, #tpu.memory_space<vmem>>, vector<1x128x64xf32>
    %199 = vector.shape_cast %198 : vector<1x128x64xf32> to vector<128x64xf32>
    %cst_180 = arith.constant dense<0.000000e+00> : vector<4x64xf32>
    %200 = tpu.matmul %194, %199, %cst_180 {dimension_numbers = #tpu.dot_dimension_numbers<[1], [0], [0], [1], [0, 0, 1, 1], [], []>} : vector<4x128xf32>, vector<128x64xf32>, vector<4x64xf32> -> vector<4x64xf32>
    %201 = arith.maximumf %197, %200 : vector<4x64xf32>
    %c0_181 = arith.constant 0 : index
    %c0_182 = arith.constant 0 : index
    %c0_183 = arith.constant 0 : index
    %202 = vector.load %arg28[%c0_181, %c0_182, %c0_183] : memref<3x4x4xf32, #tpu.memory_space<vmem>>, vector<1x4x4xf32>
    %203 = vector.shape_cast %202 : vector<1x4x4xf32> to vector<4x4xf32>
    %cst_184 = arith.constant dense<0.000000e+00> : vector<4x64xf32>
    %204 = tpu.matmul %203, %201, %cst_184 {dimension_numbers = #tpu.dot_dimension_numbers<[1], [0], [0], [1], [0, 0, 1, 1], [], []>} : vector<4x4xf32>, vector<4x64xf32>, vector<4x64xf32> -> vector<4x64xf32>
    %c0_185 = arith.constant 0 : index
    %c0_186 = arith.constant 0 : index
    %c0_187 = arith.constant 0 : index
    %205 = vector.load %arg29[%c0_185, %c0_186, %c0_187] : memref<3x64x128xf32, #tpu.memory_space<vmem>>, vector<1x64x128xf32>
    %206 = vector.shape_cast %205 : vector<1x64x128xf32> to vector<64x128xf32>
    %cst_188 = arith.constant dense<0.000000e+00> : vector<4x128xf32>
    %207 = tpu.matmul %204, %206, %cst_188 {dimension_numbers = #tpu.dot_dimension_numbers<[1], [0], [0], [1], [0, 0, 1, 1], [], []>} : vector<4x64xf32>, vector<64x128xf32>, vector<4x128xf32> -> vector<4x128xf32>
    %c1_189 = arith.constant 1 : index
    %c0_190 = arith.constant 0 : index
    %c0_191 = arith.constant 0 : index
    %208 = vector.load %arg28[%c1_189, %c0_190, %c0_191] : memref<3x4x4xf32, #tpu.memory_space<vmem>>, vector<1x4x4xf32>
    %209 = vector.shape_cast %208 : vector<1x4x4xf32> to vector<4x4xf32>
    %cst_192 = arith.constant dense<0.000000e+00> : vector<4x64xf32>
    %210 = tpu.matmul %209, %201, %cst_192 {dimension_numbers = #tpu.dot_dimension_numbers<[1], [0], [0], [1], [0, 0, 1, 1], [], []>} : vector<4x4xf32>, vector<4x64xf32>, vector<4x64xf32> -> vector<4x64xf32>
    %c1_193 = arith.constant 1 : index
    %c0_194 = arith.constant 0 : index
    %c0_195 = arith.constant 0 : index
    %211 = vector.load %arg29[%c1_193, %c0_194, %c0_195] : memref<3x64x128xf32, #tpu.memory_space<vmem>>, vector<1x64x128xf32>
    %212 = vector.shape_cast %211 : vector<1x64x128xf32> to vector<64x128xf32>
    %cst_196 = arith.constant dense<0.000000e+00> : vector<4x128xf32>
    %213 = tpu.matmul %210, %212, %cst_196 {dimension_numbers = #tpu.dot_dimension_numbers<[1], [0], [0], [1], [0, 0, 1, 1], [], []>} : vector<4x64xf32>, vector<64x128xf32>, vector<4x128xf32> -> vector<4x128xf32>
    %214 = arith.addf %207, %213 : vector<4x128xf32>
    %c2_197 = arith.constant 2 : index
    %c0_198 = arith.constant 0 : index
    %c0_199 = arith.constant 0 : index
    %215 = vector.load %arg28[%c2_197, %c0_198, %c0_199] : memref<3x4x4xf32, #tpu.memory_space<vmem>>, vector<1x4x4xf32>
    %216 = vector.shape_cast %215 : vector<1x4x4xf32> to vector<4x4xf32>
    %cst_200 = arith.constant dense<0.000000e+00> : vector<4x64xf32>
    %217 = tpu.matmul %216, %201, %cst_200 {dimension_numbers = #tpu.dot_dimension_numbers<[1], [0], [0], [1], [0, 0, 1, 1], [], []>} : vector<4x4xf32>, vector<4x64xf32>, vector<4x64xf32> -> vector<4x64xf32>
    %c2_201 = arith.constant 2 : index
    %c0_202 = arith.constant 0 : index
    %c0_203 = arith.constant 0 : index
    %218 = vector.load %arg29[%c2_201, %c0_202, %c0_203] : memref<3x64x128xf32, #tpu.memory_space<vmem>>, vector<1x64x128xf32>
    %219 = vector.shape_cast %218 : vector<1x64x128xf32> to vector<64x128xf32>
    %cst_204 = arith.constant dense<0.000000e+00> : vector<4x128xf32>
    %220 = tpu.matmul %217, %219, %cst_204 {dimension_numbers = #tpu.dot_dimension_numbers<[1], [0], [0], [1], [0, 0, 1, 1], [], []>} : vector<4x64xf32>, vector<64x128xf32>, vector<4x128xf32> -> vector<4x128xf32>
    %221 = arith.addf %214, %220 : vector<4x128xf32>
    %c0_205 = arith.constant 0 : index
    %c0_206 = arith.constant 0 : index
    %222 = vector.load %arg30[%c0_205, %c0_206] : memref<1x128xf32, #tpu.memory_space<vmem>>, vector<1x128xf32>
    %223 = vector.broadcast %222 : vector<1x128xf32> to vector<4x128xf32>
    %224 = arith.addf %221, %223 : vector<4x128xf32>
    %c0_207 = arith.constant 0 : index
    %c0_208 = arith.constant 0 : index
    %225 = vector.load %arg33[%c0_207, %c0_208] : memref<128x64xf32, #tpu.memory_space<vmem>>, vector<128x64xf32>
    %c0_209 = arith.constant 0 : index
    %c0_210 = arith.constant 0 : index
    %226 = vector.load %arg34[%c0_209, %c0_210] : memref<64x128xf32, #tpu.memory_space<vmem>>, vector<64x128xf32>
    %cst_211 = arith.constant dense<0.000000e+00> : vector<128xf32>
    %227 = vector.multi_reduction <add>, %224, %cst_211 [0] : vector<4x128xf32> to vector<128xf32>
    %228 = vector.shape_cast %227 : vector<128xf32> to vector<1x128xf32>
    %cst_212 = arith.constant dense<0.000000e+00> : vector<1x64xf32>
    %229 = tpu.matmul %228, %225, %cst_212 {dimension_numbers = #tpu.dot_dimension_numbers<[1], [0], [0], [1], [0, 0, 1, 1], [], []>} : vector<1x128xf32>, vector<128x64xf32>, vector<1x64xf32> -> vector<1x64xf32>
    %cst_213 = arith.constant 1.250000e-01 : f32
    %230 = vector.broadcast %cst_213 : f32 to vector<1x64xf32>
    %231 = arith.mulf %229, %230 : vector<1x64xf32>
    %cst_214 = arith.constant dense<0.000000e+00> : vector<1x128xf32>
    %232 = tpu.matmul %231, %226, %cst_214 {dimension_numbers = #tpu.dot_dimension_numbers<[1], [0], [0], [1], [0, 0, 1, 1], [], []>} : vector<1x64xf32>, vector<64x128xf32>, vector<1x128xf32> -> vector<1x128xf32>
    %233 = vector.broadcast %232 : vector<1x128xf32> to vector<4x128xf32>
    %234 = arith.subf %224, %233 : vector<4x128xf32>
    %235 = arith.mulf %234, %234 : vector<4x128xf32>
    %cst_215 = arith.constant dense<0.000000e+00> : vector<128xf32>
    %236 = vector.multi_reduction <add>, %235, %cst_215 [0] : vector<4x128xf32> to vector<128xf32>
    %237 = vector.shape_cast %236 : vector<128xf32> to vector<1x128xf32>
    %cst_216 = arith.constant dense<0.000000e+00> : vector<1x64xf32>
    %238 = tpu.matmul %237, %225, %cst_216 {dimension_numbers = #tpu.dot_dimension_numbers<[1], [0], [0], [1], [0, 0, 1, 1], [], []>} : vector<1x128xf32>, vector<128x64xf32>, vector<1x64xf32> -> vector<1x64xf32>
    %cst_217 = arith.constant 1.250000e-01 : f32
    %239 = vector.broadcast %cst_217 : f32 to vector<1x64xf32>
    %240 = arith.mulf %238, %239 : vector<1x64xf32>
    %c0_218 = arith.constant 0 : index
    %c0_219 = arith.constant 0 : index
    %241 = vector.load %arg31[%c0_218, %c0_219] : memref<1x64xf32, #tpu.memory_space<vmem>>, vector<1x64xf32>
    %cst_220 = arith.constant 9.99999974E-6 : f32
    %242 = vector.broadcast %cst_220 : f32 to vector<1x64xf32>
    %243 = arith.addf %240, %242 : vector<1x64xf32>
    %244 = math.rsqrt %243 : vector<1x64xf32>
    %245 = arith.mulf %241, %244 : vector<1x64xf32>
    %cst_221 = arith.constant dense<0.000000e+00> : vector<1x128xf32>
    %246 = tpu.matmul %245, %226, %cst_221 {dimension_numbers = #tpu.dot_dimension_numbers<[1], [0], [0], [1], [0, 0, 1, 1], [], []>} : vector<1x64xf32>, vector<64x128xf32>, vector<1x128xf32> -> vector<1x128xf32>
    %247 = vector.broadcast %246 : vector<1x128xf32> to vector<4x128xf32>
    %248 = arith.mulf %234, %247 : vector<4x128xf32>
    %c0_222 = arith.constant 0 : index
    %c0_223 = arith.constant 0 : index
    %249 = vector.load %arg32[%c0_222, %c0_223] : memref<1x64xf32, #tpu.memory_space<vmem>>, vector<1x64xf32>
    %cst_224 = arith.constant dense<0.000000e+00> : vector<1x128xf32>
    %250 = tpu.matmul %249, %226, %cst_224 {dimension_numbers = #tpu.dot_dimension_numbers<[1], [0], [0], [1], [0, 0, 1, 1], [], []>} : vector<1x64xf32>, vector<64x128xf32>, vector<1x128xf32> -> vector<1x128xf32>
    %251 = vector.broadcast %250 : vector<1x128xf32> to vector<4x128xf32>
    %252 = arith.addf %248, %251 : vector<4x128xf32>
    %cst_225 = arith.constant 0.000000e+00 : f32
    %253 = vector.broadcast %cst_225 : f32 to vector<4x128xf32>
    %254 = arith.maximumf %252, %253 : vector<4x128xf32>
    %c0_226 = arith.constant 0 : index
    %c0_227 = arith.constant 0 : index
    %c0_228 = arith.constant 0 : index
    %255 = vector.load %arg35[%c0_226, %c0_227, %c0_228] : memref<2x2x4xf32, #tpu.memory_space<vmem>>, vector<1x2x4xf32>
    %256 = vector.shape_cast %255 : vector<1x2x4xf32> to vector<2x4xf32>
    %cst_229 = arith.constant dense<0.000000e+00> : vector<2x128xf32>
    %257 = tpu.matmul %256, %254, %cst_229 {dimension_numbers = #tpu.dot_dimension_numbers<[1], [0], [0], [1], [0, 0, 1, 1], [], []>} : vector<2x4xf32>, vector<4x128xf32>, vector<2x128xf32> -> vector<2x128xf32>
    %c1_230 = arith.constant 1 : index
    %c0_231 = arith.constant 0 : index
    %c0_232 = arith.constant 0 : index
    %258 = vector.load %arg35[%c1_230, %c0_231, %c0_232] : memref<2x2x4xf32, #tpu.memory_space<vmem>>, vector<1x2x4xf32>
    %259 = vector.shape_cast %258 : vector<1x2x4xf32> to vector<2x4xf32>
    %cst_233 = arith.constant dense<0.000000e+00> : vector<2x128xf32>
    %260 = tpu.matmul %259, %254, %cst_233 {dimension_numbers = #tpu.dot_dimension_numbers<[1], [0], [0], [1], [0, 0, 1, 1], [], []>} : vector<2x4xf32>, vector<4x128xf32>, vector<2x128xf32> -> vector<2x128xf32>
    %261 = arith.maximumf %257, %260 : vector<2x128xf32>
    %c0_234 = arith.constant 0 : index
    %c0_235 = arith.constant 0 : index
    %c0_236 = arith.constant 0 : index
    %262 = vector.load %arg36[%c0_234, %c0_235, %c0_236] : memref<2x128x64xf32, #tpu.memory_space<vmem>>, vector<1x128x64xf32>
    %263 = vector.shape_cast %262 : vector<1x128x64xf32> to vector<128x64xf32>
    %cst_237 = arith.constant dense<0.000000e+00> : vector<2x64xf32>
    %264 = tpu.matmul %261, %263, %cst_237 {dimension_numbers = #tpu.dot_dimension_numbers<[1], [0], [0], [1], [0, 0, 1, 1], [], []>} : vector<2x128xf32>, vector<128x64xf32>, vector<2x64xf32> -> vector<2x64xf32>
    %c1_238 = arith.constant 1 : index
    %c0_239 = arith.constant 0 : index
    %c0_240 = arith.constant 0 : index
    %265 = vector.load %arg36[%c1_238, %c0_239, %c0_240] : memref<2x128x64xf32, #tpu.memory_space<vmem>>, vector<1x128x64xf32>
    %266 = vector.shape_cast %265 : vector<1x128x64xf32> to vector<128x64xf32>
    %cst_241 = arith.constant dense<0.000000e+00> : vector<2x64xf32>
    %267 = tpu.matmul %261, %266, %cst_241 {dimension_numbers = #tpu.dot_dimension_numbers<[1], [0], [0], [1], [0, 0, 1, 1], [], []>} : vector<2x128xf32>, vector<128x64xf32>, vector<2x64xf32> -> vector<2x64xf32>
    %268 = arith.maximumf %264, %267 : vector<2x64xf32>
    %c0_242 = arith.constant 0 : index
    %c0_243 = arith.constant 0 : index
    %269 = vector.load %arg37[%c0_242, %c0_243] : memref<64x64xf32, #tpu.memory_space<vmem>>, vector<64x64xf32>
    %cst_244 = arith.constant dense<0.000000e+00> : vector<2x64xf32>
    %270 = tpu.matmul %268, %269, %cst_244 {dimension_numbers = #tpu.dot_dimension_numbers<[1], [0], [0], [1], [0, 0, 1, 1], [], []>} : vector<2x64xf32>, vector<64x64xf32>, vector<2x64xf32> -> vector<2x64xf32>
    %c0_245 = arith.constant 0 : index
    %c0_246 = arith.constant 0 : index
    %271 = vector.load %arg38[%c0_245, %c0_246] : memref<1x64xf32, #tpu.memory_space<vmem>>, vector<1x64xf32>
    %272 = vector.broadcast %271 : vector<1x64xf32> to vector<2x64xf32>
    %273 = arith.addf %270, %272 : vector<2x64xf32>
    %cst_247 = arith.constant dense<0.000000e+00> : vector<64xf32>
    %274 = vector.multi_reduction <add>, %273, %cst_247 [0] : vector<2x64xf32> to vector<64xf32>
    %275 = vector.shape_cast %274 : vector<64xf32> to vector<1x64xf32>
    %cst_248 = arith.constant 5.000000e-01 : f32
    %276 = vector.broadcast %cst_248 : f32 to vector<1x64xf32>
    %277 = arith.mulf %275, %276 : vector<1x64xf32>
    %278 = vector.broadcast %277 : vector<1x64xf32> to vector<2x64xf32>
    %279 = arith.subf %273, %278 : vector<2x64xf32>
    %280 = arith.mulf %279, %279 : vector<2x64xf32>
    %cst_249 = arith.constant dense<0.000000e+00> : vector<64xf32>
    %281 = vector.multi_reduction <add>, %280, %cst_249 [0] : vector<2x64xf32> to vector<64xf32>
    %282 = vector.shape_cast %281 : vector<64xf32> to vector<1x64xf32>
    %cst_250 = arith.constant 5.000000e-01 : f32
    %283 = vector.broadcast %cst_250 : f32 to vector<1x64xf32>
    %284 = arith.mulf %282, %283 : vector<1x64xf32>
    %c0_251 = arith.constant 0 : index
    %c0_252 = arith.constant 0 : index
    %285 = vector.load %arg39[%c0_251, %c0_252] : memref<1x64xf32, #tpu.memory_space<vmem>>, vector<1x64xf32>
    %286 = vector.broadcast %285 : vector<1x64xf32> to vector<2x64xf32>
    %287 = arith.mulf %286, %279 : vector<2x64xf32>
    %cst_253 = arith.constant 9.99999974E-6 : f32
    %288 = vector.broadcast %cst_253 : f32 to vector<1x64xf32>
    %289 = arith.addf %284, %288 : vector<1x64xf32>
    %290 = math.rsqrt %289 : vector<1x64xf32>
    %291 = vector.broadcast %290 : vector<1x64xf32> to vector<2x64xf32>
    %292 = arith.mulf %287, %291 : vector<2x64xf32>
    %c0_254 = arith.constant 0 : index
    %c0_255 = arith.constant 0 : index
    %293 = vector.load %arg40[%c0_254, %c0_255] : memref<1x64xf32, #tpu.memory_space<vmem>>, vector<1x64xf32>
    %294 = vector.broadcast %293 : vector<1x64xf32> to vector<2x64xf32>
    %295 = arith.addf %292, %294 : vector<2x64xf32>
    %cst_256 = arith.constant 0.000000e+00 : f32
    %296 = vector.broadcast %cst_256 : f32 to vector<2x64xf32>
    %297 = arith.cmpf ogt, %295, %296 : vector<2x64xf32>
    %cst_257 = arith.constant 0.00999999977 : f32
    %298 = vector.broadcast %cst_257 : f32 to vector<2x64xf32>
    %299 = arith.mulf %298, %295 : vector<2x64xf32>
    %300 = arith.select %297, %295, %299 : vector<2x64xi1>, vector<2x64xf32>
    %c0_258 = arith.constant 0 : index
    %c0_259 = arith.constant 0 : index
    %301 = vector.load %arg41[%c0_258, %c0_259] : memref<64x36xf32, #tpu.memory_space<vmem>>, vector<64x36xf32>
    %cst_260 = arith.constant dense<0.000000e+00> : vector<2x36xf32>
    %302 = tpu.matmul %300, %301, %cst_260 {dimension_numbers = #tpu.dot_dimension_numbers<[1], [0], [0], [1], [0, 0, 1, 1], [], []>} : vector<2x64xf32>, vector<64x36xf32>, vector<2x36xf32> -> vector<2x36xf32>
    %c0_261 = arith.constant 0 : index
    %c0_262 = arith.constant 0 : index
    %303 = vector.load %arg42[%c0_261, %c0_262] : memref<1x36xf32, #tpu.memory_space<vmem>>, vector<1x36xf32>
    %304 = vector.broadcast %303 : vector<1x36xf32> to vector<2x36xf32>
    %305 = arith.addf %302, %304 : vector<2x36xf32>
    %cst_263 = arith.constant dense<0xFF800000> : vector<2xf32>
    %306 = vector.multi_reduction <maximumf>, %305, %cst_263 [1] : vector<2x36xf32> to vector<2xf32>
    %307 = vector.shape_cast %306 : vector<2xf32> to vector<2x1xf32>
    %308 = vector.broadcast %307 : vector<2x1xf32> to vector<2x36xf32>
    %309 = arith.subf %305, %308 : vector<2x36xf32>
    %310 = math.exp %309 : vector<2x36xf32>
    %cst_264 = arith.constant dense<0.000000e+00> : vector<2xf32>
    %311 = vector.multi_reduction <add>, %310, %cst_264 [1] : vector<2x36xf32> to vector<2xf32>
    %312 = vector.shape_cast %311 : vector<2xf32> to vector<2x1xf32>
    %313 = vector.broadcast %312 : vector<2x1xf32> to vector<2x36xf32>
    %314 = arith.divf %310, %313 : vector<2x36xf32>
    %c0_265 = arith.constant 0 : index
    %c0_266 = arith.constant 0 : index
    %315 = vector.load %arg43[%c0_265, %c0_266] : memref<2x36xf32, #tpu.memory_space<vmem>>, vector<2x36xf32>
    tpu.vector_store %arg43[%c0_265, %c0_266], %314 {strides = array<i32>} : memref<2x36xf32, #tpu.memory_space<vmem>>, vector<2x36xf32>,
    return
  }
}

</mosaic_0001>

<llo_original>
// kernel: recognition_forward.1
$region0: #{recognition_forward.1}
  #allocation0 [shape = 'u32[]', space=smem, size = 0x4, offset = 0x4, fixed_abs, tag = 'smem constant byte address 0x4 - core index']
  #allocation1 [shape = 'u32[144,128]{1,0:T(1,128)}', space=vmem, size = 0x12000, scoped, tag = 'internal scratch']
  %s0 = inlined_call_operand.smem [shape: u32[44], index: -1, kind: input, shape index: {}]
  %s1 = sld [smem:[%s0]]
  %s2 = scalar_lea.smem %s0, 1
  %s3 = sld [smem:[%s2]]
  %s4 = scalar_lea.smem %s0, 2
  %s5 = sld [smem:[%s4]]
  %s6 = scalar_lea.smem %s0, 3
  %s7 = sld [smem:[%s6]]
  %s8 = scalar_lea.smem %s0, 4
  %s9 = sld [smem:[%s8]]
  %s10 = scalar_lea.smem %s0, 5
  %s11 = sld [smem:[%s10]]
  %s12 = scalar_lea.smem %s0, 6
  %s13 = sld [smem:[%s12]]
  %s14 = scalar_lea.smem %s0, 7
  %s15 = sld [smem:[%s14]]
  %s16 = scalar_lea.smem %s0, 8
  %s17 = sld [smem:[%s16]]
  %s18 = scalar_lea.smem %s0, 9
  %s19 = sld [smem:[%s18]]
  %s20 = scalar_lea.smem %s0, 10
  %s21 = sld [smem:[%s20]]
  %s22 = scalar_lea.smem %s0, 11
  %s23 = sld [smem:[%s22]]
  %s24 = scalar_lea.smem %s0, 12
  %s25 = sld [smem:[%s24]]
  %s26 = scalar_lea.smem %s0, 13
  %s27 = sld [smem:[%s26]]
  %s28 = scalar_lea.smem %s0, 14
  %s29 = sld [smem:[%s28]]
  %s30 = scalar_lea.smem %s0, 15
  %s31 = sld [smem:[%s30]]
  %s32 = scalar_lea.smem %s0, 16
  %s33 = sld [smem:[%s32]]
  %s34 = scalar_lea.smem %s0, 17
  %s35 = sld [smem:[%s34]]
  %s36 = scalar_lea.smem %s0, 18
  %s37 = sld [smem:[%s36]]
  %s38 = scalar_lea.smem %s0, 19
  %s39 = sld [smem:[%s38]]
  %s40 = scalar_lea.smem %s0, 20
  %s41 = sld [smem:[%s40]]
  %s42 = scalar_lea.smem %s0, 21
  %s43 = sld [smem:[%s42]]
  %s44 = scalar_lea.smem %s0, 22
  %s45 = sld [smem:[%s44]]
  %s46 = scalar_lea.smem %s0, 23
  %s47 = sld [smem:[%s46]]
  %s48 = scalar_lea.smem %s0, 24
  %s49 = sld [smem:[%s48]]
  %s50 = scalar_lea.smem %s0, 25
  %s51 = sld [smem:[%s50]]
  %s52 = scalar_lea.smem %s0, 26
  %s53 = sld [smem:[%s52]]
  %s54 = scalar_lea.smem %s0, 27
  %s55 = sld [smem:[%s54]]
  %s56 = scalar_lea.smem %s0, 28
  %s57 = sld [smem:[%s56]]
  %s58 = scalar_lea.smem %s0, 29
  %s59 = sld [smem:[%s58]]
  %s60 = scalar_lea.smem %s0, 30
  %s61 = sld [smem:[%s60]]
  %s62 = scalar_lea.smem %s0, 31
  %s63 = sld [smem:[%s62]]
  %s64 = scalar_lea.smem %s0, 32
  %s65 = sld [smem:[%s64]]
  %s66 = scalar_lea.smem %s0, 33
  %s67 = sld [smem:[%s66]]
  %s68 = scalar_lea.smem %s0, 34
  %s69 = sld [smem:[%s68]]
  %s70 = scalar_lea.smem %s0, 35
  %s71 = sld [smem:[%s70]]
  %s72 = scalar_lea.smem %s0, 36
  %s73 = sld [smem:[%s72]]
  %s74 = scalar_lea.smem %s0, 37
  %s75 = sld [smem:[%s74]]
  %s76 = scalar_lea.smem %s0, 38
  %s77 = sld [smem:[%s76]]
  %s78 = scalar_lea.smem %s0, 39
  %s79 = sld [smem:[%s78]]
  %s80 = scalar_lea.smem %s0, 40
  %s81 = sld [smem:[%s80]]
  %s82 = scalar_lea.smem %s0, 41
  %s83 = sld [smem:[%s82]]
  %s84 = scalar_lea.smem %s0, 42
  %s85 = sld [smem:[%s84]]
  %s86 = scalar_lea.smem %s0, 43
  %s87 = sld [smem:[%s86]]
  %s88 = sld [smem:[#allocation0]]
  $region310: #{recognition_forward.1} parent=0
    _
  %s90 = ssub.s32 1, %s88
  %s91 = scalar_select 0, %s90, %s88
  $region1: #{recognition_forward.1} parent=0
    #allocation2 [shape = 'u8[16384]{0}', space=vmem, size = 0x4000, scoped, tag = 'input window, operand 0, single buffered']
    #allocation3 [shape = 's32[1]{0}', space=sflag, size = 0x4, scoped, tag = 'scoped memory for recognition_forward.1']
    #allocation4 [shape = 's32[1]{0}', space=sflag, size = 0x4, scoped, tag = 'scoped memory for recognition_forward.1']
    #allocation5 [shape = 'u8[49152]{0}', space=vmem, size = 0xc000, scoped, tag = 'input window, operand 1, single buffered']
    #allocation6 [shape = 's32[1]{0}', space=sflag, size = 0x4, scoped, tag = 'scoped memory for recognition_forward.1']
    #allocation7 [shape = 'u8[49152]{0}', space=vmem, size = 0xc000, scoped, tag = 'input window, operand 2, single buffered']
    #allocation8 [shape = 'u8[1024]{0}', space=vmem, size = 0x400, scoped, tag = 'input window, operand 3, single buffered']
    #allocation9 [shape = 's32[1]{0}', space=sflag, size = 0x4, scoped, tag = 'scoped memory for recognition_forward.1']
    #allocation10 [shape = 'u8[512]{0}', space=vmem, size = 0x400, scoped, tag = 'input window, operand 4, single buffered']
    #allocation11 [shape = 'u8[512]{0}', space=vmem, size = 0x400, scoped, tag = 'input window, operand 5, single buffered']
    #allocation12 [shape = 's32[1]{0}', space=sflag, size = 0x4, scoped, tag = 'scoped memory for recognition_forward.1']
    #allocation13 [shape = 'u8[16384]{0}', space=vmem, size = 0x4000, scoped, tag = 'input window, operand 7, single buffered']
    #allocation14 [shape = 'u8[16384]{0}', space=vmem, size = 0x4000, scoped, tag = 'input window, operand 8, single buffered']
    #allocation15 [shape = 's32[1]{0}', space=sflag, size = 0x4, scoped, tag = 'scoped memory for recognition_forward.1']
    #allocation16 [shape = 'u8[24576]{0}', space=vmem, size = 0x6000, scoped, tag = 'input window, operand 10, single buffered']
    #allocation17 [shape = 'u8[1024]{0}', space=vmem, size = 0x400, scoped, tag = 'input window, operand 12, single buffered']
    #allocation18 [shape = 's32[1]{0}', space=sflag, size = 0x4, scoped, tag = 'scoped memory for recognition_forward.1']
    #allocation19 [shape = 'u8[512]{0}', space=vmem, size = 0x400, scoped, tag = 'input window, operand 13, single buffered']
    #allocation20 [shape = 'u8[512]{0}', space=vmem, size = 0x400, scoped, tag = 'input window, operand 14, single buffered']
    #allocation21 [shape = 's32[1]{0}', space=sflag, size = 0x4, scoped, tag = 'scoped memory for recognition_forward.1']
    #allocation22 [shape = 'u8[32768]{0}', space=vmem, size = 0x8000, scoped, tag = 'input window, operand 16, single buffered']
    #allocation23 [shape = 'u8[8192]{0}', space=vmem, size = 0x2000, scoped, tag = 'input window, operand 17, single buffered']
    #allocation24 [shape = 's32[1]{0}', space=sflag, size = 0x4, scoped, tag = 'scoped memory for recognition_forward.1']
    #allocation25 [shape = 'u8[12288]{0}', space=vmem, size = 0x3000, scoped, tag = 'input window, operand 19, single buffered']
    #allocation26 [shape = 'u8[196608]{0}', space=vmem, size = 0x30000, scoped, tag = 'input window, operand 20, single buffered']
    #allocation27 [shape = 's32[1]{0}', space=sflag, size = 0x4, scoped, tag = 'scoped memory for recognition_forward.1']
    #allocation28 [shape = 'u8[512]{0}', space=vmem, size = 0x400, scoped, tag = 'input window, operand 21, single buffered']
    #allocation29 [shape = 'u8[512]{0}', space=vmem, size = 0x400, scoped, tag = 'input window, operand 22, single buffered']
    #allocation30 [shape = 's32[1]{0}', space=sflag, size = 0x4, scoped, tag = 'scoped memory for recognition_forward.1']
    #allocation31 [shape = 'u8[512]{0}', space=vmem, size = 0x400, scoped, tag = 'input window, operand 23, single buffered']
    #allocation32 [shape = 'u8[16384]{0}', space=vmem, size = 0x4000, scoped, tag = 'input window, operand 25, single buffered']
    #allocation33 [shape = 's32[1]{0}', space=sflag, size = 0x4, scoped, tag = 'scoped memory for recognition_forward.1']
    #allocation34 [shape = 'u8[4096]{0}', space=vmem, size = 0x1000, scoped, tag = 'input window, operand 26, single buffered']
    #allocation35 [shape = 'u8[98304]{0}', space=vmem, size = 0x18000, scoped, tag = 'input window, operand 29, single buffered']
    #allocation36 [shape = 's32[1]{0}', space=sflag, size = 0x4, scoped, tag = 'scoped memory for recognition_forward.1']
    #allocation37 [shape = 'u8[512]{0}', space=vmem, size = 0x400, scoped, tag = 'input window, operand 30, single buffered']
    #allocation38 [shape = 'u8[512]{0}', space=vmem, size = 0x400, scoped, tag = 'input window, operand 31, single buffered']
    #allocation39 [shape = 's32[1]{0}', space=sflag, size = 0x4, scoped, tag = 'scoped memory for recognition_forward.1']
    #allocation40 [shape = 'u8[512]{0}', space=vmem, size = 0x400, scoped, tag = 'input window, operand 32, single buffered']
    #allocation41 [shape = 'u8[32768]{0}', space=vmem, size = 0x8000, scoped, tag = 'input window, operand 34, single buffered']
    #allocation42 [shape = 's32[1]{0}', space=sflag, size = 0x4, scoped, tag = 'scoped memory for recognition_forward.1']
    #allocation43 [shape = 'u8[2048]{0}', space=vmem, size = 0x800, scoped, tag = 'input window, operand 35, single buffered']
    #allocation44 [shape = 'u8[32768]{0}', space=vmem, size = 0x8000, scoped, tag = 'input window, operand 37, single buffered']
    #allocation45 [shape = 's32[1]{0}', space=sflag, size = 0x4, scoped, tag = 'scoped memory for recognition_forward.1']
    #allocation46 [shape = 'u8[512]{0}', space=vmem, size = 0x400, scoped, tag = 'input window, operand 38, single buffered']
    #allocation47 [shape = 'u8[512]{0}', space=vmem, size = 0x400, scoped, tag = 'input window, operand 39, single buffered']
    #allocation48 [shape = 's32[1]{0}', space=sflag, size = 0x4, scoped, tag = 'scoped memory for recognition_forward.1']
    #allocation49 [shape = 'u8[512]{0}', space=vmem, size = 0x400, scoped, tag = 'input window, operand 40, single buffered']
    #allocation50 [shape = 'u8[512]{0}', space=vmem, size = 0x400, scoped, tag = 'input window, operand 42, single buffered']
    #allocation51 [shape = 's32[1]{0}', space=sflag, size = 0x4, scoped, tag = 'scoped memory for recognition_forward.1']
    #allocation52 [shape = 'u8[1024]{0}', space=vmem, size = 0x400, scoped, tag = 'output window, operand 0, single buffered']
    %92 = vsyncpa [#allocation3], 0
    %93 = vsyncpa [#allocation6], 0
    %94 = vsyncpa [#allocation9], 0
    %95 = vsyncpa [#allocation12], 0
    %96 = vsyncpa [#allocation15], 0
    %97 = vsyncpa [#allocation18], 0
    %98 = vsyncpa [#allocation21], 0
    %99 = vsyncpa [#allocation24], 0
    %100 = vsyncpa [#allocation27], 0
    %101 = vsyncpa [#allocation30], 0
    %102 = vsyncpa [#allocation33], 0
    %103 = vsyncpa [#allocation36], 0
    %104 = vsyncpa [#allocation39], 0
    %105 = vsyncpa [#allocation42], 0
    %106 = vsyncpa [#allocation45], 0
    %107 = vsyncpa [#allocation48], 0
    %108 = vsyncpa [#allocation51], 0
    %109 = vsyncpa [#allocation4], 0
    // Predicated region
    $region2: #{recognition_forward.1} parent=1 // pred_check
      _
    $region3: #{recognition_forward.1} parent=1 // pred_check_branch
      %111 = sbr.rel (0) target = $region5
    $region4: #{recognition_forward.1} parent=1 // pred_region
      %s113 = ssub.s32 512, 512
      %114 = vsyncadd [#allocation3], %s113
      %s115 = sshll.u32 [#allocation2], 4
      %s116 = int_to_ptr.vmem [resolvable:$true] %s115
      %121 = dma.hbm_to_vmem [thread:$0]  %s1, 512, %s116, [#allocation3], 128, 128, 8
    $region5: #{recognition_forward.1} parent=1 // pred_fallthru
      _
    // Predicated region
    $region6: #{recognition_forward.1} parent=1 // pred_check
      _
    $region7: #{recognition_forward.1} parent=1 // pred_check_branch
      %123 = sbr.rel (0) target = $region9
    $region8: #{recognition_forward.1} parent=1 // pred_region
      %s125 = ssub.s32 1536, 1536
      %126 = vsyncadd [#allocation6], %s125
      %s127 = sshll.u32 [#allocation5], 4
      %s128 = int_to_ptr.vmem [resolvable:$true] %s127
      %133 = dma.hbm_to_vmem [thread:$0]  %s3, 1536, %s128, [#allocation6], 128, 128, 8
    $region9: #{recognition_forward.1} parent=1 // pred_fallthru
      _
    // Predicated region
    $region10: #{recognition_forward.1} parent=1 // pred_check
      _
    $region11: #{recognition_forward.1} parent=1 // pred_check_branch
      %135 = sbr.rel (0) target = $region13
    $region12: #{recognition_forward.1} parent=1 // pred_region
      %s137 = ssub.s32 1536, 1536
      %138 = vsyncadd [#allocation6], %s137
      %s139 = sshll.u32 [#allocation7], 4
      %s140 = int_to_ptr.vmem [resolvable:$true] %s139
      %145 = dma.hbm_to_vmem [thread:$0]  %s5, 1536, %s140, [#allocation6], 256, 256, 16
    $region13: #{recognition_forward.1} parent=1 // pred_fallthru
      _
    // Predicated region
    $region14: #{recognition_forward.1} parent=1 // pred_check
      _
    $region15: #{recognition_forward.1} parent=1 // pred_check_branch
      %147 = sbr.rel (0) target = $region17
    $region16: #{recognition_forward.1} parent=1 // pred_region
      %s149 = ssub.s32 32, 32
      %150 = vsyncadd [#allocation9], %s149
      %s152 = sshll.u32 [#allocation8], 4
      %s153 = int_to_ptr.vmem [resolvable:$true] %s152
      %155 = dma.hbm_to_vmem [thread:$0]  %s7, 32, %s153, [#allocation9]
    $region17: #{recognition_forward.1} parent=1 // pred_fallthru
      _
    // Predicated region
    $region18: #{recognition_forward.1} parent=1 // pred_check
      _
    $region19: #{recognition_forward.1} parent=1 // pred_check_branch
      %157 = sbr.rel (0) target = $region21
    $region20: #{recognition_forward.1} parent=1 // pred_region
      %s159 = ssub.s32 16, 16
      %160 = vsyncadd [#allocation9], %s159
      %s162 = sshll.u32 [#allocation10], 4
      %s163 = int_to_ptr.vmem [resolvable:$true] %s162
      %165 = dma.hbm_to_vmem [thread:$0]  %s9, 16, %s163, [#allocation9]
    $region21: #{recognition_forward.1} parent=1 // pred_fallthru
      _
    // Predicated region
    $region22: #{recognition_forward.1} parent=1 // pred_check
      _
    $region23: #{recognition_forward.1} parent=1 // pred_check_branch
      %167 = sbr.rel (0) target = $region25
    $region24: #{recognition_forward.1} parent=1 // pred_region
      %s169 = ssub.s32 16, 16
      %170 = vsyncadd [#allocation12], %s169
      %s172 = sshll.u32 [#allocation11], 4
      %s173 = int_to_ptr.vmem [resolvable:$true] %s172
      %175 = dma.hbm_to_vmem [thread:$0]  %s11, 16, %s173, [#allocation12]
    $region25: #{recognition_forward.1} parent=1 // pred_fallthru
      _
    // Predicated region
    $region26: #{recognition_forward.1} parent=1 // pred_check
      _
    $region27: #{recognition_forward.1} parent=1 // pred_check_branch
      %177 = sbr.rel (0) target = $region29
    $region28: #{recognition_forward.1} parent=1 // pred_region
      _
    $region29: #{recognition_forward.1} parent=1 // pred_fallthru
      _
    // Predicated region
    $region30: #{recognition_forward.1} parent=1 // pred_check
      _
    $region31: #{recognition_forward.1} parent=1 // pred_check_branch
      %179 = sbr.rel (0) target = $region33
    $region32: #{recognition_forward.1} parent=1 // pred_region
      %s181 = ssub.s32 512, 512
      %182 = vsyncadd [#allocation12], %s181
      %s183 = sshll.u32 [#allocation13], 4
      %s184 = int_to_ptr.vmem [resolvable:$true] %s183
      %189 = dma.hbm_to_vmem [thread:$0]  %s15, 512, %s184, [#allocation12], 256, 256, 16
    $region33: #{recognition_forward.1} parent=1 // pred_fallthru
      _
    // Predicated region
    $region34: #{recognition_forward.1} parent=1 // pred_check
      _
    $region35: #{recognition_forward.1} parent=1 // pred_check_branch
      %191 = sbr.rel (0) target = $region37
    $region36: #{recognition_forward.1} parent=1 // pred_region
      %s193 = ssub.s32 512, 512
      %194 = vsyncadd [#allocation15], %s193
      %s195 = sshll.u32 [#allocation14], 4
      %s196 = int_to_ptr.vmem [resolvable:$true] %s195
      %201 = dma.hbm_to_vmem [thread:$0]  %s17, 512, %s196, [#allocation15], 128, 128, 8
    $region37: #{recognition_forward.1} parent=1 // pred_fallthru
      _
    // Predicated region
    $region38: #{recognition_forward.1} parent=1 // pred_check
      _
    $region39: #{recognition_forward.1} parent=1 // pred_check_branch
      %203 = sbr.rel (0) target = $region41
    $region40: #{recognition_forward.1} parent=1 // pred_region
      _
    $region41: #{recognition_forward.1} parent=1 // pred_fallthru
      _
    // Predicated region
    $region42: #{recognition_forward.1} parent=1 // pred_check
      _
    $region43: #{recognition_forward.1} parent=1 // pred_check_branch
      %205 = sbr.rel (0) target = $region45
    $region44: #{recognition_forward.1} parent=1 // pred_region
      %s207 = ssub.s32 768, 768
      %208 = vsyncadd [#allocation15], %s207
      %s209 = sshll.u32 [#allocation16], 4
      %s210 = int_to_ptr.vmem [resolvable:$true] %s209
      %215 = dma.hbm_to_vmem [thread:$0]  %s21, 768, %s210, [#allocation15], 128, 128, 8
    $region45: #{recognition_forward.1} parent=1 // pred_fallthru
      _
    // Predicated region
    $region46: #{recognition_forward.1} parent=1 // pred_check
      _
    $region47: #{recognition_forward.1} parent=1 // pred_check_branch
      %217 = sbr.rel (0) target = $region49
    $region48: #{recognition_forward.1} parent=1 // pred_region
      _
    $region49: #{recognition_forward.1} parent=1 // pred_fallthru
      _
    // Predicated region
    $region50: #{recognition_forward.1} parent=1 // pred_check
      _
    $region51: #{recognition_forward.1} parent=1 // pred_check_branch
      %219 = sbr.rel (0) target = $region53
    $region52: #{recognition_forward.1} parent=1 // pred_region
      %s221 = ssub.s32 32, 32
      %222 = vsyncadd [#allocation18], %s221
      %s224 = sshll.u32 [#allocation17], 4
      %s225 = int_to_ptr.vmem [resolvable:$true] %s224
      %227 = dma.hbm_to_vmem [thread:$0]  %s25, 32, %s225, [#allocation18]
    $region53: #{recognition_forward.1} parent=1 // pred_fallthru
      _
    // Predicated region
    $region54: #{recognition_forward.1} parent=1 // pred_check
      _
    $region55: #{recognition_forward.1} parent=1 // pred_check_branch
      %229 = sbr.rel (0) target = $region57
    $region56: #{recognition_forward.1} parent=1 // pred_region
      %s231 = ssub.s32 16, 16
      %232 = vsyncadd [#allocation18], %s231
      %s234 = sshll.u32 [#allocation19], 4
      %s235 = int_to_ptr.vmem [resolvable:$true] %s234
      %237 = dma.hbm_to_vmem [thread:$0]  %s27, 16, %s235, [#allocation18]
    $region57: #{recognition_forward.1} parent=1 // pred_fallthru
      _
    // Predicated region
    $region58: #{recognition_forward.1} parent=1 // pred_check
      _
    $region59: #{recognition_forward.1} parent=1 // pred_check_branch
      %239 = sbr.rel (0) target = $region61
    $region60: #{recognition_forward.1} parent=1 // pred_region
      %s241 = ssub.s32 16, 16
      %242 = vsyncadd [#allocation21], %s241
      %s244 = sshll.u32 [#allocation20], 4
      %s245 = int_to_ptr.vmem [resolvable:$true] %s244
      %247 = dma.hbm_to_vmem [thread:$0]  %s29, 16, %s245, [#allocation21]
    $region61: #{recognition_forward.1} parent=1 // pred_fallthru
      _
    // Predicated region
    $region62: #{recognition_forward.1} parent=1 // pred_check
      _
    $region63: #{recognition_forward.1} parent=1 // pred_check_branch
      %249 = sbr.rel (0) target = $region65
    $region64: #{recognition_forward.1} parent=1 // pred_region
      _
    $region65: #{recognition_forward.1} parent=1 // pred_fallthru
      _
    // Predicated region
    $region66: #{recognition_forward.1} parent=1 // pred_check
      _
    $region67: #{recognition_forward.1} parent=1 // pred_check_branch
      %251 = sbr.rel (0) target = $region69
    $region68: #{recognition_forward.1} parent=1 // pred_region
      %s253 = ssub.s32 1024, 1024
      %254 = vsyncadd [#allocation21], %s253
      %s255 = sshll.u32 [#allocation22], 4
      %s256 = int_to_ptr.vmem [resolvable:$true] %s255
      %261 = dma.hbm_to_vmem [thread:$0]  %s33, 1024, %s256, [#allocation21], 256, 256, 16
    $region69: #{recognition_forward.1} parent=1 // pred_fallthru
      _
    // Predicated region
    $region70: #{recognition_forward.1} parent=1 // pred_check
      _
    $region71: #{recognition_forward.1} parent=1 // pred_check_branch
      %263 = sbr.rel (0) target = $region73
    $region72: #{recognition_forward.1} parent=1 // pred_region
      %s265 = ssub.s32 256, 256
      %266 = vsyncadd [#allocation24], %s265
      %s267 = sshll.u32 [#allocation23], 4
      %s268 = int_to_ptr.vmem [resolvable:$true] %s267
      %273 = dma.hbm_to_vmem [thread:$0]  %s35, 256, %s268, [#allocation24], 128, 128, 8
    $region73: #{recognition_forward.1} parent=1 // pred_fallthru
      _
    // Predicated region
    $region74: #{recognition_forward.1} parent=1 // pred_check
      _
    $region75: #{recognition_forward.1} parent=1 // pred_check_branch
      %275 = sbr.rel (0) target = $region77
    $region76: #{recognition_forward.1} parent=1 // pred_region
      _
    $region77: #{recognition_forward.1} parent=1 // pred_fallthru
      _
    // Predicated region
    $region78: #{recognition_forward.1} parent=1 // pred_check
      _
    $region79: #{recognition_forward.1} parent=1 // pred_check_branch
      %277 = sbr.rel (0) target = $region81
    $region80: #{recognition_forward.1} parent=1 // pred_region
      %s279 = ssub.s32 384, 384
      %280 = vsyncadd [#allocation24], %s279
      %s281 = sshll.u32 [#allocation25], 4
      %s282 = int_to_ptr.vmem [resolvable:$true] %s281
      %287 = dma.hbm_to_vmem [thread:$0]  %s39, 384, %s282, [#allocation24], 128, 128, 8
    $region81: #{recognition_forward.1} parent=1 // pred_fallthru
      _
    // Predicated region
    $region82: #{recognition_forward.1} parent=1 // pred_check
      _
    $region83: #{recognition_forward.1} parent=1 // pred_check_branch
      %289 = sbr.rel (0) target = $region85
    $region84: #{recognition_forward.1} parent=1 // pred_region
      %s291 = ssub.s32 6144, 6144
      %292 = vsyncadd [#allocation27], %s291
      %s293 = sshll.u32 [#allocation26], 4
      %s294 = int_to_ptr.vmem [resolvable:$true] %s293
      %299 = dma.hbm_to_vmem [thread:$0]  %s41, 6144, %s294, [#allocation27], 128, 128, 8
    $region85: #{recognition_forward.1} parent=1 // pred_fallthru
      _
    // Predicated region
    $region86: #{recognition_forward.1} parent=1 // pred_check
      _
    $region87: #{recognition_forward.1} parent=1 // pred_check_branch
      %301 = sbr.rel (0) target = $region89
    $region88: #{recognition_forward.1} parent=1 // pred_region
      %s303 = ssub.s32 16, 16
      %304 = vsyncadd [#allocation27], %s303
      %s306 = sshll.u32 [#allocation28], 4
      %s307 = int_to_ptr.vmem [resolvable:$true] %s306
      %309 = dma.hbm_to_vmem [thread:$0]  %s43, 16, %s307, [#allocation27]
    $region89: #{recognition_forward.1} parent=1 // pred_fallthru
      _
    // Predicated region
    $region90: #{recognition_forward.1} parent=1 // pred_check
      _
    $region91: #{recognition_forward.1} parent=1 // pred_check_branch
      %311 = sbr.rel (0) target = $region93
    $region92: #{recognition_forward.1} parent=1 // pred_region
      %s313 = ssub.s32 16, 16
      %314 = vsyncadd [#allocation30], %s313
      %s316 = sshll.u32 [#allocation29], 4
      %s317 = int_to_ptr.vmem [resolvable:$true] %s316
      %319 = dma.hbm_to_vmem [thread:$0]  %s45, 16, %s317, [#allocation30]
    $region93: #{recognition_forward.1} parent=1 // pred_fallthru
      _
    // Predicated region
    $region94: #{recognition_forward.1} parent=1 // pred_check
      _
    $region95: #{recognition_forward.1} parent=1 // pred_check_branch
      %321 = sbr.rel (0) target = $region97
    $region96: #{recognition_forward.1} parent=1 // pred_region
      %s323 = ssub.s32 16, 16
      %324 = vsyncadd [#allocation30], %s323
      %s326 = sshll.u32 [#allocation31], 4
      %s327 = int_to_ptr.vmem [resolvable:$true] %s326
      %329 = dma.hbm_to_vmem [thread:$0]  %s47, 16, %s327, [#allocation30]
    $region97: #{recognition_forward.1} parent=1 // pred_fallthru
      _
    // Predicated region
    $region98: #{recognition_forward.1} parent=1 // pred_check
      _
    $region99: #{recognition_forward.1} parent=1 // pred_check_branch
      %331 = sbr.rel (0) target = $region101
    $region100: #{recognition_forward.1} parent=1 // pred_region
      _
    $region101: #{recognition_forward.1} parent=1 // pred_fallthru
      _
    // Predicated region
    $region102: #{recognition_forward.1} parent=1 // pred_check
      _
    $region103: #{recognition_forward.1} parent=1 // pred_check_branch
      %333 = sbr.rel (0) target = $region105
    $region104: #{recognition_forward.1} parent=1 // pred_region
      %s335 = ssub.s32 512, 512
      %336 = vsyncadd [#allocation33], %s335
      %s337 = sshll.u32 [#allocation32], 4
      %s338 = int_to_ptr.vmem [resolvable:$true] %s337
      %343 = dma.hbm_to_vmem [thread:$0]  %s51, 512, %s338, [#allocation33], 128, 128, 8
    $region105: #{recognition_forward.1} parent=1 // pred_fallthru
      _
    // Predicated region
    $region106: #{recognition_forward.1} parent=1 // pred_check
      _
    $region107: #{recognition_forward.1} parent=1 // pred_check_branch
      %345 = sbr.rel (0) target = $region109
    $region108: #{recognition_forward.1} parent=1 // pred_region
      %s347 = ssub.s32 128, 128
      %348 = vsyncadd [#allocation33], %s347
      %s349 = sshll.u32 [#allocation34], 4
      %s350 = int_to_ptr.vmem [resolvable:$true] %s349
      %355 = dma.hbm_to_vmem [thread:$0]  %s53, 128, %s350, [#allocation33], 64, 64, 4
    $region109: #{recognition_forward.1} parent=1 // pred_fallthru
      _
    // Predicated region
    $region110: #{recognition_forward.1} parent=1 // pred_check
      _
    $region111: #{recognition_forward.1} parent=1 // pred_check_branch
      %357 = sbr.rel (0) target = $region113
    $region112: #{recognition_forward.1} parent=1 // pred_region
      _
    $region113: #{recognition_forward.1} parent=1 // pred_fallthru
      _
    // Predicated region
    $region114: #{recognition_forward.1} parent=1 // pred_check
      _
    $region115: #{recognition_forward.1} parent=1 // pred_check_branch
      %359 = sbr.rel (0) target = $region117
    $region116: #{recognition_forward.1} parent=1 // pred_region
      _
    $region117: #{recognition_forward.1} parent=1 // pred_fallthru
      _
    // Predicated region
    $region118: #{recognition_forward.1} parent=1 // pred_check
      _
    $region119: #{recognition_forward.1} parent=1 // pred_check_branch
      %361 = sbr.rel (0) target = $region121
    $region120: #{recognition_forward.1} parent=1 // pred_region
      %s363 = ssub.s32 3072, 3072
      %364 = vsyncadd [#allocation36], %s363
      %s365 = sshll.u32 [#allocation35], 4
      %s366 = int_to_ptr.vmem [resolvable:$true] %s365
      %371 = dma.hbm_to_vmem [thread:$0]  %s59, 3072, %s366, [#allocation36], 128, 128, 8
    $region121: #{recognition_forward.1} parent=1 // pred_fallthru
      _
    // Predicated region
    $region122: #{recognition_forward.1} parent=1 // pred_check
      _
    $region123: #{recognition_forward.1} parent=1 // pred_check_branch
      %373 = sbr.rel (0) target = $region125
    $region124: #{recognition_forward.1} parent=1 // pred_region
      %s375 = ssub.s32 16, 16
      %376 = vsyncadd [#allocation36], %s375
      %s378 = sshll.u32 [#allocation37], 4
      %s379 = int_to_ptr.vmem [resolvable:$true] %s378
      %381 = dma.hbm_to_vmem [thread:$0]  %s61, 16, %s379, [#allocation36]
    $region125: #{recognition_forward.1} parent=1 // pred_fallthru
      _
    // Predicated region
    $region126: #{recognition_forward.1} parent=1 // pred_check
      _
    $region127: #{recognition_forward.1} parent=1 // pred_check_branch
      %383 = sbr.rel (0) target = $region129
    $region128: #{recognition_forward.1} parent=1 // pred_region
      %s385 = ssub.s32 16, 16
      %386 = vsyncadd [#allocation39], %s385
      %s388 = sshll.u32 [#allocation38], 4
      %s389 = int_to_ptr.vmem [resolvable:$true] %s388
      %391 = dma.hbm_to_vmem [thread:$0]  %s63, 16, %s389, [#allocation39]
    $region129: #{recognition_forward.1} parent=1 // pred_fallthru
      _
    // Predicated region
    $region130: #{recognition_forward.1} parent=1 // pred_check
      _
    $region131: #{recognition_forward.1} parent=1 // pred_check_branch
      %393 = sbr.rel (0) target = $region133
    $region132: #{recognition_forward.1} parent=1 // pred_region
      %s395 = ssub.s32 16, 16
      %396 = vsyncadd [#allocation39], %s395
      %s398 = sshll.u32 [#allocation40], 4
      %s399 = int_to_ptr.vmem [resolvable:$true] %s398
      %401 = dma.hbm_to_vmem [thread:$0]  %s65, 16, %s399, [#allocation39]
    $region133: #{recognition_forward.1} parent=1 // pred_fallthru
      _
    // Predicated region
    $region134: #{recognition_forward.1} parent=1 // pred_check
      _
    $region135: #{recognition_forward.1} parent=1 // pred_check_branch
      %403 = sbr.rel (0) target = $region137
    $region136: #{recognition_forward.1} parent=1 // pred_region
      _
    $region137: #{recognition_forward.1} parent=1 // pred_fallthru
      _
    // Predicated region
    $region138: #{recognition_forward.1} parent=1 // pred_check
      _
    $region139: #{recognition_forward.1} parent=1 // pred_check_branch
      %405 = sbr.rel (0) target = $region141
    $region140: #{recognition_forward.1} parent=1 // pred_region
      %s407 = ssub.s32 1024, 1024
      %408 = vsyncadd [#allocation42], %s407
      %s409 = sshll.u32 [#allocation41], 4
      %s410 = int_to_ptr.vmem [resolvable:$true] %s409
      %415 = dma.hbm_to_vmem [thread:$0]  %s69, 1024, %s410, [#allocation42], 128, 128, 8
    $region141: #{recognition_forward.1} parent=1 // pred_fallthru
      _
    // Predicated region
    $region142: #{recognition_forward.1} parent=1 // pred_check
      _
    $region143: #{recognition_forward.1} parent=1 // pred_check_branch
      %417 = sbr.rel (0) target = $region145
    $region144: #{recognition_forward.1} parent=1 // pred_region
      %s419 = ssub.s32 64, 64
      %420 = vsyncadd [#allocation42], %s419
      %s421 = sshll.u32 [#allocation43], 4
      %s422 = int_to_ptr.vmem [resolvable:$true] %s421
      %427 = dma.hbm_to_vmem [thread:$0]  %s71, 64, %s422, [#allocation42], 32, 32, 2
    $region145: #{recognition_forward.1} parent=1 // pred_fallthru
      _
    // Predicated region
    $region146: #{recognition_forward.1} parent=1 // pred_check
      _
    $region147: #{recognition_forward.1} parent=1 // pred_check_branch
      %429 = sbr.rel (0) target = $region149
    $region148: #{recognition_forward.1} parent=1 // pred_region
      _
    $region149: #{recognition_forward.1} parent=1 // pred_fallthru
      _
    // Predicated region
    $region150: #{recognition_forward.1} parent=1 // pred_check
      _
    $region151: #{recognition_forward.1} parent=1 // pred_check_branch
      %431 = sbr.rel (0) target = $region153
    $region152: #{recognition_forward.1} parent=1 // pred_region
      %s433 = ssub.s32 1024, 1024
      %434 = vsyncadd [#allocation45], %s433
      %s435 = sshll.u32 [#allocation44], 4
      %s436 = int_to_ptr.vmem [resolvable:$true] %s435
      %441 = dma.hbm_to_vmem [thread:$0]  %s75, 1024, %s436, [#allocation45], 128, 128, 8
    $region153: #{recognition_forward.1} parent=1 // pred_fallthru
      _
    // Predicated region
    $region154: #{recognition_forward.1} parent=1 // pred_check
      _
    $region155: #{recognition_forward.1} parent=1 // pred_check_branch
      %443 = sbr.rel (0) target = $region157
    $region156: #{recognition_forward.1} parent=1 // pred_region
      %s445 = ssub.s32 16, 16
      %446 = vsyncadd [#allocation45], %s445
      %s448 = sshll.u32 [#allocation46], 4
      %s449 = int_to_ptr.vmem [resolvable:$true] %s448
      %451 = dma.hbm_to_vmem [thread:$0]  %s77, 16, %s449, [#allocation45]
    $region157: #{recognition_forward.1} parent=1 // pred_fallthru
      _
    // Predicated region
    $region158: #{recognition_forward.1} parent=1 // pred_check
      _
    $region159: #{recognition_forward.1} parent=1 // pred_check_branch
      %453 = sbr.rel (0) target = $region161
    $region160: #{recognition_forward.1} parent=1 // pred_region
      %s455 = ssub.s32 16, 16
      %456 = vsyncadd [#allocation48], %s455
      %s458 = sshll.u32 [#allocation47], 4
      %s459 = int_to_ptr.vmem [resolvable:$true] %s458
      %461 = dma.hbm_to_vmem [thread:$0]  %s79, 16, %s459, [#allocation48]
    $region161: #{recognition_forward.1} parent=1 // pred_fallthru
      _
    // Predicated region
    $region162: #{recognition_forward.1} parent=1 // pred_check
      _
    $region163: #{recognition_forward.1} parent=1 // pred_check_branch
      %463 = sbr.rel (0) target = $region165
    $region164: #{recognition_forward.1} parent=1 // pred_region
      %s465 = ssub.s32 16, 16
      %466 = vsyncadd [#allocation48], %s465
      %s468 = sshll.u32 [#allocation49], 4
      %s469 = int_to_ptr.vmem [resolvable:$true] %s468
      %471 = dma.hbm_to_vmem [thread:$0]  %s81, 16, %s469, [#allocation48]
    $region165: #{recognition_forward.1} parent=1 // pred_fallthru
      _
    // Predicated region
    $region166: #{recognition_forward.1} parent=1 // pred_check
      _
    $region167: #{recognition_forward.1} parent=1 // pred_check_branch
      %473 = sbr.rel (0) target = $region169
    $region168: #{recognition_forward.1} parent=1 // pred_region
      _
    $region169: #{recognition_forward.1} parent=1 // pred_fallthru
      _
    // Predicated region
    $region170: #{recognition_forward.1} parent=1 // pred_check
      _
    $region171: #{recognition_forward.1} parent=1 // pred_check_branch
      %475 = sbr.rel (0) target = $region173
    $region172: #{recognition_forward.1} parent=1 // pred_region
      %s477 = ssub.s32 16, 16
      %478 = vsyncadd [#allocation51], %s477
      %s480 = sshll.u32 [#allocation50], 4
      %s481 = int_to_ptr.vmem [resolvable:$true] %s480
      %483 = dma.hbm_to_vmem [thread:$0]  %s85, 16, %s481, [#allocation51]
    $region173: #{recognition_forward.1} parent=1 // pred_fallthru
      _
    // Predicated region
    $region174: #{recognition_forward.1} parent=1 // pred_check
      _
    $region175: #{recognition_forward.1} parent=1 // pred_check_branch
      %485 = sbr.rel (0) target = $region177
    $region176: #{recognition_forward.1} parent=1 // pred_region
      %486 = dma.done [#allocation3], 512
    $region177: #{recognition_forward.1} parent=1 // pred_fallthru
      _
    // Predicated region
    $region178: #{recognition_forward.1} parent=1 // pred_check
      _
    $region179: #{recognition_forward.1} parent=1 // pred_check_branch
      %488 = sbr.rel (0) target = $region181
    $region180: #{recognition_forward.1} parent=1 // pred_region
      %489 = dma.done [#allocation6], 1536
    $region181: #{recognition_forward.1} parent=1 // pred_fallthru
      _
    // Predicated region
    $region182: #{recognition_forward.1} parent=1 // pred_check
      _
    $region183: #{recognition_forward.1} parent=1 // pred_check_branch
      %491 = sbr.rel (0) target = $region185
    $region184: #{recognition_forward.1} parent=1 // pred_region
      %492 = dma.done [#allocation6], 1536
    $region185: #{recognition_forward.1} parent=1 // pred_fallthru
      _
    // Predicated region
    $region186: #{recognition_forward.1} parent=1 // pred_check
      _
    $region187: #{recognition_forward.1} parent=1 // pred_check_branch
      %494 = sbr.rel (0) target = $region189
    $region188: #{recognition_forward.1} parent=1 // pred_region
      %495 = dma.done [#allocation9], 32
    $region189: #{recognition_forward.1} parent=1 // pred_fallthru
      _
    // Predicated region
    $region190: #{recognition_forward.1} parent=1 // pred_check
      _
    $region191: #{recognition_forward.1} parent=1 // pred_check_branch
      %497 = sbr.rel (0) target = $region193
    $region192: #{recognition_forward.1} parent=1 // pred_region
      %498 = dma.done [#allocation9], 16
    $region193: #{recognition_forward.1} parent=1 // pred_fallthru
      _
    // Predicated region
    $region194: #{recognition_forward.1} parent=1 // pred_check
      _
    $region195: #{recognition_forward.1} parent=1 // pred_check_branch
      %500 = sbr.rel (0) target = $region197
    $region196: #{recognition_forward.1} parent=1 // pred_region
      %501 = dma.done [#allocation12], 16
    $region197: #{recognition_forward.1} parent=1 // pred_fallthru
      _
    // Predicated region
    $region198: #{recognition_forward.1} parent=1 // pred_check
      _
    $region199: #{recognition_forward.1} parent=1 // pred_check_branch
      %503 = sbr.rel (0) target = $region201
    $region200: #{recognition_forward.1} parent=1 // pred_region
      %504 = dma.done [#allocation12], 512
    $region201: #{recognition_forward.1} parent=1 // pred_fallthru
      _
    // Predicated region
    $region202: #{recognition_forward.1} parent=1 // pred_check
      _
    $region203: #{recognition_forward.1} parent=1 // pred_check_branch
      %506 = sbr.rel (0) target = $region205
    $region204: #{recognition_forward.1} parent=1 // pred_region
      %507 = dma.done [#allocation15], 512
    $region205: #{recognition_forward.1} parent=1 // pred_fallthru
      _
    // Predicated region
    $region206: #{recognition_forward.1} parent=1 // pred_check
      _
    $region207: #{recognition_forward.1} parent=1 // pred_check_branch
      %509 = sbr.rel (0) target = $region209
    $region208: #{recognition_forward.1} parent=1 // pred_region
      %510 = dma.done [#allocation15], 768
    $region209: #{recognition_forward.1} parent=1 // pred_fallthru
      _
    // Predicated region
    $region210: #{recognition_forward.1} parent=1 // pred_check
      _
    $region211: #{recognition_forward.1} parent=1 // pred_check_branch
      %512 = sbr.rel (0) target = $region213
    $region212: #{recognition_forward.1} parent=1 // pred_region
      %513 = dma.done [#allocation18], 32
    $region213: #{recognition_forward.1} parent=1 // pred_fallthru
      _
    // Predicated region
    $region214: #{recognition_forward.1} parent=1 // pred_check
      _
    $region215: #{recognition_forward.1} parent=1 // pred_check_branch
      %515 = sbr.rel (0) target = $region217
    $region216: #{recognition_forward.1} parent=1 // pred_region
      %516 = dma.done [#allocation18], 16
    $region217: #{recognition_forward.1} parent=1 // pred_fallthru
      _
    // Predicated region
    $region218: #{recognition_forward.1} parent=1 // pred_check
      _
    $region219: #{recognition_forward.1} parent=1 // pred_check_branch
      %518 = sbr.rel (0) target = $region221
    $region220: #{recognition_forward.1} parent=1 // pred_region
      %519 = dma.done [#allocation21], 16
    $region221: #{recognition_forward.1} parent=1 // pred_fallthru
      _
    // Predicated region
    $region222: #{recognition_forward.1} parent=1 // pred_check
      _
    $region223: #{recognition_forward.1} parent=1 // pred_check_branch
      %521 = sbr.rel (0) target = $region225
    $region224: #{recognition_forward.1} parent=1 // pred_region
      %522 = dma.done [#allocation21], 1024
    $region225: #{recognition_forward.1} parent=1 // pred_fallthru
      _
    // Predicated region
    $region226: #{recognition_forward.1} parent=1 // pred_check
      _
    $region227: #{recognition_forward.1} parent=1 // pred_check_branch
      %524 = sbr.rel (0) target = $region229
    $region228: #{recognition_forward.1} parent=1 // pred_region
      %525 = dma.done [#allocation24], 256
    $region229: #{recognition_forward.1} parent=1 // pred_fallthru
      _
    // Predicated region
    $region230: #{recognition_forward.1} parent=1 // pred_check
      _
    $region231: #{recognition_forward.1} parent=1 // pred_check_branch
      %527 = sbr.rel (0) target = $region233
    $region232: #{recognition_forward.1} parent=1 // pred_region
      %528 = dma.done [#allocation24], 384
    $region233: #{recognition_forward.1} parent=1 // pred_fallthru
      _
    // Predicated region
    $region234: #{recognition_forward.1} parent=1 // pred_check
      _
    $region235: #{recognition_forward.1} parent=1 // pred_check_branch
      %530 = sbr.rel (0) target = $region237
    $region236: #{recognition_forward.1} parent=1 // pred_region
      %531 = dma.done [#allocation27], 6144
    $region237: #{recognition_forward.1} parent=1 // pred_fallthru
      _
    // Predicated region
    $region238: #{recognition_forward.1} parent=1 // pred_check
      _
    $region239: #{recognition_forward.1} parent=1 // pred_check_branch
      %533 = sbr.rel (0) target = $region241
    $region240: #{recognition_forward.1} parent=1 // pred_region
      %534 = dma.done [#allocation27], 16
    $region241: #{recognition_forward.1} parent=1 // pred_fallthru
      _
    // Predicated region
    $region242: #{recognition_forward.1} parent=1 // pred_check
      _
    $region243: #{recognition_forward.1} parent=1 // pred_check_branch
      %536 = sbr.rel (0) target = $region245
    $region244: #{recognition_forward.1} parent=1 // pred_region
      %537 = dma.done [#allocation30], 16
    $region245: #{recognition_forward.1} parent=1 // pred_fallthru
      _
    // Predicated region
    $region246: #{recognition_forward.1} parent=1 // pred_check
      _
    $region247: #{recognition_forward.1} parent=1 // pred_check_branch
      %539 = sbr.rel (0) target = $region249
    $region248: #{recognition_forward.1} parent=1 // pred_region
      %540 = dma.done [#allocation30], 16
    $region249: #{recognition_forward.1} parent=1 // pred_fallthru
      _
    // Predicated region
    $region250: #{recognition_forward.1} parent=1 // pred_check
      _
    $region251: #{recognition_forward.1} parent=1 // pred_check_branch
      %542 = sbr.rel (0) target = $region253
    $region252: #{recognition_forward.1} parent=1 // pred_region
      %543 = dma.done [#allocation33], 512
    $region253: #{recognition_forward.1} parent=1 // pred_fallthru
      _
    // Predicated region
    $region254: #{recognition_forward.1} parent=1 // pred_check
      _
    $region255: #{recognition_forward.1} parent=1 // pred_check_branch
      %545 = sbr.rel (0) target = $region257
    $region256: #{recognition_forward.1} parent=1 // pred_region
      %546 = dma.done [#allocation33], 128
    $region257: #{recognition_forward.1} parent=1 // pred_fallthru
      _
    // Predicated region
    $region258: #{recognition_forward.1} parent=1 // pred_check
      _
    $region259: #{recognition_forward.1} parent=1 // pred_check_branch
      %548 = sbr.rel (0) target = $region261
    $region260: #{recognition_forward.1} parent=1 // pred_region
      %549 = dma.done [#allocation36], 3072
    $region261: #{recognition_forward.1} parent=1 // pred_fallthru
      _
    // Predicated region
    $region262: #{recognition_forward.1} parent=1 // pred_check
      _
    $region263: #{recognition_forward.1} parent=1 // pred_check_branch
      %551 = sbr.rel (0) target = $region265
    $region264: #{recognition_forward.1} parent=1 // pred_region
      %552 = dma.done [#allocation36], 16
    $region265: #{recognition_forward.1} parent=1 // pred_fallthru
      _
    // Predicated region
    $region266: #{recognition_forward.1} parent=1 // pred_check
      _
    $region267: #{recognition_forward.1} parent=1 // pred_check_branch
      %554 = sbr.rel (0) target = $region269
    $region268: #{recognition_forward.1} parent=1 // pred_region
      %555 = dma.done [#allocation39], 16
    $region269: #{recognition_forward.1} parent=1 // pred_fallthru
      _
    // Predicated region
    $region270: #{recognition_forward.1} parent=1 // pred_check
      _
    $region271: #{recognition_forward.1} parent=1 // pred_check_branch
      %557 = sbr.rel (0) target = $region273
    $region272: #{recognition_forward.1} parent=1 // pred_region
      %558 = dma.done [#allocation39], 16
    $region273: #{recognition_forward.1} parent=1 // pred_fallthru
      _
    // Predicated region
    $region274: #{recognition_forward.1} parent=1 // pred_check
      _
    $region275: #{recognition_forward.1} parent=1 // pred_check_branch
      %560 = sbr.rel (0) target = $region277
    $region276: #{recognition_forward.1} parent=1 // pred_region
      %561 = dma.done [#allocation42], 1024
    $region277: #{recognition_forward.1} parent=1 // pred_fallthru
      _
    // Predicated region
    $region278: #{recognition_forward.1} parent=1 // pred_check
      _
    $region279: #{recognition_forward.1} parent=1 // pred_check_branch
      %563 = sbr.rel (0) target = $region281
    $region280: #{recognition_forward.1} parent=1 // pred_region
      %564 = dma.done [#allocation42], 64
    $region281: #{recognition_forward.1} parent=1 // pred_fallthru
      _
    // Predicated region
    $region282: #{recognition_forward.1} parent=1 // pred_check
      _
    $region283: #{recognition_forward.1} parent=1 // pred_check_branch
      %566 = sbr.rel (0) target = $region285
    $region284: #{recognition_forward.1} parent=1 // pred_region
      %567 = dma.done [#allocation45], 1024
    $region285: #{recognition_forward.1} parent=1 // pred_fallthru
      _
    // Predicated region
    $region286: #{recognition_forward.1} parent=1 // pred_check
      _
    $region287: #{recognition_forward.1} parent=1 // pred_check_branch
      %569 = sbr.rel (0) target = $region289
    $region288: #{recognition_forward.1} parent=1 // pred_region
      %570 = dma.done [#allocation45], 16
    $region289: #{recognition_forward.1} parent=1 // pred_fallthru
      _
    // Predicated region
    $region290: #{recognition_forward.1} parent=1 // pred_check
      _
    $region291: #{recognition_forward.1} parent=1 // pred_check_branch
      %572 = sbr.rel (0) target = $region293
    $region292: #{recognition_forward.1} parent=1 // pred_region
      %573 = dma.done [#allocation48], 16
    $region293: #{recognition_forward.1} parent=1 // pred_fallthru
      _
    // Predicated region
    $region294: #{recognition_forward.1} parent=1 // pred_check
      _
    $region295: #{recognition_forward.1} parent=1 // pred_check_branch
      %575 = sbr.rel (0) target = $region297
    $region296: #{recognition_forward.1} parent=1 // pred_region
      %576 = dma.done [#allocation48], 16
    $region297: #{recognition_forward.1} parent=1 // pred_fallthru
      _
    // Predicated region
    $region298: #{recognition_forward.1} parent=1 // pred_check
      _
    $region299: #{recognition_forward.1} parent=1 // pred_check_branch
      %578 = sbr.rel (0) target = $region301
    $region300: #{recognition_forward.1} parent=1 // pred_region
      %579 = dma.done [#allocation51], 16
    $region301: #{recognition_forward.1} parent=1 // pred_fallthru
      _
    %v580 = vld [vmem:[#allocation2] sm:$0xff]
    %v581 = vld [vmem:[#allocation2 + $0x8] sm:$0xff]
    %v582 = vld [vmem:[#allocation2 + $0x10] sm:$0xff]
    %v583 = vld [vmem:[#allocation2 + $0x18] sm:$0xff]
    %v584 = vld [vmem:[#allocation5] sm:$0xff]
    %v585 = vld [vmem:[#allocation5 + $0x8] sm:$0xff]
    %v586 = vld [vmem:[#allocation5 + $0x10] sm:$0xff]
    %v587 = vld [vmem:[#allocation5 + $0x18] sm:$0xff]
    %vm588 = vcmask 261120
    %v590 = vsel %vm588, %v584, 0
    %v593 = vsel %vm588, %v585, 0
    %v596 = vsel %vm588, %v586, 0
    %v599 = vsel %vm588, %v587, 0
    %601 = vmatprep.subr.mxu0 0.0
    %602 = vmatpush1.msra.mxu0 0.0
    %603 = vmatprep.subr.mxu0 0.0
    %604 = vmatpush1.msra.mxu0 0.0
    %605 = vmatprep.subr.mxu0 0.0
    %606 = vmatpush1.msra.mxu0 0.0
    %607 = vmatprep.subr.mxu0 0.0
    %608 = vmatpush1.msra.mxu0 0.0
    %609 = vmatprep.subr.mxu0 0.0
    %610 = vmatpush1.msra.mxu0 0.0
    %611 = vmatprep.subr.mxu0 0.0
    %612 = vmatpush1.msra.mxu0 0.0
    %613 = vmatprep.subr.mxu0 0.0
    %614 = vmatpush1.msra.mxu0 0.0
    %615 = vmatprep.subr.mxu0 0.0
    %616 = vmatpush1.msra.mxu0 0.0
    %617 = vmatprep.subr.mxu0 0.0
    %618 = vmatpush1.msra.mxu0 0.0
    %619 = vmatprep.subr.mxu0 0.0
    %620 = vmatpush1.msra.mxu0 0.0
    %621 = vmatprep.subr.mxu0 0.0
    %622 = vmatpush1.msra.mxu0 0.0
    %623 = vmatprep.subr.mxu0 0.0
    %624 = vmatpush1.msra.mxu0 0.0
    %625 = vmatprep.subr.mxu0 0.0
    %626 = vmatpush1.msra.mxu0 %v583
    %627 = vmatprep.subr.mxu0 0.0
    %628 = vmatpush1.msra.mxu0 %v582
    %629 = vmatprep.subr.mxu0 0.0
    %630 = vmatpush1.msra.mxu0 %v581
    %631 = vmatprep.subr.mxu0 0.0
    %632 = vmatpush1.msra.mxu0 %v580
    %633 = vmatprep.subr.mxu0 0.0
    %634 = vmatpush2.msra.mxu0 0.0
    %635 = vmatprep.subr.mxu0 0.0
    %636 = vmatpush2.msra.mxu0 0.0
    %637 = vmatprep.subr.mxu0 0.0
    %638 = vmatpush2.msra.mxu0 0.0
    %639 = vmatprep.subr.mxu0 0.0
    %640 = vmatpush2.msra.mxu0 0.0
    %641 = vmatprep.subr.mxu0 0.0
    %642 = vmatpush2.msra.mxu0 0.0
    %643 = vmatprep.subr.mxu0 0.0
    %644 = vmatpush2.msra.mxu0 0.0
    %645 = vmatprep.subr.mxu0 0.0
    %646 = vmatpush2.msra.mxu0 0.0
    %647 = vmatprep.subr.mxu0 0.0
    %648 = vmatpush2.msra.mxu0 0.0
    %649 = vmatprep.subr.mxu0 0.0
    %650 = vmatpush2.msra.mxu0 0.0
    %651 = vmatprep.subr.mxu0 0.0
    %652 = vmatpush2.msra.mxu0 0.0
    %653 = vmatprep.subr.mxu0 0.0
    %654 = vmatpush2.msra.mxu0 0.0
    %655 = vmatprep.subr.mxu0 0.0
    %656 = vmatpush2.msra.mxu0 0.0
    %657 = vmatprep.subr.mxu0 0.0
    %658 = vmatpush2.msra.mxu0 0.0
    %659 = vmatprep.subr.mxu0 0.0
    %660 = vmatpush2.msra.mxu0 0.0
    %661 = vmatprep.subr.mxu0 0.0
    %662 = vmatpush2.msra.mxu0 0.0
    %663 = vmatprep.subr.mxu0 0.0
    %664 = vmatpush2.msra.mxu0 0.0
    %665 = vmatprep.mubr.f32.mxu0 0.0
    %666 = vmatmul.mubr.f32.gmra.mxu0 %v590
    %v667 = vpop.f32.mrf.mxu0
    %v668 = vadd.f32 0.0, %v667
    %v669 = vpop.f32.mrf.mxu0
    %670 = vmatprep.mubr.f32.mxu0 0.0
    %671 = vmatmul.mubr.f32.gmra.mxu0 %v593
    %v672 = vpop.f32.mrf.mxu0
    %v673 = vadd.f32 0.0, %v672
    %v674 = vpop.f32.mrf.mxu0
    %675 = vmatprep.mubr.f32.mxu0 0.0
    %676 = vmatmul.mubr.f32.gmra.mxu0 %v596
    %v677 = vpop.f32.mrf.mxu0
    %v678 = vadd.f32 0.0, %v677
    %v679 = vpop.f32.mrf.mxu0
    %680 = vmatprep.mubr.f32.mxu0 0.0
    %681 = vmatmul.mubr.f32.gmra.mxu0 %v599
    %v682 = vpop.f32.mrf.mxu0
    %v683 = vadd.f32 0.0, %v682
    %v684 = vpop.f32.mrf.mxu0
    %685 = vdwg.mxu0
    %v686 = vld [vmem:[#allocation7] sm:$0xff]
    %v687 = vld [vmem:[#allocation7 + $0x8] sm:$0xff]
    %v688 = vld [vmem:[#allocation7 + $0x10] sm:$0xff]
    %v689 = vld [vmem:[#allocation7 + $0x18] sm:$0xff]
    %s690 = scalar_lea.vmem [#allocation5], 32
    %v691 = vld [vmem:[%s690] sm:$0xff]
    %v692 = vld [vmem:[%s690 + $0x8] sm:$0xff]
    %v693 = vld [vmem:[%s690 + $0x10] sm:$0xff]
    %v694 = vld [vmem:[%s690 + $0x18] sm:$0xff]
    %v696 = vsel %vm588, %v691, 0
    %v699 = vsel %vm588, %v692, 0
    %v702 = vsel %vm588, %v693, 0
    %v705 = vsel %vm588, %v694, 0
    %707 = vmatprep.subr.mxu0 0.0
    %708 = vmatpush1.msra.mxu0 0.0
    %709 = vmatprep.subr.mxu0 0.0
    %710 = vmatpush1.msra.mxu0 0.0
    %711 = vmatprep.subr.mxu0 0.0
    %712 = vmatpush1.msra.mxu0 0.0
    %713 = vmatprep.subr.mxu0 0.0
    %714 = vmatpush1.msra.mxu0 0.0
    %715 = vmatprep.subr.mxu0 0.0
    %716 = vmatpush1.msra.mxu0 0.0
    %717 = vmatprep.subr.mxu0 0.0
    %718 = vmatpush1.msra.mxu0 0.0
    %719 = vmatprep.subr.mxu0 0.0
    %720 = vmatpush1.msra.mxu0 0.0
    %721 = vmatprep.subr.mxu0 0.0
    %722 = vmatpush1.msra.mxu0 0.0
    %723 = vmatprep.subr.mxu0 0.0
    %724 = vmatpush1.msra.mxu0 0.0
    %725 = vmatprep.subr.mxu0 0.0
    %726 = vmatpush1.msra.mxu0 0.0
    %727 = vmatprep.subr.mxu0 0.0
    %728 = vmatpush1.msra.mxu0 0.0
    %729 = vmatprep.subr.mxu0 0.0
    %730 = vmatpush1.msra.mxu0 0.0
    %731 = vmatprep.subr.mxu0 0.0
    %732 = vmatpush1.msra.mxu0 %v583
    %733 = vmatprep.subr.mxu0 0.0
    %734 = vmatpush1.msra.mxu0 %v582
    %735 = vmatprep.subr.mxu0 0.0
    %736 = vmatpush1.msra.mxu0 %v581
    %737 = vmatprep.subr.mxu0 0.0
    %738 = vmatpush1.msra.mxu0 %v580
    %739 = vmatprep.subr.mxu0 0.0
    %740 = vmatpush2.msra.mxu0 0.0
    %741 = vmatprep.subr.mxu0 0.0
    %742 = vmatpush2.msra.mxu0 0.0
    %743 = vmatprep.subr.mxu0 0.0
    %744 = vmatpush2.msra.mxu0 0.0
    %745 = vmatprep.subr.mxu0 0.0
    %746 = vmatpush2.msra.mxu0 0.0
    %747 = vmatprep.subr.mxu0 0.0
    %748 = vmatpush2.msra.mxu0 0.0
    %749 = vmatprep.subr.mxu0 0.0
    %750 = vmatpush2.msra.mxu0 0.0
    %751 = vmatprep.subr.mxu0 0.0
    %752 = vmatpush2.msra.mxu0 0.0
    %753 = vmatprep.subr.mxu0 0.0
    %754 = vmatpush2.msra.mxu0 0.0
    %755 = vmatprep.subr.mxu0 0.0
    %756 = vmatpush2.msra.mxu0 0.0
    %757 = vmatprep.subr.mxu0 0.0
    %758 = vmatpush2.msra.mxu0 0.0
    %759 = vmatprep.subr.mxu0 0.0
    %760 = vmatpush2.msra.mxu0 0.0
    %761 = vmatprep.subr.mxu0 0.0
    %762 = vmatpush2.msra.mxu0 0.0
    %763 = vmatprep.subr.mxu0 0.0
    %764 = vmatpush2.msra.mxu0 0.0
    %765 = vmatprep.subr.mxu0 0.0
    %766 = vmatpush2.msra.mxu0 0.0
    %767 = vmatprep.subr.mxu0 0.0
    %768 = vmatpush2.msra.mxu0 0.0
    %769 = vmatprep.subr.mxu0 0.0
    %770 = vmatpush2.msra.mxu0 0.0
    %771 = vmatprep.mubr.f32.mxu0 0.0
    %772 = vmatmul.mubr.f32.gmra.mxu0 %v696
    %v773 = vpop.f32.mrf.mxu0
    %v774 = vadd.f32 0.0, %v773
    %v775 = vpop.f32.mrf.mxu0
    %776 = vmatprep.mubr.f32.mxu0 0.0
    %777 = vmatmul.mubr.f32.gmra.mxu0 %v699
    %v778 = vpop.f32.mrf.mxu0
    %v779 = vadd.f32 0.0, %v778
    %v780 = vpop.f32.mrf.mxu0
    %781 = vmatprep.mubr.f32.mxu0 0.0
    %782 = vmatmul.mubr.f32.gmra.mxu0 %v702
    %v783 = vpop.f32.mrf.mxu0
    %v784 = vadd.f32 0.0, %v783
    %v785 = vpop.f32.mrf.mxu0
    %786 = vmatprep.mubr.f32.mxu0 0.0
    %787 = vmatmul.mubr.f32.gmra.mxu0 %v705
    %v788 = vpop.f32.mrf.mxu0
    %v789 = vadd.f32 0.0, %v788
    %v790 = vpop.f32.mrf.mxu0
    %791 = vdwg.mxu0
    %s792 = scalar_lea.vmem [#allocation7], 32
    %v793 = vld [vmem:[%s792] sm:$0xff]
    %v794 = vld [vmem:[%s792 + $0x8] sm:$0xff]
    %v795 = vld [vmem:[%s792 + $0x10] sm:$0xff]
    %v796 = vld [vmem:[%s792 + $0x18] sm:$0xff]
    %vm797 = vcmask 130048
    %v799 = vsel %vm797, %v774, 0
    %v802 = vsel %vm797, %v779, 0
    %v805 = vsel %vm797, %v784, 0
    %v808 = vsel %vm797, %v789, 0
    %810 = vmatprep.subr.mxu0 0.0
    %811 = vmatpush1.msra.mxu0 0.0
    %812 = vmatprep.subr.mxu0 0.0
    %813 = vmatpush1.msra.mxu0 0.0
    %814 = vmatprep.subr.mxu0 0.0
    %815 = vmatpush1.msra.mxu0 0.0
    %816 = vmatprep.subr.mxu0 0.0
    %817 = vmatpush1.msra.mxu0 0.0
    %818 = vmatprep.subr.mxu0 0.0
    %819 = vmatpush1.msra.mxu0 0.0
    %820 = vmatprep.subr.mxu0 0.0
    %821 = vmatpush1.msra.mxu0 0.0
    %822 = vmatprep.subr.mxu0 0.0
    %823 = vmatpush1.msra.mxu0 0.0
    %824 = vmatprep.subr.mxu0 0.0
    %825 = vmatpush1.msra.mxu0 0.0
    %826 = vmatprep.subr.mxu0 0.0
    %827 = vmatpush1.msra.mxu0 0.0
    %828 = vmatprep.subr.mxu0 0.0
    %829 = vmatpush1.msra.mxu0 0.0
    %830 = vmatprep.subr.mxu0 0.0
    %831 = vmatpush1.msra.mxu0 0.0
    %832 = vmatprep.subr.mxu0 0.0
    %833 = vmatpush1.msra.mxu0 0.0
    %834 = vmatprep.subr.mxu0 0.0
    %835 = vmatpush1.msra.mxu0 0.0
    %836 = vmatprep.subr.mxu0 0.0
    %837 = vmatpush1.msra.mxu0 0.0
    %838 = vmatprep.subr.mxu0 %v796
    %839 = vmatpush1.msra.mxu0 %v795
    %840 = vmatprep.subr.mxu0 %v794
    %841 = vmatpush1.msra.mxu0 %v793
    %842 = vmatprep.subr.mxu0 0.0
    %843 = vmatpush2.msra.mxu0 0.0
    %844 = vmatprep.subr.mxu0 0.0
    %845 = vmatpush2.msra.mxu0 0.0
    %846 = vmatprep.subr.mxu0 0.0
    %847 = vmatpush2.msra.mxu0 0.0
    %848 = vmatprep.subr.mxu0 0.0
    %849 = vmatpush2.msra.mxu0 0.0
    %850 = vmatprep.subr.mxu0 0.0
    %851 = vmatpush2.msra.mxu0 0.0
    %852 = vmatprep.subr.mxu0 0.0
    %853 = vmatpush2.msra.mxu0 0.0
    %854 = vmatprep.subr.mxu0 0.0
    %855 = vmatpush2.msra.mxu0 0.0
    %856 = vmatprep.subr.mxu0 0.0
    %857 = vmatpush2.msra.mxu0 0.0
    %858 = vmatprep.subr.mxu0 0.0
    %859 = vmatpush2.msra.mxu0 0.0
    %860 = vmatprep.subr.mxu0 0.0
    %861 = vmatpush2.msra.mxu0 0.0
    %862 = vmatprep.subr.mxu0 0.0
    %863 = vmatpush2.msra.mxu0 0.0
    %864 = vmatprep.subr.mxu0 0.0
    %865 = vmatpush2.msra.mxu0 0.0
    %866 = vmatprep.subr.mxu0 0.0
    %867 = vmatpush2.msra.mxu0 0.0
    %868 = vmatprep.subr.mxu0 0.0
    %869 = vmatpush2.msra.mxu0 0.0
    %870 = vmatprep.subr.mxu0 0.0
    %871 = vmatpush2.msra.mxu0 0.0
    %872 = vmatprep.subr.mxu0 0.0
    %873 = vmatpush2.msra.mxu0 0.0
    %874 = vmatprep.mubr.f32.mxu0 0.0
    %875 = vmatmul.mubr.f32.gmra.mxu0 %v799
    %v876 = vpop.f32.mrf.mxu0
    %v877 = vadd.f32 0.0, %v876
    %v878 = vpop.f32.mrf.mxu0
    %v879 = vadd.f32 0.0, %v878
    %880 = vmatprep.mubr.f32.mxu0 0.0
    %881 = vmatmul.mubr.f32.gmra.mxu0 %v802
    %v882 = vpop.f32.mrf.mxu0
    %v883 = vadd.f32 0.0, %v882
    %v884 = vpop.f32.mrf.mxu0
    %v885 = vadd.f32 0.0, %v884
    %886 = vmatprep.mubr.f32.mxu0 0.0
    %887 = vmatmul.mubr.f32.gmra.mxu0 %v805
    %v888 = vpop.f32.mrf.mxu0
    %v889 = vadd.f32 0.0, %v888
    %v890 = vpop.f32.mrf.mxu0
    %v891 = vadd.f32 0.0, %v890
    %892 = vmatprep.mubr.f32.mxu0 0.0
    %893 = vmatmul.mubr.f32.gmra.mxu0 %v808
    %v894 = vpop.f32.mrf.mxu0
    %v895 = vadd.f32 0.0, %v894
    %v896 = vpop.f32.mrf.mxu0
    %v897 = vadd.f32 0.0, %v896
    %898 = vdwg.mxu0
    %v900 = vsel %vm797, %v668, 0
    %v903 = vsel %vm797, %v673, 0
    %v906 = vsel %vm797, %v678, 0
    %v909 = vsel %vm797, %v683, 0
    %911 = vmatprep.subr.mxu0 0.0
    %912 = vmatpush1.msra.mxu0 0.0
    %913 = vmatprep.subr.mxu0 0.0
    %914 = vmatpush1.msra.mxu0 0.0
    %915 = vmatprep.subr.mxu0 0.0
    %916 = vmatpush1.msra.mxu0 0.0
    %917 = vmatprep.subr.mxu0 0.0
    %918 = vmatpush1.msra.mxu0 0.0
    %919 = vmatprep.subr.mxu0 0.0
    %920 = vmatpush1.msra.mxu0 0.0
    %921 = vmatprep.subr.mxu0 0.0
    %922 = vmatpush1.msra.mxu0 0.0
    %923 = vmatprep.subr.mxu0 0.0
    %924 = vmatpush1.msra.mxu0 0.0
    %925 = vmatprep.subr.mxu0 0.0
    %926 = vmatpush1.msra.mxu0 0.0
    %927 = vmatprep.subr.mxu0 0.0
    %928 = vmatpush1.msra.mxu0 0.0
    %929 = vmatprep.subr.mxu0 0.0
    %930 = vmatpush1.msra.mxu0 0.0
    %931 = vmatprep.subr.mxu0 0.0
    %932 = vmatpush1.msra.mxu0 0.0
    %933 = vmatprep.subr.mxu0 0.0
    %934 = vmatpush1.msra.mxu0 0.0
    %935 = vmatprep.subr.mxu0 0.0
    %936 = vmatpush1.msra.mxu0 0.0
    %937 = vmatprep.subr.mxu0 0.0
    %938 = vmatpush1.msra.mxu0 0.0
    %939 = vmatprep.subr.mxu0 %v689
    %940 = vmatpush1.msra.mxu0 %v688
    %941 = vmatprep.subr.mxu0 %v687
    %942 = vmatpush1.msra.mxu0 %v686
    %943 = vmatprep.subr.mxu0 0.0
    %944 = vmatpush2.msra.mxu0 0.0
    %945 = vmatprep.subr.mxu0 0.0
    %946 = vmatpush2.msra.mxu0 0.0
    %947 = vmatprep.subr.mxu0 0.0
    %948 = vmatpush2.msra.mxu0 0.0
    %949 = vmatprep.subr.mxu0 0.0
    %950 = vmatpush2.msra.mxu0 0.0
    %951 = vmatprep.subr.mxu0 0.0
    %952 = vmatpush2.msra.mxu0 0.0
    %953 = vmatprep.subr.mxu0 0.0
    %954 = vmatpush2.msra.mxu0 0.0
    %955 = vmatprep.subr.mxu0 0.0
    %956 = vmatpush2.msra.mxu0 0.0
    %957 = vmatprep.subr.mxu0 0.0
    %958 = vmatpush2.msra.mxu0 0.0
    %959 = vmatprep.subr.mxu0 0.0
    %960 = vmatpush2.msra.mxu0 0.0
    %961 = vmatprep.subr.mxu0 0.0
    %962 = vmatpush2.msra.mxu0 0.0
    %963 = vmatprep.subr.mxu0 0.0
    %964 = vmatpush2.msra.mxu0 0.0
    %965 = vmatprep.subr.mxu0 0.0
    %966 = vmatpush2.msra.mxu0 0.0
    %967 = vmatprep.subr.mxu0 0.0
    %968 = vmatpush2.msra.mxu0 0.0
    %969 = vmatprep.subr.mxu0 0.0
    %970 = vmatpush2.msra.mxu0 0.0
    %971 = vmatprep.subr.mxu0 0.0
    %972 = vmatpush2.msra.mxu0 0.0
    %973 = vmatprep.subr.mxu0 0.0
    %974 = vmatpush2.msra.mxu0 0.0
    %975 = vmatprep.mubr.f32.mxu0 0.0
    %976 = vmatmul.mubr.f32.gmra.mxu0 %v900
    %v977 = vpop.f32.mrf.mxu0
    %v978 = vadd.f32 %v877, %v977
    %v979 = vpop.f32.mrf.mxu0
    %v980 = vadd.f32 %v879, %v979
    %981 = vmatprep.mubr.f32.mxu0 0.0
    %982 = vmatmul.mubr.f32.gmra.mxu0 %v903
    %v983 = vpop.f32.mrf.mxu0
    %v984 = vadd.f32 %v883, %v983
    %v985 = vpop.f32.mrf.mxu0
    %v986 = vadd.f32 %v885, %v985
    %987 = vmatprep.mubr.f32.mxu0 0.0
    %988 = vmatmul.mubr.f32.gmra.mxu0 %v906
    %v989 = vpop.f32.mrf.mxu0
    %v990 = vadd.f32 %v889, %v989
    %v991 = vpop.f32.mrf.mxu0
    %v992 = vadd.f32 %v891, %v991
    %993 = vmatprep.mubr.f32.mxu0 0.0
    %994 = vmatmul.mubr.f32.gmra.mxu0 %v909
    %v995 = vpop.f32.mrf.mxu0
    %v996 = vadd.f32 %v895, %v995
    %v997 = vpop.f32.mrf.mxu0
    %v998 = vadd.f32 %v897, %v997
    %999 = vdwg.mxu0
    %s1000 = scalar_lea.vmem [#allocation5], 64
    %v1001 = vld [vmem:[%s1000] sm:$0xff]
    %v1002 = vld [vmem:[%s1000 + $0x8] sm:$0xff]
    %v1003 = vld [vmem:[%s1000 + $0x10] sm:$0xff]
    %v1004 = vld [vmem:[%s1000 + $0x18] sm:$0xff]
    %v1006 = vsel %vm588, %v1001, 0
    %v1009 = vsel %vm588, %v1002, 0
    %v1012 = vsel %vm588, %v1003, 0
    %v1015 = vsel %vm588, %v1004, 0
    %1017 = vmatprep.subr.mxu0 0.0
    %1018 = vmatpush1.msra.mxu0 0.0
    %1019 = vmatprep.subr.mxu0 0.0
    %1020 = vmatpush1.msra.mxu0 0.0
    %1021 = vmatprep.subr.mxu0 0.0
    %1022 = vmatpush1.msra.mxu0 0.0
    %1023 = vmatprep.subr.mxu0 0.0
    %1024 = vmatpush1.msra.mxu0 0.0
    %1025 = vmatprep.subr.mxu0 0.0
    %1026 = vmatpush1.msra.mxu0 0.0
    %1027 = vmatprep.subr.mxu0 0.0
    %1028 = vmatpush1.msra.mxu0 0.0
    %1029 = vmatprep.subr.mxu0 0.0
    %1030 = vmatpush1.msra.mxu0 0.0
    %1031 = vmatprep.subr.mxu0 0.0
    %1032 = vmatpush1.msra.mxu0 0.0
    %1033 = vmatprep.subr.mxu0 0.0
    %1034 = vmatpush1.msra.mxu0 0.0
    %1035 = vmatprep.subr.mxu0 0.0
    %1036 = vmatpush1.msra.mxu0 0.0
    %1037 = vmatprep.subr.mxu0 0.0
    %1038 = vmatpush1.msra.mxu0 0.0
    %1039 = vmatprep.subr.mxu0 0.0
    %1040 = vmatpush1.msra.mxu0 0.0
    %1041 = vmatprep.subr.mxu0 0.0
    %1042 = vmatpush1.msra.mxu0 %v583
    %1043 = vmatprep.subr.mxu0 0.0
    %1044 = vmatpush1.msra.mxu0 %v582
    %1045 = vmatprep.subr.mxu0 0.0
    %1046 = vmatpush1.msra.mxu0 %v581
    %1047 = vmatprep.subr.mxu0 0.0
    %1048 = vmatpush1.msra.mxu0 %v580
    %1049 = vmatprep.subr.mxu0 0.0
    %1050 = vmatpush2.msra.mxu0 0.0
    %1051 = vmatprep.subr.mxu0 0.0
    %1052 = vmatpush2.msra.mxu0 0.0
    %1053 = vmatprep.subr.mxu0 0.0
    %1054 = vmatpush2.msra.mxu0 0.0
    %1055 = vmatprep.subr.mxu0 0.0
    %1056 = vmatpush2.msra.mxu0 0.0
    %1057 = vmatprep.subr.mxu0 0.0
    %1058 = vmatpush2.msra.mxu0 0.0
    %1059 = vmatprep.subr.mxu0 0.0
    %1060 = vmatpush2.msra.mxu0 0.0
    %1061 = vmatprep.subr.mxu0 0.0
    %1062 = vmatpush2.msra.mxu0 0.0
    %1063 = vmatprep.subr.mxu0 0.0
    %1064 = vmatpush2.msra.mxu0 0.0
    %1065 = vmatprep.subr.mxu0 0.0
    %1066 = vmatpush2.msra.mxu0 0.0
    %1067 = vmatprep.subr.mxu0 0.0
    %1068 = vmatpush2.msra.mxu0 0.0
    %1069 = vmatprep.subr.mxu0 0.0
    %1070 = vmatpush2.msra.mxu0 0.0
    %1071 = vmatprep.subr.mxu0 0.0
    %1072 = vmatpush2.msra.mxu0 0.0
    %1073 = vmatprep.subr.mxu0 0.0
    %1074 = vmatpush2.msra.mxu0 0.0
    %1075 = vmatprep.subr.mxu0 0.0
    %1076 = vmatpush2.msra.mxu0 0.0
    %1077 = vmatprep.subr.mxu0 0.0
    %1078 = vmatpush2.msra.mxu0 0.0
    %1079 = vmatprep.subr.mxu0 0.0
    %1080 = vmatpush2.msra.mxu0 0.0
    %1081 = vmatprep.mubr.f32.mxu0 0.0
    %1082 = vmatmul.mubr.f32.gmra.mxu0 %v1006
    %v1083 = vpop.f32.mrf.mxu0
    %v1084 = vadd.f32 0.0, %v1083
    %v1085 = vpop.f32.mrf.mxu0
    %1086 = vmatprep.mubr.f32.mxu0 0.0
    %1087 = vmatmul.mubr.f32.gmra.mxu0 %v1009
    %v1088 = vpop.f32.mrf.mxu0
    %v1089 = vadd.f32 0.0, %v1088
    %v1090 = vpop.f32.mrf.mxu0
    %1091 = vmatprep.mubr.f32.mxu0 0.0
    %1092 = vmatmul.mubr.f32.gmra.mxu0 %v1012
    %v1093 = vpop.f32.mrf.mxu0
    %v1094 = vadd.f32 0.0, %v1093
    %v1095 = vpop.f32.mrf.mxu0
    %1096 = vmatprep.mubr.f32.mxu0 0.0
    %1097 = vmatmul.mubr.f32.gmra.mxu0 %v1015
    %v1098 = vpop.f32.mrf.mxu0
    %v1099 = vadd.f32 0.0, %v1098
    %v1100 = vpop.f32.mrf.mxu0
    %1101 = vdwg.mxu0
    %s1102 = scalar_lea.vmem [#allocation7], 64
    %v1103 = vld [vmem:[%s1102] sm:$0xff]
    %v1104 = vld [vmem:[%s1102 + $0x8] sm:$0xff]
    %v1105 = vld [vmem:[%s1102 + $0x10] sm:$0xff]
    %v1106 = vld [vmem:[%s1102 + $0x18] sm:$0xff]
    %v1108 = vsel %vm797, %v1084, 0
    %v1111 = vsel %vm797, %v1089, 0
    %v1114 = vsel %vm797, %v1094, 0
    %v1117 = vsel %vm797, %v1099, 0
    %1119 = vmatprep.subr.mxu0 0.0
    %1120 = vmatpush1.msra.mxu0 0.0
    %1121 = vmatprep.subr.mxu0 0.0
    %1122 = vmatpush1.msra.mxu0 0.0
    %1123 = vmatprep.subr.mxu0 0.0
    %1124 = vmatpush1.msra.mxu0 0.0
    %1125 = vmatprep.subr.mxu0 0.0
    %1126 = vmatpush1.msra.mxu0 0.0
    %1127 = vmatprep.subr.mxu0 0.0
    %1128 = vmatpush1.msra.mxu0 0.0
    %1129 = vmatprep.subr.mxu0 0.0
    %1130 = vmatpush1.msra.mxu0 0.0
    %1131 = vmatprep.subr.mxu0 0.0
    %1132 = vmatpush1.msra.mxu0 0.0
    %1133 = vmatprep.subr.mxu0 0.0
    %1134 = vmatpush1.msra.mxu0 0.0
    %1135 = vmatprep.subr.mxu0 0.0
    %1136 = vmatpush1.msra.mxu0 0.0
    %1137 = vmatprep.subr.mxu0 0.0
    %1138 = vmatpush1.msra.mxu0 0.0
    %1139 = vmatprep.subr.mxu0 0.0
    %1140 = vmatpush1.msra.mxu0 0.0
    %1141 = vmatprep.subr.mxu0 0.0
    %1142 = vmatpush1.msra.mxu0 0.0
    %1143 = vmatprep.subr.mxu0 0.0
    %1144 = vmatpush1.msra.mxu0 0.0
    %1145 = vmatprep.subr.mxu0 0.0
    %1146 = vmatpush1.msra.mxu0 0.0
    %1147 = vmatprep.subr.mxu0 %v1106
    %1148 = vmatpush1.msra.mxu0 %v1105
    %1149 = vmatprep.subr.mxu0 %v1104
    %1150 = vmatpush1.msra.mxu0 %v1103
    %1151 = vmatprep.subr.mxu0 0.0
    %1152 = vmatpush2.msra.mxu0 0.0
    %1153 = vmatprep.subr.mxu0 0.0
    %1154 = vmatpush2.msra.mxu0 0.0
    %1155 = vmatprep.subr.mxu0 0.0
    %1156 = vmatpush2.msra.mxu0 0.0
    %1157 = vmatprep.subr.mxu0 0.0
    %1158 = vmatpush2.msra.mxu0 0.0
    %1159 = vmatprep.subr.mxu0 0.0
    %1160 = vmatpush2.msra.mxu0 0.0
    %1161 = vmatprep.subr.mxu0 0.0
    %1162 = vmatpush2.msra.mxu0 0.0
    %1163 = vmatprep.subr.mxu0 0.0
    %1164 = vmatpush2.msra.mxu0 0.0
    %1165 = vmatprep.subr.mxu0 0.0
    %1166 = vmatpush2.msra.mxu0 0.0
    %1167 = vmatprep.subr.mxu0 0.0
    %1168 = vmatpush2.msra.mxu0 0.0
    %1169 = vmatprep.subr.mxu0 0.0
    %1170 = vmatpush2.msra.mxu0 0.0
    %1171 = vmatprep.subr.mxu0 0.0
    %1172 = vmatpush2.msra.mxu0 0.0
    %1173 = vmatprep.subr.mxu0 0.0
    %1174 = vmatpush2.msra.mxu0 0.0
    %1175 = vmatprep.subr.mxu0 0.0
    %1176 = vmatpush2.msra.mxu0 0.0
    %1177 = vmatprep.subr.mxu0 0.0
    %1178 = vmatpush2.msra.mxu0 0.0
    %1179 = vmatprep.subr.mxu0 0.0
    %1180 = vmatpush2.msra.mxu0 0.0
    %1181 = vmatprep.subr.mxu0 0.0
    %1182 = vmatpush2.msra.mxu0 0.0
    %1183 = vmatprep.mubr.f32.mxu0 0.0
    %1184 = vmatmul.mubr.f32.gmra.mxu0 %v1108
    %v1185 = vpop.f32.mrf.mxu0
    %v1186 = vadd.f32 0.0, %v1185
    %v1187 = vpop.f32.mrf.mxu0
    %v1188 = vadd.f32 0.0, %v1187
    %1189 = vmatprep.mubr.f32.mxu0 0.0
    %1190 = vmatmul.mubr.f32.gmra.mxu0 %v1111
    %v1191 = vpop.f32.mrf.mxu0
    %v1192 = vadd.f32 0.0, %v1191
    %v1193 = vpop.f32.mrf.mxu0
    %v1194 = vadd.f32 0.0, %v1193
    %1195 = vmatprep.mubr.f32.mxu0 0.0
    %1196 = vmatmul.mubr.f32.gmra.mxu0 %v1114
    %v1197 = vpop.f32.mrf.mxu0
    %v1198 = vadd.f32 0.0, %v1197
    %v1199 = vpop.f32.mrf.mxu0
    %v1200 = vadd.f32 0.0, %v1199
    %1201 = vmatprep.mubr.f32.mxu0 0.0
    %1202 = vmatmul.mubr.f32.gmra.mxu0 %v1117
    %v1203 = vpop.f32.mrf.mxu0
    %v1204 = vadd.f32 0.0, %v1203
    %v1205 = vpop.f32.mrf.mxu0
    %v1206 = vadd.f32 0.0, %v1205
    %1207 = vdwg.mxu0
    %v1208 = vadd.f32 %v978, %v1186
    %v1209 = vadd.f32 %v980, %v1188
    %v1210 = vadd.f32 %v984, %v1192
    %v1211 = vadd.f32 %v986, %v1194
    %v1212 = vadd.f32 %v990, %v1198
    %v1213 = vadd.f32 %v992, %v1200
    %v1214 = vadd.f32 %v996, %v1204
    %v1215 = vadd.f32 %v998, %v1206
    %v1216 = vld [vmem:[#allocation8] sm:$0x3]
    %v1218 = vlaneseq
    %v1219 = vshrl.u32 %v1218, 7
    %v1220 = vsub.s32 0, %v1219
    %v1221 = vrot.slane %v1216, %v1220
    %v1222 = vlaneseq
    %v1223 = vshrl.u32 %v1222, 7
    %v1224 = vsub.s32 1, %v1223
    %v1225 = vrot.slane %v1216, %v1224
    %v1228 = vadd.f32 %v1208, %v1221
    %v1229 = vadd.f32 %v1209, %v1225
    %v1230 = vadd.f32 %v1210, %v1221
    %v1231 = vadd.f32 %v1211, %v1225
    %v1232 = vadd.f32 %v1212, %v1221
    %v1233 = vadd.f32 %v1213, %v1225
    %v1234 = vadd.f32 %v1214, %v1221
    %v1235 = vadd.f32 %v1215, %v1225
    %v1236 = vld [vmem:[%s13] sm:$0xff]
    %v1237 = vld [vmem:[%s13 + $0x8] sm:$0xff]
    %v1238 = vld [vmem:[%s13 + $0x10] sm:$0xff]
    %v1239 = vld [vmem:[%s13 + $0x18] sm:$0xff]
    %v1240 = vld [vmem:[%s13 + $0x20] sm:$0xff]
    %v1241 = vld [vmem:[%s13 + $0x28] sm:$0xff]
    %v1242 = vld [vmem:[%s13 + $0x30] sm:$0xff]
    %v1243 = vld [vmem:[%s13 + $0x38] sm:$0xff]
    %v1244 = vld [vmem:[%s13 + $0x40] sm:$0xff]
    %v1245 = vld [vmem:[%s13 + $0x48] sm:$0xff]
    %v1246 = vld [vmem:[%s13 + $0x50] sm:$0xff]
    %v1247 = vld [vmem:[%s13 + $0x58] sm:$0xff]
    %v1248 = vld [vmem:[%s13 + $0x60] sm:$0xff]
    %v1249 = vld [vmem:[%s13 + $0x68] sm:$0xff]
    %v1250 = vld [vmem:[%s13 + $0x70] sm:$0xff]
    %v1251 = vld [vmem:[%s13 + $0x78] sm:$0xff]
    %v1252 = vld [vmem:[%s13 + $0x80] sm:$0xff]
    %v1253 = vld [vmem:[%s13 + $0x88] sm:$0xff]
    %v1254 = vld [vmem:[%s13 + $0x90] sm:$0xff]
    %v1255 = vld [vmem:[%s13 + $0x98] sm:$0xff]
    %v1256 = vld [vmem:[%s13 + $0xa0] sm:$0xff]
    %v1257 = vld [vmem:[%s13 + $0xa8] sm:$0xff]
    %v1258 = vld [vmem:[%s13 + $0xb0] sm:$0xff]
    %v1259 = vld [vmem:[%s13 + $0xb8] sm:$0xff]
    %v1260 = vld [vmem:[%s13 + $0xc0] sm:$0xff]
    %v1261 = vld [vmem:[%s13 + $0xc8] sm:$0xff]
    %v1262 = vld [vmem:[%s13 + $0xd0] sm:$0xff]
    %v1263 = vld [vmem:[%s13 + $0xd8] sm:$0xff]
    %v1264 = vld [vmem:[%s13 + $0xe0] sm:$0xff]
    %v1265 = vld [vmem:[%s13 + $0xe8] sm:$0xff]
    %v1266 = vld [vmem:[%s13 + $0xf0] sm:$0xff]
    %v1267 = vld [vmem:[%s13 + $0xf8] sm:$0xff]
    %v1268 = vld [vmem:[#allocation13] sm:$0xff]
    %v1269 = vld [vmem:[#allocation13 + $0x8] sm:$0xff]
    %v1270 = vld [vmem:[#allocation13 + $0x10] sm:$0xff]
    %v1271 = vld [vmem:[#allocation13 + $0x18] sm:$0xff]
    %v1272 = vadd.f32 %v1228, %v1230
    %v1273 = vadd.f32 %v1272, %v1232
    %v1274 = vadd.f32 %v1273, %v1234
    %v1275 = vrot.slane %v1274, 4
    %v1276 = vadd.f32 %v1274, %v1275
    %v1277 = vrot.slane %v1276, 2
    %v1278 = vadd.f32 %v1276, %v1277
    %v1279 = vrot.slane %v1278, 1
    %v1280 = vadd.f32 %v1278, %v1279
    %v1281 = vadd.f32 %v1229, %v1231
    %v1282 = vadd.f32 %v1281, %v1233
    %v1283 = vadd.f32 %v1282, %v1235
    %v1284 = vrot.slane %v1283, 4
    %v1285 = vadd.f32 %v1283, %v1284
    %v1286 = vrot.slane %v1285, 2
    %v1287 = vadd.f32 %v1285, %v1286
    %v1288 = vrot.slane %v1287, 1
    %v1289 = vadd.f32 %v1287, %v1288
    %1290 = vmatprep.subr.mxu0 0.0
    %1291 = vmatpush1.msra.mxu0 %v1251
    %1292 = vmatprep.subr.mxu0 0.0
    %1293 = vmatpush1.msra.mxu0 %v1250
    %1294 = vmatprep.subr.mxu0 0.0
    %1295 = vmatpush1.msra.mxu0 %v1249
    %1296 = vmatprep.subr.mxu0 0.0
    %1297 = vmatpush1.msra.mxu0 %v1248
    %1298 = vmatprep.subr.mxu0 0.0
    %1299 = vmatpush1.msra.mxu0 %v1247
    %1300 = vmatprep.subr.mxu0 0.0
    %1301 = vmatpush1.msra.mxu0 %v1246
    %1302 = vmatprep.subr.mxu0 0.0
    %1303 = vmatpush1.msra.mxu0 %v1245
    %1304 = vmatprep.subr.mxu0 0.0
    %1305 = vmatpush1.msra.mxu0 %v1244
    %1306 = vmatprep.subr.mxu0 0.0
    %1307 = vmatpush1.msra.mxu0 %v1243
    %1308 = vmatprep.subr.mxu0 0.0
    %1309 = vmatpush1.msra.mxu0 %v1242
    %1310 = vmatprep.subr.mxu0 0.0
    %1311 = vmatpush1.msra.mxu0 %v1241
    %1312 = vmatprep.subr.mxu0 0.0
    %1313 = vmatpush1.msra.mxu0 %v1240
    %1314 = vmatprep.subr.mxu0 0.0
    %1315 = vmatpush1.msra.mxu0 %v1239
    %1316 = vmatprep.subr.mxu0 0.0
    %1317 = vmatpush1.msra.mxu0 %v1238
    %1318 = vmatprep.subr.mxu0 0.0
    %1319 = vmatpush1.msra.mxu0 %v1237
    %1320 = vmatprep.subr.mxu0 0.0
    %1321 = vmatpush1.msra.mxu0 %v1236
    %1322 = vmatprep.subr.mxu0 0.0
    %1323 = vmatpush2.msra.mxu0 %v1267
    %1324 = vmatprep.subr.mxu0 0.0
    %1325 = vmatpush2.msra.mxu0 %v1266
    %1326 = vmatprep.subr.mxu0 0.0
    %1327 = vmatpush2.msra.mxu0 %v1265
    %1328 = vmatprep.subr.mxu0 0.0
    %1329 = vmatpush2.msra.mxu0 %v1264
    %1330 = vmatprep.subr.mxu0 0.0
    %1331 = vmatpush2.msra.mxu0 %v1263
    %1332 = vmatprep.subr.mxu0 0.0
    %1333 = vmatpush2.msra.mxu0 %v1262
    %1334 = vmatprep.subr.mxu0 0.0
    %1335 = vmatpush2.msra.mxu0 %v1261
    %1336 = vmatprep.subr.mxu0 0.0
    %1337 = vmatpush2.msra.mxu0 %v1260
    %1338 = vmatprep.subr.mxu0 0.0
    %1339 = vmatpush2.msra.mxu0 %v1259
    %1340 = vmatprep.subr.mxu0 0.0
    %1341 = vmatpush2.msra.mxu0 %v1258
    %1342 = vmatprep.subr.mxu0 0.0
    %1343 = vmatpush2.msra.mxu0 %v1257
    %1344 = vmatprep.subr.mxu0 0.0
    %1345 = vmatpush2.msra.mxu0 %v1256
    %1346 = vmatprep.subr.mxu0 0.0
    %1347 = vmatpush2.msra.mxu0 %v1255
    %1348 = vmatprep.subr.mxu0 0.0
    %1349 = vmatpush2.msra.mxu0 %v1254
    %1350 = vmatprep.subr.mxu0 0.0
    %1351 = vmatpush2.msra.mxu0 %v1253
    %1352 = vmatprep.subr.mxu0 0.0
    %1353 = vmatpush2.msra.mxu0 %v1252
    %1354 = vmatprep.mubr.f32.mxu0 %v1289
    %1355 = vmatmul.mubr.f32.gmra.mxu0 %v1280
    %v1356 = vpop.f32.mrf.mxu0
    %v1357 = vadd.f32 0.0, %v1356
    %v1358 = vpop.f32.mrf.mxu0
    %1359 = vdwg.mxu0
    %v1360 = vmul.f32 %v1357, 0.001953125
    %v1362 = vsel %vm797, %v1360, 0
    %1364 = vmatprep.subr.mxu0 0.0
    %1365 = vmatpush1.msra.mxu0 0.0
    %1366 = vmatprep.subr.mxu0 0.0
    %1367 = vmatpush1.msra.mxu0 0.0
    %1368 = vmatprep.subr.mxu0 0.0
    %1369 = vmatpush1.msra.mxu0 0.0
    %1370 = vmatprep.subr.mxu0 0.0
    %1371 = vmatpush1.msra.mxu0 0.0
    %1372 = vmatprep.subr.mxu0 0.0
    %1373 = vmatpush1.msra.mxu0 0.0
    %1374 = vmatprep.subr.mxu0 0.0
    %1375 = vmatpush1.msra.mxu0 0.0
    %1376 = vmatprep.subr.mxu0 0.0
    %1377 = vmatpush1.msra.mxu0 0.0
    %1378 = vmatprep.subr.mxu0 0.0
    %1379 = vmatpush1.msra.mxu0 0.0
    %1380 = vmatprep.subr.mxu0 0.0
    %1381 = vmatpush1.msra.mxu0 0.0
    %1382 = vmatprep.subr.mxu0 0.0
    %1383 = vmatpush1.msra.mxu0 0.0
    %1384 = vmatprep.subr.mxu0 0.0
    %1385 = vmatpush1.msra.mxu0 0.0
    %1386 = vmatprep.subr.mxu0 0.0
    %1387 = vmatpush1.msra.mxu0 0.0
    %1388 = vmatprep.subr.mxu0 0.0
    %1389 = vmatpush1.msra.mxu0 0.0
    %1390 = vmatprep.subr.mxu0 0.0
    %1391 = vmatpush1.msra.mxu0 0.0
    %1392 = vmatprep.subr.mxu0 %v1271
    %1393 = vmatpush1.msra.mxu0 %v1270
    %1394 = vmatprep.subr.mxu0 %v1269
    %1395 = vmatpush1.msra.mxu0 %v1268
    %1396 = vmatprep.subr.mxu0 0.0
    %1397 = vmatpush2.msra.mxu0 0.0
    %1398 = vmatprep.subr.mxu0 0.0
    %1399 = vmatpush2.msra.mxu0 0.0
    %1400 = vmatprep.subr.mxu0 0.0
    %1401 = vmatpush2.msra.mxu0 0.0
    %1402 = vmatprep.subr.mxu0 0.0
    %1403 = vmatpush2.msra.mxu0 0.0
    %1404 = vmatprep.subr.mxu0 0.0
    %1405 = vmatpush2.msra.mxu0 0.0
    %1406 = vmatprep.subr.mxu0 0.0
    %1407 = vmatpush2.msra.mxu0 0.0
    %1408 = vmatprep.subr.mxu0 0.0
    %1409 = vmatpush2.msra.mxu0 0.0
    %1410 = vmatprep.subr.mxu0 0.0
    %1411 = vmatpush2.msra.mxu0 0.0
    %1412 = vmatprep.subr.mxu0 0.0
    %1413 = vmatpush2.msra.mxu0 0.0
    %1414 = vmatprep.subr.mxu0 0.0
    %1415 = vmatpush2.msra.mxu0 0.0
    %1416 = vmatprep.subr.mxu0 0.0
    %1417 = vmatpush2.msra.mxu0 0.0
    %1418 = vmatprep.subr.mxu0 0.0
    %1419 = vmatpush2.msra.mxu0 0.0
    %1420 = vmatprep.subr.mxu0 0.0
    %1421 = vmatpush2.msra.mxu0 0.0
    %1422 = vmatprep.subr.mxu0 0.0
    %1423 = vmatpush2.msra.mxu0 0.0
    %1424 = vmatprep.subr.mxu0 0.0
    %1425 = vmatpush2.msra.mxu0 0.0
    %1426 = vmatprep.subr.mxu0 0.0
    %1427 = vmatpush2.msra.mxu0 0.0
    %1428 = vmatprep.mubr.f32.mxu0 0.0
    %1429 = vmatmul.mubr.f32.gmra.mxu0 %v1362
    %v1430 = vpop.f32.mrf.mxu0
    %v1431 = vadd.f32 0.0, %v1430
    %v1432 = vpop.f32.mrf.mxu0
    %v1433 = vadd.f32 0.0, %v1432
    %1434 = vdwg.mxu0
    %v1435 = vlaneseq
    %v1436 = vshrl.u32 %v1435, 7
    %v1437 = vsub.s32 0, %v1436
    %v1438 = vrot.slane %v1431, %v1437
    %v1439 = vlaneseq
    %v1440 = vshrl.u32 %v1439, 7
    %v1441 = vsub.s32 0, %v1440
    %v1442 = vrot.slane %v1433, %v1441
    %v1443 = vsub.f32 %v1228, %v1438
    %v1444 = vsub.f32 %v1229, %v1442
    %v1445 = vsub.f32 %v1230, %v1438
    %v1446 = vsub.f32 %v1231, %v1442
    %v1447 = vsub.f32 %v1232, %v1438
    %v1448 = vsub.f32 %v1233, %v1442
    %v1449 = vsub.f32 %v1234, %v1438
    %v1450 = vsub.f32 %v1235, %v1442
    %v1451 = vmul.f32 %v1443, %v1443
    %v1452 = vmul.f32 %v1444, %v1444
    %v1453 = vmul.f32 %v1445, %v1445
    %v1454 = vmul.f32 %v1446, %v1446
    %v1455 = vmul.f32 %v1447, %v1447
    %v1456 = vmul.f32 %v1448, %v1448
    %v1457 = vmul.f32 %v1449, %v1449
    %v1458 = vmul.f32 %v1450, %v1450
    %v1459 = vadd.f32 %v1451, %v1453
    %v1460 = vadd.f32 %v1459, %v1455
    %v1461 = vadd.f32 %v1460, %v1457
    %v1462 = vrot.slane %v1461, 4
    %v1463 = vadd.f32 %v1461, %v1462
    %v1464 = vrot.slane %v1463, 2
    %v1465 = vadd.f32 %v1463, %v1464
    %v1466 = vrot.slane %v1465, 1
    %v1467 = vadd.f32 %v1465, %v1466
    %v1468 = vadd.f32 %v1452, %v1454
    %v1469 = vadd.f32 %v1468, %v1456
    %v1470 = vadd.f32 %v1469, %v1458
    %v1471 = vrot.slane %v1470, 4
    %v1472 = vadd.f32 %v1470, %v1471
    %v1473 = vrot.slane %v1472, 2
    %v1474 = vadd.f32 %v1472, %v1473
    %v1475 = vrot.slane %v1474, 1
    %v1476 = vadd.f32 %v1474, %v1475
    %1477 = vmatprep.subr.mxu0 0.0
    %1478 = vmatpush1.msra.mxu0 %v1251
    %1479 = vmatprep.subr.mxu0 0.0
    %1480 = vmatpush1.msra.mxu0 %v1250
    %1481 = vmatprep.subr.mxu0 0.0
    %1482 = vmatpush1.msra.mxu0 %v1249
    %1483 = vmatprep.subr.mxu0 0.0
    %1484 = vmatpush1.msra.mxu0 %v1248
    %1485 = vmatprep.subr.mxu0 0.0
    %1486 = vmatpush1.msra.mxu0 %v1247
    %1487 = vmatprep.subr.mxu0 0.0
    %1488 = vmatpush1.msra.mxu0 %v1246
    %1489 = vmatprep.subr.mxu0 0.0
    %1490 = vmatpush1.msra.mxu0 %v1245
    %1491 = vmatprep.subr.mxu0 0.0
    %1492 = vmatpush1.msra.mxu0 %v1244
    %1493 = vmatprep.subr.mxu0 0.0
    %1494 = vmatpush1.msra.mxu0 %v1243
    %1495 = vmatprep.subr.mxu0 0.0
    %1496 = vmatpush1.msra.mxu0 %v1242
    %1497 = vmatprep.subr.mxu0 0.0
    %1498 = vmatpush1.msra.mxu0 %v1241
    %1499 = vmatprep.subr.mxu0 0.0
    %1500 = vmatpush1.msra.mxu0 %v1240
    %1501 = vmatprep.subr.mxu0 0.0
    %1502 = vmatpush1.msra.mxu0 %v1239
    %1503 = vmatprep.subr.mxu0 0.0
    %1504 = vmatpush1.msra.mxu0 %v1238
    %1505 = vmatprep.subr.mxu0 0.0
    %1506 = vmatpush1.msra.mxu0 %v1237
    %1507 = vmatprep.subr.mxu0 0.0
    %1508 = vmatpush1.msra.mxu0 %v1236
    %1509 = vmatprep.subr.mxu0 0.0
    %1510 = vmatpush2.msra.mxu0 %v1267
    %1511 = vmatprep.subr.mxu0 0.0
    %1512 = vmatpush2.msra.mxu0 %v1266
    %1513 = vmatprep.subr.mxu0 0.0
    %1514 = vmatpush2.msra.mxu0 %v1265
    %1515 = vmatprep.subr.mxu0 0.0
    %1516 = vmatpush2.msra.mxu0 %v1264
    %1517 = vmatprep.subr.mxu0 0.0
    %1518 = vmatpush2.msra.mxu0 %v1263
    %1519 = vmatprep.subr.mxu0 0.0
    %1520 = vmatpush2.msra.mxu0 %v1262
    %1521 = vmatprep.subr.mxu0 0.0
    %1522 = vmatpush2.msra.mxu0 %v1261
    %1523 = vmatprep.subr.mxu0 0.0
    %1524 = vmatpush2.msra.mxu0 %v1260
    %1525 = vmatprep.subr.mxu0 0.0
    %1526 = vmatpush2.msra.mxu0 %v1259
    %1527 = vmatprep.subr.mxu0 0.0
    %1528 = vmatpush2.msra.mxu0 %v1258
    %1529 = vmatprep.subr.mxu0 0.0
    %1530 = vmatpush2.msra.mxu0 %v1257
    %1531 = vmatprep.subr.mxu0 0.0
    %1532 = vmatpush2.msra.mxu0 %v1256
    %1533 = vmatprep.subr.mxu0 0.0
    %1534 = vmatpush2.msra.mxu0 %v1255
    %1535 = vmatprep.subr.mxu0 0.0
    %1536 = vmatpush2.msra.mxu0 %v1254
    %1537 = vmatprep.subr.mxu0 0.0
    %1538 = vmatpush2.msra.mxu0 %v1253
    %1539 = vmatprep.subr.mxu0 0.0
    %1540 = vmatpush2.msra.mxu0 %v1252
    %1541 = vmatprep.mubr.f32.mxu0 %v1476
    %1542 = vmatmul.mubr.f32.gmra.mxu0 %v1467
    %v1543 = vpop.f32.mrf.mxu0
    %v1544 = vadd.f32 0.0, %v1543
    %v1545 = vpop.f32.mrf.mxu0
    %1546 = vdwg.mxu0
    %v1547 = vmul.f32 %v1544, 0.001953125
    %v1548 = vld [vmem:[#allocation10] sm:$0x1]
    %v1549 = vadd.f32 %v1547, 1e-05
    %v1550 = vrsqrt.pop %v1549
    %v1551 = vmul.f32 %v1548, %v1550
    %v1553 = vsel %vm797, %v1551, 0
    %1555 = vmatprep.subr.mxu0 0.0
    %1556 = vmatpush1.msra.mxu0 0.0
    %1557 = vmatprep.subr.mxu0 0.0
    %1558 = vmatpush1.msra.mxu0 0.0
    %1559 = vmatprep.subr.mxu0 0.0
    %1560 = vmatpush1.msra.mxu0 0.0
    %1561 = vmatprep.subr.mxu0 0.0
    %1562 = vmatpush1.msra.mxu0 0.0
    %1563 = vmatprep.subr.mxu0 0.0
    %1564 = vmatpush1.msra.mxu0 0.0
    %1565 = vmatprep.subr.mxu0 0.0
    %1566 = vmatpush1.msra.mxu0 0.0
    %1567 = vmatprep.subr.mxu0 0.0
    %1568 = vmatpush1.msra.mxu0 0.0
    %1569 = vmatprep.subr.mxu0 0.0
    %1570 = vmatpush1.msra.mxu0 0.0
    %1571 = vmatprep.subr.mxu0 0.0
    %1572 = vmatpush1.msra.mxu0 0.0
    %1573 = vmatprep.subr.mxu0 0.0
    %1574 = vmatpush1.msra.mxu0 0.0
    %1575 = vmatprep.subr.mxu0 0.0
    %1576 = vmatpush1.msra.mxu0 0.0
    %1577 = vmatprep.subr.mxu0 0.0
    %1578 = vmatpush1.msra.mxu0 0.0
    %1579 = vmatprep.subr.mxu0 0.0
    %1580 = vmatpush1.msra.mxu0 0.0
    %1581 = vmatprep.subr.mxu0 0.0
    %1582 = vmatpush1.msra.mxu0 0.0
    %1583 = vmatprep.subr.mxu0 %v1271
    %1584 = vmatpush1.msra.mxu0 %v1270
    %1585 = vmatprep.subr.mxu0 %v1269
    %1586 = vmatpush1.msra.mxu0 %v1268
    %1587 = vmatprep.subr.mxu0 0.0
    %1588 = vmatpush2.msra.mxu0 0.0
    %1589 = vmatprep.subr.mxu0 0.0
    %1590 = vmatpush2.msra.mxu0 0.0
    %1591 = vmatprep.subr.mxu0 0.0
    %1592 = vmatpush2.msra.mxu0 0.0
    %1593 = vmatprep.subr.mxu0 0.0
    %1594 = vmatpush2.msra.mxu0 0.0
    %1595 = vmatprep.subr.mxu0 0.0
    %1596 = vmatpush2.msra.mxu0 0.0
    %1597 = vmatprep.subr.mxu0 0.0
    %1598 = vmatpush2.msra.mxu0 0.0
    %1599 = vmatprep.subr.mxu0 0.0
    %1600 = vmatpush2.msra.mxu0 0.0
    %1601 = vmatprep.subr.mxu0 0.0
    %1602 = vmatpush2.msra.mxu0 0.0
    %1603 = vmatprep.subr.mxu0 0.0
    %1604 = vmatpush2.msra.mxu0 0.0
    %1605 = vmatprep.subr.mxu0 0.0
    %1606 = vmatpush2.msra.mxu0 0.0
    %1607 = vmatprep.subr.mxu0 0.0
    %1608 = vmatpush2.msra.mxu0 0.0
    %1609 = vmatprep.subr.mxu0 0.0
    %1610 = vmatpush2.msra.mxu0 0.0
    %1611 = vmatprep.subr.mxu0 0.0
    %1612 = vmatpush2.msra.mxu0 0.0
    %1613 = vmatprep.subr.mxu0 0.0
    %1614 = vmatpush2.msra.mxu0 0.0
    %1615 = vmatprep.subr.mxu0 0.0
    %1616 = vmatpush2.msra.mxu0 0.0
    %1617 = vmatprep.subr.mxu0 0.0
    %1618 = vmatpush2.msra.mxu0 0.0
    %1619 = vmatprep.mubr.f32.mxu0 0.0
    %1620 = vmatmul.mubr.f32.gmra.mxu0 %v1553
    %v1621 = vpop.f32.mrf.mxu0
    %v1622 = vadd.f32 0.0, %v1621
    %v1623 = vpop.f32.mrf.mxu0
    %v1624 = vadd.f32 0.0, %v1623
    %1625 = vdwg.mxu0
    %v1626 = vlaneseq
    %v1627 = vshrl.u32 %v1626, 7
    %v1628 = vsub.s32 0, %v1627
    %v1629 = vrot.slane %v1622, %v1628
    %v1630 = vlaneseq
    %v1631 = vshrl.u32 %v1630, 7
    %v1632 = vsub.s32 0, %v1631
    %v1633 = vrot.slane %v1624, %v1632
    %v1634 = vmul.f32 %v1443, %v1629
    %v1635 = vmul.f32 %v1444, %v1633
    %v1636 = vmul.f32 %v1445, %v1629
    %v1637 = vmul.f32 %v1446, %v1633
    %v1638 = vmul.f32 %v1447, %v1629
    %v1639 = vmul.f32 %v1448, %v1633
    %v1640 = vmul.f32 %v1449, %v1629
    %v1641 = vmul.f32 %v1450, %v1633
    %v1642 = vld [vmem:[#allocation11] sm:$0x1]
    %v1644 = vsel %vm797, %v1642, 0
    %1646 = vmatprep.subr.mxu0 0.0
    %1647 = vmatpush1.msra.mxu0 0.0
    %1648 = vmatprep.subr.mxu0 0.0
    %1649 = vmatpush1.msra.mxu0 0.0
    %1650 = vmatprep.subr.mxu0 0.0
    %1651 = vmatpush1.msra.mxu0 0.0
    %1652 = vmatprep.subr.mxu0 0.0
    %1653 = vmatpush1.msra.mxu0 0.0
    %1654 = vmatprep.subr.mxu0 0.0
    %1655 = vmatpush1.msra.mxu0 0.0
    %1656 = vmatprep.subr.mxu0 0.0
    %1657 = vmatpush1.msra.mxu0 0.0
    %1658 = vmatprep.subr.mxu0 0.0
    %1659 = vmatpush1.msra.mxu0 0.0
    %1660 = vmatprep.subr.mxu0 0.0
    %1661 = vmatpush1.msra.mxu0 0.0
    %1662 = vmatprep.subr.mxu0 0.0
    %1663 = vmatpush1.msra.mxu0 0.0
    %1664 = vmatprep.subr.mxu0 0.0
    %1665 = vmatpush1.msra.mxu0 0.0
    %1666 = vmatprep.subr.mxu0 0.0
    %1667 = vmatpush1.msra.mxu0 0.0
    %1668 = vmatprep.subr.mxu0 0.0
    %1669 = vmatpush1.msra.mxu0 0.0
    %1670 = vmatprep.subr.mxu0 0.0
    %1671 = vmatpush1.msra.mxu0 0.0
    %1672 = vmatprep.subr.mxu0 0.0
    %1673 = vmatpush1.msra.mxu0 0.0
    %1674 = vmatprep.subr.mxu0 %v1271
    %1675 = vmatpush1.msra.mxu0 %v1270
    %1676 = vmatprep.subr.mxu0 %v1269
    %1677 = vmatpush1.msra.mxu0 %v1268
    %1678 = vmatprep.subr.mxu0 0.0
    %1679 = vmatpush2.msra.mxu0 0.0
    %1680 = vmatprep.subr.mxu0 0.0
    %1681 = vmatpush2.msra.mxu0 0.0
    %1682 = vmatprep.subr.mxu0 0.0
    %1683 = vmatpush2.msra.mxu0 0.0
    %1684 = vmatprep.subr.mxu0 0.0
    %1685 = vmatpush2.msra.mxu0 0.0
    %1686 = vmatprep.subr.mxu0 0.0
    %1687 = vmatpush2.msra.mxu0 0.0
    %1688 = vmatprep.subr.mxu0 0.0
    %1689 = vmatpush2.msra.mxu0 0.0
    %1690 = vmatprep.subr.mxu0 0.0
    %1691 = vmatpush2.msra.mxu0 0.0
    %1692 = vmatprep.subr.mxu0 0.0
    %1693 = vmatpush2.msra.mxu0 0.0
    %1694 = vmatprep.subr.mxu0 0.0
    %1695 = vmatpush2.msra.mxu0 0.0
    %1696 = vmatprep.subr.mxu0 0.0
    %1697 = vmatpush2.msra.mxu0 0.0
    %1698 = vmatprep.subr.mxu0 0.0
    %1699 = vmatpush2.msra.mxu0 0.0
    %1700 = vmatprep.subr.mxu0 0.0
    %1701 = vmatpush2.msra.mxu0 0.0
    %1702 = vmatprep.subr.mxu0 0.0
    %1703 = vmatpush2.msra.mxu0 0.0
    %1704 = vmatprep.subr.mxu0 0.0
    %1705 = vmatpush2.msra.mxu0 0.0
    %1706 = vmatprep.subr.mxu0 0.0
    %1707 = vmatpush2.msra.mxu0 0.0
    %1708 = vmatprep.subr.mxu0 0.0
    %1709 = vmatpush2.msra.mxu0 0.0
    %1710 = vmatprep.mubr.f32.mxu0 0.0
    %1711 = vmatmul.mubr.f32.gmra.mxu0 %v1644
    %v1712 = vpop.f32.mrf.mxu0
    %v1713 = vadd.f32 0.0, %v1712
    %v1714 = vpop.f32.mrf.mxu0
    %v1715 = vadd.f32 0.0, %v1714
    %1716 = vdwg.mxu0
    %v1717 = vlaneseq
    %v1718 = vshrl.u32 %v1717, 7
    %v1719 = vsub.s32 0, %v1718
    %v1720 = vrot.slane %v1713, %v1719
    %v1721 = vlaneseq
    %v1722 = vshrl.u32 %v1721, 7
    %v1723 = vsub.s32 0, %v1722
    %v1724 = vrot.slane %v1715, %v1723
    %v1725 = vadd.f32 %v1634, %v1720
    %v1726 = vadd.f32 %v1635, %v1724
    %v1727 = vadd.f32 %v1636, %v1720
    %v1728 = vadd.f32 %v1637, %v1724
    %v1729 = vadd.f32 %v1638, %v1720
    %v1730 = vadd.f32 %v1639, %v1724
    %v1731 = vadd.f32 %v1640, %v1720
    %v1732 = vadd.f32 %v1641, %v1724
    %v1733 = vmax.f32 %v1725, 0.0
    %v1734 = vmax.f32 %v1726, 0.0
    %v1735 = vmax.f32 %v1727, 0.0
    %v1736 = vmax.f32 %v1728, 0.0
    %v1737 = vmax.f32 %v1729, 0.0
    %v1738 = vmax.f32 %v1730, 0.0
    %v1739 = vmax.f32 %v1731, 0.0
    %v1740 = vmax.f32 %v1732, 0.0
    %v1741 = vld [vmem:[#allocation14] sm:$0xff]
    %v1742 = vld [vmem:[#allocation14 + $0x8] sm:$0xff]
    %v1744 = vsel %vm588, %v1741, 0
    %v1747 = vsel %vm588, %v1742, 0
    %1749 = vmatprep.subr.mxu0 0.0
    %1750 = vmatpush1.msra.mxu0 0.0
    %1751 = vmatprep.subr.mxu0 0.0
    %1752 = vmatpush1.msra.mxu0 0.0
    %1753 = vmatprep.subr.mxu0 0.0
    %1754 = vmatpush1.msra.mxu0 0.0
    %1755 = vmatprep.subr.mxu0 0.0
    %1756 = vmatpush1.msra.mxu0 0.0
    %1757 = vmatprep.subr.mxu0 0.0
    %1758 = vmatpush1.msra.mxu0 0.0
    %1759 = vmatprep.subr.mxu0 0.0
    %1760 = vmatpush1.msra.mxu0 0.0
    %1761 = vmatprep.subr.mxu0 0.0
    %1762 = vmatpush1.msra.mxu0 0.0
    %1763 = vmatprep.subr.mxu0 0.0
    %1764 = vmatpush1.msra.mxu0 0.0
    %1765 = vmatprep.subr.mxu0 0.0
    %1766 = vmatpush1.msra.mxu0 0.0
    %1767 = vmatprep.subr.mxu0 0.0
    %1768 = vmatpush1.msra.mxu0 0.0
    %1769 = vmatprep.subr.mxu0 0.0
    %1770 = vmatpush1.msra.mxu0 0.0
    %1771 = vmatprep.subr.mxu0 0.0
    %1772 = vmatpush1.msra.mxu0 0.0
    %1773 = vmatprep.subr.mxu0 %v1740
    %1774 = vmatpush1.msra.mxu0 %v1739
    %1775 = vmatprep.subr.mxu0 %v1738
    %1776 = vmatpush1.msra.mxu0 %v1737
    %1777 = vmatprep.subr.mxu0 %v1736
    %1778 = vmatpush1.msra.mxu0 %v1735
    %1779 = vmatprep.subr.mxu0 %v1734
    %1780 = vmatpush1.msra.mxu0 %v1733
    %1781 = vmatprep.subr.mxu0 0.0
    %1782 = vmatpush2.msra.mxu0 0.0
    %1783 = vmatprep.subr.mxu0 0.0
    %1784 = vmatpush2.msra.mxu0 0.0
    %1785 = vmatprep.subr.mxu0 0.0
    %1786 = vmatpush2.msra.mxu0 0.0
    %1787 = vmatprep.subr.mxu0 0.0
    %1788 = vmatpush2.msra.mxu0 0.0
    %1789 = vmatprep.subr.mxu0 0.0
    %1790 = vmatpush2.msra.mxu0 0.0
    %1791 = vmatprep.subr.mxu0 0.0
    %1792 = vmatpush2.msra.mxu0 0.0
    %1793 = vmatprep.subr.mxu0 0.0
    %1794 = vmatpush2.msra.mxu0 0.0
    %1795 = vmatprep.subr.mxu0 0.0
    %1796 = vmatpush2.msra.mxu0 0.0
    %1797 = vmatprep.subr.mxu0 0.0
    %1798 = vmatpush2.msra.mxu0 0.0
    %1799 = vmatprep.subr.mxu0 0.0
    %1800 = vmatpush2.msra.mxu0 0.0
    %1801 = vmatprep.subr.mxu0 0.0
    %1802 = vmatpush2.msra.mxu0 0.0
    %1803 = vmatprep.subr.mxu0 0.0
    %1804 = vmatpush2.msra.mxu0 0.0
    %1805 = vmatprep.subr.mxu0 0.0
    %1806 = vmatpush2.msra.mxu0 0.0
    %1807 = vmatprep.subr.mxu0 0.0
    %1808 = vmatpush2.msra.mxu0 0.0
    %1809 = vmatprep.subr.mxu0 0.0
    %1810 = vmatpush2.msra.mxu0 0.0
    %1811 = vmatprep.subr.mxu0 0.0
    %1812 = vmatpush2.msra.mxu0 0.0
    %1813 = vmatprep.mubr.f32.mxu0 0.0
    %1814 = vmatmul.mubr.f32.gmra.mxu0 %v1744
    %v1815 = vpop.f32.mrf.mxu0
    %v1816 = vadd.f32 0.0, %v1815
    %v1817 = vpop.f32.mrf.mxu0
    %v1818 = vadd.f32 0.0, %v1817
    %1819 = vmatprep.mubr.f32.mxu0 0.0
    %1820 = vmatmul.mubr.f32.gmra.mxu0 %v1747
    %v1821 = vpop.f32.mrf.mxu0
    %v1822 = vadd.f32 0.0, %v1821
    %v1823 = vpop.f32.mrf.mxu0
    %v1824 = vadd.f32 0.0, %v1823
    %1825 = vdwg.mxu0
    %s1826 = scalar_lea.vmem [#allocation14], 16
    %v1827 = vld [vmem:[%s1826] sm:$0xff]
    %v1828 = vld [vmem:[%s1826 + $0x8] sm:$0xff]
    %v1830 = vsel %vm588, %v1827, 0
    %v1833 = vsel %vm588, %v1828, 0
    %1835 = vmatprep.subr.mxu0 0.0
    %1836 = vmatpush1.msra.mxu0 0.0
    %1837 = vmatprep.subr.mxu0 0.0
    %1838 = vmatpush1.msra.mxu0 0.0
    %1839 = vmatprep.subr.mxu0 0.0
    %1840 = vmatpush1.msra.mxu0 0.0
    %1841 = vmatprep.subr.mxu0 0.0
    %1842 = vmatpush1.msra.mxu0 0.0
    %1843 = vmatprep.subr.mxu0 0.0
    %1844 = vmatpush1.msra.mxu0 0.0
    %1845 = vmatprep.subr.mxu0 0.0
    %1846 = vmatpush1.msra.mxu0 0.0
    %1847 = vmatprep.subr.mxu0 0.0
    %1848 = vmatpush1.msra.mxu0 0.0
    %1849 = vmatprep.subr.mxu0 0.0
    %1850 = vmatpush1.msra.mxu0 0.0
    %1851 = vmatprep.subr.mxu0 0.0
    %1852 = vmatpush1.msra.mxu0 0.0
    %1853 = vmatprep.subr.mxu0 0.0
    %1854 = vmatpush1.msra.mxu0 0.0
    %1855 = vmatprep.subr.mxu0 0.0
    %1856 = vmatpush1.msra.mxu0 0.0
    %1857 = vmatprep.subr.mxu0 0.0
    %1858 = vmatpush1.msra.mxu0 0.0
    %1859 = vmatprep.subr.mxu0 %v1740
    %1860 = vmatpush1.msra.mxu0 %v1739
    %1861 = vmatprep.subr.mxu0 %v1738
    %1862 = vmatpush1.msra.mxu0 %v1737
    %1863 = vmatprep.subr.mxu0 %v1736
    %1864 = vmatpush1.msra.mxu0 %v1735
    %1865 = vmatprep.subr.mxu0 %v1734
    %1866 = vmatpush1.msra.mxu0 %v1733
    %1867 = vmatprep.subr.mxu0 0.0
    %1868 = vmatpush2.msra.mxu0 0.0
    %1869 = vmatprep.subr.mxu0 0.0
    %1870 = vmatpush2.msra.mxu0 0.0
    %1871 = vmatprep.subr.mxu0 0.0
    %1872 = vmatpush2.msra.mxu0 0.0
    %1873 = vmatprep.subr.mxu0 0.0
    %1874 = vmatpush2.msra.mxu0 0.0
    %1875 = vmatprep.subr.mxu0 0.0
    %1876 = vmatpush2.msra.mxu0 0.0
    %1877 = vmatprep.subr.mxu0 0.0
    %1878 = vmatpush2.msra.mxu0 0.0
    %1879 = vmatprep.subr.mxu0 0.0
    %1880 = vmatpush2.msra.mxu0 0.0
    %1881 = vmatprep.subr.mxu0 0.0
    %1882 = vmatpush2.msra.mxu0 0.0
    %1883 = vmatprep.subr.mxu0 0.0
    %1884 = vmatpush2.msra.mxu0 0.0
    %1885 = vmatprep.subr.mxu0 0.0
    %1886 = vmatpush2.msra.mxu0 0.0
    %1887 = vmatprep.subr.mxu0 0.0
    %1888 = vmatpush2.msra.mxu0 0.0
    %1889 = vmatprep.subr.mxu0 0.0
    %1890 = vmatpush2.msra.mxu0 0.0
    %1891 = vmatprep.subr.mxu0 0.0
    %1892 = vmatpush2.msra.mxu0 0.0
    %1893 = vmatprep.subr.mxu0 0.0
    %1894 = vmatpush2.msra.mxu0 0.0
    %1895 = vmatprep.subr.mxu0 0.0
    %1896 = vmatpush2.msra.mxu0 0.0
    %1897 = vmatprep.subr.mxu0 0.0
    %1898 = vmatpush2.msra.mxu0 0.0
    %1899 = vmatprep.mubr.f32.mxu0 0.0
    %1900 = vmatmul.mubr.f32.gmra.mxu0 %v1830
    %v1901 = vpop.f32.mrf.mxu0
    %v1902 = vadd.f32 0.0, %v1901
    %v1903 = vpop.f32.mrf.mxu0
    %v1904 = vadd.f32 0.0, %v1903
    %1905 = vmatprep.mubr.f32.mxu0 0.0
    %1906 = vmatmul.mubr.f32.gmra.mxu0 %v1833
    %v1907 = vpop.f32.mrf.mxu0
    %v1908 = vadd.f32 0.0, %v1907
    %v1909 = vpop.f32.mrf.mxu0
    %v1910 = vadd.f32 0.0, %v1909
    %1911 = vdwg.mxu0
    %v1912 = vmax.f32 %v1816, %v1902
    %v1913 = vmax.f32 %v1818, %v1904
    %v1914 = vmax.f32 %v1822, %v1908
    %v1915 = vmax.f32 %v1824, %v1910
    %v1916 = vld [vmem:[%s19] sm:$0xff]
    %v1917 = vld [vmem:[%s19 + $0x8] sm:$0xff]
    %v1918 = vld [vmem:[%s19 + $0x10] sm:$0xff]
    %v1919 = vld [vmem:[%s19 + $0x18] sm:$0xff]
    %v1920 = vld [vmem:[%s19 + $0x20] sm:$0xff]
    %v1921 = vld [vmem:[%s19 + $0x28] sm:$0xff]
    %v1922 = vld [vmem:[%s19 + $0x30] sm:$0xff]
    %v1923 = vld [vmem:[%s19 + $0x38] sm:$0xff]
    %v1924 = vld [vmem:[%s19 + $0x40] sm:$0xff]
    %v1925 = vld [vmem:[%s19 + $0x48] sm:$0xff]
    %v1926 = vld [vmem:[%s19 + $0x50] sm:$0xff]
    %v1927 = vld [vmem:[%s19 + $0x58] sm:$0xff]
    %v1928 = vld [vmem:[%s19 + $0x60] sm:$0xff]
    %v1929 = vld [vmem:[%s19 + $0x68] sm:$0xff]
    %v1930 = vld [vmem:[%s19 + $0x70] sm:$0xff]
    %v1931 = vld [vmem:[%s19 + $0x78] sm:$0xff]
    %v1932 = vld [vmem:[%s19 + $0x80] sm:$0xff]
    %v1933 = vld [vmem:[%s19 + $0x88] sm:$0xff]
    %v1934 = vld [vmem:[%s19 + $0x90] sm:$0xff]
    %v1935 = vld [vmem:[%s19 + $0x98] sm:$0xff]
    %v1936 = vld [vmem:[%s19 + $0xa0] sm:$0xff]
    %v1937 = vld [vmem:[%s19 + $0xa8] sm:$0xff]
    %v1938 = vld [vmem:[%s19 + $0xb0] sm:$0xff]
    %v1939 = vld [vmem:[%s19 + $0xb8] sm:$0xff]
    %v1940 = vld [vmem:[%s19 + $0xc0] sm:$0xff]
    %v1941 = vld [vmem:[%s19 + $0xc8] sm:$0xff]
    %v1942 = vld [vmem:[%s19 + $0xd0] sm:$0xff]
    %v1943 = vld [vmem:[%s19 + $0xd8] sm:$0xff]
    %v1944 = vld [vmem:[%s19 + $0xe0] sm:$0xff]
    %v1945 = vld [vmem:[%s19 + $0xe8] sm:$0xff]
    %v1946 = vld [vmem:[%s19 + $0xf0] sm:$0xff]
    %v1947 = vld [vmem:[%s19 + $0xf8] sm:$0xff]
    %1948 = vmatprep.subr.mxu0 0.0
    %1949 = vmatpush1.msra.mxu0 %v1931
    %1950 = vmatprep.subr.mxu0 0.0
    %1951 = vmatpush1.msra.mxu0 %v1930
    %1952 = vmatprep.subr.mxu0 0.0
    %1953 = vmatpush1.msra.mxu0 %v1929
    %1954 = vmatprep.subr.mxu0 0.0
    %1955 = vmatpush1.msra.mxu0 %v1928
    %1956 = vmatprep.subr.mxu0 0.0
    %1957 = vmatpush1.msra.mxu0 %v1927
    %1958 = vmatprep.subr.mxu0 0.0
    %1959 = vmatpush1.msra.mxu0 %v1926
    %1960 = vmatprep.subr.mxu0 0.0
    %1961 = vmatpush1.msra.mxu0 %v1925
    %1962 = vmatprep.subr.mxu0 0.0
    %1963 = vmatpush1.msra.mxu0 %v1924
    %1964 = vmatprep.subr.mxu0 0.0
    %1965 = vmatpush1.msra.mxu0 %v1923
    %1966 = vmatprep.subr.mxu0 0.0
    %1967 = vmatpush1.msra.mxu0 %v1922
    %1968 = vmatprep.subr.mxu0 0.0
    %1969 = vmatpush1.msra.mxu0 %v1921
    %1970 = vmatprep.subr.mxu0 0.0
    %1971 = vmatpush1.msra.mxu0 %v1920
    %1972 = vmatprep.subr.mxu0 0.0
    %1973 = vmatpush1.msra.mxu0 %v1919
    %1974 = vmatprep.subr.mxu0 0.0
    %1975 = vmatpush1.msra.mxu0 %v1918
    %1976 = vmatprep.subr.mxu0 0.0
    %1977 = vmatpush1.msra.mxu0 %v1917
    %1978 = vmatprep.subr.mxu0 0.0
    %1979 = vmatpush1.msra.mxu0 %v1916
    %1980 = vmatprep.subr.mxu0 0.0
    %1981 = vmatpush2.msra.mxu0 %v1947
    %1982 = vmatprep.subr.mxu0 0.0
    %1983 = vmatpush2.msra.mxu0 %v1946
    %1984 = vmatprep.subr.mxu0 0.0
    %1985 = vmatpush2.msra.mxu0 %v1945
    %1986 = vmatprep.subr.mxu0 0.0
    %1987 = vmatpush2.msra.mxu0 %v1944
    %1988 = vmatprep.subr.mxu0 0.0
    %1989 = vmatpush2.msra.mxu0 %v1943
    %1990 = vmatprep.subr.mxu0 0.0
    %1991 = vmatpush2.msra.mxu0 %v1942
    %1992 = vmatprep.subr.mxu0 0.0
    %1993 = vmatpush2.msra.mxu0 %v1941
    %1994 = vmatprep.subr.mxu0 0.0
    %1995 = vmatpush2.msra.mxu0 %v1940
    %1996 = vmatprep.subr.mxu0 0.0
    %1997 = vmatpush2.msra.mxu0 %v1939
    %1998 = vmatprep.subr.mxu0 0.0
    %1999 = vmatpush2.msra.mxu0 %v1938
    %2000 = vmatprep.subr.mxu0 0.0
    %2001 = vmatpush2.msra.mxu0 %v1937
    %2002 = vmatprep.subr.mxu0 0.0
    %2003 = vmatpush2.msra.mxu0 %v1936
    %2004 = vmatprep.subr.mxu0 0.0
    %2005 = vmatpush2.msra.mxu0 %v1935
    %2006 = vmatprep.subr.mxu0 0.0
    %2007 = vmatpush2.msra.mxu0 %v1934
    %2008 = vmatprep.subr.mxu0 0.0
    %2009 = vmatpush2.msra.mxu0 %v1933
    %2010 = vmatprep.subr.mxu0 0.0
    %2011 = vmatpush2.msra.mxu0 %v1932
    %2012 = vmatprep.mubr.f32.mxu0 %v1913
    %2013 = vmatmul.mubr.f32.gmra.mxu0 %v1912
    %v2014 = vpop.f32.mrf.mxu0
    %v2015 = vadd.f32 0.0, %v2014
    %v2016 = vpop.f32.mrf.mxu0
    %2017 = vmatprep.mubr.f32.mxu0 %v1915
    %2018 = vmatmul.mubr.f32.gmra.mxu0 %v1914
    %v2019 = vpop.f32.mrf.mxu0
    %v2020 = vadd.f32 0.0, %v2019
    %v2021 = vpop.f32.mrf.mxu0
    %2022 = vdwg.mxu0
    %s2023 = scalar_lea.vmem %s19, 256
    %v2024 = vld [vmem:[%s2023] sm:$0xff]
    %v2025 = vld [vmem:[%s2023 + $0x8] sm:$0xff]
    %v2026 = vld [vmem:[%s2023 + $0x10] sm:$0xff]
    %v2027 = vld [vmem:[%s2023 + $0x18] sm:$0xff]
    %v2028 = vld [vmem:[%s2023 + $0x20] sm:$0xff]
    %v2029 = vld [vmem:[%s2023 + $0x28] sm:$0xff]
    %v2030 = vld [vmem:[%s2023 + $0x30] sm:$0xff]
    %v2031 = vld [vmem:[%s2023 + $0x38] sm:$0xff]
    %v2032 = vld [vmem:[%s2023 + $0x40] sm:$0xff]
    %v2033 = vld [vmem:[%s2023 + $0x48] sm:$0xff]
    %v2034 = vld [vmem:[%s2023 + $0x50] sm:$0xff]
    %v2035 = vld [vmem:[%s2023 + $0x58] sm:$0xff]
    %v2036 = vld [vmem:[%s2023 + $0x60] sm:$0xff]
    %v2037 = vld [vmem:[%s2023 + $0x68] sm:$0xff]
    %v2038 = vld [vmem:[%s2023 + $0x70] sm:$0xff]
    %v2039 = vld [vmem:[%s2023 + $0x78] sm:$0xff]
    %v2040 = vld [vmem:[%s2023 + $0x80] sm:$0xff]
    %v2041 = vld [vmem:[%s2023 + $0x88] sm:$0xff]
    %v2042 = vld [vmem:[%s2023 + $0x90] sm:$0xff]
    %v2043 = vld [vmem:[%s2023 + $0x98] sm:$0xff]
    %v2044 = vld [vmem:[%s2023 + $0xa0] sm:$0xff]
    %v2045 = vld [vmem:[%s2023 + $0xa8] sm:$0xff]
    %v2046 = vld [vmem:[%s2023 + $0xb0] sm:$0xff]
    %v2047 = vld [vmem:[%s2023 + $0xb8] sm:$0xff]
    %v2048 = vld [vmem:[%s2023 + $0xc0] sm:$0xff]
    %v2049 = vld [vmem:[%s2023 + $0xc8] sm:$0xff]
    %v2050 = vld [vmem:[%s2023 + $0xd0] sm:$0xff]
    %v2051 = vld [vmem:[%s2023 + $0xd8] sm:$0xff]
    %v2052 = vld [vmem:[%s2023 + $0xe0] sm:$0xff]
    %v2053 = vld [vmem:[%s2023 + $0xe8] sm:$0xff]
    %v2054 = vld [vmem:[%s2023 + $0xf0] sm:$0xff]
    %v2055 = vld [vmem:[%s2023 + $0xf8] sm:$0xff]
    %2056 = vmatprep.subr.mxu0 0.0
    %2057 = vmatpush1.msra.mxu0 %v2039
    %2058 = vmatprep.subr.mxu0 0.0
    %2059 = vmatpush1.msra.mxu0 %v2038
    %2060 = vmatprep.subr.mxu0 0.0
    %2061 = vmatpush1.msra.mxu0 %v2037
    %2062 = vmatprep.subr.mxu0 0.0
    %2063 = vmatpush1.msra.mxu0 %v2036
    %2064 = vmatprep.subr.mxu0 0.0
    %2065 = vmatpush1.msra.mxu0 %v2035
    %2066 = vmatprep.subr.mxu0 0.0
    %2067 = vmatpush1.msra.mxu0 %v2034
    %2068 = vmatprep.subr.mxu0 0.0
    %2069 = vmatpush1.msra.mxu0 %v2033
    %2070 = vmatprep.subr.mxu0 0.0
    %2071 = vmatpush1.msra.mxu0 %v2032
    %2072 = vmatprep.subr.mxu0 0.0
    %2073 = vmatpush1.msra.mxu0 %v2031
    %2074 = vmatprep.subr.mxu0 0.0
    %2075 = vmatpush1.msra.mxu0 %v2030
    %2076 = vmatprep.subr.mxu0 0.0
    %2077 = vmatpush1.msra.mxu0 %v2029
    %2078 = vmatprep.subr.mxu0 0.0
    %2079 = vmatpush1.msra.mxu0 %v2028
    %2080 = vmatprep.subr.mxu0 0.0
    %2081 = vmatpush1.msra.mxu0 %v2027
    %2082 = vmatprep.subr.mxu0 0.0
    %2083 = vmatpush1.msra.mxu0 %v2026
    %2084 = vmatprep.subr.mxu0 0.0
    %2085 = vmatpush1.msra.mxu0 %v2025
    %2086 = vmatprep.subr.mxu0 0.0
    %2087 = vmatpush1.msra.mxu0 %v2024
    %2088 = vmatprep.subr.mxu0 0.0
    %2089 = vmatpush2.msra.mxu0 %v2055
    %2090 = vmatprep.subr.mxu0 0.0
    %2091 = vmatpush2.msra.mxu0 %v2054
    %2092 = vmatprep.subr.mxu0 0.0
    %2093 = vmatpush2.msra.mxu0 %v2053
    %2094 = vmatprep.subr.mxu0 0.0
    %2095 = vmatpush2.msra.mxu0 %v2052
    %2096 = vmatprep.subr.mxu0 0.0
    %2097 = vmatpush2.msra.mxu0 %v2051
    %2098 = vmatprep.subr.mxu0 0.0
    %2099 = vmatpush2.msra.mxu0 %v2050
    %2100 = vmatprep.subr.mxu0 0.0
    %2101 = vmatpush2.msra.mxu0 %v2049
    %2102 = vmatprep.subr.mxu0 0.0
    %2103 = vmatpush2.msra.mxu0 %v2048
    %2104 = vmatprep.subr.mxu0 0.0
    %2105 = vmatpush2.msra.mxu0 %v2047
    %2106 = vmatprep.subr.mxu0 0.0
    %2107 = vmatpush2.msra.mxu0 %v2046
    %2108 = vmatprep.subr.mxu0 0.0
    %2109 = vmatpush2.msra.mxu0 %v2045
    %2110 = vmatprep.subr.mxu0 0.0
    %2111 = vmatpush2.msra.mxu0 %v2044
    %2112 = vmatprep.subr.mxu0 0.0
    %2113 = vmatpush2.msra.mxu0 %v2043
    %2114 = vmatprep.subr.mxu0 0.0
    %2115 = vmatpush2.msra.mxu0 %v2042
    %2116 = vmatprep.subr.mxu0 0.0
    %2117 = vmatpush2.msra.mxu0 %v2041
    %2118 = vmatprep.subr.mxu0 0.0
    %2119 = vmatpush2.msra.mxu0 %v2040
    %2120 = vmatprep.mubr.f32.mxu0 %v1913
    %2121 = vmatmul.mubr.f32.gmra.mxu0 %v1912
    %v2122 = vpop.f32.mrf.mxu0
    %v2123 = vadd.f32 0.0, %v2122
    %v2124 = vpop.f32.mrf.mxu0
    %2125 = vmatprep.mubr.f32.mxu0 %v1915
    %2126 = vmatmul.mubr.f32.gmra.mxu0 %v1914
    %v2127 = vpop.f32.mrf.mxu0
    %v2128 = vadd.f32 0.0, %v2127
    %v2129 = vpop.f32.mrf.mxu0
    %2130 = vdwg.mxu0
    %v2131 = vmax.f32 %v2015, %v2123
    %v2132 = vmax.f32 %v2020, %v2128
    %v2133 = vld [vmem:[#allocation16] sm:$0xff]
    %v2134 = vld [vmem:[#allocation16 + $0x8] sm:$0xff]
    %v2136 = vsel %vm797, %v2133, 0
    %v2139 = vsel %vm797, %v2134, 0
    %2141 = vmatprep.subr.mxu0 0.0
    %2142 = vmatpush1.msra.mxu0 0.0
    %2143 = vmatprep.subr.mxu0 0.0
    %2144 = vmatpush1.msra.mxu0 0.0
    %2145 = vmatprep.subr.mxu0 0.0
    %2146 = vmatpush1.msra.mxu0 0.0
    %2147 = vmatprep.subr.mxu0 0.0
    %2148 = vmatpush1.msra.mxu0 0.0
    %2149 = vmatprep.subr.mxu0 0.0
    %2150 = vmatpush1.msra.mxu0 0.0
    %2151 = vmatprep.subr.mxu0 0.0
    %2152 = vmatpush1.msra.mxu0 0.0
    %2153 = vmatprep.subr.mxu0 0.0
    %2154 = vmatpush1.msra.mxu0 0.0
    %2155 = vmatprep.subr.mxu0 0.0
    %2156 = vmatpush1.msra.mxu0 0.0
    %2157 = vmatprep.subr.mxu0 0.0
    %2158 = vmatpush1.msra.mxu0 0.0
    %2159 = vmatprep.subr.mxu0 0.0
    %2160 = vmatpush1.msra.mxu0 0.0
    %2161 = vmatprep.subr.mxu0 0.0
    %2162 = vmatpush1.msra.mxu0 0.0
    %2163 = vmatprep.subr.mxu0 0.0
    %2164 = vmatpush1.msra.mxu0 0.0
    %2165 = vmatprep.subr.mxu0 0.0
    %2166 = vmatpush1.msra.mxu0 0.0
    %2167 = vmatprep.subr.mxu0 0.0
    %2168 = vmatpush1.msra.mxu0 0.0
    %2169 = vmatprep.subr.mxu0 0.0
    %2170 = vmatpush1.msra.mxu0 %v2132
    %2171 = vmatprep.subr.mxu0 0.0
    %2172 = vmatpush1.msra.mxu0 %v2131
    %2173 = vmatprep.subr.mxu0 0.0
    %2174 = vmatpush2.msra.mxu0 0.0
    %2175 = vmatprep.subr.mxu0 0.0
    %2176 = vmatpush2.msra.mxu0 0.0
    %2177 = vmatprep.subr.mxu0 0.0
    %2178 = vmatpush2.msra.mxu0 0.0
    %2179 = vmatprep.subr.mxu0 0.0
    %2180 = vmatpush2.msra.mxu0 0.0
    %2181 = vmatprep.subr.mxu0 0.0
    %2182 = vmatpush2.msra.mxu0 0.0
    %2183 = vmatprep.subr.mxu0 0.0
    %2184 = vmatpush2.msra.mxu0 0.0
    %2185 = vmatprep.subr.mxu0 0.0
    %2186 = vmatpush2.msra.mxu0 0.0
    %2187 = vmatprep.subr.mxu0 0.0
    %2188 = vmatpush2.msra.mxu0 0.0
    %2189 = vmatprep.subr.mxu0 0.0
    %2190 = vmatpush2.msra.mxu0 0.0
    %2191 = vmatprep.subr.mxu0 0.0
    %2192 = vmatpush2.msra.mxu0 0.0
    %2193 = vmatprep.subr.mxu0 0.0
    %2194 = vmatpush2.msra.mxu0 0.0
    %2195 = vmatprep.subr.mxu0 0.0
    %2196 = vmatpush2.msra.mxu0 0.0
    %2197 = vmatprep.subr.mxu0 0.0
    %2198 = vmatpush2.msra.mxu0 0.0
    %2199 = vmatprep.subr.mxu0 0.0
    %2200 = vmatpush2.msra.mxu0 0.0
    %2201 = vmatprep.subr.mxu0 0.0
    %2202 = vmatpush2.msra.mxu0 0.0
    %2203 = vmatprep.subr.mxu0 0.0
    %2204 = vmatpush2.msra.mxu0 0.0
    %2205 = vmatprep.mubr.f32.mxu0 0.0
    %2206 = vmatmul.mubr.f32.gmra.mxu0 %v2136
    %v2207 = vpop.f32.mrf.mxu0
    %v2208 = vadd.f32 0.0, %v2207
    %v2209 = vpop.f32.mrf.mxu0
    %2210 = vmatprep.mubr.f32.mxu0 0.0
    %2211 = vmatmul.mubr.f32.gmra.mxu0 %v2139
    %v2212 = vpop.f32.mrf.mxu0
    %v2213 = vadd.f32 0.0, %v2212
    %v2214 = vpop.f32.mrf.mxu0
    %2215 = vdwg.mxu0
    %v2216 = vld [vmem:[%s23] sm:$0xff]
    %v2217 = vld [vmem:[%s23 + $0x8] sm:$0xff]
    %v2218 = vld [vmem:[%s23 + $0x10] sm:$0xff]
    %v2219 = vld [vmem:[%s23 + $0x18] sm:$0xff]
    %v2220 = vld [vmem:[%s23 + $0x20] sm:$0xff]
    %v2221 = vld [vmem:[%s23 + $0x28] sm:$0xff]
    %v2222 = vld [vmem:[%s23 + $0x30] sm:$0xff]
    %v2223 = vld [vmem:[%s23 + $0x38] sm:$0xff]
    %v2224 = vld [vmem:[%s23 + $0x40] sm:$0xff]
    %v2225 = vld [vmem:[%s23 + $0x48] sm:$0xff]
    %v2226 = vld [vmem:[%s23 + $0x50] sm:$0xff]
    %v2227 = vld [vmem:[%s23 + $0x58] sm:$0xff]
    %v2228 = vld [vmem:[%s23 + $0x60] sm:$0xff]
    %v2229 = vld [vmem:[%s23 + $0x68] sm:$0xff]
    %v2230 = vld [vmem:[%s23 + $0x70] sm:$0xff]
    %v2231 = vld [vmem:[%s23 + $0x78] sm:$0xff]
    %v2232 = vld [vmem:[%s23 + $0x80] sm:$0xff]
    %v2233 = vld [vmem:[%s23 + $0x88] sm:$0xff]
    %v2234 = vld [vmem:[%s23 + $0x90] sm:$0xff]
    %v2235 = vld [vmem:[%s23 + $0x98] sm:$0xff]
    %v2236 = vld [vmem:[%s23 + $0xa0] sm:$0xff]
    %v2237 = vld [vmem:[%s23 + $0xa8] sm:$0xff]
    %v2238 = vld [vmem:[%s23 + $0xb0] sm:$0xff]
    %v2239 = vld [vmem:[%s23 + $0xb8] sm:$0xff]
    %v2240 = vld [vmem:[%s23 + $0xc0] sm:$0xff]
    %v2241 = vld [vmem:[%s23 + $0xc8] sm:$0xff]
    %v2242 = vld [vmem:[%s23 + $0xd0] sm:$0xff]
    %v2243 = vld [vmem:[%s23 + $0xd8] sm:$0xff]
    %v2244 = vld [vmem:[%s23 + $0xe0] sm:$0xff]
    %v2245 = vld [vmem:[%s23 + $0xe8] sm:$0xff]
    %v2246 = vld [vmem:[%s23 + $0xf0] sm:$0xff]
    %v2247 = vld [vmem:[%s23 + $0xf8] sm:$0xff]
    %s2248 = scalar_lea.vmem [#allocation16], 16
    %v2249 = vld [vmem:[%s2248] sm:$0xff]
    %v2250 = vld [vmem:[%s2248 + $0x8] sm:$0xff]
    %v2252 = vsel %vm797, %v2249, 0
    %v2255 = vsel %vm797, %v2250, 0
    %2257 = vmatprep.subr.mxu0 0.0
    %2258 = vmatpush1.msra.mxu0 0.0
    %2259 = vmatprep.subr.mxu0 0.0
    %2260 = vmatpush1.msra.mxu0 0.0
    %2261 = vmatprep.subr.mxu0 0.0
    %2262 = vmatpush1.msra.mxu0 0.0
    %2263 = vmatprep.subr.mxu0 0.0
    %2264 = vmatpush1.msra.mxu0 0.0
    %2265 = vmatprep.subr.mxu0 0.0
    %2266 = vmatpush1.msra.mxu0 0.0
    %2267 = vmatprep.subr.mxu0 0.0
    %2268 = vmatpush1.msra.mxu0 0.0
    %2269 = vmatprep.subr.mxu0 0.0
    %2270 = vmatpush1.msra.mxu0 0.0
    %2271 = vmatprep.subr.mxu0 0.0
    %2272 = vmatpush1.msra.mxu0 0.0
    %2273 = vmatprep.subr.mxu0 0.0
    %2274 = vmatpush1.msra.mxu0 0.0
    %2275 = vmatprep.subr.mxu0 0.0
    %2276 = vmatpush1.msra.mxu0 0.0
    %2277 = vmatprep.subr.mxu0 0.0
    %2278 = vmatpush1.msra.mxu0 0.0
    %2279 = vmatprep.subr.mxu0 0.0
    %2280 = vmatpush1.msra.mxu0 0.0
    %2281 = vmatprep.subr.mxu0 0.0
    %2282 = vmatpush1.msra.mxu0 0.0
    %2283 = vmatprep.subr.mxu0 0.0
    %2284 = vmatpush1.msra.mxu0 0.0
    %2285 = vmatprep.subr.mxu0 0.0
    %2286 = vmatpush1.msra.mxu0 %v2132
    %2287 = vmatprep.subr.mxu0 0.0
    %2288 = vmatpush1.msra.mxu0 %v2131
    %2289 = vmatprep.subr.mxu0 0.0
    %2290 = vmatpush2.msra.mxu0 0.0
    %2291 = vmatprep.subr.mxu0 0.0
    %2292 = vmatpush2.msra.mxu0 0.0
    %2293 = vmatprep.subr.mxu0 0.0
    %2294 = vmatpush2.msra.mxu0 0.0
    %2295 = vmatprep.subr.mxu0 0.0
    %2296 = vmatpush2.msra.mxu0 0.0
    %2297 = vmatprep.subr.mxu0 0.0
    %2298 = vmatpush2.msra.mxu0 0.0
    %2299 = vmatprep.subr.mxu0 0.0
    %2300 = vmatpush2.msra.mxu0 0.0
    %2301 = vmatprep.subr.mxu0 0.0
    %2302 = vmatpush2.msra.mxu0 0.0
    %2303 = vmatprep.subr.mxu0 0.0
    %2304 = vmatpush2.msra.mxu0 0.0
    %2305 = vmatprep.subr.mxu0 0.0
    %2306 = vmatpush2.msra.mxu0 0.0
    %2307 = vmatprep.subr.mxu0 0.0
    %2308 = vmatpush2.msra.mxu0 0.0
    %2309 = vmatprep.subr.mxu0 0.0
    %2310 = vmatpush2.msra.mxu0 0.0
    %2311 = vmatprep.subr.mxu0 0.0
    %2312 = vmatpush2.msra.mxu0 0.0
    %2313 = vmatprep.subr.mxu0 0.0
    %2314 = vmatpush2.msra.mxu0 0.0
    %2315 = vmatprep.subr.mxu0 0.0
    %2316 = vmatpush2.msra.mxu0 0.0
    %2317 = vmatprep.subr.mxu0 0.0
    %2318 = vmatpush2.msra.mxu0 0.0
    %2319 = vmatprep.subr.mxu0 0.0
    %2320 = vmatpush2.msra.mxu0 0.0
    %2321 = vmatprep.mubr.f32.mxu0 0.0
    %2322 = vmatmul.mubr.f32.gmra.mxu0 %v2252
    %v2323 = vpop.f32.mrf.mxu0
    %v2324 = vadd.f32 0.0, %v2323
    %v2325 = vpop.f32.mrf.mxu0
    %2326 = vmatprep.mubr.f32.mxu0 0.0
    %2327 = vmatmul.mubr.f32.gmra.mxu0 %v2255
    %v2328 = vpop.f32.mrf.mxu0
    %v2329 = vadd.f32 0.0, %v2328
    %v2330 = vpop.f32.mrf.mxu0
    %2331 = vdwg.mxu0
    %s2332 = scalar_lea.vmem %s23, 256
    %v2333 = vld [vmem:[%s2332] sm:$0xff]
    %v2334 = vld [vmem:[%s2332 + $0x8] sm:$0xff]
    %v2335 = vld [vmem:[%s2332 + $0x10] sm:$0xff]
    %v2336 = vld [vmem:[%s2332 + $0x18] sm:$0xff]
    %v2337 = vld [vmem:[%s2332 + $0x20] sm:$0xff]
    %v2338 = vld [vmem:[%s2332 + $0x28] sm:$0xff]
    %v2339 = vld [vmem:[%s2332 + $0x30] sm:$0xff]
    %v2340 = vld [vmem:[%s2332 + $0x38] sm:$0xff]
    %v2341 = vld [vmem:[%s2332 + $0x40] sm:$0xff]
    %v2342 = vld [vmem:[%s2332 + $0x48] sm:$0xff]
    %v2343 = vld [vmem:[%s2332 + $0x50] sm:$0xff]
    %v2344 = vld [vmem:[%s2332 + $0x58] sm:$0xff]
    %v2345 = vld [vmem:[%s2332 + $0x60] sm:$0xff]
    %v2346 = vld [vmem:[%s2332 + $0x68] sm:$0xff]
    %v2347 = vld [vmem:[%s2332 + $0x70] sm:$0xff]
    %v2348 = vld [vmem:[%s2332 + $0x78] sm:$0xff]
    %v2349 = vld [vmem:[%s2332 + $0x80] sm:$0xff]
    %v2350 = vld [vmem:[%s2332 + $0x88] sm:$0xff]
    %v2351 = vld [vmem:[%s2332 + $0x90] sm:$0xff]
    %v2352 = vld [vmem:[%s2332 + $0x98] sm:$0xff]
    %v2353 = vld [vmem:[%s2332 + $0xa0] sm:$0xff]
    %v2354 = vld [vmem:[%s2332 + $0xa8] sm:$0xff]
    %v2355 = vld [vmem:[%s2332 + $0xb0] sm:$0xff]
    %v2356 = vld [vmem:[%s2332 + $0xb8] sm:$0xff]
    %v2357 = vld [vmem:[%s2332 + $0xc0] sm:$0xff]
    %v2358 = vld [vmem:[%s2332 + $0xc8] sm:$0xff]
    %v2359 = vld [vmem:[%s2332 + $0xd0] sm:$0xff]
    %v2360 = vld [vmem:[%s2332 + $0xd8] sm:$0xff]
    %v2361 = vld [vmem:[%s2332 + $0xe0] sm:$0xff]
    %v2362 = vld [vmem:[%s2332 + $0xe8] sm:$0xff]
    %v2363 = vld [vmem:[%s2332 + $0xf0] sm:$0xff]
    %v2364 = vld [vmem:[%s2332 + $0xf8] sm:$0xff]
    %2365 = vmatprep.subr.mxu0 %v2364
    %2366 = vmatpush1.msra.mxu0 %v2363
    %2367 = vmatprep.subr.mxu0 %v2362
    %2368 = vmatpush1.msra.mxu0 %v2361
    %2369 = vmatprep.subr.mxu0 %v2360
    %2370 = vmatpush1.msra.mxu0 %v2359
    %2371 = vmatprep.subr.mxu0 %v2358
    %2372 = vmatpush1.msra.mxu0 %v2357
    %2373 = vmatprep.subr.mxu0 %v2356
    %2374 = vmatpush1.msra.mxu0 %v2355
    %2375 = vmatprep.subr.mxu0 %v2354
    %2376 = vmatpush1.msra.mxu0 %v2353
    %2377 = vmatprep.subr.mxu0 %v2352
    %2378 = vmatpush1.msra.mxu0 %v2351
    %2379 = vmatprep.subr.mxu0 %v2350
    %2380 = vmatpush1.msra.mxu0 %v2349
    %2381 = vmatprep.subr.mxu0 %v2348
    %2382 = vmatpush1.msra.mxu0 %v2347
    %2383 = vmatprep.subr.mxu0 %v2346
    %2384 = vmatpush1.msra.mxu0 %v2345
    %2385 = vmatprep.subr.mxu0 %v2344
    %2386 = vmatpush1.msra.mxu0 %v2343
    %2387 = vmatprep.subr.mxu0 %v2342
    %2388 = vmatpush1.msra.mxu0 %v2341
    %2389 = vmatprep.subr.mxu0 %v2340
    %2390 = vmatpush1.msra.mxu0 %v2339
    %2391 = vmatprep.subr.mxu0 %v2338
    %2392 = vmatpush1.msra.mxu0 %v2337
    %2393 = vmatprep.subr.mxu0 %v2336
    %2394 = vmatpush1.msra.mxu0 %v2335
    %2395 = vmatprep.subr.mxu0 %v2334
    %2396 = vmatpush1.msra.mxu0 %v2333
    %2397 = vmatprep.subr.mxu0 0.0
    %2398 = vmatpush2.msra.mxu0 0.0
    %2399 = vmatprep.subr.mxu0 0.0
    %2400 = vmatpush2.msra.mxu0 0.0
    %2401 = vmatprep.subr.mxu0 0.0
    %2402 = vmatpush2.msra.mxu0 0.0
    %2403 = vmatprep.subr.mxu0 0.0
    %2404 = vmatpush2.msra.mxu0 0.0
    %2405 = vmatprep.subr.mxu0 0.0
    %2406 = vmatpush2.msra.mxu0 0.0
    %2407 = vmatprep.subr.mxu0 0.0
    %2408 = vmatpush2.msra.mxu0 0.0
    %2409 = vmatprep.subr.mxu0 0.0
    %2410 = vmatpush2.msra.mxu0 0.0
    %2411 = vmatprep.subr.mxu0 0.0
    %2412 = vmatpush2.msra.mxu0 0.0
    %2413 = vmatprep.subr.mxu0 0.0
    %2414 = vmatpush2.msra.mxu0 0.0
    %2415 = vmatprep.subr.mxu0 0.0
    %2416 = vmatpush2.msra.mxu0 0.0
    %2417 = vmatprep.subr.mxu0 0.0
    %2418 = vmatpush2.msra.mxu0 0.0
    %2419 = vmatprep.subr.mxu0 0.0
    %2420 = vmatpush2.msra.mxu0 0.0
    %2421 = vmatprep.subr.mxu0 0.0
    %2422 = vmatpush2.msra.mxu0 0.0
    %2423 = vmatprep.subr.mxu0 0.0
    %2424 = vmatpush2.msra.mxu0 0.0
    %2425 = vmatprep.subr.mxu0 0.0
    %2426 = vmatpush2.msra.mxu0 0.0
    %2427 = vmatprep.subr.mxu0 0.0
    %2428 = vmatpush2.msra.mxu0 0.0
    %2429 = vmatprep.mubr.f32.mxu0 0.0
    %2430 = vmatmul.mubr.f32.gmra.mxu0 %v2324
    %v2431 = vpop.f32.mrf.mxu0
    %v2432 = vadd.f32 0.0, %v2431
    %v2433 = vpop.f32.mrf.mxu0
    %v2434 = vadd.f32 0.0, %v2433
    %2435 = vmatprep.mubr.f32.mxu0 0.0
    %2436 = vmatmul.mubr.f32.gmra.mxu0 %v2329
    %v2437 = vpop.f32.mrf.mxu0
    %v2438 = vadd.f32 0.0, %v2437
    %v2439 = vpop.f32.mrf.mxu0
    %v2440 = vadd.f32 0.0, %v2439
    %2441 = vdwg.mxu0
    %2442 = vmatprep.subr.mxu0 %v2247
    %2443 = vmatpush1.msra.mxu0 %v2246
    %2444 = vmatprep.subr.mxu0 %v2245
    %2445 = vmatpush1.msra.mxu0 %v2244
    %2446 = vmatprep.subr.mxu0 %v2243
    %2447 = vmatpush1.msra.mxu0 %v2242
    %2448 = vmatprep.subr.mxu0 %v2241
    %2449 = vmatpush1.msra.mxu0 %v2240
    %2450 = vmatprep.subr.mxu0 %v2239
    %2451 = vmatpush1.msra.mxu0 %v2238
    %2452 = vmatprep.subr.mxu0 %v2237
    %2453 = vmatpush1.msra.mxu0 %v2236
    %2454 = vmatprep.subr.mxu0 %v2235
    %2455 = vmatpush1.msra.mxu0 %v2234
    %2456 = vmatprep.subr.mxu0 %v2233
    %2457 = vmatpush1.msra.mxu0 %v2232
    %2458 = vmatprep.subr.mxu0 %v2231
    %2459 = vmatpush1.msra.mxu0 %v2230
    %2460 = vmatprep.subr.mxu0 %v2229
    %2461 = vmatpush1.msra.mxu0 %v2228
    %2462 = vmatprep.subr.mxu0 %v2227
    %2463 = vmatpush1.msra.mxu0 %v2226
    %2464 = vmatprep.subr.mxu0 %v2225
    %2465 = vmatpush1.msra.mxu0 %v2224
    %2466 = vmatprep.subr.mxu0 %v2223
    %2467 = vmatpush1.msra.mxu0 %v2222
    %2468 = vmatprep.subr.mxu0 %v2221
    %2469 = vmatpush1.msra.mxu0 %v2220
    %2470 = vmatprep.subr.mxu0 %v2219
    %2471 = vmatpush1.msra.mxu0 %v2218
    %2472 = vmatprep.subr.mxu0 %v2217
    %2473 = vmatpush1.msra.mxu0 %v2216
    %2474 = vmatprep.subr.mxu0 0.0
    %2475 = vmatpush2.msra.mxu0 0.0
    %2476 = vmatprep.subr.mxu0 0.0
    %2477 = vmatpush2.msra.mxu0 0.0
    %2478 = vmatprep.subr.mxu0 0.0
    %2479 = vmatpush2.msra.mxu0 0.0
    %2480 = vmatprep.subr.mxu0 0.0
    %2481 = vmatpush2.msra.mxu0 0.0
    %2482 = vmatprep.subr.mxu0 0.0
    %2483 = vmatpush2.msra.mxu0 0.0
    %2484 = vmatprep.subr.mxu0 0.0
    %2485 = vmatpush2.msra.mxu0 0.0
    %2486 = vmatprep.subr.mxu0 0.0
    %2487 = vmatpush2.msra.mxu0 0.0
    %2488 = vmatprep.subr.mxu0 0.0
    %2489 = vmatpush2.msra.mxu0 0.0
    %2490 = vmatprep.subr.mxu0 0.0
    %2491 = vmatpush2.msra.mxu0 0.0
    %2492 = vmatprep.subr.mxu0 0.0
    %2493 = vmatpush2.msra.mxu0 0.0
    %2494 = vmatprep.subr.mxu0 0.0
    %2495 = vmatpush2.msra.mxu0 0.0
    %2496 = vmatprep.subr.mxu0 0.0
    %2497 = vmatpush2.msra.mxu0 0.0
    %2498 = vmatprep.subr.mxu0 0.0
    %2499 = vmatpush2.msra.mxu0 0.0
    %2500 = vmatprep.subr.mxu0 0.0
    %2501 = vmatpush2.msra.mxu0 0.0
    %2502 = vmatprep.subr.mxu0 0.0
    %2503 = vmatpush2.msra.mxu0 0.0
    %2504 = vmatprep.subr.mxu0 0.0
    %2505 = vmatpush2.msra.mxu0 0.0
    %2506 = vmatprep.mubr.f32.mxu0 0.0
    %2507 = vmatmul.mubr.f32.gmra.mxu0 %v2208
    %v2508 = vpop.f32.mrf.mxu0
    %v2509 = vadd.f32 %v2432, %v2508
    %v2510 = vpop.f32.mrf.mxu0
    %v2511 = vadd.f32 %v2434, %v2510
    %2512 = vmatprep.mubr.f32.mxu0 0.0
    %2513 = vmatmul.mubr.f32.gmra.mxu0 %v2213
    %v2514 = vpop.f32.mrf.mxu0
    %v2515 = vadd.f32 %v2438, %v2514
    %v2516 = vpop.f32.mrf.mxu0
    %v2517 = vadd.f32 %v2440, %v2516
    %2518 = vdwg.mxu0
    %s2519 = scalar_lea.vmem [#allocation16], 32
    %v2520 = vld [vmem:[%s2519] sm:$0xff]
    %v2521 = vld [vmem:[%s2519 + $0x8] sm:$0xff]
    %v2523 = vsel %vm797, %v2520, 0
    %v2526 = vsel %vm797, %v2521, 0
    %2528 = vmatprep.subr.mxu0 0.0
    %2529 = vmatpush1.msra.mxu0 0.0
    %2530 = vmatprep.subr.mxu0 0.0
    %2531 = vmatpush1.msra.mxu0 0.0
    %2532 = vmatprep.subr.mxu0 0.0
    %2533 = vmatpush1.msra.mxu0 0.0
    %2534 = vmatprep.subr.mxu0 0.0
    %2535 = vmatpush1.msra.mxu0 0.0
    %2536 = vmatprep.subr.mxu0 0.0
    %2537 = vmatpush1.msra.mxu0 0.0
    %2538 = vmatprep.subr.mxu0 0.0
    %2539 = vmatpush1.msra.mxu0 0.0
    %2540 = vmatprep.subr.mxu0 0.0
    %2541 = vmatpush1.msra.mxu0 0.0
    %2542 = vmatprep.subr.mxu0 0.0
    %2543 = vmatpush1.msra.mxu0 0.0
    %2544 = vmatprep.subr.mxu0 0.0
    %2545 = vmatpush1.msra.mxu0 0.0
    %2546 = vmatprep.subr.mxu0 0.0
    %2547 = vmatpush1.msra.mxu0 0.0
    %2548 = vmatprep.subr.mxu0 0.0
    %2549 = vmatpush1.msra.mxu0 0.0
    %2550 = vmatprep.subr.mxu0 0.0
    %2551 = vmatpush1.msra.mxu0 0.0
    %2552 = vmatprep.subr.mxu0 0.0
    %2553 = vmatpush1.msra.mxu0 0.0
    %2554 = vmatprep.subr.mxu0 0.0
    %2555 = vmatpush1.msra.mxu0 0.0
    %2556 = vmatprep.subr.mxu0 0.0
    %2557 = vmatpush1.msra.mxu0 %v2132
    %2558 = vmatprep.subr.mxu0 0.0
    %2559 = vmatpush1.msra.mxu0 %v2131
    %2560 = vmatprep.subr.mxu0 0.0
    %2561 = vmatpush2.msra.mxu0 0.0
    %2562 = vmatprep.subr.mxu0 0.0
    %2563 = vmatpush2.msra.mxu0 0.0
    %2564 = vmatprep.subr.mxu0 0.0
    %2565 = vmatpush2.msra.mxu0 0.0
    %2566 = vmatprep.subr.mxu0 0.0
    %2567 = vmatpush2.msra.mxu0 0.0
    %2568 = vmatprep.subr.mxu0 0.0
    %2569 = vmatpush2.msra.mxu0 0.0
    %2570 = vmatprep.subr.mxu0 0.0
    %2571 = vmatpush2.msra.mxu0 0.0
    %2572 = vmatprep.subr.mxu0 0.0
    %2573 = vmatpush2.msra.mxu0 0.0
    %2574 = vmatprep.subr.mxu0 0.0
    %2575 = vmatpush2.msra.mxu0 0.0
    %2576 = vmatprep.subr.mxu0 0.0
    %2577 = vmatpush2.msra.mxu0 0.0
    %2578 = vmatprep.subr.mxu0 0.0
    %2579 = vmatpush2.msra.mxu0 0.0
    %2580 = vmatprep.subr.mxu0 0.0
    %2581 = vmatpush2.msra.mxu0 0.0
    %2582 = vmatprep.subr.mxu0 0.0
    %2583 = vmatpush2.msra.mxu0 0.0
    %2584 = vmatprep.subr.mxu0 0.0
    %2585 = vmatpush2.msra.mxu0 0.0
    %2586 = vmatprep.subr.mxu0 0.0
    %2587 = vmatpush2.msra.mxu0 0.0
    %2588 = vmatprep.subr.mxu0 0.0
    %2589 = vmatpush2.msra.mxu0 0.0
    %2590 = vmatprep.subr.mxu0 0.0
    %2591 = vmatpush2.msra.mxu0 0.0
    %2592 = vmatprep.mubr.f32.mxu0 0.0
    %2593 = vmatmul.mubr.f32.gmra.mxu0 %v2523
    %v2594 = vpop.f32.mrf.mxu0
    %v2595 = vadd.f32 0.0, %v2594
    %v2596 = vpop.f32.mrf.mxu0
    %2597 = vmatprep.mubr.f32.mxu0 0.0
    %2598 = vmatmul.mubr.f32.gmra.mxu0 %v2526
    %v2599 = vpop.f32.mrf.mxu0
    %v2600 = vadd.f32 0.0, %v2599
    %v2601 = vpop.f32.mrf.mxu0
    %2602 = vdwg.mxu0
    %s2603 = scalar_lea.vmem %s23, 512
    %v2604 = vld [vmem:[%s2603] sm:$0xff]
    %v2605 = vld [vmem:[%s2603 + $0x8] sm:$0xff]
    %v2606 = vld [vmem:[%s2603 + $0x10] sm:$0xff]
    %v2607 = vld [vmem:[%s2603 + $0x18] sm:$0xff]
    %v2608 = vld [vmem:[%s2603 + $0x20] sm:$0xff]
    %v2609 = vld [vmem:[%s2603 + $0x28] sm:$0xff]
    %v2610 = vld [vmem:[%s2603 + $0x30] sm:$0xff]
    %v2611 = vld [vmem:[%s2603 + $0x38] sm:$0xff]
    %v2612 = vld [vmem:[%s2603 + $0x40] sm:$0xff]
    %v2613 = vld [vmem:[%s2603 + $0x48] sm:$0xff]
    %v2614 = vld [vmem:[%s2603 + $0x50] sm:$0xff]
    %v2615 = vld [vmem:[%s2603 + $0x58] sm:$0xff]
    %v2616 = vld [vmem:[%s2603 + $0x60] sm:$0xff]
    %v2617 = vld [vmem:[%s2603 + $0x68] sm:$0xff]
    %v2618 = vld [vmem:[%s2603 + $0x70] sm:$0xff]
    %v2619 = vld [vmem:[%s2603 + $0x78] sm:$0xff]
    %v2620 = vld [vmem:[%s2603 + $0x80] sm:$0xff]
    %v2621 = vld [vmem:[%s2603 + $0x88] sm:$0xff]
    %v2622 = vld [vmem:[%s2603 + $0x90] sm:$0xff]
    %v2623 = vld [vmem:[%s2603 + $0x98] sm:$0xff]
    %v2624 = vld [vmem:[%s2603 + $0xa0] sm:$0xff]
    %v2625 = vld [vmem:[%s2603 + $0xa8] sm:$0xff]
    %v2626 = vld [vmem:[%s2603 + $0xb0] sm:$0xff]
    %v2627 = vld [vmem:[%s2603 + $0xb8] sm:$0xff]
    %v2628 = vld [vmem:[%s2603 + $0xc0] sm:$0xff]
    %v2629 = vld [vmem:[%s2603 + $0xc8] sm:$0xff]
    %v2630 = vld [vmem:[%s2603 + $0xd0] sm:$0xff]
    %v2631 = vld [vmem:[%s2603 + $0xd8] sm:$0xff]
    %v2632 = vld [vmem:[%s2603 + $0xe0] sm:$0xff]
    %v2633 = vld [vmem:[%s2603 + $0xe8] sm:$0xff]
    %v2634 = vld [vmem:[%s2603 + $0xf0] sm:$0xff]
    %v2635 = vld [vmem:[%s2603 + $0xf8] sm:$0xff]
    %2636 = vmatprep.subr.mxu0 %v2635
    %2637 = vmatpush1.msra.mxu0 %v2634
    %2638 = vmatprep.subr.mxu0 %v2633
    %2639 = vmatpush1.msra.mxu0 %v2632
    %2640 = vmatprep.subr.mxu0 %v2631
    %2641 = vmatpush1.msra.mxu0 %v2630
    %2642 = vmatprep.subr.mxu0 %v2629
    %2643 = vmatpush1.msra.mxu0 %v2628
    %2644 = vmatprep.subr.mxu0 %v2627
    %2645 = vmatpush1.msra.mxu0 %v2626
    %2646 = vmatprep.subr.mxu0 %v2625
    %2647 = vmatpush1.msra.mxu0 %v2624
    %2648 = vmatprep.subr.mxu0 %v2623
    %2649 = vmatpush1.msra.mxu0 %v2622
    %2650 = vmatprep.subr.mxu0 %v2621
    %2651 = vmatpush1.msra.mxu0 %v2620
    %2652 = vmatprep.subr.mxu0 %v2619
    %2653 = vmatpush1.msra.mxu0 %v2618
    %2654 = vmatprep.subr.mxu0 %v2617
    %2655 = vmatpush1.msra.mxu0 %v2616
    %2656 = vmatprep.subr.mxu0 %v2615
    %2657 = vmatpush1.msra.mxu0 %v2614
    %2658 = vmatprep.subr.mxu0 %v2613
    %2659 = vmatpush1.msra.mxu0 %v2612
    %2660 = vmatprep.subr.mxu0 %v2611
    %2661 = vmatpush1.msra.mxu0 %v2610
    %2662 = vmatprep.subr.mxu0 %v2609
    %2663 = vmatpush1.msra.mxu0 %v2608
    %2664 = vmatprep.subr.mxu0 %v2607
    %2665 = vmatpush1.msra.mxu0 %v2606
    %2666 = vmatprep.subr.mxu0 %v2605
    %2667 = vmatpush1.msra.mxu0 %v2604
    %2668 = vmatprep.subr.mxu0 0.0
    %2669 = vmatpush2.msra.mxu0 0.0
    %2670 = vmatprep.subr.mxu0 0.0
    %2671 = vmatpush2.msra.mxu0 0.0
    %2672 = vmatprep.subr.mxu0 0.0
    %2673 = vmatpush2.msra.mxu0 0.0
    %2674 = vmatprep.subr.mxu0 0.0
    %2675 = vmatpush2.msra.mxu0 0.0
    %2676 = vmatprep.subr.mxu0 0.0
    %2677 = vmatpush2.msra.mxu0 0.0
    %2678 = vmatprep.subr.mxu0 0.0
    %2679 = vmatpush2.msra.mxu0 0.0
    %2680 = vmatprep.subr.mxu0 0.0
    %2681 = vmatpush2.msra.mxu0 0.0
    %2682 = vmatprep.subr.mxu0 0.0
    %2683 = vmatpush2.msra.mxu0 0.0
    %2684 = vmatprep.subr.mxu0 0.0
    %2685 = vmatpush2.msra.mxu0 0.0
    %2686 = vmatprep.subr.mxu0 0.0
    %2687 = vmatpush2.msra.mxu0 0.0
    %2688 = vmatprep.subr.mxu0 0.0
    %2689 = vmatpush2.msra.mxu0 0.0
    %2690 = vmatprep.subr.mxu0 0.0
    %2691 = vmatpush2.msra.mxu0 0.0
    %2692 = vmatprep.subr.mxu0 0.0
    %2693 = vmatpush2.msra.mxu0 0.0
    %2694 = vmatprep.subr.mxu0 0.0
    %2695 = vmatpush2.msra.mxu0 0.0
    %2696 = vmatprep.subr.mxu0 0.0
    %2697 = vmatpush2.msra.mxu0 0.0
    %2698 = vmatprep.subr.mxu0 0.0
    %2699 = vmatpush2.msra.mxu0 0.0
    %2700 = vmatprep.mubr.f32.mxu0 0.0
    %2701 = vmatmul.mubr.f32.gmra.mxu0 %v2595
    %v2702 = vpop.f32.mrf.mxu0
    %v2703 = vadd.f32 0.0, %v2702
    %v2704 = vpop.f32.mrf.mxu0
    %v2705 = vadd.f32 0.0, %v2704
    %2706 = vmatprep.mubr.f32.mxu0 0.0
    %2707 = vmatmul.mubr.f32.gmra.mxu0 %v2600
    %v2708 = vpop.f32.mrf.mxu0
    %v2709 = vadd.f32 0.0, %v2708
    %v2710 = vpop.f32.mrf.mxu0
    %v2711 = vadd.f32 0.0, %v2710
    %2712 = vdwg.mxu0
    %v2713 = vadd.f32 %v2509, %v2703
    %v2714 = vadd.f32 %v2511, %v2705
    %v2715 = vadd.f32 %v2515, %v2709
    %v2716 = vadd.f32 %v2517, %v2711
    %v2717 = vld [vmem:[#allocation17] sm:$0x3]
    %v2719 = vlaneseq
    %v2720 = vshrl.u32 %v2719, 7
    %v2721 = vsub.s32 0, %v2720
    %v2722 = vrot.slane %v2717, %v2721
    %v2723 = vlaneseq
    %v2724 = vshrl.u32 %v2723, 7
    %v2725 = vsub.s32 1, %v2724
    %v2726 = vrot.slane %v2717, %v2725
    %v2729 = vadd.f32 %v2713, %v2722
    %v2730 = vadd.f32 %v2714, %v2726
    %v2731 = vadd.f32 %v2715, %v2722
    %v2732 = vadd.f32 %v2716, %v2726
    %v2733 = vld [vmem:[%s31] sm:$0xff]
    %v2734 = vld [vmem:[%s31 + $0x8] sm:$0xff]
    %v2735 = vld [vmem:[%s31 + $0x10] sm:$0xff]
    %v2736 = vld [vmem:[%s31 + $0x18] sm:$0xff]
    %v2737 = vld [vmem:[%s31 + $0x20] sm:$0xff]
    %v2738 = vld [vmem:[%s31 + $0x28] sm:$0xff]
    %v2739 = vld [vmem:[%s31 + $0x30] sm:$0xff]
    %v2740 = vld [vmem:[%s31 + $0x38] sm:$0xff]
    %v2741 = vld [vmem:[%s31 + $0x40] sm:$0xff]
    %v2742 = vld [vmem:[%s31 + $0x48] sm:$0xff]
    %v2743 = vld [vmem:[%s31 + $0x50] sm:$0xff]
    %v2744 = vld [vmem:[%s31 + $0x58] sm:$0xff]
    %v2745 = vld [vmem:[%s31 + $0x60] sm:$0xff]
    %v2746 = vld [vmem:[%s31 + $0x68] sm:$0xff]
    %v2747 = vld [vmem:[%s31 + $0x70] sm:$0xff]
    %v2748 = vld [vmem:[%s31 + $0x78] sm:$0xff]
    %v2749 = vld [vmem:[%s31 + $0x80] sm:$0xff]
    %v2750 = vld [vmem:[%s31 + $0x88] sm:$0xff]
    %v2751 = vld [vmem:[%s31 + $0x90] sm:$0xff]
    %v2752 = vld [vmem:[%s31 + $0x98] sm:$0xff]
    %v2753 = vld [vmem:[%s31 + $0xa0] sm:$0xff]
    %v2754 = vld [vmem:[%s31 + $0xa8] sm:$0xff]
    %v2755 = vld [vmem:[%s31 + $0xb0] sm:$0xff]
    %v2756 = vld [vmem:[%s31 + $0xb8] sm:$0xff]
    %v2757 = vld [vmem:[%s31 + $0xc0] sm:$0xff]
    %v2758 = vld [vmem:[%s31 + $0xc8] sm:$0xff]
    %v2759 = vld [vmem:[%s31 + $0xd0] sm:$0xff]
    %v2760 = vld [vmem:[%s31 + $0xd8] sm:$0xff]
    %v2761 = vld [vmem:[%s31 + $0xe0] sm:$0xff]
    %v2762 = vld [vmem:[%s31 + $0xe8] sm:$0xff]
    %v2763 = vld [vmem:[%s31 + $0xf0] sm:$0xff]
    %v2764 = vld [vmem:[%s31 + $0xf8] sm:$0xff]
    %v2765 = vld [vmem:[#allocation22] sm:$0xff]
    %v2766 = vld [vmem:[#allocation22 + $0x8] sm:$0xff]
    %v2767 = vld [vmem:[#allocation22 + $0x10] sm:$0xff]
    %v2768 = vld [vmem:[#allocation22 + $0x18] sm:$0xff]
    %v2769 = vld [vmem:[#allocation22 + $0x20] sm:$0xff]
    %v2770 = vld [vmem:[#allocation22 + $0x28] sm:$0xff]
    %v2771 = vld [vmem:[#allocation22 + $0x30] sm:$0xff]
    %v2772 = vld [vmem:[#allocation22 + $0x38] sm:$0xff]
    %v2773 = vadd.f32 %v2729, %v2731
    %v2774 = vrot.slane %v2773, 4
    %v2775 = vadd.f32 %v2773, %v2774
    %v2776 = vrot.slane %v2775, 2
    %v2777 = vadd.f32 %v2775, %v2776
    %v2778 = vrot.slane %v2777, 1
    %v2779 = vadd.f32 %v2777, %v2778
    %v2780 = vadd.f32 %v2730, %v2732
    %v2781 = vrot.slane %v2780, 4
    %v2782 = vadd.f32 %v2780, %v2781
    %v2783 = vrot.slane %v2782, 2
    %v2784 = vadd.f32 %v2782, %v2783
    %v2785 = vrot.slane %v2784, 1
    %v2786 = vadd.f32 %v2784, %v2785
    %2787 = vmatprep.subr.mxu0 0.0
    %2788 = vmatpush1.msra.mxu0 %v2748
    %2789 = vmatprep.subr.mxu0 0.0
    %2790 = vmatpush1.msra.mxu0 %v2747
    %2791 = vmatprep.subr.mxu0 0.0
    %2792 = vmatpush1.msra.mxu0 %v2746
    %2793 = vmatprep.subr.mxu0 0.0
    %2794 = vmatpush1.msra.mxu0 %v2745
    %2795 = vmatprep.subr.mxu0 0.0
    %2796 = vmatpush1.msra.mxu0 %v2744
    %2797 = vmatprep.subr.mxu0 0.0
    %2798 = vmatpush1.msra.mxu0 %v2743
    %2799 = vmatprep.subr.mxu0 0.0
    %2800 = vmatpush1.msra.mxu0 %v2742
    %2801 = vmatprep.subr.mxu0 0.0
    %2802 = vmatpush1.msra.mxu0 %v2741
    %2803 = vmatprep.subr.mxu0 0.0
    %2804 = vmatpush1.msra.mxu0 %v2740
    %2805 = vmatprep.subr.mxu0 0.0
    %2806 = vmatpush1.msra.mxu0 %v2739
    %2807 = vmatprep.subr.mxu0 0.0
    %2808 = vmatpush1.msra.mxu0 %v2738
    %2809 = vmatprep.subr.mxu0 0.0
    %2810 = vmatpush1.msra.mxu0 %v2737
    %2811 = vmatprep.subr.mxu0 0.0
    %2812 = vmatpush1.msra.mxu0 %v2736
    %2813 = vmatprep.subr.mxu0 0.0
    %2814 = vmatpush1.msra.mxu0 %v2735
    %2815 = vmatprep.subr.mxu0 0.0
    %2816 = vmatpush1.msra.mxu0 %v2734
    %2817 = vmatprep.subr.mxu0 0.0
    %2818 = vmatpush1.msra.mxu0 %v2733
    %2819 = vmatprep.subr.mxu0 0.0
    %2820 = vmatpush2.msra.mxu0 %v2764
    %2821 = vmatprep.subr.mxu0 0.0
    %2822 = vmatpush2.msra.mxu0 %v2763
    %2823 = vmatprep.subr.mxu0 0.0
    %2824 = vmatpush2.msra.mxu0 %v2762
    %2825 = vmatprep.subr.mxu0 0.0
    %2826 = vmatpush2.msra.mxu0 %v2761
    %2827 = vmatprep.subr.mxu0 0.0
    %2828 = vmatpush2.msra.mxu0 %v2760
    %2829 = vmatprep.subr.mxu0 0.0
    %2830 = vmatpush2.msra.mxu0 %v2759
    %2831 = vmatprep.subr.mxu0 0.0
    %2832 = vmatpush2.msra.mxu0 %v2758
    %2833 = vmatprep.subr.mxu0 0.0
    %2834 = vmatpush2.msra.mxu0 %v2757
    %2835 = vmatprep.subr.mxu0 0.0
    %2836 = vmatpush2.msra.mxu0 %v2756
    %2837 = vmatprep.subr.mxu0 0.0
    %2838 = vmatpush2.msra.mxu0 %v2755
    %2839 = vmatprep.subr.mxu0 0.0
    %2840 = vmatpush2.msra.mxu0 %v2754
    %2841 = vmatprep.subr.mxu0 0.0
    %2842 = vmatpush2.msra.mxu0 %v2753
    %2843 = vmatprep.subr.mxu0 0.0
    %2844 = vmatpush2.msra.mxu0 %v2752
    %2845 = vmatprep.subr.mxu0 0.0
    %2846 = vmatpush2.msra.mxu0 %v2751
    %2847 = vmatprep.subr.mxu0 0.0
    %2848 = vmatpush2.msra.mxu0 %v2750
    %2849 = vmatprep.subr.mxu0 0.0
    %2850 = vmatpush2.msra.mxu0 %v2749
    %2851 = vmatprep.mubr.f32.mxu0 %v2786
    %2852 = vmatmul.mubr.f32.gmra.mxu0 %v2779
    %v2853 = vpop.f32.mrf.mxu0
    %v2854 = vadd.f32 0.0, %v2853
    %v2855 = vpop.f32.mrf.mxu0
    %2856 = vdwg.mxu0
    %v2857 = vmul.f32 %v2854, 0.0078125
    %v2859 = vsel %vm588, %v2857, 0
    %2861 = vmatprep.subr.mxu0 0.0
    %2862 = vmatpush1.msra.mxu0 0.0
    %2863 = vmatprep.subr.mxu0 0.0
    %2864 = vmatpush1.msra.mxu0 0.0
    %2865 = vmatprep.subr.mxu0 0.0
    %2866 = vmatpush1.msra.mxu0 0.0
    %2867 = vmatprep.subr.mxu0 0.0
    %2868 = vmatpush1.msra.mxu0 0.0
    %2869 = vmatprep.subr.mxu0 0.0
    %2870 = vmatpush1.msra.mxu0 0.0
    %2871 = vmatprep.subr.mxu0 0.0
    %2872 = vmatpush1.msra.mxu0 0.0
    %2873 = vmatprep.subr.mxu0 0.0
    %2874 = vmatpush1.msra.mxu0 0.0
    %2875 = vmatprep.subr.mxu0 0.0
    %2876 = vmatpush1.msra.mxu0 0.0
    %2877 = vmatprep.subr.mxu0 0.0
    %2878 = vmatpush1.msra.mxu0 0.0
    %2879 = vmatprep.subr.mxu0 0.0
    %2880 = vmatpush1.msra.mxu0 0.0
    %2881 = vmatprep.subr.mxu0 0.0
    %2882 = vmatpush1.msra.mxu0 0.0
    %2883 = vmatprep.subr.mxu0 0.0
    %2884 = vmatpush1.msra.mxu0 0.0
    %2885 = vmatprep.subr.mxu0 %v2772
    %2886 = vmatpush1.msra.mxu0 %v2771
    %2887 = vmatprep.subr.mxu0 %v2770
    %2888 = vmatpush1.msra.mxu0 %v2769
    %2889 = vmatprep.subr.mxu0 %v2768
    %2890 = vmatpush1.msra.mxu0 %v2767
    %2891 = vmatprep.subr.mxu0 %v2766
    %2892 = vmatpush1.msra.mxu0 %v2765
    %2893 = vmatprep.subr.mxu0 0.0
    %2894 = vmatpush2.msra.mxu0 0.0
    %2895 = vmatprep.subr.mxu0 0.0
    %2896 = vmatpush2.msra.mxu0 0.0
    %2897 = vmatprep.subr.mxu0 0.0
    %2898 = vmatpush2.msra.mxu0 0.0
    %2899 = vmatprep.subr.mxu0 0.0
    %2900 = vmatpush2.msra.mxu0 0.0
    %2901 = vmatprep.subr.mxu0 0.0
    %2902 = vmatpush2.msra.mxu0 0.0
    %2903 = vmatprep.subr.mxu0 0.0
    %2904 = vmatpush2.msra.mxu0 0.0
    %2905 = vmatprep.subr.mxu0 0.0
    %2906 = vmatpush2.msra.mxu0 0.0
    %2907 = vmatprep.subr.mxu0 0.0
    %2908 = vmatpush2.msra.mxu0 0.0
    %2909 = vmatprep.subr.mxu0 0.0
    %2910 = vmatpush2.msra.mxu0 0.0
    %2911 = vmatprep.subr.mxu0 0.0
    %2912 = vmatpush2.msra.mxu0 0.0
    %2913 = vmatprep.subr.mxu0 0.0
    %2914 = vmatpush2.msra.mxu0 0.0
    %2915 = vmatprep.subr.mxu0 0.0
    %2916 = vmatpush2.msra.mxu0 0.0
    %2917 = vmatprep.subr.mxu0 0.0
    %2918 = vmatpush2.msra.mxu0 0.0
    %2919 = vmatprep.subr.mxu0 0.0
    %2920 = vmatpush2.msra.mxu0 0.0
    %2921 = vmatprep.subr.mxu0 0.0
    %2922 = vmatpush2.msra.mxu0 0.0
    %2923 = vmatprep.subr.mxu0 0.0
    %2924 = vmatpush2.msra.mxu0 0.0
    %2925 = vmatprep.mubr.f32.mxu0 0.0
    %2926 = vmatmul.mubr.f32.gmra.mxu0 %v2859
    %v2927 = vpop.f32.mrf.mxu0
    %v2928 = vadd.f32 0.0, %v2927
    %v2929 = vpop.f32.mrf.mxu0
    %v2930 = vadd.f32 0.0, %v2929
    %2931 = vdwg.mxu0
    %v2932 = vlaneseq
    %v2933 = vshrl.u32 %v2932, 7
    %v2934 = vsub.s32 0, %v2933
    %v2935 = vrot.slane %v2928, %v2934
    %v2936 = vlaneseq
    %v2937 = vshrl.u32 %v2936, 7
    %v2938 = vsub.s32 0, %v2937
    %v2939 = vrot.slane %v2930, %v2938
    %v2940 = vsub.f32 %v2729, %v2935
    %v2941 = vsub.f32 %v2730, %v2939
    %v2942 = vsub.f32 %v2731, %v2935
    %v2943 = vsub.f32 %v2732, %v2939
    %v2944 = vmul.f32 %v2940, %v2940
    %v2945 = vmul.f32 %v2941, %v2941
    %v2946 = vmul.f32 %v2942, %v2942
    %v2947 = vmul.f32 %v2943, %v2943
    %v2948 = vadd.f32 %v2944, %v2946
    %v2949 = vrot.slane %v2948, 4
    %v2950 = vadd.f32 %v2948, %v2949
    %v2951 = vrot.slane %v2950, 2
    %v2952 = vadd.f32 %v2950, %v2951
    %v2953 = vrot.slane %v2952, 1
    %v2954 = vadd.f32 %v2952, %v2953
    %v2955 = vadd.f32 %v2945, %v2947
    %v2956 = vrot.slane %v2955, 4
    %v2957 = vadd.f32 %v2955, %v2956
    %v2958 = vrot.slane %v2957, 2
    %v2959 = vadd.f32 %v2957, %v2958
    %v2960 = vrot.slane %v2959, 1
    %v2961 = vadd.f32 %v2959, %v2960
    %2962 = vmatprep.subr.mxu0 0.0
    %2963 = vmatpush1.msra.mxu0 %v2748
    %2964 = vmatprep.subr.mxu0 0.0
    %2965 = vmatpush1.msra.mxu0 %v2747
    %2966 = vmatprep.subr.mxu0 0.0
    %2967 = vmatpush1.msra.mxu0 %v2746
    %2968 = vmatprep.subr.mxu0 0.0
    %2969 = vmatpush1.msra.mxu0 %v2745
    %2970 = vmatprep.subr.mxu0 0.0
    %2971 = vmatpush1.msra.mxu0 %v2744
    %2972 = vmatprep.subr.mxu0 0.0
    %2973 = vmatpush1.msra.mxu0 %v2743
    %2974 = vmatprep.subr.mxu0 0.0
    %2975 = vmatpush1.msra.mxu0 %v2742
    %2976 = vmatprep.subr.mxu0 0.0
    %2977 = vmatpush1.msra.mxu0 %v2741
    %2978 = vmatprep.subr.mxu0 0.0
    %2979 = vmatpush1.msra.mxu0 %v2740
    %2980 = vmatprep.subr.mxu0 0.0
    %2981 = vmatpush1.msra.mxu0 %v2739
    %2982 = vmatprep.subr.mxu0 0.0
    %2983 = vmatpush1.msra.mxu0 %v2738
    %2984 = vmatprep.subr.mxu0 0.0
    %2985 = vmatpush1.msra.mxu0 %v2737
    %2986 = vmatprep.subr.mxu0 0.0
    %2987 = vmatpush1.msra.mxu0 %v2736
    %2988 = vmatprep.subr.mxu0 0.0
    %2989 = vmatpush1.msra.mxu0 %v2735
    %2990 = vmatprep.subr.mxu0 0.0
    %2991 = vmatpush1.msra.mxu0 %v2734
    %2992 = vmatprep.subr.mxu0 0.0
    %2993 = vmatpush1.msra.mxu0 %v2733
    %2994 = vmatprep.subr.mxu0 0.0
    %2995 = vmatpush2.msra.mxu0 %v2764
    %2996 = vmatprep.subr.mxu0 0.0
    %2997 = vmatpush2.msra.mxu0 %v2763
    %2998 = vmatprep.subr.mxu0 0.0
    %2999 = vmatpush2.msra.mxu0 %v2762
    %3000 = vmatprep.subr.mxu0 0.0
    %3001 = vmatpush2.msra.mxu0 %v2761
    %3002 = vmatprep.subr.mxu0 0.0
    %3003 = vmatpush2.msra.mxu0 %v2760
    %3004 = vmatprep.subr.mxu0 0.0
    %3005 = vmatpush2.msra.mxu0 %v2759
    %3006 = vmatprep.subr.mxu0 0.0
    %3007 = vmatpush2.msra.mxu0 %v2758
    %3008 = vmatprep.subr.mxu0 0.0
    %3009 = vmatpush2.msra.mxu0 %v2757
    %3010 = vmatprep.subr.mxu0 0.0
    %3011 = vmatpush2.msra.mxu0 %v2756
    %3012 = vmatprep.subr.mxu0 0.0
    %3013 = vmatpush2.msra.mxu0 %v2755
    %3014 = vmatprep.subr.mxu0 0.0
    %3015 = vmatpush2.msra.mxu0 %v2754
    %3016 = vmatprep.subr.mxu0 0.0
    %3017 = vmatpush2.msra.mxu0 %v2753
    %3018 = vmatprep.subr.mxu0 0.0
    %3019 = vmatpush2.msra.mxu0 %v2752
    %3020 = vmatprep.subr.mxu0 0.0
    %3021 = vmatpush2.msra.mxu0 %v2751
    %3022 = vmatprep.subr.mxu0 0.0
    %3023 = vmatpush2.msra.mxu0 %v2750
    %3024 = vmatprep.subr.mxu0 0.0
    %3025 = vmatpush2.msra.mxu0 %v2749
    %3026 = vmatprep.mubr.f32.mxu0 %v2961
    %3027 = vmatmul.mubr.f32.gmra.mxu0 %v2954
    %v3028 = vpop.f32.mrf.mxu0
    %v3029 = vadd.f32 0.0, %v3028
    %v3030 = vpop.f32.mrf.mxu0
    %3031 = vdwg.mxu0
    %v3032 = vmul.f32 %v3029, 0.0078125
    %v3033 = vld [vmem:[#allocation19] sm:$0x1]
    %v3034 = vadd.f32 %v3032, 1e-05
    %v3035 = vrsqrt.pop %v3034
    %v3036 = vmul.f32 %v3033, %v3035
    %v3038 = vsel %vm588, %v3036, 0
    %3040 = vmatprep.subr.mxu0 0.0
    %3041 = vmatpush1.msra.mxu0 0.0
    %3042 = vmatprep.subr.mxu0 0.0
    %3043 = vmatpush1.msra.mxu0 0.0
    %3044 = vmatprep.subr.mxu0 0.0
    %3045 = vmatpush1.msra.mxu0 0.0
    %3046 = vmatprep.subr.mxu0 0.0
    %3047 = vmatpush1.msra.mxu0 0.0
    %3048 = vmatprep.subr.mxu0 0.0
    %3049 = vmatpush1.msra.mxu0 0.0
    %3050 = vmatprep.subr.mxu0 0.0
    %3051 = vmatpush1.msra.mxu0 0.0
    %3052 = vmatprep.subr.mxu0 0.0
    %3053 = vmatpush1.msra.mxu0 0.0
    %3054 = vmatprep.subr.mxu0 0.0
    %3055 = vmatpush1.msra.mxu0 0.0
    %3056 = vmatprep.subr.mxu0 0.0
    %3057 = vmatpush1.msra.mxu0 0.0
    %3058 = vmatprep.subr.mxu0 0.0
    %3059 = vmatpush1.msra.mxu0 0.0
    %3060 = vmatprep.subr.mxu0 0.0
    %3061 = vmatpush1.msra.mxu0 0.0
    %3062 = vmatprep.subr.mxu0 0.0
    %3063 = vmatpush1.msra.mxu0 0.0
    %3064 = vmatprep.subr.mxu0 %v2772
    %3065 = vmatpush1.msra.mxu0 %v2771
    %3066 = vmatprep.subr.mxu0 %v2770
    %3067 = vmatpush1.msra.mxu0 %v2769
    %3068 = vmatprep.subr.mxu0 %v2768
    %3069 = vmatpush1.msra.mxu0 %v2767
    %3070 = vmatprep.subr.mxu0 %v2766
    %3071 = vmatpush1.msra.mxu0 %v2765
    %3072 = vmatprep.subr.mxu0 0.0
    %3073 = vmatpush2.msra.mxu0 0.0
    %3074 = vmatprep.subr.mxu0 0.0
    %3075 = vmatpush2.msra.mxu0 0.0
    %3076 = vmatprep.subr.mxu0 0.0
    %3077 = vmatpush2.msra.mxu0 0.0
    %3078 = vmatprep.subr.mxu0 0.0
    %3079 = vmatpush2.msra.mxu0 0.0
    %3080 = vmatprep.subr.mxu0 0.0
    %3081 = vmatpush2.msra.mxu0 0.0
    %3082 = vmatprep.subr.mxu0 0.0
    %3083 = vmatpush2.msra.mxu0 0.0
    %3084 = vmatprep.subr.mxu0 0.0
    %3085 = vmatpush2.msra.mxu0 0.0
    %3086 = vmatprep.subr.mxu0 0.0
    %3087 = vmatpush2.msra.mxu0 0.0
    %3088 = vmatprep.subr.mxu0 0.0
    %3089 = vmatpush2.msra.mxu0 0.0
    %3090 = vmatprep.subr.mxu0 0.0
    %3091 = vmatpush2.msra.mxu0 0.0
    %3092 = vmatprep.subr.mxu0 0.0
    %3093 = vmatpush2.msra.mxu0 0.0
    %3094 = vmatprep.subr.mxu0 0.0
    %3095 = vmatpush2.msra.mxu0 0.0
    %3096 = vmatprep.subr.mxu0 0.0
    %3097 = vmatpush2.msra.mxu0 0.0
    %3098 = vmatprep.subr.mxu0 0.0
    %3099 = vmatpush2.msra.mxu0 0.0
    %3100 = vmatprep.subr.mxu0 0.0
    %3101 = vmatpush2.msra.mxu0 0.0
    %3102 = vmatprep.subr.mxu0 0.0
    %3103 = vmatpush2.msra.mxu0 0.0
    %3104 = vmatprep.mubr.f32.mxu0 0.0
    %3105 = vmatmul.mubr.f32.gmra.mxu0 %v3038
    %v3106 = vpop.f32.mrf.mxu0
    %v3107 = vadd.f32 0.0, %v3106
    %v3108 = vpop.f32.mrf.mxu0
    %v3109 = vadd.f32 0.0, %v3108
    %3110 = vdwg.mxu0
    %v3111 = vlaneseq
    %v3112 = vshrl.u32 %v3111, 7
    %v3113 = vsub.s32 0, %v3112
    %v3114 = vrot.slane %v3107, %v3113
    %v3115 = vlaneseq
    %v3116 = vshrl.u32 %v3115, 7
    %v3117 = vsub.s32 0, %v3116
    %v3118 = vrot.slane %v3109, %v3117
    %v3119 = vmul.f32 %v2940, %v3114
    %v3120 = vmul.f32 %v2941, %v3118
    %v3121 = vmul.f32 %v2942, %v3114
    %v3122 = vmul.f32 %v2943, %v3118
    %v3123 = vld [vmem:[#allocation20] sm:$0x1]
    %v3125 = vsel %vm588, %v3123, 0
    %3127 = vmatprep.subr.mxu0 0.0
    %3128 = vmatpush1.msra.mxu0 0.0
    %3129 = vmatprep.subr.mxu0 0.0
    %3130 = vmatpush1.msra.mxu0 0.0
    %3131 = vmatprep.subr.mxu0 0.0
    %3132 = vmatpush1.msra.mxu0 0.0
    %3133 = vmatprep.subr.mxu0 0.0
    %3134 = vmatpush1.msra.mxu0 0.0
    %3135 = vmatprep.subr.mxu0 0.0
    %3136 = vmatpush1.msra.mxu0 0.0
    %3137 = vmatprep.subr.mxu0 0.0
    %3138 = vmatpush1.msra.mxu0 0.0
    %3139 = vmatprep.subr.mxu0 0.0
    %3140 = vmatpush1.msra.mxu0 0.0
    %3141 = vmatprep.subr.mxu0 0.0
    %3142 = vmatpush1.msra.mxu0 0.0
    %3143 = vmatprep.subr.mxu0 0.0
    %3144 = vmatpush1.msra.mxu0 0.0
    %3145 = vmatprep.subr.mxu0 0.0
    %3146 = vmatpush1.msra.mxu0 0.0
    %3147 = vmatprep.subr.mxu0 0.0
    %3148 = vmatpush1.msra.mxu0 0.0
    %3149 = vmatprep.subr.mxu0 0.0
    %3150 = vmatpush1.msra.mxu0 0.0
    %3151 = vmatprep.subr.mxu0 %v2772
    %3152 = vmatpush1.msra.mxu0 %v2771
    %3153 = vmatprep.subr.mxu0 %v2770
    %3154 = vmatpush1.msra.mxu0 %v2769
    %3155 = vmatprep.subr.mxu0 %v2768
    %3156 = vmatpush1.msra.mxu0 %v2767
    %3157 = vmatprep.subr.mxu0 %v2766
    %3158 = vmatpush1.msra.mxu0 %v2765
    %3159 = vmatprep.subr.mxu0 0.0
    %3160 = vmatpush2.msra.mxu0 0.0
    %3161 = vmatprep.subr.mxu0 0.0
    %3162 = vmatpush2.msra.mxu0 0.0
    %3163 = vmatprep.subr.mxu0 0.0
    %3164 = vmatpush2.msra.mxu0 0.0
    %3165 = vmatprep.subr.mxu0 0.0
    %3166 = vmatpush2.msra.mxu0 0.0
    %3167 = vmatprep.subr.mxu0 0.0
    %3168 = vmatpush2.msra.mxu0 0.0
    %3169 = vmatprep.subr.mxu0 0.0
    %3170 = vmatpush2.msra.mxu0 0.0
    %3171 = vmatprep.subr.mxu0 0.0
    %3172 = vmatpush2.msra.mxu0 0.0
    %3173 = vmatprep.subr.mxu0 0.0
    %3174 = vmatpush2.msra.mxu0 0.0
    %3175 = vmatprep.subr.mxu0 0.0
    %3176 = vmatpush2.msra.mxu0 0.0
    %3177 = vmatprep.subr.mxu0 0.0
    %3178 = vmatpush2.msra.mxu0 0.0
    %3179 = vmatprep.subr.mxu0 0.0
    %3180 = vmatpush2.msra.mxu0 0.0
    %3181 = vmatprep.subr.mxu0 0.0
    %3182 = vmatpush2.msra.mxu0 0.0
    %3183 = vmatprep.subr.mxu0 0.0
    %3184 = vmatpush2.msra.mxu0 0.0
    %3185 = vmatprep.subr.mxu0 0.0
    %3186 = vmatpush2.msra.mxu0 0.0
    %3187 = vmatprep.subr.mxu0 0.0
    %3188 = vmatpush2.msra.mxu0 0.0
    %3189 = vmatprep.subr.mxu0 0.0
    %3190 = vmatpush2.msra.mxu0 0.0
    %3191 = vmatprep.mubr.f32.mxu0 0.0
    %3192 = vmatmul.mubr.f32.gmra.mxu0 %v3125
    %v3193 = vpop.f32.mrf.mxu0
    %v3194 = vadd.f32 0.0, %v3193
    %v3195 = vpop.f32.mrf.mxu0
    %v3196 = vadd.f32 0.0, %v3195
    %3197 = vdwg.mxu0
    %v3198 = vlaneseq
    %v3199 = vshrl.u32 %v3198, 7
    %v3200 = vsub.s32 0, %v3199
    %v3201 = vrot.slane %v3194, %v3200
    %v3202 = vlaneseq
    %v3203 = vshrl.u32 %v3202, 7
    %v3204 = vsub.s32 0, %v3203
    %v3205 = vrot.slane %v3196, %v3204
    %v3206 = vadd.f32 %v3119, %v3201
    %v3207 = vadd.f32 %v3120, %v3205
    %v3208 = vadd.f32 %v3121, %v3201
    %v3209 = vadd.f32 %v3122, %v3205
    %v3210 = vmax.f32 %v3206, 0.0
    %v3211 = vmax.f32 %v3207, 0.0
    %v3212 = vmax.f32 %v3208, 0.0
    %v3213 = vmax.f32 %v3209, 0.0
    %v3214 = vld [vmem:[#allocation23] sm:$0xff]
    %v3216 = vsel %vm797, %v3214, 0
    %3218 = vmatprep.subr.mxu0 0.0
    %3219 = vmatpush1.msra.mxu0 0.0
    %3220 = vmatprep.subr.mxu0 0.0
    %3221 = vmatpush1.msra.mxu0 0.0
    %3222 = vmatprep.subr.mxu0 0.0
    %3223 = vmatpush1.msra.mxu0 0.0
    %3224 = vmatprep.subr.mxu0 0.0
    %3225 = vmatpush1.msra.mxu0 0.0
    %3226 = vmatprep.subr.mxu0 0.0
    %3227 = vmatpush1.msra.mxu0 0.0
    %3228 = vmatprep.subr.mxu0 0.0
    %3229 = vmatpush1.msra.mxu0 0.0
    %3230 = vmatprep.subr.mxu0 0.0
    %3231 = vmatpush1.msra.mxu0 0.0
    %3232 = vmatprep.subr.mxu0 0.0
    %3233 = vmatpush1.msra.mxu0 0.0
    %3234 = vmatprep.subr.mxu0 0.0
    %3235 = vmatpush1.msra.mxu0 0.0
    %3236 = vmatprep.subr.mxu0 0.0
    %3237 = vmatpush1.msra.mxu0 0.0
    %3238 = vmatprep.subr.mxu0 0.0
    %3239 = vmatpush1.msra.mxu0 0.0
    %3240 = vmatprep.subr.mxu0 0.0
    %3241 = vmatpush1.msra.mxu0 0.0
    %3242 = vmatprep.subr.mxu0 0.0
    %3243 = vmatpush1.msra.mxu0 0.0
    %3244 = vmatprep.subr.mxu0 0.0
    %3245 = vmatpush1.msra.mxu0 0.0
    %3246 = vmatprep.subr.mxu0 %v3213
    %3247 = vmatpush1.msra.mxu0 %v3212
    %3248 = vmatprep.subr.mxu0 %v3211
    %3249 = vmatpush1.msra.mxu0 %v3210
    %3250 = vmatprep.subr.mxu0 0.0
    %3251 = vmatpush2.msra.mxu0 0.0
    %3252 = vmatprep.subr.mxu0 0.0
    %3253 = vmatpush2.msra.mxu0 0.0
    %3254 = vmatprep.subr.mxu0 0.0
    %3255 = vmatpush2.msra.mxu0 0.0
    %3256 = vmatprep.subr.mxu0 0.0
    %3257 = vmatpush2.msra.mxu0 0.0
    %3258 = vmatprep.subr.mxu0 0.0
    %3259 = vmatpush2.msra.mxu0 0.0
    %3260 = vmatprep.subr.mxu0 0.0
    %3261 = vmatpush2.msra.mxu0 0.0
    %3262 = vmatprep.subr.mxu0 0.0
    %3263 = vmatpush2.msra.mxu0 0.0
    %3264 = vmatprep.subr.mxu0 0.0
    %3265 = vmatpush2.msra.mxu0 0.0
    %3266 = vmatprep.subr.mxu0 0.0
    %3267 = vmatpush2.msra.mxu0 0.0
    %3268 = vmatprep.subr.mxu0 0.0
    %3269 = vmatpush2.msra.mxu0 0.0
    %3270 = vmatprep.subr.mxu0 0.0
    %3271 = vmatpush2.msra.mxu0 0.0
    %3272 = vmatprep.subr.mxu0 0.0
    %3273 = vmatpush2.msra.mxu0 0.0
    %3274 = vmatprep.subr.mxu0 0.0
    %3275 = vmatpush2.msra.mxu0 0.0
    %3276 = vmatprep.subr.mxu0 0.0
    %3277 = vmatpush2.msra.mxu0 0.0
    %3278 = vmatprep.subr.mxu0 0.0
    %3279 = vmatpush2.msra.mxu0 0.0
    %3280 = vmatprep.subr.mxu0 0.0
    %3281 = vmatpush2.msra.mxu0 0.0
    %3282 = vmatprep.mubr.f32.mxu0 0.0
    %3283 = vmatmul.mubr.f32.gmra.mxu0 %v3216
    %v3284 = vpop.f32.mrf.mxu0
    %v3285 = vadd.f32 0.0, %v3284
    %v3286 = vpop.f32.mrf.mxu0
    %v3287 = vadd.f32 0.0, %v3286
    %3288 = vdwg.mxu0
    %s3289 = scalar_lea.vmem [#allocation23], 8
    %v3290 = vld [vmem:[%s3289] sm:$0xff]
    %v3292 = vsel %vm797, %v3290, 0
    %3294 = vmatprep.subr.mxu0 0.0
    %3295 = vmatpush1.msra.mxu0 0.0
    %3296 = vmatprep.subr.mxu0 0.0
    %3297 = vmatpush1.msra.mxu0 0.0
    %3298 = vmatprep.subr.mxu0 0.0
    %3299 = vmatpush1.msra.mxu0 0.0
    %3300 = vmatprep.subr.mxu0 0.0
    %3301 = vmatpush1.msra.mxu0 0.0
    %3302 = vmatprep.subr.mxu0 0.0
    %3303 = vmatpush1.msra.mxu0 0.0
    %3304 = vmatprep.subr.mxu0 0.0
    %3305 = vmatpush1.msra.mxu0 0.0
    %3306 = vmatprep.subr.mxu0 0.0
    %3307 = vmatpush1.msra.mxu0 0.0
    %3308 = vmatprep.subr.mxu0 0.0
    %3309 = vmatpush1.msra.mxu0 0.0
    %3310 = vmatprep.subr.mxu0 0.0
    %3311 = vmatpush1.msra.mxu0 0.0
    %3312 = vmatprep.subr.mxu0 0.0
    %3313 = vmatpush1.msra.mxu0 0.0
    %3314 = vmatprep.subr.mxu0 0.0
    %3315 = vmatpush1.msra.mxu0 0.0
    %3316 = vmatprep.subr.mxu0 0.0
    %3317 = vmatpush1.msra.mxu0 0.0
    %3318 = vmatprep.subr.mxu0 0.0
    %3319 = vmatpush1.msra.mxu0 0.0
    %3320 = vmatprep.subr.mxu0 0.0
    %3321 = vmatpush1.msra.mxu0 0.0
    %3322 = vmatprep.subr.mxu0 %v3213
    %3323 = vmatpush1.msra.mxu0 %v3212
    %3324 = vmatprep.subr.mxu0 %v3211
    %3325 = vmatpush1.msra.mxu0 %v3210
    %3326 = vmatprep.subr.mxu0 0.0
    %3327 = vmatpush2.msra.mxu0 0.0
    %3328 = vmatprep.subr.mxu0 0.0
    %3329 = vmatpush2.msra.mxu0 0.0
    %3330 = vmatprep.subr.mxu0 0.0
    %3331 = vmatpush2.msra.mxu0 0.0
    %3332 = vmatprep.subr.mxu0 0.0
    %3333 = vmatpush2.msra.mxu0 0.0
    %3334 = vmatprep.subr.mxu0 0.0
    %3335 = vmatpush2.msra.mxu0 0.0
    %3336 = vmatprep.subr.mxu0 0.0
    %3337 = vmatpush2.msra.mxu0 0.0
    %3338 = vmatprep.subr.mxu0 0.0
    %3339 = vmatpush2.msra.mxu0 0.0
    %3340 = vmatprep.subr.mxu0 0.0
    %3341 = vmatpush2.msra.mxu0 0.0
    %3342 = vmatprep.subr.mxu0 0.0
    %3343 = vmatpush2.msra.mxu0 0.0
    %3344 = vmatprep.subr.mxu0 0.0
    %3345 = vmatpush2.msra.mxu0 0.0
    %3346 = vmatprep.subr.mxu0 0.0
    %3347 = vmatpush2.msra.mxu0 0.0
    %3348 = vmatprep.subr.mxu0 0.0
    %3349 = vmatpush2.msra.mxu0 0.0
    %3350 = vmatprep.subr.mxu0 0.0
    %3351 = vmatpush2.msra.mxu0 0.0
    %3352 = vmatprep.subr.mxu0 0.0
    %3353 = vmatpush2.msra.mxu0 0.0
    %3354 = vmatprep.subr.mxu0 0.0
    %3355 = vmatpush2.msra.mxu0 0.0
    %3356 = vmatprep.subr.mxu0 0.0
    %3357 = vmatpush2.msra.mxu0 0.0
    %3358 = vmatprep.mubr.f32.mxu0 0.0
    %3359 = vmatmul.mubr.f32.gmra.mxu0 %v3292
    %v3360 = vpop.f32.mrf.mxu0
    %v3361 = vadd.f32 0.0, %v3360
    %v3362 = vpop.f32.mrf.mxu0
    %v3363 = vadd.f32 0.0, %v3362
    %3364 = vdwg.mxu0
    %v3365 = vmax.f32 %v3285, %v3361
    %v3366 = vmax.f32 %v3287, %v3363
    %v3367 = vld [vmem:[%s37] sm:$0xff]
    %v3368 = vld [vmem:[%s37 + $0x8] sm:$0xff]
    %v3369 = vld [vmem:[%s37 + $0x10] sm:$0xff]
    %v3370 = vld [vmem:[%s37 + $0x18] sm:$0xff]
    %v3371 = vld [vmem:[%s37 + $0x20] sm:$0xff]
    %v3372 = vld [vmem:[%s37 + $0x28] sm:$0xff]
    %v3373 = vld [vmem:[%s37 + $0x30] sm:$0xff]
    %v3374 = vld [vmem:[%s37 + $0x38] sm:$0xff]
    %v3375 = vld [vmem:[%s37 + $0x40] sm:$0xff]
    %v3376 = vld [vmem:[%s37 + $0x48] sm:$0xff]
    %v3377 = vld [vmem:[%s37 + $0x50] sm:$0xff]
    %v3378 = vld [vmem:[%s37 + $0x58] sm:$0xff]
    %v3379 = vld [vmem:[%s37 + $0x60] sm:$0xff]
    %v3380 = vld [vmem:[%s37 + $0x68] sm:$0xff]
    %v3381 = vld [vmem:[%s37 + $0x70] sm:$0xff]
    %v3382 = vld [vmem:[%s37 + $0x78] sm:$0xff]
    %v3383 = vld [vmem:[%s37 + $0x80] sm:$0xff]
    %v3384 = vld [vmem:[%s37 + $0x88] sm:$0xff]
    %v3385 = vld [vmem:[%s37 + $0x90] sm:$0xff]
    %v3386 = vld [vmem:[%s37 + $0x98] sm:$0xff]
    %v3387 = vld [vmem:[%s37 + $0xa0] sm:$0xff]
    %v3388 = vld [vmem:[%s37 + $0xa8] sm:$0xff]
    %v3389 = vld [vmem:[%s37 + $0xb0] sm:$0xff]
    %v3390 = vld [vmem:[%s37 + $0xb8] sm:$0xff]
    %v3391 = vld [vmem:[%s37 + $0xc0] sm:$0xff]
    %v3392 = vld [vmem:[%s37 + $0xc8] sm:$0xff]
    %v3393 = vld [vmem:[%s37 + $0xd0] sm:$0xff]
    %v3394 = vld [vmem:[%s37 + $0xd8] sm:$0xff]
    %v3395 = vld [vmem:[%s37 + $0xe0] sm:$0xff]
    %v3396 = vld [vmem:[%s37 + $0xe8] sm:$0xff]
    %v3397 = vld [vmem:[%s37 + $0xf0] sm:$0xff]
    %v3398 = vld [vmem:[%s37 + $0xf8] sm:$0xff]
    %3399 = vmatprep.subr.mxu0 0.0
    %3400 = vmatpush1.msra.mxu0 %v3382
    %3401 = vmatprep.subr.mxu0 0.0
    %3402 = vmatpush1.msra.mxu0 %v3381
    %3403 = vmatprep.subr.mxu0 0.0
    %3404 = vmatpush1.msra.mxu0 %v3380
    %3405 = vmatprep.subr.mxu0 0.0
    %3406 = vmatpush1.msra.mxu0 %v3379
    %3407 = vmatprep.subr.mxu0 0.0
    %3408 = vmatpush1.msra.mxu0 %v3378
    %3409 = vmatprep.subr.mxu0 0.0
    %3410 = vmatpush1.msra.mxu0 %v3377
    %3411 = vmatprep.subr.mxu0 0.0
    %3412 = vmatpush1.msra.mxu0 %v3376
    %3413 = vmatprep.subr.mxu0 0.0
    %3414 = vmatpush1.msra.mxu0 %v3375
    %3415 = vmatprep.subr.mxu0 0.0
    %3416 = vmatpush1.msra.mxu0 %v3374
    %3417 = vmatprep.subr.mxu0 0.0
    %3418 = vmatpush1.msra.mxu0 %v3373
    %3419 = vmatprep.subr.mxu0 0.0
    %3420 = vmatpush1.msra.mxu0 %v3372
    %3421 = vmatprep.subr.mxu0 0.0
    %3422 = vmatpush1.msra.mxu0 %v3371
    %3423 = vmatprep.subr.mxu0 0.0
    %3424 = vmatpush1.msra.mxu0 %v3370
    %3425 = vmatprep.subr.mxu0 0.0
    %3426 = vmatpush1.msra.mxu0 %v3369
    %3427 = vmatprep.subr.mxu0 0.0
    %3428 = vmatpush1.msra.mxu0 %v3368
    %3429 = vmatprep.subr.mxu0 0.0
    %3430 = vmatpush1.msra.mxu0 %v3367
    %3431 = vmatprep.subr.mxu0 0.0
    %3432 = vmatpush2.msra.mxu0 %v3398
    %3433 = vmatprep.subr.mxu0 0.0
    %3434 = vmatpush2.msra.mxu0 %v3397
    %3435 = vmatprep.subr.mxu0 0.0
    %3436 = vmatpush2.msra.mxu0 %v3396
    %3437 = vmatprep.subr.mxu0 0.0
    %3438 = vmatpush2.msra.mxu0 %v3395
    %3439 = vmatprep.subr.mxu0 0.0
    %3440 = vmatpush2.msra.mxu0 %v3394
    %3441 = vmatprep.subr.mxu0 0.0
    %3442 = vmatpush2.msra.mxu0 %v3393
    %3443 = vmatprep.subr.mxu0 0.0
    %3444 = vmatpush2.msra.mxu0 %v3392
    %3445 = vmatprep.subr.mxu0 0.0
    %3446 = vmatpush2.msra.mxu0 %v3391
    %3447 = vmatprep.subr.mxu0 0.0
    %3448 = vmatpush2.msra.mxu0 %v3390
    %3449 = vmatprep.subr.mxu0 0.0
    %3450 = vmatpush2.msra.mxu0 %v3389
    %3451 = vmatprep.subr.mxu0 0.0
    %3452 = vmatpush2.msra.mxu0 %v3388
    %3453 = vmatprep.subr.mxu0 0.0
    %3454 = vmatpush2.msra.mxu0 %v3387
    %3455 = vmatprep.subr.mxu0 0.0
    %3456 = vmatpush2.msra.mxu0 %v3386
    %3457 = vmatprep.subr.mxu0 0.0
    %3458 = vmatpush2.msra.mxu0 %v3385
    %3459 = vmatprep.subr.mxu0 0.0
    %3460 = vmatpush2.msra.mxu0 %v3384
    %3461 = vmatprep.subr.mxu0 0.0
    %3462 = vmatpush2.msra.mxu0 %v3383
    %3463 = vmatprep.mubr.f32.mxu0 %v3366
    %3464 = vmatmul.mubr.f32.gmra.mxu0 %v3365
    %v3465 = vpop.f32.mrf.mxu0
    %v3466 = vadd.f32 0.0, %v3465
    %v3467 = vpop.f32.mrf.mxu0
    %3468 = vdwg.mxu0
    %s3469 = scalar_lea.vmem %s37, 256
    %v3470 = vld [vmem:[%s3469] sm:$0xff]
    %v3471 = vld [vmem:[%s3469 + $0x8] sm:$0xff]
    %v3472 = vld [vmem:[%s3469 + $0x10] sm:$0xff]
    %v3473 = vld [vmem:[%s3469 + $0x18] sm:$0xff]
    %v3474 = vld [vmem:[%s3469 + $0x20] sm:$0xff]
    %v3475 = vld [vmem:[%s3469 + $0x28] sm:$0xff]
    %v3476 = vld [vmem:[%s3469 + $0x30] sm:$0xff]
    %v3477 = vld [vmem:[%s3469 + $0x38] sm:$0xff]
    %v3478 = vld [vmem:[%s3469 + $0x40] sm:$0xff]
    %v3479 = vld [vmem:[%s3469 + $0x48] sm:$0xff]
    %v3480 = vld [vmem:[%s3469 + $0x50] sm:$0xff]
    %v3481 = vld [vmem:[%s3469 + $0x58] sm:$0xff]
    %v3482 = vld [vmem:[%s3469 + $0x60] sm:$0xff]
    %v3483 = vld [vmem:[%s3469 + $0x68] sm:$0xff]
    %v3484 = vld [vmem:[%s3469 + $0x70] sm:$0xff]
    %v3485 = vld [vmem:[%s3469 + $0x78] sm:$0xff]
    %v3486 = vld [vmem:[%s3469 + $0x80] sm:$0xff]
    %v3487 = vld [vmem:[%s3469 + $0x88] sm:$0xff]
    %v3488 = vld [vmem:[%s3469 + $0x90] sm:$0xff]
    %v3489 = vld [vmem:[%s3469 + $0x98] sm:$0xff]
    %v3490 = vld [vmem:[%s3469 + $0xa0] sm:$0xff]
    %v3491 = vld [vmem:[%s3469 + $0xa8] sm:$0xff]
    %v3492 = vld [vmem:[%s3469 + $0xb0] sm:$0xff]
    %v3493 = vld [vmem:[%s3469 + $0xb8] sm:$0xff]
    %v3494 = vld [vmem:[%s3469 + $0xc0] sm:$0xff]
    %v3495 = vld [vmem:[%s3469 + $0xc8] sm:$0xff]
    %v3496 = vld [vmem:[%s3469 + $0xd0] sm:$0xff]
    %v3497 = vld [vmem:[%s3469 + $0xd8] sm:$0xff]
    %v3498 = vld [vmem:[%s3469 + $0xe0] sm:$0xff]
    %v3499 = vld [vmem:[%s3469 + $0xe8] sm:$0xff]
    %v3500 = vld [vmem:[%s3469 + $0xf0] sm:$0xff]
    %v3501 = vld [vmem:[%s3469 + $0xf8] sm:$0xff]
    %3502 = vmatprep.subr.mxu0 0.0
    %3503 = vmatpush1.msra.mxu0 %v3485
    %3504 = vmatprep.subr.mxu0 0.0
    %3505 = vmatpush1.msra.mxu0 %v3484
    %3506 = vmatprep.subr.mxu0 0.0
    %3507 = vmatpush1.msra.mxu0 %v3483
    %3508 = vmatprep.subr.mxu0 0.0
    %3509 = vmatpush1.msra.mxu0 %v3482
    %3510 = vmatprep.subr.mxu0 0.0
    %3511 = vmatpush1.msra.mxu0 %v3481
    %3512 = vmatprep.subr.mxu0 0.0
    %3513 = vmatpush1.msra.mxu0 %v3480
    %3514 = vmatprep.subr.mxu0 0.0
    %3515 = vmatpush1.msra.mxu0 %v3479
    %3516 = vmatprep.subr.mxu0 0.0
    %3517 = vmatpush1.msra.mxu0 %v3478
    %3518 = vmatprep.subr.mxu0 0.0
    %3519 = vmatpush1.msra.mxu0 %v3477
    %3520 = vmatprep.subr.mxu0 0.0
    %3521 = vmatpush1.msra.mxu0 %v3476
    %3522 = vmatprep.subr.mxu0 0.0
    %3523 = vmatpush1.msra.mxu0 %v3475
    %3524 = vmatprep.subr.mxu0 0.0
    %3525 = vmatpush1.msra.mxu0 %v3474
    %3526 = vmatprep.subr.mxu0 0.0
    %3527 = vmatpush1.msra.mxu0 %v3473
    %3528 = vmatprep.subr.mxu0 0.0
    %3529 = vmatpush1.msra.mxu0 %v3472
    %3530 = vmatprep.subr.mxu0 0.0
    %3531 = vmatpush1.msra.mxu0 %v3471
    %3532 = vmatprep.subr.mxu0 0.0
    %3533 = vmatpush1.msra.mxu0 %v3470
    %3534 = vmatprep.subr.mxu0 0.0
    %3535 = vmatpush2.msra.mxu0 %v3501
    %3536 = vmatprep.subr.mxu0 0.0
    %3537 = vmatpush2.msra.mxu0 %v3500
    %3538 = vmatprep.subr.mxu0 0.0
    %3539 = vmatpush2.msra.mxu0 %v3499
    %3540 = vmatprep.subr.mxu0 0.0
    %3541 = vmatpush2.msra.mxu0 %v3498
    %3542 = vmatprep.subr.mxu0 0.0
    %3543 = vmatpush2.msra.mxu0 %v3497
    %3544 = vmatprep.subr.mxu0 0.0
    %3545 = vmatpush2.msra.mxu0 %v3496
    %3546 = vmatprep.subr.mxu0 0.0
    %3547 = vmatpush2.msra.mxu0 %v3495
    %3548 = vmatprep.subr.mxu0 0.0
    %3549 = vmatpush2.msra.mxu0 %v3494
    %3550 = vmatprep.subr.mxu0 0.0
    %3551 = vmatpush2.msra.mxu0 %v3493
    %3552 = vmatprep.subr.mxu0 0.0
    %3553 = vmatpush2.msra.mxu0 %v3492
    %3554 = vmatprep.subr.mxu0 0.0
    %3555 = vmatpush2.msra.mxu0 %v3491
    %3556 = vmatprep.subr.mxu0 0.0
    %3557 = vmatpush2.msra.mxu0 %v3490
    %3558 = vmatprep.subr.mxu0 0.0
    %3559 = vmatpush2.msra.mxu0 %v3489
    %3560 = vmatprep.subr.mxu0 0.0
    %3561 = vmatpush2.msra.mxu0 %v3488
    %3562 = vmatprep.subr.mxu0 0.0
    %3563 = vmatpush2.msra.mxu0 %v3487
    %3564 = vmatprep.subr.mxu0 0.0
    %3565 = vmatpush2.msra.mxu0 %v3486
    %3566 = vmatprep.mubr.f32.mxu0 %v3366
    %3567 = vmatmul.mubr.f32.gmra.mxu0 %v3365
    %v3568 = vpop.f32.mrf.mxu0
    %v3569 = vadd.f32 0.0, %v3568
    %v3570 = vpop.f32.mrf.mxu0
    %3571 = vdwg.mxu0
    %v3572 = vmax.f32 %v3466, %v3569
    %v3573 = vld [vmem:[#allocation25] sm:$0xff]
    %vm3574 = vcmask 64512
    %v3576 = vsel %vm3574, %v3573, 0
    %3578 = vmatprep.subr.mxu0 0.0
    %3579 = vmatpush1.msra.mxu0 0.0
    %3580 = vmatprep.subr.mxu0 0.0
    %3581 = vmatpush1.msra.mxu0 0.0
    %3582 = vmatprep.subr.mxu0 0.0
    %3583 = vmatpush1.msra.mxu0 0.0
    %3584 = vmatprep.subr.mxu0 0.0
    %3585 = vmatpush1.msra.mxu0 0.0
    %3586 = vmatprep.subr.mxu0 0.0
    %3587 = vmatpush1.msra.mxu0 0.0
    %3588 = vmatprep.subr.mxu0 0.0
    %3589 = vmatpush1.msra.mxu0 0.0
    %3590 = vmatprep.subr.mxu0 0.0
    %3591 = vmatpush1.msra.mxu0 0.0
    %3592 = vmatprep.subr.mxu0 0.0
    %3593 = vmatpush1.msra.mxu0 0.0
    %3594 = vmatprep.subr.mxu0 0.0
    %3595 = vmatpush1.msra.mxu0 0.0
    %3596 = vmatprep.subr.mxu0 0.0
    %3597 = vmatpush1.msra.mxu0 0.0
    %3598 = vmatprep.subr.mxu0 0.0
    %3599 = vmatpush1.msra.mxu0 0.0
    %3600 = vmatprep.subr.mxu0 0.0
    %3601 = vmatpush1.msra.mxu0 0.0
    %3602 = vmatprep.subr.mxu0 0.0
    %3603 = vmatpush1.msra.mxu0 0.0
    %3604 = vmatprep.subr.mxu0 0.0
    %3605 = vmatpush1.msra.mxu0 0.0
    %3606 = vmatprep.subr.mxu0 0.0
    %3607 = vmatpush1.msra.mxu0 0.0
    %3608 = vmatprep.subr.mxu0 0.0
    %3609 = vmatpush1.msra.mxu0 %v3572
    %3610 = vmatprep.subr.mxu0 0.0
    %3611 = vmatpush2.msra.mxu0 0.0
    %3612 = vmatprep.subr.mxu0 0.0
    %3613 = vmatpush2.msra.mxu0 0.0
    %3614 = vmatprep.subr.mxu0 0.0
    %3615 = vmatpush2.msra.mxu0 0.0
    %3616 = vmatprep.subr.mxu0 0.0
    %3617 = vmatpush2.msra.mxu0 0.0
    %3618 = vmatprep.subr.mxu0 0.0
    %3619 = vmatpush2.msra.mxu0 0.0
    %3620 = vmatprep.subr.mxu0 0.0
    %3621 = vmatpush2.msra.mxu0 0.0
    %3622 = vmatprep.subr.mxu0 0.0
    %3623 = vmatpush2.msra.mxu0 0.0
    %3624 = vmatprep.subr.mxu0 0.0
    %3625 = vmatpush2.msra.mxu0 0.0
    %3626 = vmatprep.subr.mxu0 0.0
    %3627 = vmatpush2.msra.mxu0 0.0
    %3628 = vmatprep.subr.mxu0 0.0
    %3629 = vmatpush2.msra.mxu0 0.0
    %3630 = vmatprep.subr.mxu0 0.0
    %3631 = vmatpush2.msra.mxu0 0.0
    %3632 = vmatprep.subr.mxu0 0.0
    %3633 = vmatpush2.msra.mxu0 0.0
    %3634 = vmatprep.subr.mxu0 0.0
    %3635 = vmatpush2.msra.mxu0 0.0
    %3636 = vmatprep.subr.mxu0 0.0
    %3637 = vmatpush2.msra.mxu0 0.0
    %3638 = vmatprep.subr.mxu0 0.0
    %3639 = vmatpush2.msra.mxu0 0.0
    %3640 = vmatprep.subr.mxu0 0.0
    %3641 = vmatpush2.msra.mxu0 0.0
    %3642 = vmatprep.mubr.f32.mxu0 0.0
    %3643 = vmatmul.mubr.f32.gmra.mxu0 %v3576
    %v3644 = vpop.f32.mrf.mxu0
    %v3645 = vadd.f32 0.0, %v3644
    %v3646 = vpop.f32.mrf.mxu0
    %3647 = vdwg.mxu0
    %v3648 = vld [vmem:[#allocation26] sm:$0xff]
    %v3649 = vld [vmem:[#allocation26 + $0x8] sm:$0xff]
    %v3650 = vld [vmem:[#allocation26 + $0x10] sm:$0xff]
    %v3651 = vld [vmem:[#allocation26 + $0x18] sm:$0xff]
    %v3652 = vld [vmem:[#allocation26 + $0x20] sm:$0xff]
    %v3653 = vld [vmem:[#allocation26 + $0x28] sm:$0xff]
    %v3654 = vld [vmem:[#allocation26 + $0x30] sm:$0xff]
    %v3655 = vld [vmem:[#allocation26 + $0x38] sm:$0xff]
    %v3656 = vld [vmem:[#allocation26 + $0x40] sm:$0xff]
    %v3657 = vld [vmem:[#allocation26 + $0x48] sm:$0xff]
    %v3658 = vld [vmem:[#allocation26 + $0x50] sm:$0xff]
    %v3659 = vld [vmem:[#allocation26 + $0x58] sm:$0xff]
    %v3660 = vld [vmem:[#allocation26 + $0x60] sm:$0xff]
    %v3661 = vld [vmem:[#allocation26 + $0x68] sm:$0xff]
    %v3662 = vld [vmem:[#allocation26 + $0x70] sm:$0xff]
    %v3663 = vld [vmem:[#allocation26 + $0x78] sm:$0xff]
    %s3664 = scalar_lea.vmem [#allocation25], 8
    %v3665 = vld [vmem:[%s3664] sm:$0xff]
    %v3667 = vsel %vm3574, %v3665, 0
    %3669 = vmatprep.subr.mxu0 0.0
    %3670 = vmatpush1.msra.mxu0 0.0
    %3671 = vmatprep.subr.mxu0 0.0
    %3672 = vmatpush1.msra.mxu0 0.0
    %3673 = vmatprep.subr.mxu0 0.0
    %3674 = vmatpush1.msra.mxu0 0.0
    %3675 = vmatprep.subr.mxu0 0.0
    %3676 = vmatpush1.msra.mxu0 0.0
    %3677 = vmatprep.subr.mxu0 0.0
    %3678 = vmatpush1.msra.mxu0 0.0
    %3679 = vmatprep.subr.mxu0 0.0
    %3680 = vmatpush1.msra.mxu0 0.0
    %3681 = vmatprep.subr.mxu0 0.0
    %3682 = vmatpush1.msra.mxu0 0.0
    %3683 = vmatprep.subr.mxu0 0.0
    %3684 = vmatpush1.msra.mxu0 0.0
    %3685 = vmatprep.subr.mxu0 0.0
    %3686 = vmatpush1.msra.mxu0 0.0
    %3687 = vmatprep.subr.mxu0 0.0
    %3688 = vmatpush1.msra.mxu0 0.0
    %3689 = vmatprep.subr.mxu0 0.0
    %3690 = vmatpush1.msra.mxu0 0.0
    %3691 = vmatprep.subr.mxu0 0.0
    %3692 = vmatpush1.msra.mxu0 0.0
    %3693 = vmatprep.subr.mxu0 0.0
    %3694 = vmatpush1.msra.mxu0 0.0
    %3695 = vmatprep.subr.mxu0 0.0
    %3696 = vmatpush1.msra.mxu0 0.0
    %3697 = vmatprep.subr.mxu0 0.0
    %3698 = vmatpush1.msra.mxu0 0.0
    %3699 = vmatprep.subr.mxu0 0.0
    %3700 = vmatpush1.msra.mxu0 %v3572
    %3701 = vmatprep.subr.mxu0 0.0
    %3702 = vmatpush2.msra.mxu0 0.0
    %3703 = vmatprep.subr.mxu0 0.0
    %3704 = vmatpush2.msra.mxu0 0.0
    %3705 = vmatprep.subr.mxu0 0.0
    %3706 = vmatpush2.msra.mxu0 0.0
    %3707 = vmatprep.subr.mxu0 0.0
    %3708 = vmatpush2.msra.mxu0 0.0
    %3709 = vmatprep.subr.mxu0 0.0
    %3710 = vmatpush2.msra.mxu0 0.0
    %3711 = vmatprep.subr.mxu0 0.0
    %3712 = vmatpush2.msra.mxu0 0.0
    %3713 = vmatprep.subr.mxu0 0.0
    %3714 = vmatpush2.msra.mxu0 0.0
    %3715 = vmatprep.subr.mxu0 0.0
    %3716 = vmatpush2.msra.mxu0 0.0
    %3717 = vmatprep.subr.mxu0 0.0
    %3718 = vmatpush2.msra.mxu0 0.0
    %3719 = vmatprep.subr.mxu0 0.0
    %3720 = vmatpush2.msra.mxu0 0.0
    %3721 = vmatprep.subr.mxu0 0.0
    %3722 = vmatpush2.msra.mxu0 0.0
    %3723 = vmatprep.subr.mxu0 0.0
    %3724 = vmatpush2.msra.mxu0 0.0
    %3725 = vmatprep.subr.mxu0 0.0
    %3726 = vmatpush2.msra.mxu0 0.0
    %3727 = vmatprep.subr.mxu0 0.0
    %3728 = vmatpush2.msra.mxu0 0.0
    %3729 = vmatprep.subr.mxu0 0.0
    %3730 = vmatpush2.msra.mxu0 0.0
    %3731 = vmatprep.subr.mxu0 0.0
    %3732 = vmatpush2.msra.mxu0 0.0
    %3733 = vmatprep.mubr.f32.mxu0 0.0
    %3734 = vmatmul.mubr.f32.gmra.mxu0 %v3667
    %v3735 = vpop.f32.mrf.mxu0
    %v3736 = vadd.f32 0.0, %v3735
    %v3737 = vpop.f32.mrf.mxu0
    %3738 = vdwg.mxu0
    %s3739 = scalar_lea.vmem [#allocation26], 128
    %v3740 = vld [vmem:[%s3739] sm:$0xff]
    %v3741 = vld [vmem:[%s3739 + $0x8] sm:$0xff]
    %v3742 = vld [vmem:[%s3739 + $0x10] sm:$0xff]
    %v3743 = vld [vmem:[%s3739 + $0x18] sm:$0xff]
    %v3744 = vld [vmem:[%s3739 + $0x20] sm:$0xff]
    %v3745 = vld [vmem:[%s3739 + $0x28] sm:$0xff]
    %v3746 = vld [vmem:[%s3739 + $0x30] sm:$0xff]
    %v3747 = vld [vmem:[%s3739 + $0x38] sm:$0xff]
    %v3748 = vld [vmem:[%s3739 + $0x40] sm:$0xff]
    %v3749 = vld [vmem:[%s3739 + $0x48] sm:$0xff]
    %v3750 = vld [vmem:[%s3739 + $0x50] sm:$0xff]
    %v3751 = vld [vmem:[%s3739 + $0x58] sm:$0xff]
    %v3752 = vld [vmem:[%s3739 + $0x60] sm:$0xff]
    %v3753 = vld [vmem:[%s3739 + $0x68] sm:$0xff]
    %v3754 = vld [vmem:[%s3739 + $0x70] sm:$0xff]
    %v3755 = vld [vmem:[%s3739 + $0x78] sm:$0xff]
    %3756 = vmatprep.subr.mxu0 0.0
    %3757 = vmatpush1.msra.mxu0 %v3755
    %3758 = vmatprep.subr.mxu0 0.0
    %3759 = vmatpush1.msra.mxu0 %v3754
    %3760 = vmatprep.subr.mxu0 0.0
    %3761 = vmatpush1.msra.mxu0 %v3753
    %3762 = vmatprep.subr.mxu0 0.0
    %3763 = vmatpush1.msra.mxu0 %v3752
    %3764 = vmatprep.subr.mxu0 0.0
    %3765 = vmatpush1.msra.mxu0 %v3751
    %3766 = vmatprep.subr.mxu0 0.0
    %3767 = vmatpush1.msra.mxu0 %v3750
    %3768 = vmatprep.subr.mxu0 0.0
    %3769 = vmatpush1.msra.mxu0 %v3749
    %3770 = vmatprep.subr.mxu0 0.0
    %3771 = vmatpush1.msra.mxu0 %v3748
    %3772 = vmatprep.subr.mxu0 0.0
    %3773 = vmatpush1.msra.mxu0 %v3747
    %3774 = vmatprep.subr.mxu0 0.0
    %3775 = vmatpush1.msra.mxu0 %v3746
    %3776 = vmatprep.subr.mxu0 0.0
    %3777 = vmatpush1.msra.mxu0 %v3745
    %3778 = vmatprep.subr.mxu0 0.0
    %3779 = vmatpush1.msra.mxu0 %v3744
    %3780 = vmatprep.subr.mxu0 0.0
    %3781 = vmatpush1.msra.mxu0 %v3743
    %3782 = vmatprep.subr.mxu0 0.0
    %3783 = vmatpush1.msra.mxu0 %v3742
    %3784 = vmatprep.subr.mxu0 0.0
    %3785 = vmatpush1.msra.mxu0 %v3741
    %3786 = vmatprep.subr.mxu0 0.0
    %3787 = vmatpush1.msra.mxu0 %v3740
    %3788 = vmatprep.subr.mxu0 0.0
    %3789 = vmatpush2.msra.mxu0 0.0
    %3790 = vmatprep.subr.mxu0 0.0
    %3791 = vmatpush2.msra.mxu0 0.0
    %3792 = vmatprep.subr.mxu0 0.0
    %3793 = vmatpush2.msra.mxu0 0.0
    %3794 = vmatprep.subr.mxu0 0.0
    %3795 = vmatpush2.msra.mxu0 0.0
    %3796 = vmatprep.subr.mxu0 0.0
    %3797 = vmatpush2.msra.mxu0 0.0
    %3798 = vmatprep.subr.mxu0 0.0
    %3799 = vmatpush2.msra.mxu0 0.0
    %3800 = vmatprep.subr.mxu0 0.0
    %3801 = vmatpush2.msra.mxu0 0.0
    %3802 = vmatprep.subr.mxu0 0.0
    %3803 = vmatpush2.msra.mxu0 0.0
    %3804 = vmatprep.subr.mxu0 0.0
    %3805 = vmatpush2.msra.mxu0 0.0
    %3806 = vmatprep.subr.mxu0 0.0
    %3807 = vmatpush2.msra.mxu0 0.0
    %3808 = vmatprep.subr.mxu0 0.0
    %3809 = vmatpush2.msra.mxu0 0.0
    %3810 = vmatprep.subr.mxu0 0.0
    %3811 = vmatpush2.msra.mxu0 0.0
    %3812 = vmatprep.subr.mxu0 0.0
    %3813 = vmatpush2.msra.mxu0 0.0
    %3814 = vmatprep.subr.mxu0 0.0
    %3815 = vmatpush2.msra.mxu0 0.0
    %3816 = vmatprep.subr.mxu0 0.0
    %3817 = vmatpush2.msra.mxu0 0.0
    %3818 = vmatprep.subr.mxu0 0.0
    %3819 = vmatpush2.msra.mxu0 0.0
    %3820 = vmatprep.mubr.f32.mxu0 0.0
    %3821 = vmatmul.mubr.f32.gmra.mxu0 %v3736
    %v3822 = vpop.f32.mrf.mxu0
    %v3823 = vadd.f32 0.0, %v3822
    %v3824 = vpop.f32.mrf.mxu0
    %3825 = vdwg.mxu0
    %3826 = vmatprep.subr.mxu0 0.0
    %3827 = vmatpush1.msra.mxu0 %v3663
    %3828 = vmatprep.subr.mxu0 0.0
    %3829 = vmatpush1.msra.mxu0 %v3662
    %3830 = vmatprep.subr.mxu0 0.0
    %3831 = vmatpush1.msra.mxu0 %v3661
    %3832 = vmatprep.subr.mxu0 0.0
    %3833 = vmatpush1.msra.mxu0 %v3660
    %3834 = vmatprep.subr.mxu0 0.0
    %3835 = vmatpush1.msra.mxu0 %v3659
    %3836 = vmatprep.subr.mxu0 0.0
    %3837 = vmatpush1.msra.mxu0 %v3658
    %3838 = vmatprep.subr.mxu0 0.0
    %3839 = vmatpush1.msra.mxu0 %v3657
    %3840 = vmatprep.subr.mxu0 0.0
    %3841 = vmatpush1.msra.mxu0 %v3656
    %3842 = vmatprep.subr.mxu0 0.0
    %3843 = vmatpush1.msra.mxu0 %v3655
    %3844 = vmatprep.subr.mxu0 0.0
    %3845 = vmatpush1.msra.mxu0 %v3654
    %3846 = vmatprep.subr.mxu0 0.0
    %3847 = vmatpush1.msra.mxu0 %v3653
    %3848 = vmatprep.subr.mxu0 0.0
    %3849 = vmatpush1.msra.mxu0 %v3652
    %3850 = vmatprep.subr.mxu0 0.0
    %3851 = vmatpush1.msra.mxu0 %v3651
    %3852 = vmatprep.subr.mxu0 0.0
    %3853 = vmatpush1.msra.mxu0 %v3650
    %3854 = vmatprep.subr.mxu0 0.0
    %3855 = vmatpush1.msra.mxu0 %v3649
    %3856 = vmatprep.subr.mxu0 0.0
    %3857 = vmatpush1.msra.mxu0 %v3648
    %3858 = vmatprep.subr.mxu0 0.0
    %3859 = vmatpush2.msra.mxu0 0.0
    %3860 = vmatprep.subr.mxu0 0.0
    %3861 = vmatpush2.msra.mxu0 0.0
    %3862 = vmatprep.subr.mxu0 0.0
    %3863 = vmatpush2.msra.mxu0 0.0
    %3864 = vmatprep.subr.mxu0 0.0
    %3865 = vmatpush2.msra.mxu0 0.0
    %3866 = vmatprep.subr.mxu0 0.0
    %3867 = vmatpush2.msra.mxu0 0.0
    %3868 = vmatprep.subr.mxu0 0.0
    %3869 = vmatpush2.msra.mxu0 0.0
    %3870 = vmatprep.subr.mxu0 0.0
    %3871 = vmatpush2.msra.mxu0 0.0
    %3872 = vmatprep.subr.mxu0 0.0
    %3873 = vmatpush2.msra.mxu0 0.0
    %3874 = vmatprep.subr.mxu0 0.0
    %3875 = vmatpush2.msra.mxu0 0.0
    %3876 = vmatprep.subr.mxu0 0.0
    %3877 = vmatpush2.msra.mxu0 0.0
    %3878 = vmatprep.subr.mxu0 0.0
    %3879 = vmatpush2.msra.mxu0 0.0
    %3880 = vmatprep.subr.mxu0 0.0
    %3881 = vmatpush2.msra.mxu0 0.0
    %3882 = vmatprep.subr.mxu0 0.0
    %3883 = vmatpush2.msra.mxu0 0.0
    %3884 = vmatprep.subr.mxu0 0.0
    %3885 = vmatpush2.msra.mxu0 0.0
    %3886 = vmatprep.subr.mxu0 0.0
    %3887 = vmatpush2.msra.mxu0 0.0
    %3888 = vmatprep.subr.mxu0 0.0
    %3889 = vmatpush2.msra.mxu0 0.0
    %3890 = vmatprep.mubr.f32.mxu0 0.0
    %3891 = vmatmul.mubr.f32.gmra.mxu0 %v3645
    %v3892 = vpop.f32.mrf.mxu0
    %v3893 = vadd.f32 %v3823, %v3892
    %v3894 = vpop.f32.mrf.mxu0
    %3895 = vdwg.mxu0
    %s3896 = scalar_lea.vmem [#allocation25], 16
    %v3897 = vld [vmem:[%s3896] sm:$0xff]
    %v3899 = vsel %vm3574, %v3897, 0
    %3901 = vmatprep.subr.mxu0 0.0
    %3902 = vmatpush1.msra.mxu0 0.0
    %3903 = vmatprep.subr.mxu0 0.0
    %3904 = vmatpush1.msra.mxu0 0.0
    %3905 = vmatprep.subr.mxu0 0.0
    %3906 = vmatpush1.msra.mxu0 0.0
    %3907 = vmatprep.subr.mxu0 0.0
    %3908 = vmatpush1.msra.mxu0 0.0
    %3909 = vmatprep.subr.mxu0 0.0
    %3910 = vmatpush1.msra.mxu0 0.0
    %3911 = vmatprep.subr.mxu0 0.0
    %3912 = vmatpush1.msra.mxu0 0.0
    %3913 = vmatprep.subr.mxu0 0.0
    %3914 = vmatpush1.msra.mxu0 0.0
    %3915 = vmatprep.subr.mxu0 0.0
    %3916 = vmatpush1.msra.mxu0 0.0
    %3917 = vmatprep.subr.mxu0 0.0
    %3918 = vmatpush1.msra.mxu0 0.0
    %3919 = vmatprep.subr.mxu0 0.0
    %3920 = vmatpush1.msra.mxu0 0.0
    %3921 = vmatprep.subr.mxu0 0.0
    %3922 = vmatpush1.msra.mxu0 0.0
    %3923 = vmatprep.subr.mxu0 0.0
    %3924 = vmatpush1.msra.mxu0 0.0
    %3925 = vmatprep.subr.mxu0 0.0
    %3926 = vmatpush1.msra.mxu0 0.0
    %3927 = vmatprep.subr.mxu0 0.0
    %3928 = vmatpush1.msra.mxu0 0.0
    %3929 = vmatprep.subr.mxu0 0.0
    %3930 = vmatpush1.msra.mxu0 0.0
    %3931 = vmatprep.subr.mxu0 0.0
    %3932 = vmatpush1.msra.mxu0 %v3572
    %3933 = vmatprep.subr.mxu0 0.0
    %3934 = vmatpush2.msra.mxu0 0.0
    %3935 = vmatprep.subr.mxu0 0.0
    %3936 = vmatpush2.msra.mxu0 0.0
    %3937 = vmatprep.subr.mxu0 0.0
    %3938 = vmatpush2.msra.mxu0 0.0
    %3939 = vmatprep.subr.mxu0 0.0
    %3940 = vmatpush2.msra.mxu0 0.0
    %3941 = vmatprep.subr.mxu0 0.0
    %3942 = vmatpush2.msra.mxu0 0.0
    %3943 = vmatprep.subr.mxu0 0.0
    %3944 = vmatpush2.msra.mxu0 0.0
    %3945 = vmatprep.subr.mxu0 0.0
    %3946 = vmatpush2.msra.mxu0 0.0
    %3947 = vmatprep.subr.mxu0 0.0
    %3948 = vmatpush2.msra.mxu0 0.0
    %3949 = vmatprep.subr.mxu0 0.0
    %3950 = vmatpush2.msra.mxu0 0.0
    %3951 = vmatprep.subr.mxu0 0.0
    %3952 = vmatpush2.msra.mxu0 0.0
    %3953 = vmatprep.subr.mxu0 0.0
    %3954 = vmatpush2.msra.mxu0 0.0
    %3955 = vmatprep.subr.mxu0 0.0
    %3956 = vmatpush2.msra.mxu0 0.0
    %3957 = vmatprep.subr.mxu0 0.0
    %3958 = vmatpush2.msra.mxu0 0.0
    %3959 = vmatprep.subr.mxu0 0.0
    %3960 = vmatpush2.msra.mxu0 0.0
    %3961 = vmatprep.subr.mxu0 0.0
    %3962 = vmatpush2.msra.mxu0 0.0
    %3963 = vmatprep.subr.mxu0 0.0
    %3964 = vmatpush2.msra.mxu0 0.0
    %3965 = vmatprep.mubr.f32.mxu0 0.0
    %3966 = vmatmul.mubr.f32.gmra.mxu0 %v3899
    %v3967 = vpop.f32.mrf.mxu0
    %v3968 = vadd.f32 0.0, %v3967
    %v3969 = vpop.f32.mrf.mxu0
    %3970 = vdwg.mxu0
    %s3971 = scalar_lea.vmem [#allocation26], 256
    %v3972 = vld [vmem:[%s3971] sm:$0xff]
    %v3973 = vld [vmem:[%s3971 + $0x8] sm:$0xff]
    %v3974 = vld [vmem:[%s3971 + $0x10] sm:$0xff]
    %v3975 = vld [vmem:[%s3971 + $0x18] sm:$0xff]
    %v3976 = vld [vmem:[%s3971 + $0x20] sm:$0xff]
    %v3977 = vld [vmem:[%s3971 + $0x28] sm:$0xff]
    %v3978 = vld [vmem:[%s3971 + $0x30] sm:$0xff]
    %v3979 = vld [vmem:[%s3971 + $0x38] sm:$0xff]
    %v3980 = vld [vmem:[%s3971 + $0x40] sm:$0xff]
    %v3981 = vld [vmem:[%s3971 + $0x48] sm:$0xff]
    %v3982 = vld [vmem:[%s3971 + $0x50] sm:$0xff]
    %v3983 = vld [vmem:[%s3971 + $0x58] sm:$0xff]
    %v3984 = vld [vmem:[%s3971 + $0x60] sm:$0xff]
    %v3985 = vld [vmem:[%s3971 + $0x68] sm:$0xff]
    %v3986 = vld [vmem:[%s3971 + $0x70] sm:$0xff]
    %v3987 = vld [vmem:[%s3971 + $0x78] sm:$0xff]
    %3988 = vmatprep.subr.mxu0 0.0
    %3989 = vmatpush1.msra.mxu0 %v3987
    %3990 = vmatprep.subr.mxu0 0.0
    %3991 = vmatpush1.msra.mxu0 %v3986
    %3992 = vmatprep.subr.mxu0 0.0
    %3993 = vmatpush1.msra.mxu0 %v3985
    %3994 = vmatprep.subr.mxu0 0.0
    %3995 = vmatpush1.msra.mxu0 %v3984
    %3996 = vmatprep.subr.mxu0 0.0
    %3997 = vmatpush1.msra.mxu0 %v3983
    %3998 = vmatprep.subr.mxu0 0.0
    %3999 = vmatpush1.msra.mxu0 %v3982
    %4000 = vmatprep.subr.mxu0 0.0
    %4001 = vmatpush1.msra.mxu0 %v3981
    %4002 = vmatprep.subr.mxu0 0.0
    %4003 = vmatpush1.msra.mxu0 %v3980
    %4004 = vmatprep.subr.mxu0 0.0
    %4005 = vmatpush1.msra.mxu0 %v3979
    %4006 = vmatprep.subr.mxu0 0.0
    %4007 = vmatpush1.msra.mxu0 %v3978
    %4008 = vmatprep.subr.mxu0 0.0
    %4009 = vmatpush1.msra.mxu0 %v3977
    %4010 = vmatprep.subr.mxu0 0.0
    %4011 = vmatpush1.msra.mxu0 %v3976
    %4012 = vmatprep.subr.mxu0 0.0
    %4013 = vmatpush1.msra.mxu0 %v3975
    %4014 = vmatprep.subr.mxu0 0.0
    %4015 = vmatpush1.msra.mxu0 %v3974
    %4016 = vmatprep.subr.mxu0 0.0
    %4017 = vmatpush1.msra.mxu0 %v3973
    %4018 = vmatprep.subr.mxu0 0.0
    %4019 = vmatpush1.msra.mxu0 %v3972
    %4020 = vmatprep.subr.mxu0 0.0
    %4021 = vmatpush2.msra.mxu0 0.0
    %4022 = vmatprep.subr.mxu0 0.0
    %4023 = vmatpush2.msra.mxu0 0.0
    %4024 = vmatprep.subr.mxu0 0.0
    %4025 = vmatpush2.msra.mxu0 0.0
    %4026 = vmatprep.subr.mxu0 0.0
    %4027 = vmatpush2.msra.mxu0 0.0
    %4028 = vmatprep.subr.mxu0 0.0
    %4029 = vmatpush2.msra.mxu0 0.0
    %4030 = vmatprep.subr.mxu0 0.0
    %4031 = vmatpush2.msra.mxu0 0.0
    %4032 = vmatprep.subr.mxu0 0.0
    %4033 = vmatpush2.msra.mxu0 0.0
    %4034 = vmatprep.subr.mxu0 0.0
    %4035 = vmatpush2.msra.mxu0 0.0
    %4036 = vmatprep.subr.mxu0 0.0
    %4037 = vmatpush2.msra.mxu0 0.0
    %4038 = vmatprep.subr.mxu0 0.0
    %4039 = vmatpush2.msra.mxu0 0.0
    %4040 = vmatprep.subr.mxu0 0.0
    %4041 = vmatpush2.msra.mxu0 0.0
    %4042 = vmatprep.subr.mxu0 0.0
    %4043 = vmatpush2.msra.mxu0 0.0
    %4044 = vmatprep.subr.mxu0 0.0
    %4045 = vmatpush2.msra.mxu0 0.0
    %4046 = vmatprep.subr.mxu0 0.0
    %4047 = vmatpush2.msra.mxu0 0.0
    %4048 = vmatprep.subr.mxu0 0.0
    %4049 = vmatpush2.msra.mxu0 0.0
    %4050 = vmatprep.subr.mxu0 0.0
    %4051 = vmatpush2.msra.mxu0 0.0
    %4052 = vmatprep.mubr.f32.mxu0 0.0
    %4053 = vmatmul.mubr.f32.gmra.mxu0 %v3968
    %v4054 = vpop.f32.mrf.mxu0
    %v4055 = vadd.f32 0.0, %v4054
    %v4056 = vpop.f32.mrf.mxu0
    %4057 = vdwg.mxu0
    %v4058 = vadd.f32 %v3893, %v4055
    %v4059 = vld [vmem:[#allocation28] sm:$0x1]
    %v4061 = vlaneseq
    %v4062 = vshrl.u32 %v4061, 7
    %v4063 = vsub.s32 0, %v4062
    %v4064 = vrot.slane %v4059, %v4063
    %v4066 = vadd.f32 %v4058, %v4064
    %v4067 = vld [vmem:[%s49] sm:$0xff]
    %v4068 = vld [vmem:[%s49 + $0x8] sm:$0xff]
    %v4069 = vld [vmem:[%s49 + $0x10] sm:$0xff]
    %v4070 = vld [vmem:[%s49 + $0x18] sm:$0xff]
    %v4071 = vld [vmem:[%s49 + $0x20] sm:$0xff]
    %v4072 = vld [vmem:[%s49 + $0x28] sm:$0xff]
    %v4073 = vld [vmem:[%s49 + $0x30] sm:$0xff]
    %v4074 = vld [vmem:[%s49 + $0x38] sm:$0xff]
    %v4075 = vld [vmem:[%s49 + $0x40] sm:$0xff]
    %v4076 = vld [vmem:[%s49 + $0x48] sm:$0xff]
    %v4077 = vld [vmem:[%s49 + $0x50] sm:$0xff]
    %v4078 = vld [vmem:[%s49 + $0x58] sm:$0xff]
    %v4079 = vld [vmem:[%s49 + $0x60] sm:$0xff]
    %v4080 = vld [vmem:[%s49 + $0x68] sm:$0xff]
    %v4081 = vld [vmem:[%s49 + $0x70] sm:$0xff]
    %v4082 = vld [vmem:[%s49 + $0x78] sm:$0xff]
    %v4083 = vld [vmem:[#allocation32] sm:$0xff]
    %v4084 = vld [vmem:[#allocation32 + $0x8] sm:$0xff]
    %v4085 = vld [vmem:[#allocation32 + $0x10] sm:$0xff]
    %v4086 = vld [vmem:[#allocation32 + $0x18] sm:$0xff]
    %v4087 = vrot.slane %v4066, 4
    %v4088 = vadd.f32 %v4066, %v4087
    %v4089 = vrot.slane %v4088, 2
    %v4090 = vadd.f32 %v4088, %v4089
    %v4091 = vrot.slane %v4090, 1
    %v4092 = vadd.f32 %v4090, %v4091
    %4093 = vmatprep.subr.mxu0 0.0
    %4094 = vmatpush1.msra.mxu0 %v4082
    %4095 = vmatprep.subr.mxu0 0.0
    %4096 = vmatpush1.msra.mxu0 %v4081
    %4097 = vmatprep.subr.mxu0 0.0
    %4098 = vmatpush1.msra.mxu0 %v4080
    %4099 = vmatprep.subr.mxu0 0.0
    %4100 = vmatpush1.msra.mxu0 %v4079
    %4101 = vmatprep.subr.mxu0 0.0
    %4102 = vmatpush1.msra.mxu0 %v4078
    %4103 = vmatprep.subr.mxu0 0.0
    %4104 = vmatpush1.msra.mxu0 %v4077
    %4105 = vmatprep.subr.mxu0 0.0
    %4106 = vmatpush1.msra.mxu0 %v4076
    %4107 = vmatprep.subr.mxu0 0.0
    %4108 = vmatpush1.msra.mxu0 %v4075
    %4109 = vmatprep.subr.mxu0 0.0
    %4110 = vmatpush1.msra.mxu0 %v4074
    %4111 = vmatprep.subr.mxu0 0.0
    %4112 = vmatpush1.msra.mxu0 %v4073
    %4113 = vmatprep.subr.mxu0 0.0
    %4114 = vmatpush1.msra.mxu0 %v4072
    %4115 = vmatprep.subr.mxu0 0.0
    %4116 = vmatpush1.msra.mxu0 %v4071
    %4117 = vmatprep.subr.mxu0 0.0
    %4118 = vmatpush1.msra.mxu0 %v4070
    %4119 = vmatprep.subr.mxu0 0.0
    %4120 = vmatpush1.msra.mxu0 %v4069
    %4121 = vmatprep.subr.mxu0 0.0
    %4122 = vmatpush1.msra.mxu0 %v4068
    %4123 = vmatprep.subr.mxu0 0.0
    %4124 = vmatpush1.msra.mxu0 %v4067
    %4125 = vmatprep.subr.mxu0 0.0
    %4126 = vmatpush2.msra.mxu0 0.0
    %4127 = vmatprep.subr.mxu0 0.0
    %4128 = vmatpush2.msra.mxu0 0.0
    %4129 = vmatprep.subr.mxu0 0.0
    %4130 = vmatpush2.msra.mxu0 0.0
    %4131 = vmatprep.subr.mxu0 0.0
    %4132 = vmatpush2.msra.mxu0 0.0
    %4133 = vmatprep.subr.mxu0 0.0
    %4134 = vmatpush2.msra.mxu0 0.0
    %4135 = vmatprep.subr.mxu0 0.0
    %4136 = vmatpush2.msra.mxu0 0.0
    %4137 = vmatprep.subr.mxu0 0.0
    %4138 = vmatpush2.msra.mxu0 0.0
    %4139 = vmatprep.subr.mxu0 0.0
    %4140 = vmatpush2.msra.mxu0 0.0
    %4141 = vmatprep.subr.mxu0 0.0
    %4142 = vmatpush2.msra.mxu0 0.0
    %4143 = vmatprep.subr.mxu0 0.0
    %4144 = vmatpush2.msra.mxu0 0.0
    %4145 = vmatprep.subr.mxu0 0.0
    %4146 = vmatpush2.msra.mxu0 0.0
    %4147 = vmatprep.subr.mxu0 0.0
    %4148 = vmatpush2.msra.mxu0 0.0
    %4149 = vmatprep.subr.mxu0 0.0
    %4150 = vmatpush2.msra.mxu0 0.0
    %4151 = vmatprep.subr.mxu0 0.0
    %4152 = vmatpush2.msra.mxu0 0.0
    %4153 = vmatprep.subr.mxu0 0.0
    %4154 = vmatpush2.msra.mxu0 0.0
    %4155 = vmatprep.subr.mxu0 0.0
    %4156 = vmatpush2.msra.mxu0 0.0
    %4157 = vmatprep.mubr.f32.mxu0 0.0
    %4158 = vmatmul.mubr.f32.gmra.mxu0 %v4092
    %v4159 = vpop.f32.mrf.mxu0
    %v4160 = vadd.f32 0.0, %v4159
    %v4161 = vpop.f32.mrf.mxu0
    %4162 = vdwg.mxu0
    %v4163 = vmul.f32 %v4160, 0.03125
    %v4165 = vsel %vm588, %v4163, 0
    %4167 = vmatprep.subr.mxu0 0.0
    %4168 = vmatpush1.msra.mxu0 0.0
    %4169 = vmatprep.subr.mxu0 0.0
    %4170 = vmatpush1.msra.mxu0 0.0
    %4171 = vmatprep.subr.mxu0 0.0
    %4172 = vmatpush1.msra.mxu0 0.0
    %4173 = vmatprep.subr.mxu0 0.0
    %4174 = vmatpush1.msra.mxu0 0.0
    %4175 = vmatprep.subr.mxu0 0.0
    %4176 = vmatpush1.msra.mxu0 0.0
    %4177 = vmatprep.subr.mxu0 0.0
    %4178 = vmatpush1.msra.mxu0 0.0
    %4179 = vmatprep.subr.mxu0 0.0
    %4180 = vmatpush1.msra.mxu0 0.0
    %4181 = vmatprep.subr.mxu0 0.0
    %4182 = vmatpush1.msra.mxu0 0.0
    %4183 = vmatprep.subr.mxu0 0.0
    %4184 = vmatpush1.msra.mxu0 0.0
    %4185 = vmatprep.subr.mxu0 0.0
    %4186 = vmatpush1.msra.mxu0 0.0
    %4187 = vmatprep.subr.mxu0 0.0
    %4188 = vmatpush1.msra.mxu0 0.0
    %4189 = vmatprep.subr.mxu0 0.0
    %4190 = vmatpush1.msra.mxu0 0.0
    %4191 = vmatprep.subr.mxu0 0.0
    %4192 = vmatpush1.msra.mxu0 %v4086
    %4193 = vmatprep.subr.mxu0 0.0
    %4194 = vmatpush1.msra.mxu0 %v4085
    %4195 = vmatprep.subr.mxu0 0.0
    %4196 = vmatpush1.msra.mxu0 %v4084
    %4197 = vmatprep.subr.mxu0 0.0
    %4198 = vmatpush1.msra.mxu0 %v4083
    %4199 = vmatprep.subr.mxu0 0.0
    %4200 = vmatpush2.msra.mxu0 0.0
    %4201 = vmatprep.subr.mxu0 0.0
    %4202 = vmatpush2.msra.mxu0 0.0
    %4203 = vmatprep.subr.mxu0 0.0
    %4204 = vmatpush2.msra.mxu0 0.0
    %4205 = vmatprep.subr.mxu0 0.0
    %4206 = vmatpush2.msra.mxu0 0.0
    %4207 = vmatprep.subr.mxu0 0.0
    %4208 = vmatpush2.msra.mxu0 0.0
    %4209 = vmatprep.subr.mxu0 0.0
    %4210 = vmatpush2.msra.mxu0 0.0
    %4211 = vmatprep.subr.mxu0 0.0
    %4212 = vmatpush2.msra.mxu0 0.0
    %4213 = vmatprep.subr.mxu0 0.0
    %4214 = vmatpush2.msra.mxu0 0.0
    %4215 = vmatprep.subr.mxu0 0.0
    %4216 = vmatpush2.msra.mxu0 0.0
    %4217 = vmatprep.subr.mxu0 0.0
    %4218 = vmatpush2.msra.mxu0 0.0
    %4219 = vmatprep.subr.mxu0 0.0
    %4220 = vmatpush2.msra.mxu0 0.0
    %4221 = vmatprep.subr.mxu0 0.0
    %4222 = vmatpush2.msra.mxu0 0.0
    %4223 = vmatprep.subr.mxu0 0.0
    %4224 = vmatpush2.msra.mxu0 0.0
    %4225 = vmatprep.subr.mxu0 0.0
    %4226 = vmatpush2.msra.mxu0 0.0
    %4227 = vmatprep.subr.mxu0 0.0
    %4228 = vmatpush2.msra.mxu0 0.0
    %4229 = vmatprep.subr.mxu0 0.0
    %4230 = vmatpush2.msra.mxu0 0.0
    %4231 = vmatprep.mubr.f32.mxu0 0.0
    %4232 = vmatmul.mubr.f32.gmra.mxu0 %v4165
    %v4233 = vpop.f32.mrf.mxu0
    %v4234 = vadd.f32 0.0, %v4233
    %v4235 = vpop.f32.mrf.mxu0
    %4236 = vdwg.mxu0
    %v4237 = vlaneseq
    %v4238 = vshrl.u32 %v4237, 7
    %v4239 = vsub.s32 0, %v4238
    %v4240 = vrot.slane %v4234, %v4239
    %v4241 = vsub.f32 %v4066, %v4240
    %v4242 = vmul.f32 %v4241, %v4241
    %v4243 = vrot.slane %v4242, 4
    %v4244 = vadd.f32 %v4242, %v4243
    %v4245 = vrot.slane %v4244, 2
    %v4246 = vadd.f32 %v4244, %v4245
    %v4247 = vrot.slane %v4246, 1
    %v4248 = vadd.f32 %v4246, %v4247
    %4249 = vmatprep.subr.mxu0 0.0
    %4250 = vmatpush1.msra.mxu0 %v4082
    %4251 = vmatprep.subr.mxu0 0.0
    %4252 = vmatpush1.msra.mxu0 %v4081
    %4253 = vmatprep.subr.mxu0 0.0
    %4254 = vmatpush1.msra.mxu0 %v4080
    %4255 = vmatprep.subr.mxu0 0.0
    %4256 = vmatpush1.msra.mxu0 %v4079
    %4257 = vmatprep.subr.mxu0 0.0
    %4258 = vmatpush1.msra.mxu0 %v4078
    %4259 = vmatprep.subr.mxu0 0.0
    %4260 = vmatpush1.msra.mxu0 %v4077
    %4261 = vmatprep.subr.mxu0 0.0
    %4262 = vmatpush1.msra.mxu0 %v4076
    %4263 = vmatprep.subr.mxu0 0.0
    %4264 = vmatpush1.msra.mxu0 %v4075
    %4265 = vmatprep.subr.mxu0 0.0
    %4266 = vmatpush1.msra.mxu0 %v4074
    %4267 = vmatprep.subr.mxu0 0.0
    %4268 = vmatpush1.msra.mxu0 %v4073
    %4269 = vmatprep.subr.mxu0 0.0
    %4270 = vmatpush1.msra.mxu0 %v4072
    %4271 = vmatprep.subr.mxu0 0.0
    %4272 = vmatpush1.msra.mxu0 %v4071
    %4273 = vmatprep.subr.mxu0 0.0
    %4274 = vmatpush1.msra.mxu0 %v4070
    %4275 = vmatprep.subr.mxu0 0.0
    %4276 = vmatpush1.msra.mxu0 %v4069
    %4277 = vmatprep.subr.mxu0 0.0
    %4278 = vmatpush1.msra.mxu0 %v4068
    %4279 = vmatprep.subr.mxu0 0.0
    %4280 = vmatpush1.msra.mxu0 %v4067
    %4281 = vmatprep.subr.mxu0 0.0
    %4282 = vmatpush2.msra.mxu0 0.0
    %4283 = vmatprep.subr.mxu0 0.0
    %4284 = vmatpush2.msra.mxu0 0.0
    %4285 = vmatprep.subr.mxu0 0.0
    %4286 = vmatpush2.msra.mxu0 0.0
    %4287 = vmatprep.subr.mxu0 0.0
    %4288 = vmatpush2.msra.mxu0 0.0
    %4289 = vmatprep.subr.mxu0 0.0
    %4290 = vmatpush2.msra.mxu0 0.0
    %4291 = vmatprep.subr.mxu0 0.0
    %4292 = vmatpush2.msra.mxu0 0.0
    %4293 = vmatprep.subr.mxu0 0.0
    %4294 = vmatpush2.msra.mxu0 0.0
    %4295 = vmatprep.subr.mxu0 0.0
    %4296 = vmatpush2.msra.mxu0 0.0
    %4297 = vmatprep.subr.mxu0 0.0
    %4298 = vmatpush2.msra.mxu0 0.0
    %4299 = vmatprep.subr.mxu0 0.0
    %4300 = vmatpush2.msra.mxu0 0.0
    %4301 = vmatprep.subr.mxu0 0.0
    %4302 = vmatpush2.msra.mxu0 0.0
    %4303 = vmatprep.subr.mxu0 0.0
    %4304 = vmatpush2.msra.mxu0 0.0
    %4305 = vmatprep.subr.mxu0 0.0
    %4306 = vmatpush2.msra.mxu0 0.0
    %4307 = vmatprep.subr.mxu0 0.0
    %4308 = vmatpush2.msra.mxu0 0.0
    %4309 = vmatprep.subr.mxu0 0.0
    %4310 = vmatpush2.msra.mxu0 0.0
    %4311 = vmatprep.subr.mxu0 0.0
    %4312 = vmatpush2.msra.mxu0 0.0
    %4313 = vmatprep.mubr.f32.mxu0 0.0
    %4314 = vmatmul.mubr.f32.gmra.mxu0 %v4248
    %v4315 = vpop.f32.mrf.mxu0
    %v4316 = vadd.f32 0.0, %v4315
    %v4317 = vpop.f32.mrf.mxu0
    %4318 = vdwg.mxu0
    %v4319 = vmul.f32 %v4316, 0.03125
    %v4320 = vld [vmem:[#allocation29] sm:$0x1]
    %v4321 = vadd.f32 %v4319, 1e-05
    %v4322 = vrsqrt.pop %v4321
    %v4323 = vmul.f32 %v4320, %v4322
    %v4325 = vsel %vm588, %v4323, 0
    %4327 = vmatprep.subr.mxu0 0.0
    %4328 = vmatpush1.msra.mxu0 0.0
    %4329 = vmatprep.subr.mxu0 0.0
    %4330 = vmatpush1.msra.mxu0 0.0
    %4331 = vmatprep.subr.mxu0 0.0
    %4332 = vmatpush1.msra.mxu0 0.0
    %4333 = vmatprep.subr.mxu0 0.0
    %4334 = vmatpush1.msra.mxu0 0.0
    %4335 = vmatprep.subr.mxu0 0.0
    %4336 = vmatpush1.msra.mxu0 0.0
    %4337 = vmatprep.subr.mxu0 0.0
    %4338 = vmatpush1.msra.mxu0 0.0
    %4339 = vmatprep.subr.mxu0 0.0
    %4340 = vmatpush1.msra.mxu0 0.0
    %4341 = vmatprep.subr.mxu0 0.0
    %4342 = vmatpush1.msra.mxu0 0.0
    %4343 = vmatprep.subr.mxu0 0.0
    %4344 = vmatpush1.msra.mxu0 0.0
    %4345 = vmatprep.subr.mxu0 0.0
    %4346 = vmatpush1.msra.mxu0 0.0
    %4347 = vmatprep.subr.mxu0 0.0
    %4348 = vmatpush1.msra.mxu0 0.0
    %4349 = vmatprep.subr.mxu0 0.0
    %4350 = vmatpush1.msra.mxu0 0.0
    %4351 = vmatprep.subr.mxu0 0.0
    %4352 = vmatpush1.msra.mxu0 %v4086
    %4353 = vmatprep.subr.mxu0 0.0
    %4354 = vmatpush1.msra.mxu0 %v4085
    %4355 = vmatprep.subr.mxu0 0.0
    %4356 = vmatpush1.msra.mxu0 %v4084
    %4357 = vmatprep.subr.mxu0 0.0
    %4358 = vmatpush1.msra.mxu0 %v4083
    %4359 = vmatprep.subr.mxu0 0.0
    %4360 = vmatpush2.msra.mxu0 0.0
    %4361 = vmatprep.subr.mxu0 0.0
    %4362 = vmatpush2.msra.mxu0 0.0
    %4363 = vmatprep.subr.mxu0 0.0
    %4364 = vmatpush2.msra.mxu0 0.0
    %4365 = vmatprep.subr.mxu0 0.0
    %4366 = vmatpush2.msra.mxu0 0.0
    %4367 = vmatprep.subr.mxu0 0.0
    %4368 = vmatpush2.msra.mxu0 0.0
    %4369 = vmatprep.subr.mxu0 0.0
    %4370 = vmatpush2.msra.mxu0 0.0
    %4371 = vmatprep.subr.mxu0 0.0
    %4372 = vmatpush2.msra.mxu0 0.0
    %4373 = vmatprep.subr.mxu0 0.0
    %4374 = vmatpush2.msra.mxu0 0.0
    %4375 = vmatprep.subr.mxu0 0.0
    %4376 = vmatpush2.msra.mxu0 0.0
    %4377 = vmatprep.subr.mxu0 0.0
    %4378 = vmatpush2.msra.mxu0 0.0
    %4379 = vmatprep.subr.mxu0 0.0
    %4380 = vmatpush2.msra.mxu0 0.0
    %4381 = vmatprep.subr.mxu0 0.0
    %4382 = vmatpush2.msra.mxu0 0.0
    %4383 = vmatprep.subr.mxu0 0.0
    %4384 = vmatpush2.msra.mxu0 0.0
    %4385 = vmatprep.subr.mxu0 0.0
    %4386 = vmatpush2.msra.mxu0 0.0
    %4387 = vmatprep.subr.mxu0 0.0
    %4388 = vmatpush2.msra.mxu0 0.0
    %4389 = vmatprep.subr.mxu0 0.0
    %4390 = vmatpush2.msra.mxu0 0.0
    %4391 = vmatprep.mubr.f32.mxu0 0.0
    %4392 = vmatmul.mubr.f32.gmra.mxu0 %v4325
    %v4393 = vpop.f32.mrf.mxu0
    %v4394 = vadd.f32 0.0, %v4393
    %v4395 = vpop.f32.mrf.mxu0
    %4396 = vdwg.mxu0
    %v4397 = vlaneseq
    %v4398 = vshrl.u32 %v4397, 7
    %v4399 = vsub.s32 0, %v4398
    %v4400 = vrot.slane %v4394, %v4399
    %v4401 = vmul.f32 %v4241, %v4400
    %v4402 = vld [vmem:[#allocation31] sm:$0x1]
    %v4404 = vsel %vm588, %v4402, 0
    %4406 = vmatprep.subr.mxu0 0.0
    %4407 = vmatpush1.msra.mxu0 0.0
    %4408 = vmatprep.subr.mxu0 0.0
    %4409 = vmatpush1.msra.mxu0 0.0
    %4410 = vmatprep.subr.mxu0 0.0
    %4411 = vmatpush1.msra.mxu0 0.0
    %4412 = vmatprep.subr.mxu0 0.0
    %4413 = vmatpush1.msra.mxu0 0.0
    %4414 = vmatprep.subr.mxu0 0.0
    %4415 = vmatpush1.msra.mxu0 0.0
    %4416 = vmatprep.subr.mxu0 0.0
    %4417 = vmatpush1.msra.mxu0 0.0
    %4418 = vmatprep.subr.mxu0 0.0
    %4419 = vmatpush1.msra.mxu0 0.0
    %4420 = vmatprep.subr.mxu0 0.0
    %4421 = vmatpush1.msra.mxu0 0.0
    %4422 = vmatprep.subr.mxu0 0.0
    %4423 = vmatpush1.msra.mxu0 0.0
    %4424 = vmatprep.subr.mxu0 0.0
    %4425 = vmatpush1.msra.mxu0 0.0
    %4426 = vmatprep.subr.mxu0 0.0
    %4427 = vmatpush1.msra.mxu0 0.0
    %4428 = vmatprep.subr.mxu0 0.0
    %4429 = vmatpush1.msra.mxu0 0.0
    %4430 = vmatprep.subr.mxu0 0.0
    %4431 = vmatpush1.msra.mxu0 %v4086
    %4432 = vmatprep.subr.mxu0 0.0
    %4433 = vmatpush1.msra.mxu0 %v4085
    %4434 = vmatprep.subr.mxu0 0.0
    %4435 = vmatpush1.msra.mxu0 %v4084
    %4436 = vmatprep.subr.mxu0 0.0
    %4437 = vmatpush1.msra.mxu0 %v4083
    %4438 = vmatprep.subr.mxu0 0.0
    %4439 = vmatpush2.msra.mxu0 0.0
    %4440 = vmatprep.subr.mxu0 0.0
    %4441 = vmatpush2.msra.mxu0 0.0
    %4442 = vmatprep.subr.mxu0 0.0
    %4443 = vmatpush2.msra.mxu0 0.0
    %4444 = vmatprep.subr.mxu0 0.0
    %4445 = vmatpush2.msra.mxu0 0.0
    %4446 = vmatprep.subr.mxu0 0.0
    %4447 = vmatpush2.msra.mxu0 0.0
    %4448 = vmatprep.subr.mxu0 0.0
    %4449 = vmatpush2.msra.mxu0 0.0
    %4450 = vmatprep.subr.mxu0 0.0
    %4451 = vmatpush2.msra.mxu0 0.0
    %4452 = vmatprep.subr.mxu0 0.0
    %4453 = vmatpush2.msra.mxu0 0.0
    %4454 = vmatprep.subr.mxu0 0.0
    %4455 = vmatpush2.msra.mxu0 0.0
    %4456 = vmatprep.subr.mxu0 0.0
    %4457 = vmatpush2.msra.mxu0 0.0
    %4458 = vmatprep.subr.mxu0 0.0
    %4459 = vmatpush2.msra.mxu0 0.0
    %4460 = vmatprep.subr.mxu0 0.0
    %4461 = vmatpush2.msra.mxu0 0.0
    %4462 = vmatprep.subr.mxu0 0.0
    %4463 = vmatpush2.msra.mxu0 0.0
    %4464 = vmatprep.subr.mxu0 0.0
    %4465 = vmatpush2.msra.mxu0 0.0
    %4466 = vmatprep.subr.mxu0 0.0
    %4467 = vmatpush2.msra.mxu0 0.0
    %4468 = vmatprep.subr.mxu0 0.0
    %4469 = vmatpush2.msra.mxu0 0.0
    %4470 = vmatprep.mubr.f32.mxu0 0.0
    %4471 = vmatmul.mubr.f32.gmra.mxu0 %v4404
    %v4472 = vpop.f32.mrf.mxu0
    %v4473 = vadd.f32 0.0, %v4472
    %v4474 = vpop.f32.mrf.mxu0
    %4475 = vdwg.mxu0
    %v4476 = vlaneseq
    %v4477 = vshrl.u32 %v4476, 7
    %v4478 = vsub.s32 0, %v4477
    %v4479 = vrot.slane %v4473, %v4478
    %v4480 = vadd.f32 %v4401, %v4479
    %v4481 = vmax.f32 %v4480, 0.0
    %v4482 = vld [vmem:[#allocation34] sm:$0xf]
    %v4484 = vsel %vm3574, %v4482, 0
    %4486 = vmatprep.subr.mxu0 0.0
    %4487 = vmatpush1.msra.mxu0 0.0
    %4488 = vmatprep.subr.mxu0 0.0
    %4489 = vmatpush1.msra.mxu0 0.0
    %4490 = vmatprep.subr.mxu0 0.0
    %4491 = vmatpush1.msra.mxu0 0.0
    %4492 = vmatprep.subr.mxu0 0.0
    %4493 = vmatpush1.msra.mxu0 0.0
    %4494 = vmatprep.subr.mxu0 0.0
    %4495 = vmatpush1.msra.mxu0 0.0
    %4496 = vmatprep.subr.mxu0 0.0
    %4497 = vmatpush1.msra.mxu0 0.0
    %4498 = vmatprep.subr.mxu0 0.0
    %4499 = vmatpush1.msra.mxu0 0.0
    %4500 = vmatprep.subr.mxu0 0.0
    %4501 = vmatpush1.msra.mxu0 0.0
    %4502 = vmatprep.subr.mxu0 0.0
    %4503 = vmatpush1.msra.mxu0 0.0
    %4504 = vmatprep.subr.mxu0 0.0
    %4505 = vmatpush1.msra.mxu0 0.0
    %4506 = vmatprep.subr.mxu0 0.0
    %4507 = vmatpush1.msra.mxu0 0.0
    %4508 = vmatprep.subr.mxu0 0.0
    %4509 = vmatpush1.msra.mxu0 0.0
    %4510 = vmatprep.subr.mxu0 0.0
    %4511 = vmatpush1.msra.mxu0 0.0
    %4512 = vmatprep.subr.mxu0 0.0
    %4513 = vmatpush1.msra.mxu0 0.0
    %4514 = vmatprep.subr.mxu0 0.0
    %4515 = vmatpush1.msra.mxu0 0.0
    %4516 = vmatprep.subr.mxu0 0.0
    %4517 = vmatpush1.msra.mxu0 %v4481
    %4518 = vmatprep.subr.mxu0 0.0
    %4519 = vmatpush2.msra.mxu0 0.0
    %4520 = vmatprep.subr.mxu0 0.0
    %4521 = vmatpush2.msra.mxu0 0.0
    %4522 = vmatprep.subr.mxu0 0.0
    %4523 = vmatpush2.msra.mxu0 0.0
    %4524 = vmatprep.subr.mxu0 0.0
    %4525 = vmatpush2.msra.mxu0 0.0
    %4526 = vmatprep.subr.mxu0 0.0
    %4527 = vmatpush2.msra.mxu0 0.0
    %4528 = vmatprep.subr.mxu0 0.0
    %4529 = vmatpush2.msra.mxu0 0.0
    %4530 = vmatprep.subr.mxu0 0.0
    %4531 = vmatpush2.msra.mxu0 0.0
    %4532 = vmatprep.subr.mxu0 0.0
    %4533 = vmatpush2.msra.mxu0 0.0
    %4534 = vmatprep.subr.mxu0 0.0
    %4535 = vmatpush2.msra.mxu0 0.0
    %4536 = vmatprep.subr.mxu0 0.0
    %4537 = vmatpush2.msra.mxu0 0.0
    %4538 = vmatprep.subr.mxu0 0.0
    %4539 = vmatpush2.msra.mxu0 0.0
    %4540 = vmatprep.subr.mxu0 0.0
    %4541 = vmatpush2.msra.mxu0 0.0
    %4542 = vmatprep.subr.mxu0 0.0
    %4543 = vmatpush2.msra.mxu0 0.0
    %4544 = vmatprep.subr.mxu0 0.0
    %4545 = vmatpush2.msra.mxu0 0.0
    %4546 = vmatprep.subr.mxu0 0.0
    %4547 = vmatpush2.msra.mxu0 0.0
    %4548 = vmatprep.subr.mxu0 0.0
    %4549 = vmatpush2.msra.mxu0 0.0
    %4550 = vmatprep.mubr.f32.mxu0 0.0
    %4551 = vmatmul.mubr.f32.gmra.mxu0 %v4484
    %v4552 = vpop.f32.mrf.mxu0
    %v4553 = vadd.f32 0.0, %v4552
    %v4554 = vpop.f32.mrf.mxu0
    %4555 = vdwg.mxu0
    %s4556 = scalar_lea.vmem [#allocation34], 4
    %v4557 = vld [vmem:[%s4556] sm:$0xf]
    %v4559 = vsel %vm3574, %v4557, 0
    %4561 = vmatprep.subr.mxu0 0.0
    %4562 = vmatpush1.msra.mxu0 0.0
    %4563 = vmatprep.subr.mxu0 0.0
    %4564 = vmatpush1.msra.mxu0 0.0
    %4565 = vmatprep.subr.mxu0 0.0
    %4566 = vmatpush1.msra.mxu0 0.0
    %4567 = vmatprep.subr.mxu0 0.0
    %4568 = vmatpush1.msra.mxu0 0.0
    %4569 = vmatprep.subr.mxu0 0.0
    %4570 = vmatpush1.msra.mxu0 0.0
    %4571 = vmatprep.subr.mxu0 0.0
    %4572 = vmatpush1.msra.mxu0 0.0
    %4573 = vmatprep.subr.mxu0 0.0
    %4574 = vmatpush1.msra.mxu0 0.0
    %4575 = vmatprep.subr.mxu0 0.0
    %4576 = vmatpush1.msra.mxu0 0.0
    %4577 = vmatprep.subr.mxu0 0.0
    %4578 = vmatpush1.msra.mxu0 0.0
    %4579 = vmatprep.subr.mxu0 0.0
    %4580 = vmatpush1.msra.mxu0 0.0
    %4581 = vmatprep.subr.mxu0 0.0
    %4582 = vmatpush1.msra.mxu0 0.0
    %4583 = vmatprep.subr.mxu0 0.0
    %4584 = vmatpush1.msra.mxu0 0.0
    %4585 = vmatprep.subr.mxu0 0.0
    %4586 = vmatpush1.msra.mxu0 0.0
    %4587 = vmatprep.subr.mxu0 0.0
    %4588 = vmatpush1.msra.mxu0 0.0
    %4589 = vmatprep.subr.mxu0 0.0
    %4590 = vmatpush1.msra.mxu0 0.0
    %4591 = vmatprep.subr.mxu0 0.0
    %4592 = vmatpush1.msra.mxu0 %v4481
    %4593 = vmatprep.subr.mxu0 0.0
    %4594 = vmatpush2.msra.mxu0 0.0
    %4595 = vmatprep.subr.mxu0 0.0
    %4596 = vmatpush2.msra.mxu0 0.0
    %4597 = vmatprep.subr.mxu0 0.0
    %4598 = vmatpush2.msra.mxu0 0.0
    %4599 = vmatprep.subr.mxu0 0.0
    %4600 = vmatpush2.msra.mxu0 0.0
    %4601 = vmatprep.subr.mxu0 0.0
    %4602 = vmatpush2.msra.mxu0 0.0
    %4603 = vmatprep.subr.mxu0 0.0
    %4604 = vmatpush2.msra.mxu0 0.0
    %4605 = vmatprep.subr.mxu0 0.0
    %4606 = vmatpush2.msra.mxu0 0.0
    %4607 = vmatprep.subr.mxu0 0.0
    %4608 = vmatpush2.msra.mxu0 0.0
    %4609 = vmatprep.subr.mxu0 0.0
    %4610 = vmatpush2.msra.mxu0 0.0
    %4611 = vmatprep.subr.mxu0 0.0
    %4612 = vmatpush2.msra.mxu0 0.0
    %4613 = vmatprep.subr.mxu0 0.0
    %4614 = vmatpush2.msra.mxu0 0.0
    %4615 = vmatprep.subr.mxu0 0.0
    %4616 = vmatpush2.msra.mxu0 0.0
    %4617 = vmatprep.subr.mxu0 0.0
    %4618 = vmatpush2.msra.mxu0 0.0
    %4619 = vmatprep.subr.mxu0 0.0
    %4620 = vmatpush2.msra.mxu0 0.0
    %4621 = vmatprep.subr.mxu0 0.0
    %4622 = vmatpush2.msra.mxu0 0.0
    %4623 = vmatprep.subr.mxu0 0.0
    %4624 = vmatpush2.msra.mxu0 0.0
    %4625 = vmatprep.mubr.f32.mxu0 0.0
    %4626 = vmatmul.mubr.f32.gmra.mxu0 %v4559
    %v4627 = vpop.f32.mrf.mxu0
    %v4628 = vadd.f32 0.0, %v4627
    %v4629 = vpop.f32.mrf.mxu0
    %4630 = vdwg.mxu0
    %v4631 = vmax.f32 %v4553, %v4628
    %v4632 = vld [vmem:[%s55] sm:$0xff]
    %v4633 = vld [vmem:[%s55 + $0x8] sm:$0xff]
    %v4634 = vld [vmem:[%s55 + $0x10] sm:$0xff]
    %v4635 = vld [vmem:[%s55 + $0x18] sm:$0xff]
    %v4636 = vld [vmem:[%s55 + $0x20] sm:$0xff]
    %v4637 = vld [vmem:[%s55 + $0x28] sm:$0xff]
    %v4638 = vld [vmem:[%s55 + $0x30] sm:$0xff]
    %v4639 = vld [vmem:[%s55 + $0x38] sm:$0xff]
    %v4640 = vld [vmem:[%s55 + $0x40] sm:$0xff]
    %v4641 = vld [vmem:[%s55 + $0x48] sm:$0xff]
    %v4642 = vld [vmem:[%s55 + $0x50] sm:$0xff]
    %v4643 = vld [vmem:[%s55 + $0x58] sm:$0xff]
    %v4644 = vld [vmem:[%s55 + $0x60] sm:$0xff]
    %v4645 = vld [vmem:[%s55 + $0x68] sm:$0xff]
    %v4646 = vld [vmem:[%s55 + $0x70] sm:$0xff]
    %v4647 = vld [vmem:[%s55 + $0x78] sm:$0xff]
    %4648 = vmatprep.subr.mxu0 0.0
    %4649 = vmatpush1.msra.mxu0 %v4647
    %4650 = vmatprep.subr.mxu0 0.0
    %4651 = vmatpush1.msra.mxu0 %v4646
    %4652 = vmatprep.subr.mxu0 0.0
    %4653 = vmatpush1.msra.mxu0 %v4645
    %4654 = vmatprep.subr.mxu0 0.0
    %4655 = vmatpush1.msra.mxu0 %v4644
    %4656 = vmatprep.subr.mxu0 0.0
    %4657 = vmatpush1.msra.mxu0 %v4643
    %4658 = vmatprep.subr.mxu0 0.0
    %4659 = vmatpush1.msra.mxu0 %v4642
    %4660 = vmatprep.subr.mxu0 0.0
    %4661 = vmatpush1.msra.mxu0 %v4641
    %4662 = vmatprep.subr.mxu0 0.0
    %4663 = vmatpush1.msra.mxu0 %v4640
    %4664 = vmatprep.subr.mxu0 0.0
    %4665 = vmatpush1.msra.mxu0 %v4639
    %4666 = vmatprep.subr.mxu0 0.0
    %4667 = vmatpush1.msra.mxu0 %v4638
    %4668 = vmatprep.subr.mxu0 0.0
    %4669 = vmatpush1.msra.mxu0 %v4637
    %4670 = vmatprep.subr.mxu0 0.0
    %4671 = vmatpush1.msra.mxu0 %v4636
    %4672 = vmatprep.subr.mxu0 0.0
    %4673 = vmatpush1.msra.mxu0 %v4635
    %4674 = vmatprep.subr.mxu0 0.0
    %4675 = vmatpush1.msra.mxu0 %v4634
    %4676 = vmatprep.subr.mxu0 0.0
    %4677 = vmatpush1.msra.mxu0 %v4633
    %4678 = vmatprep.subr.mxu0 0.0
    %4679 = vmatpush1.msra.mxu0 %v4632
    %4680 = vmatprep.subr.mxu0 0.0
    %4681 = vmatpush2.msra.mxu0 0.0
    %4682 = vmatprep.subr.mxu0 0.0
    %4683 = vmatpush2.msra.mxu0 0.0
    %4684 = vmatprep.subr.mxu0 0.0
    %4685 = vmatpush2.msra.mxu0 0.0
    %4686 = vmatprep.subr.mxu0 0.0
    %4687 = vmatpush2.msra.mxu0 0.0
    %4688 = vmatprep.subr.mxu0 0.0
    %4689 = vmatpush2.msra.mxu0 0.0
    %4690 = vmatprep.subr.mxu0 0.0
    %4691 = vmatpush2.msra.mxu0 0.0
    %4692 = vmatprep.subr.mxu0 0.0
    %4693 = vmatpush2.msra.mxu0 0.0
    %4694 = vmatprep.subr.mxu0 0.0
    %4695 = vmatpush2.msra.mxu0 0.0
    %4696 = vmatprep.subr.mxu0 0.0
    %4697 = vmatpush2.msra.mxu0 0.0
    %4698 = vmatprep.subr.mxu0 0.0
    %4699 = vmatpush2.msra.mxu0 0.0
    %4700 = vmatprep.subr.mxu0 0.0
    %4701 = vmatpush2.msra.mxu0 0.0
    %4702 = vmatprep.subr.mxu0 0.0
    %4703 = vmatpush2.msra.mxu0 0.0
    %4704 = vmatprep.subr.mxu0 0.0
    %4705 = vmatpush2.msra.mxu0 0.0
    %4706 = vmatprep.subr.mxu0 0.0
    %4707 = vmatpush2.msra.mxu0 0.0
    %4708 = vmatprep.subr.mxu0 0.0
    %4709 = vmatpush2.msra.mxu0 0.0
    %4710 = vmatprep.subr.mxu0 0.0
    %4711 = vmatpush2.msra.mxu0 0.0
    %4712 = vmatprep.mubr.f32.mxu0 0.0
    %4713 = vmatmul.mubr.f32.gmra.mxu0 %v4631
    %v4714 = vpop.f32.mrf.mxu0
    %v4715 = vadd.f32 0.0, %v4714
    %v4716 = vpop.f32.mrf.mxu0
    %4717 = vdwg.mxu0
    %s4718 = scalar_lea.vmem %s55, 128
    %v4719 = vld [vmem:[%s4718] sm:$0xff]
    %v4720 = vld [vmem:[%s4718 + $0x8] sm:$0xff]
    %v4721 = vld [vmem:[%s4718 + $0x10] sm:$0xff]
    %v4722 = vld [vmem:[%s4718 + $0x18] sm:$0xff]
    %v4723 = vld [vmem:[%s4718 + $0x20] sm:$0xff]
    %v4724 = vld [vmem:[%s4718 + $0x28] sm:$0xff]
    %v4725 = vld [vmem:[%s4718 + $0x30] sm:$0xff]
    %v4726 = vld [vmem:[%s4718 + $0x38] sm:$0xff]
    %v4727 = vld [vmem:[%s4718 + $0x40] sm:$0xff]
    %v4728 = vld [vmem:[%s4718 + $0x48] sm:$0xff]
    %v4729 = vld [vmem:[%s4718 + $0x50] sm:$0xff]
    %v4730 = vld [vmem:[%s4718 + $0x58] sm:$0xff]
    %v4731 = vld [vmem:[%s4718 + $0x60] sm:$0xff]
    %v4732 = vld [vmem:[%s4718 + $0x68] sm:$0xff]
    %v4733 = vld [vmem:[%s4718 + $0x70] sm:$0xff]
    %v4734 = vld [vmem:[%s4718 + $0x78] sm:$0xff]
    %4735 = vmatprep.subr.mxu0 0.0
    %4736 = vmatpush1.msra.mxu0 %v4734
    %4737 = vmatprep.subr.mxu0 0.0
    %4738 = vmatpush1.msra.mxu0 %v4733
    %4739 = vmatprep.subr.mxu0 0.0
    %4740 = vmatpush1.msra.mxu0 %v4732
    %4741 = vmatprep.subr.mxu0 0.0
    %4742 = vmatpush1.msra.mxu0 %v4731
    %4743 = vmatprep.subr.mxu0 0.0
    %4744 = vmatpush1.msra.mxu0 %v4730
    %4745 = vmatprep.subr.mxu0 0.0
    %4746 = vmatpush1.msra.mxu0 %v4729
    %4747 = vmatprep.subr.mxu0 0.0
    %4748 = vmatpush1.msra.mxu0 %v4728
    %4749 = vmatprep.subr.mxu0 0.0
    %4750 = vmatpush1.msra.mxu0 %v4727
    %4751 = vmatprep.subr.mxu0 0.0
    %4752 = vmatpush1.msra.mxu0 %v4726
    %4753 = vmatprep.subr.mxu0 0.0
    %4754 = vmatpush1.msra.mxu0 %v4725
    %4755 = vmatprep.subr.mxu0 0.0
    %4756 = vmatpush1.msra.mxu0 %v4724
    %4757 = vmatprep.subr.mxu0 0.0
    %4758 = vmatpush1.msra.mxu0 %v4723
    %4759 = vmatprep.subr.mxu0 0.0
    %4760 = vmatpush1.msra.mxu0 %v4722
    %4761 = vmatprep.subr.mxu0 0.0
    %4762 = vmatpush1.msra.mxu0 %v4721
    %4763 = vmatprep.subr.mxu0 0.0
    %4764 = vmatpush1.msra.mxu0 %v4720
    %4765 = vmatprep.subr.mxu0 0.0
    %4766 = vmatpush1.msra.mxu0 %v4719
    %4767 = vmatprep.subr.mxu0 0.0
    %4768 = vmatpush2.msra.mxu0 0.0
    %4769 = vmatprep.subr.mxu0 0.0
    %4770 = vmatpush2.msra.mxu0 0.0
    %4771 = vmatprep.subr.mxu0 0.0
    %4772 = vmatpush2.msra.mxu0 0.0
    %4773 = vmatprep.subr.mxu0 0.0
    %4774 = vmatpush2.msra.mxu0 0.0
    %4775 = vmatprep.subr.mxu0 0.0
    %4776 = vmatpush2.msra.mxu0 0.0
    %4777 = vmatprep.subr.mxu0 0.0
    %4778 = vmatpush2.msra.mxu0 0.0
    %4779 = vmatprep.subr.mxu0 0.0
    %4780 = vmatpush2.msra.mxu0 0.0
    %4781 = vmatprep.subr.mxu0 0.0
    %4782 = vmatpush2.msra.mxu0 0.0
    %4783 = vmatprep.subr.mxu0 0.0
    %4784 = vmatpush2.msra.mxu0 0.0
    %4785 = vmatprep.subr.mxu0 0.0
    %4786 = vmatpush2.msra.mxu0 0.0
    %4787 = vmatprep.subr.mxu0 0.0
    %4788 = vmatpush2.msra.mxu0 0.0
    %4789 = vmatprep.subr.mxu0 0.0
    %4790 = vmatpush2.msra.mxu0 0.0
    %4791 = vmatprep.subr.mxu0 0.0
    %4792 = vmatpush2.msra.mxu0 0.0
    %4793 = vmatprep.subr.mxu0 0.0
    %4794 = vmatpush2.msra.mxu0 0.0
    %4795 = vmatprep.subr.mxu0 0.0
    %4796 = vmatpush2.msra.mxu0 0.0
    %4797 = vmatprep.subr.mxu0 0.0
    %4798 = vmatpush2.msra.mxu0 0.0
    %4799 = vmatprep.mubr.f32.mxu0 0.0
    %4800 = vmatmul.mubr.f32.gmra.mxu0 %v4631
    %v4801 = vpop.f32.mrf.mxu0
    %v4802 = vadd.f32 0.0, %v4801
    %v4803 = vpop.f32.mrf.mxu0
    %4804 = vdwg.mxu0
    %v4805 = vmax.f32 %v4715, %v4802
    %v4806 = vld [vmem:[%s57] sm:$0xf]
    %vm4807 = vcmask 31744
    %v4809 = vsel %vm4807, %v4806, 0
    %vm4811 = vcmask 1043456
    %v4813 = vsel %vm4811, %v4805, 0
    %4815 = vmatprep.subr.mxu0 0.0
    %4816 = vmatpush1.msra.mxu0 0.0
    %4817 = vmatprep.subr.mxu0 0.0
    %4818 = vmatpush1.msra.mxu0 0.0
    %4819 = vmatprep.subr.mxu0 0.0
    %4820 = vmatpush1.msra.mxu0 0.0
    %4821 = vmatprep.subr.mxu0 0.0
    %4822 = vmatpush1.msra.mxu0 0.0
    %4823 = vmatprep.subr.mxu0 0.0
    %4824 = vmatpush1.msra.mxu0 0.0
    %4825 = vmatprep.subr.mxu0 0.0
    %4826 = vmatpush1.msra.mxu0 0.0
    %4827 = vmatprep.subr.mxu0 0.0
    %4828 = vmatpush1.msra.mxu0 0.0
    %4829 = vmatprep.subr.mxu0 0.0
    %4830 = vmatpush1.msra.mxu0 0.0
    %4831 = vmatprep.subr.mxu0 0.0
    %4832 = vmatpush1.msra.mxu0 0.0
    %4833 = vmatprep.subr.mxu0 0.0
    %4834 = vmatpush1.msra.mxu0 0.0
    %4835 = vmatprep.subr.mxu0 0.0
    %4836 = vmatpush1.msra.mxu0 0.0
    %4837 = vmatprep.subr.mxu0 0.0
    %4838 = vmatpush1.msra.mxu0 0.0
    %4839 = vmatprep.subr.mxu0 0.0
    %4840 = vmatpush1.msra.mxu0 0.0
    %4841 = vmatprep.subr.mxu0 0.0
    %4842 = vmatpush1.msra.mxu0 0.0
    %4843 = vmatprep.subr.mxu0 0.0
    %4844 = vmatpush1.msra.mxu0 0.0
    %4845 = vmatprep.subr.mxu0 0.0
    %4846 = vmatpush1.msra.mxu0 %v4813
    %4847 = vmatprep.subr.mxu0 0.0
    %4848 = vmatpush2.msra.mxu0 0.0
    %4849 = vmatprep.subr.mxu0 0.0
    %4850 = vmatpush2.msra.mxu0 0.0
    %4851 = vmatprep.subr.mxu0 0.0
    %4852 = vmatpush2.msra.mxu0 0.0
    %4853 = vmatprep.subr.mxu0 0.0
    %4854 = vmatpush2.msra.mxu0 0.0
    %4855 = vmatprep.subr.mxu0 0.0
    %4856 = vmatpush2.msra.mxu0 0.0
    %4857 = vmatprep.subr.mxu0 0.0
    %4858 = vmatpush2.msra.mxu0 0.0
    %4859 = vmatprep.subr.mxu0 0.0
    %4860 = vmatpush2.msra.mxu0 0.0
    %4861 = vmatprep.subr.mxu0 0.0
    %4862 = vmatpush2.msra.mxu0 0.0
    %4863 = vmatprep.subr.mxu0 0.0
    %4864 = vmatpush2.msra.mxu0 0.0
    %4865 = vmatprep.subr.mxu0 0.0
    %4866 = vmatpush2.msra.mxu0 0.0
    %4867 = vmatprep.subr.mxu0 0.0
    %4868 = vmatpush2.msra.mxu0 0.0
    %4869 = vmatprep.subr.mxu0 0.0
    %4870 = vmatpush2.msra.mxu0 0.0
    %4871 = vmatprep.subr.mxu0 0.0
    %4872 = vmatpush2.msra.mxu0 0.0
    %4873 = vmatprep.subr.mxu0 0.0
    %4874 = vmatpush2.msra.mxu0 0.0
    %4875 = vmatprep.subr.mxu0 0.0
    %4876 = vmatpush2.msra.mxu0 0.0
    %4877 = vmatprep.subr.mxu0 0.0
    %4878 = vmatpush2.msra.mxu0 0.0
    %4879 = vmatprep.mubr.f32.mxu0 0.0
    %4880 = vmatmul.mubr.f32.gmra.mxu0 %v4809
    %v4881 = vpop.f32.mrf.mxu0
    %v4882 = vadd.f32 0.0, %v4881
    %v4883 = vpop.f32.mrf.mxu0
    %4884 = vdwg.mxu0
    %v4885 = vld [vmem:[#allocation35] sm:$0xff]
    %v4886 = vld [vmem:[#allocation35 + $0x8] sm:$0xff]
    %v4887 = vld [vmem:[#allocation35 + $0x10] sm:$0xff]
    %v4888 = vld [vmem:[#allocation35 + $0x18] sm:$0xff]
    %v4889 = vld [vmem:[#allocation35 + $0x20] sm:$0xff]
    %v4890 = vld [vmem:[#allocation35 + $0x28] sm:$0xff]
    %v4891 = vld [vmem:[#allocation35 + $0x30] sm:$0xff]
    %v4892 = vld [vmem:[#allocation35 + $0x38] sm:$0xff]
    %s4893 = scalar_lea.vmem %s57, 4
    %v4894 = vld [vmem:[%s4893] sm:$0xf]
    %v4896 = vsel %vm4807, %v4894, 0
    %4898 = vmatprep.subr.mxu0 0.0
    %4899 = vmatpush1.msra.mxu0 0.0
    %4900 = vmatprep.subr.mxu0 0.0
    %4901 = vmatpush1.msra.mxu0 0.0
    %4902 = vmatprep.subr.mxu0 0.0
    %4903 = vmatpush1.msra.mxu0 0.0
    %4904 = vmatprep.subr.mxu0 0.0
    %4905 = vmatpush1.msra.mxu0 0.0
    %4906 = vmatprep.subr.mxu0 0.0
    %4907 = vmatpush1.msra.mxu0 0.0
    %4908 = vmatprep.subr.mxu0 0.0
    %4909 = vmatpush1.msra.mxu0 0.0
    %4910 = vmatprep.subr.mxu0 0.0
    %4911 = vmatpush1.msra.mxu0 0.0
    %4912 = vmatprep.subr.mxu0 0.0
    %4913 = vmatpush1.msra.mxu0 0.0
    %4914 = vmatprep.subr.mxu0 0.0
    %4915 = vmatpush1.msra.mxu0 0.0
    %4916 = vmatprep.subr.mxu0 0.0
    %4917 = vmatpush1.msra.mxu0 0.0
    %4918 = vmatprep.subr.mxu0 0.0
    %4919 = vmatpush1.msra.mxu0 0.0
    %4920 = vmatprep.subr.mxu0 0.0
    %4921 = vmatpush1.msra.mxu0 0.0
    %4922 = vmatprep.subr.mxu0 0.0
    %4923 = vmatpush1.msra.mxu0 0.0
    %4924 = vmatprep.subr.mxu0 0.0
    %4925 = vmatpush1.msra.mxu0 0.0
    %4926 = vmatprep.subr.mxu0 0.0
    %4927 = vmatpush1.msra.mxu0 0.0
    %4928 = vmatprep.subr.mxu0 0.0
    %4929 = vmatpush1.msra.mxu0 %v4813
    %4930 = vmatprep.subr.mxu0 0.0
    %4931 = vmatpush2.msra.mxu0 0.0
    %4932 = vmatprep.subr.mxu0 0.0
    %4933 = vmatpush2.msra.mxu0 0.0
    %4934 = vmatprep.subr.mxu0 0.0
    %4935 = vmatpush2.msra.mxu0 0.0
    %4936 = vmatprep.subr.mxu0 0.0
    %4937 = vmatpush2.msra.mxu0 0.0
    %4938 = vmatprep.subr.mxu0 0.0
    %4939 = vmatpush2.msra.mxu0 0.0
    %4940 = vmatprep.subr.mxu0 0.0
    %4941 = vmatpush2.msra.mxu0 0.0
    %4942 = vmatprep.subr.mxu0 0.0
    %4943 = vmatpush2.msra.mxu0 0.0
    %4944 = vmatprep.subr.mxu0 0.0
    %4945 = vmatpush2.msra.mxu0 0.0
    %4946 = vmatprep.subr.mxu0 0.0
    %4947 = vmatpush2.msra.mxu0 0.0
    %4948 = vmatprep.subr.mxu0 0.0
    %4949 = vmatpush2.msra.mxu0 0.0
    %4950 = vmatprep.subr.mxu0 0.0
    %4951 = vmatpush2.msra.mxu0 0.0
    %4952 = vmatprep.subr.mxu0 0.0
    %4953 = vmatpush2.msra.mxu0 0.0
    %4954 = vmatprep.subr.mxu0 0.0
    %4955 = vmatpush2.msra.mxu0 0.0
    %4956 = vmatprep.subr.mxu0 0.0
    %4957 = vmatpush2.msra.mxu0 0.0
    %4958 = vmatprep.subr.mxu0 0.0
    %4959 = vmatpush2.msra.mxu0 0.0
    %4960 = vmatprep.subr.mxu0 0.0
    %4961 = vmatpush2.msra.mxu0 0.0
    %4962 = vmatprep.mubr.f32.mxu0 0.0
    %4963 = vmatmul.mubr.f32.gmra.mxu0 %v4896
    %v4964 = vpop.f32.mrf.mxu0
    %v4965 = vadd.f32 0.0, %v4964
    %v4966 = vpop.f32.mrf.mxu0
    %4967 = vdwg.mxu0
    %s4968 = scalar_lea.vmem [#allocation35], 64
    %v4969 = vld [vmem:[%s4968] sm:$0xff]
    %v4970 = vld [vmem:[%s4968 + $0x8] sm:$0xff]
    %v4971 = vld [vmem:[%s4968 + $0x10] sm:$0xff]
    %v4972 = vld [vmem:[%s4968 + $0x18] sm:$0xff]
    %v4973 = vld [vmem:[%s4968 + $0x20] sm:$0xff]
    %v4974 = vld [vmem:[%s4968 + $0x28] sm:$0xff]
    %v4975 = vld [vmem:[%s4968 + $0x30] sm:$0xff]
    %v4976 = vld [vmem:[%s4968 + $0x38] sm:$0xff]
    %vm4977 = vcmask 523264
    %v4979 = vsel %vm4977, %v4965, 0
    %4981 = vmatprep.subr.mxu0 0.0
    %4982 = vmatpush1.msra.mxu0 0.0
    %4983 = vmatprep.subr.mxu0 0.0
    %4984 = vmatpush1.msra.mxu0 0.0
    %4985 = vmatprep.subr.mxu0 0.0
    %4986 = vmatpush1.msra.mxu0 0.0
    %4987 = vmatprep.subr.mxu0 0.0
    %4988 = vmatpush1.msra.mxu0 0.0
    %4989 = vmatprep.subr.mxu0 0.0
    %4990 = vmatpush1.msra.mxu0 0.0
    %4991 = vmatprep.subr.mxu0 0.0
    %4992 = vmatpush1.msra.mxu0 0.0
    %4993 = vmatprep.subr.mxu0 0.0
    %4994 = vmatpush1.msra.mxu0 0.0
    %4995 = vmatprep.subr.mxu0 0.0
    %4996 = vmatpush1.msra.mxu0 0.0
    %4997 = vmatprep.subr.mxu0 0.0
    %4998 = vmatpush1.msra.mxu0 %v4976
    %4999 = vmatprep.subr.mxu0 0.0
    %5000 = vmatpush1.msra.mxu0 %v4975
    %5001 = vmatprep.subr.mxu0 0.0
    %5002 = vmatpush1.msra.mxu0 %v4974
    %5003 = vmatprep.subr.mxu0 0.0
    %5004 = vmatpush1.msra.mxu0 %v4973
    %5005 = vmatprep.subr.mxu0 0.0
    %5006 = vmatpush1.msra.mxu0 %v4972
    %5007 = vmatprep.subr.mxu0 0.0
    %5008 = vmatpush1.msra.mxu0 %v4971
    %5009 = vmatprep.subr.mxu0 0.0
    %5010 = vmatpush1.msra.mxu0 %v4970
    %5011 = vmatprep.subr.mxu0 0.0
    %5012 = vmatpush1.msra.mxu0 %v4969
    %5013 = vmatprep.subr.mxu0 0.0
    %5014 = vmatpush2.msra.mxu0 0.0
    %5015 = vmatprep.subr.mxu0 0.0
    %5016 = vmatpush2.msra.mxu0 0.0
    %5017 = vmatprep.subr.mxu0 0.0
    %5018 = vmatpush2.msra.mxu0 0.0
    %5019 = vmatprep.subr.mxu0 0.0
    %5020 = vmatpush2.msra.mxu0 0.0
    %5021 = vmatprep.subr.mxu0 0.0
    %5022 = vmatpush2.msra.mxu0 0.0
    %5023 = vmatprep.subr.mxu0 0.0
    %5024 = vmatpush2.msra.mxu0 0.0
    %5025 = vmatprep.subr.mxu0 0.0
    %5026 = vmatpush2.msra.mxu0 0.0
    %5027 = vmatprep.subr.mxu0 0.0
    %5028 = vmatpush2.msra.mxu0 0.0
    %5029 = vmatprep.subr.mxu0 0.0
    %5030 = vmatpush2.msra.mxu0 0.0
    %5031 = vmatprep.subr.mxu0 0.0
    %5032 = vmatpush2.msra.mxu0 0.0
    %5033 = vmatprep.subr.mxu0 0.0
    %5034 = vmatpush2.msra.mxu0 0.0
    %5035 = vmatprep.subr.mxu0 0.0
    %5036 = vmatpush2.msra.mxu0 0.0
    %5037 = vmatprep.subr.mxu0 0.0
    %5038 = vmatpush2.msra.mxu0 0.0
    %5039 = vmatprep.subr.mxu0 0.0
    %5040 = vmatpush2.msra.mxu0 0.0
    %5041 = vmatprep.subr.mxu0 0.0
    %5042 = vmatpush2.msra.mxu0 0.0
    %5043 = vmatprep.subr.mxu0 0.0
    %5044 = vmatpush2.msra.mxu0 0.0
    %5045 = vmatprep.mubr.f32.mxu0 0.0
    %5046 = vmatmul.mubr.f32.gmra.mxu0 %v4979
    %v5047 = vpop.f32.mrf.mxu0
    %v5048 = vadd.f32 0.0, %v5047
    %v5049 = vpop.f32.mrf.mxu0
    %5050 = vdwg.mxu0
    %v5052 = vsel %vm4977, %v4882, 0
    %5054 = vmatprep.subr.mxu0 0.0
    %5055 = vmatpush1.msra.mxu0 0.0
    %5056 = vmatprep.subr.mxu0 0.0
    %5057 = vmatpush1.msra.mxu0 0.0
    %5058 = vmatprep.subr.mxu0 0.0
    %5059 = vmatpush1.msra.mxu0 0.0
    %5060 = vmatprep.subr.mxu0 0.0
    %5061 = vmatpush1.msra.mxu0 0.0
    %5062 = vmatprep.subr.mxu0 0.0
    %5063 = vmatpush1.msra.mxu0 0.0
    %5064 = vmatprep.subr.mxu0 0.0
    %5065 = vmatpush1.msra.mxu0 0.0
    %5066 = vmatprep.subr.mxu0 0.0
    %5067 = vmatpush1.msra.mxu0 0.0
    %5068 = vmatprep.subr.mxu0 0.0
    %5069 = vmatpush1.msra.mxu0 0.0
    %5070 = vmatprep.subr.mxu0 0.0
    %5071 = vmatpush1.msra.mxu0 %v4892
    %5072 = vmatprep.subr.mxu0 0.0
    %5073 = vmatpush1.msra.mxu0 %v4891
    %5074 = vmatprep.subr.mxu0 0.0
    %5075 = vmatpush1.msra.mxu0 %v4890
    %5076 = vmatprep.subr.mxu0 0.0
    %5077 = vmatpush1.msra.mxu0 %v4889
    %5078 = vmatprep.subr.mxu0 0.0
    %5079 = vmatpush1.msra.mxu0 %v4888
    %5080 = vmatprep.subr.mxu0 0.0
    %5081 = vmatpush1.msra.mxu0 %v4887
    %5082 = vmatprep.subr.mxu0 0.0
    %5083 = vmatpush1.msra.mxu0 %v4886
    %5084 = vmatprep.subr.mxu0 0.0
    %5085 = vmatpush1.msra.mxu0 %v4885
    %5086 = vmatprep.subr.mxu0 0.0
    %5087 = vmatpush2.msra.mxu0 0.0
    %5088 = vmatprep.subr.mxu0 0.0
    %5089 = vmatpush2.msra.mxu0 0.0
    %5090 = vmatprep.subr.mxu0 0.0
    %5091 = vmatpush2.msra.mxu0 0.0
    %5092 = vmatprep.subr.mxu0 0.0
    %5093 = vmatpush2.msra.mxu0 0.0
    %5094 = vmatprep.subr.mxu0 0.0
    %5095 = vmatpush2.msra.mxu0 0.0
    %5096 = vmatprep.subr.mxu0 0.0
    %5097 = vmatpush2.msra.mxu0 0.0
    %5098 = vmatprep.subr.mxu0 0.0
    %5099 = vmatpush2.msra.mxu0 0.0
    %5100 = vmatprep.subr.mxu0 0.0
    %5101 = vmatpush2.msra.mxu0 0.0
    %5102 = vmatprep.subr.mxu0 0.0
    %5103 = vmatpush2.msra.mxu0 0.0
    %5104 = vmatprep.subr.mxu0 0.0
    %5105 = vmatpush2.msra.mxu0 0.0
    %5106 = vmatprep.subr.mxu0 0.0
    %5107 = vmatpush2.msra.mxu0 0.0
    %5108 = vmatprep.subr.mxu0 0.0
    %5109 = vmatpush2.msra.mxu0 0.0
    %5110 = vmatprep.subr.mxu0 0.0
    %5111 = vmatpush2.msra.mxu0 0.0
    %5112 = vmatprep.subr.mxu0 0.0
    %5113 = vmatpush2.msra.mxu0 0.0
    %5114 = vmatprep.subr.mxu0 0.0
    %5115 = vmatpush2.msra.mxu0 0.0
    %5116 = vmatprep.subr.mxu0 0.0
    %5117 = vmatpush2.msra.mxu0 0.0
    %5118 = vmatprep.mubr.f32.mxu0 0.0
    %5119 = vmatmul.mubr.f32.gmra.mxu0 %v5052
    %v5120 = vpop.f32.mrf.mxu0
    %v5121 = vadd.f32 %v5048, %v5120
    %v5122 = vpop.f32.mrf.mxu0
    %5123 = vdwg.mxu0
    %s5124 = scalar_lea.vmem %s57, 8
    %v5125 = vld [vmem:[%s5124] sm:$0xf]
    %v5127 = vsel %vm4807, %v5125, 0
    %5129 = vmatprep.subr.mxu0 0.0
    %5130 = vmatpush1.msra.mxu0 0.0
    %5131 = vmatprep.subr.mxu0 0.0
    %5132 = vmatpush1.msra.mxu0 0.0
    %5133 = vmatprep.subr.mxu0 0.0
    %5134 = vmatpush1.msra.mxu0 0.0
    %5135 = vmatprep.subr.mxu0 0.0
    %5136 = vmatpush1.msra.mxu0 0.0
    %5137 = vmatprep.subr.mxu0 0.0
    %5138 = vmatpush1.msra.mxu0 0.0
    %5139 = vmatprep.subr.mxu0 0.0
    %5140 = vmatpush1.msra.mxu0 0.0
    %5141 = vmatprep.subr.mxu0 0.0
    %5142 = vmatpush1.msra.mxu0 0.0
    %5143 = vmatprep.subr.mxu0 0.0
    %5144 = vmatpush1.msra.mxu0 0.0
    %5145 = vmatprep.subr.mxu0 0.0
    %5146 = vmatpush1.msra.mxu0 0.0
    %5147 = vmatprep.subr.mxu0 0.0
    %5148 = vmatpush1.msra.mxu0 0.0
    %5149 = vmatprep.subr.mxu0 0.0
    %5150 = vmatpush1.msra.mxu0 0.0
    %5151 = vmatprep.subr.mxu0 0.0
    %5152 = vmatpush1.msra.mxu0 0.0
    %5153 = vmatprep.subr.mxu0 0.0
    %5154 = vmatpush1.msra.mxu0 0.0
    %5155 = vmatprep.subr.mxu0 0.0
    %5156 = vmatpush1.msra.mxu0 0.0
    %5157 = vmatprep.subr.mxu0 0.0
    %5158 = vmatpush1.msra.mxu0 0.0
    %5159 = vmatprep.subr.mxu0 0.0
    %5160 = vmatpush1.msra.mxu0 %v4813
    %5161 = vmatprep.subr.mxu0 0.0
    %5162 = vmatpush2.msra.mxu0 0.0
    %5163 = vmatprep.subr.mxu0 0.0
    %5164 = vmatpush2.msra.mxu0 0.0
    %5165 = vmatprep.subr.mxu0 0.0
    %5166 = vmatpush2.msra.mxu0 0.0
    %5167 = vmatprep.subr.mxu0 0.0
    %5168 = vmatpush2.msra.mxu0 0.0
    %5169 = vmatprep.subr.mxu0 0.0
    %5170 = vmatpush2.msra.mxu0 0.0
    %5171 = vmatprep.subr.mxu0 0.0
    %5172 = vmatpush2.msra.mxu0 0.0
    %5173 = vmatprep.subr.mxu0 0.0
    %5174 = vmatpush2.msra.mxu0 0.0
    %5175 = vmatprep.subr.mxu0 0.0
    %5176 = vmatpush2.msra.mxu0 0.0
    %5177 = vmatprep.subr.mxu0 0.0
    %5178 = vmatpush2.msra.mxu0 0.0
    %5179 = vmatprep.subr.mxu0 0.0
    %5180 = vmatpush2.msra.mxu0 0.0
    %5181 = vmatprep.subr.mxu0 0.0
    %5182 = vmatpush2.msra.mxu0 0.0
    %5183 = vmatprep.subr.mxu0 0.0
    %5184 = vmatpush2.msra.mxu0 0.0
    %5185 = vmatprep.subr.mxu0 0.0
    %5186 = vmatpush2.msra.mxu0 0.0
    %5187 = vmatprep.subr.mxu0 0.0
    %5188 = vmatpush2.msra.mxu0 0.0
    %5189 = vmatprep.subr.mxu0 0.0
    %5190 = vmatpush2.msra.mxu0 0.0
    %5191 = vmatprep.subr.mxu0 0.0
    %5192 = vmatpush2.msra.mxu0 0.0
    %5193 = vmatprep.mubr.f32.mxu0 0.0
    %5194 = vmatmul.mubr.f32.gmra.mxu0 %v5127
    %v5195 = vpop.f32.mrf.mxu0
    %v5196 = vadd.f32 0.0, %v5195
    %v5197 = vpop.f32.mrf.mxu0
    %5198 = vdwg.mxu0
    %s5199 = scalar_lea.vmem [#allocation35], 128
    %v5200 = vld [vmem:[%s5199] sm:$0xff]
    %v5201 = vld [vmem:[%s5199 + $0x8] sm:$0xff]
    %v5202 = vld [vmem:[%s5199 + $0x10] sm:$0xff]
    %v5203 = vld [vmem:[%s5199 + $0x18] sm:$0xff]
    %v5204 = vld [vmem:[%s5199 + $0x20] sm:$0xff]
    %v5205 = vld [vmem:[%s5199 + $0x28] sm:$0xff]
    %v5206 = vld [vmem:[%s5199 + $0x30] sm:$0xff]
    %v5207 = vld [vmem:[%s5199 + $0x38] sm:$0xff]
    %v5209 = vsel %vm4977, %v5196, 0
    %5211 = vmatprep.subr.mxu0 0.0
    %5212 = vmatpush1.msra.mxu0 0.0
    %5213 = vmatprep.subr.mxu0 0.0
    %5214 = vmatpush1.msra.mxu0 0.0
    %5215 = vmatprep.subr.mxu0 0.0
    %5216 = vmatpush1.msra.mxu0 0.0
    %5217 = vmatprep.subr.mxu0 0.0
    %5218 = vmatpush1.msra.mxu0 0.0
    %5219 = vmatprep.subr.mxu0 0.0
    %5220 = vmatpush1.msra.mxu0 0.0
    %5221 = vmatprep.subr.mxu0 0.0
    %5222 = vmatpush1.msra.mxu0 0.0
    %5223 = vmatprep.subr.mxu0 0.0
    %5224 = vmatpush1.msra.mxu0 0.0
    %5225 = vmatprep.subr.mxu0 0.0
    %5226 = vmatpush1.msra.mxu0 0.0
    %5227 = vmatprep.subr.mxu0 0.0
    %5228 = vmatpush1.msra.mxu0 %v5207
    %5229 = vmatprep.subr.mxu0 0.0
    %5230 = vmatpush1.msra.mxu0 %v5206
    %5231 = vmatprep.subr.mxu0 0.0
    %5232 = vmatpush1.msra.mxu0 %v5205
    %5233 = vmatprep.subr.mxu0 0.0
    %5234 = vmatpush1.msra.mxu0 %v5204
    %5235 = vmatprep.subr.mxu0 0.0
    %5236 = vmatpush1.msra.mxu0 %v5203
    %5237 = vmatprep.subr.mxu0 0.0
    %5238 = vmatpush1.msra.mxu0 %v5202
    %5239 = vmatprep.subr.mxu0 0.0
    %5240 = vmatpush1.msra.mxu0 %v5201
    %5241 = vmatprep.subr.mxu0 0.0
    %5242 = vmatpush1.msra.mxu0 %v5200
    %5243 = vmatprep.subr.mxu0 0.0
    %5244 = vmatpush2.msra.mxu0 0.0
    %5245 = vmatprep.subr.mxu0 0.0
    %5246 = vmatpush2.msra.mxu0 0.0
    %5247 = vmatprep.subr.mxu0 0.0
    %5248 = vmatpush2.msra.mxu0 0.0
    %5249 = vmatprep.subr.mxu0 0.0
    %5250 = vmatpush2.msra.mxu0 0.0
    %5251 = vmatprep.subr.mxu0 0.0
    %5252 = vmatpush2.msra.mxu0 0.0
    %5253 = vmatprep.subr.mxu0 0.0
    %5254 = vmatpush2.msra.mxu0 0.0
    %5255 = vmatprep.subr.mxu0 0.0
    %5256 = vmatpush2.msra.mxu0 0.0
    %5257 = vmatprep.subr.mxu0 0.0
    %5258 = vmatpush2.msra.mxu0 0.0
    %5259 = vmatprep.subr.mxu0 0.0
    %5260 = vmatpush2.msra.mxu0 0.0
    %5261 = vmatprep.subr.mxu0 0.0
    %5262 = vmatpush2.msra.mxu0 0.0
    %5263 = vmatprep.subr.mxu0 0.0
    %5264 = vmatpush2.msra.mxu0 0.0
    %5265 = vmatprep.subr.mxu0 0.0
    %5266 = vmatpush2.msra.mxu0 0.0
    %5267 = vmatprep.subr.mxu0 0.0
    %5268 = vmatpush2.msra.mxu0 0.0
    %5269 = vmatprep.subr.mxu0 0.0
    %5270 = vmatpush2.msra.mxu0 0.0
    %5271 = vmatprep.subr.mxu0 0.0
    %5272 = vmatpush2.msra.mxu0 0.0
    %5273 = vmatprep.subr.mxu0 0.0
    %5274 = vmatpush2.msra.mxu0 0.0
    %5275 = vmatprep.mubr.f32.mxu0 0.0
    %5276 = vmatmul.mubr.f32.gmra.mxu0 %v5209
    %v5277 = vpop.f32.mrf.mxu0
    %v5278 = vadd.f32 0.0, %v5277
    %v5279 = vpop.f32.mrf.mxu0
    %5280 = vdwg.mxu0
    %v5281 = vadd.f32 %v5121, %v5278
    %v5282 = vld [vmem:[#allocation37] sm:$0x1]
    %v5284 = vlaneseq
    %v5285 = vshrl.u32 %v5284, 7
    %v5286 = vsub.s32 0, %v5285
    %v5287 = vrot.slane %v5282, %v5286
    %v5289 = vadd.f32 %v5281, %v5287
    %v5290 = vld [vmem:[%s67] sm:$0xff]
    %v5291 = vld [vmem:[%s67 + $0x8] sm:$0xff]
    %v5292 = vld [vmem:[%s67 + $0x10] sm:$0xff]
    %v5293 = vld [vmem:[%s67 + $0x18] sm:$0xff]
    %v5294 = vld [vmem:[%s67 + $0x20] sm:$0xff]
    %v5295 = vld [vmem:[%s67 + $0x28] sm:$0xff]
    %v5296 = vld [vmem:[%s67 + $0x30] sm:$0xff]
    %v5297 = vld [vmem:[%s67 + $0x38] sm:$0xff]
    %v5298 = vld [vmem:[%s67 + $0x40] sm:$0xff]
    %v5299 = vld [vmem:[%s67 + $0x48] sm:$0xff]
    %v5300 = vld [vmem:[%s67 + $0x50] sm:$0xff]
    %v5301 = vld [vmem:[%s67 + $0x58] sm:$0xff]
    %v5302 = vld [vmem:[%s67 + $0x60] sm:$0xff]
    %v5303 = vld [vmem:[%s67 + $0x68] sm:$0xff]
    %v5304 = vld [vmem:[%s67 + $0x70] sm:$0xff]
    %v5305 = vld [vmem:[%s67 + $0x78] sm:$0xff]
    %v5306 = vld [vmem:[#allocation41] sm:$0xff]
    %v5307 = vld [vmem:[#allocation41 + $0x8] sm:$0xff]
    %v5308 = vld [vmem:[#allocation41 + $0x10] sm:$0xff]
    %v5309 = vld [vmem:[#allocation41 + $0x18] sm:$0xff]
    %v5310 = vld [vmem:[#allocation41 + $0x20] sm:$0xff]
    %v5311 = vld [vmem:[#allocation41 + $0x28] sm:$0xff]
    %v5312 = vld [vmem:[#allocation41 + $0x30] sm:$0xff]
    %v5313 = vld [vmem:[#allocation41 + $0x38] sm:$0xff]
    %v5314 = vsel %vm4811, %v5289, 0.0
    %v5315 = vrot.slane %v5314, 4
    %v5316 = vadd.f32 %v5314, %v5315
    %v5317 = vrot.slane %v5316, 2
    %v5318 = vadd.f32 %v5316, %v5317
    %v5319 = vrot.slane %v5318, 1
    %v5320 = vadd.f32 %v5318, %v5319
    %5321 = vmatprep.subr.mxu0 0.0
    %5322 = vmatpush1.msra.mxu0 %v5305
    %5323 = vmatprep.subr.mxu0 0.0
    %5324 = vmatpush1.msra.mxu0 %v5304
    %5325 = vmatprep.subr.mxu0 0.0
    %5326 = vmatpush1.msra.mxu0 %v5303
    %5327 = vmatprep.subr.mxu0 0.0
    %5328 = vmatpush1.msra.mxu0 %v5302
    %5329 = vmatprep.subr.mxu0 0.0
    %5330 = vmatpush1.msra.mxu0 %v5301
    %5331 = vmatprep.subr.mxu0 0.0
    %5332 = vmatpush1.msra.mxu0 %v5300
    %5333 = vmatprep.subr.mxu0 0.0
    %5334 = vmatpush1.msra.mxu0 %v5299
    %5335 = vmatprep.subr.mxu0 0.0
    %5336 = vmatpush1.msra.mxu0 %v5298
    %5337 = vmatprep.subr.mxu0 0.0
    %5338 = vmatpush1.msra.mxu0 %v5297
    %5339 = vmatprep.subr.mxu0 0.0
    %5340 = vmatpush1.msra.mxu0 %v5296
    %5341 = vmatprep.subr.mxu0 0.0
    %5342 = vmatpush1.msra.mxu0 %v5295
    %5343 = vmatprep.subr.mxu0 0.0
    %5344 = vmatpush1.msra.mxu0 %v5294
    %5345 = vmatprep.subr.mxu0 0.0
    %5346 = vmatpush1.msra.mxu0 %v5293
    %5347 = vmatprep.subr.mxu0 0.0
    %5348 = vmatpush1.msra.mxu0 %v5292
    %5349 = vmatprep.subr.mxu0 0.0
    %5350 = vmatpush1.msra.mxu0 %v5291
    %5351 = vmatprep.subr.mxu0 0.0
    %5352 = vmatpush1.msra.mxu0 %v5290
    %5353 = vmatprep.subr.mxu0 0.0
    %5354 = vmatpush2.msra.mxu0 0.0
    %5355 = vmatprep.subr.mxu0 0.0
    %5356 = vmatpush2.msra.mxu0 0.0
    %5357 = vmatprep.subr.mxu0 0.0
    %5358 = vmatpush2.msra.mxu0 0.0
    %5359 = vmatprep.subr.mxu0 0.0
    %5360 = vmatpush2.msra.mxu0 0.0
    %5361 = vmatprep.subr.mxu0 0.0
    %5362 = vmatpush2.msra.mxu0 0.0
    %5363 = vmatprep.subr.mxu0 0.0
    %5364 = vmatpush2.msra.mxu0 0.0
    %5365 = vmatprep.subr.mxu0 0.0
    %5366 = vmatpush2.msra.mxu0 0.0
    %5367 = vmatprep.subr.mxu0 0.0
    %5368 = vmatpush2.msra.mxu0 0.0
    %5369 = vmatprep.subr.mxu0 0.0
    %5370 = vmatpush2.msra.mxu0 0.0
    %5371 = vmatprep.subr.mxu0 0.0
    %5372 = vmatpush2.msra.mxu0 0.0
    %5373 = vmatprep.subr.mxu0 0.0
    %5374 = vmatpush2.msra.mxu0 0.0
    %5375 = vmatprep.subr.mxu0 0.0
    %5376 = vmatpush2.msra.mxu0 0.0
    %5377 = vmatprep.subr.mxu0 0.0
    %5378 = vmatpush2.msra.mxu0 0.0
    %5379 = vmatprep.subr.mxu0 0.0
    %5380 = vmatpush2.msra.mxu0 0.0
    %5381 = vmatprep.subr.mxu0 0.0
    %5382 = vmatpush2.msra.mxu0 0.0
    %5383 = vmatprep.subr.mxu0 0.0
    %5384 = vmatpush2.msra.mxu0 0.0
    %5385 = vmatprep.mubr.f32.mxu0 0.0
    %5386 = vmatmul.mubr.f32.gmra.mxu0 %v5320
    %v5387 = vpop.f32.mrf.mxu0
    %v5388 = vadd.f32 0.0, %v5387
    %v5389 = vpop.f32.mrf.mxu0
    %5390 = vdwg.mxu0
    %v5391 = vmul.f32 %v5388, 0.125
    %v5393 = vsel %vm4977, %v5391, 0
    %5395 = vmatprep.subr.mxu0 0.0
    %5396 = vmatpush1.msra.mxu0 0.0
    %5397 = vmatprep.subr.mxu0 0.0
    %5398 = vmatpush1.msra.mxu0 0.0
    %5399 = vmatprep.subr.mxu0 0.0
    %5400 = vmatpush1.msra.mxu0 0.0
    %5401 = vmatprep.subr.mxu0 0.0
    %5402 = vmatpush1.msra.mxu0 0.0
    %5403 = vmatprep.subr.mxu0 0.0
    %5404 = vmatpush1.msra.mxu0 0.0
    %5405 = vmatprep.subr.mxu0 0.0
    %5406 = vmatpush1.msra.mxu0 0.0
    %5407 = vmatprep.subr.mxu0 0.0
    %5408 = vmatpush1.msra.mxu0 0.0
    %5409 = vmatprep.subr.mxu0 0.0
    %5410 = vmatpush1.msra.mxu0 0.0
    %5411 = vmatprep.subr.mxu0 0.0
    %5412 = vmatpush1.msra.mxu0 %v5313
    %5413 = vmatprep.subr.mxu0 0.0
    %5414 = vmatpush1.msra.mxu0 %v5312
    %5415 = vmatprep.subr.mxu0 0.0
    %5416 = vmatpush1.msra.mxu0 %v5311
    %5417 = vmatprep.subr.mxu0 0.0
    %5418 = vmatpush1.msra.mxu0 %v5310
    %5419 = vmatprep.subr.mxu0 0.0
    %5420 = vmatpush1.msra.mxu0 %v5309
    %5421 = vmatprep.subr.mxu0 0.0
    %5422 = vmatpush1.msra.mxu0 %v5308
    %5423 = vmatprep.subr.mxu0 0.0
    %5424 = vmatpush1.msra.mxu0 %v5307
    %5425 = vmatprep.subr.mxu0 0.0
    %5426 = vmatpush1.msra.mxu0 %v5306
    %5427 = vmatprep.subr.mxu0 0.0
    %5428 = vmatpush2.msra.mxu0 0.0
    %5429 = vmatprep.subr.mxu0 0.0
    %5430 = vmatpush2.msra.mxu0 0.0
    %5431 = vmatprep.subr.mxu0 0.0
    %5432 = vmatpush2.msra.mxu0 0.0
    %5433 = vmatprep.subr.mxu0 0.0
    %5434 = vmatpush2.msra.mxu0 0.0
    %5435 = vmatprep.subr.mxu0 0.0
    %5436 = vmatpush2.msra.mxu0 0.0
    %5437 = vmatprep.subr.mxu0 0.0
    %5438 = vmatpush2.msra.mxu0 0.0
    %5439 = vmatprep.subr.mxu0 0.0
    %5440 = vmatpush2.msra.mxu0 0.0
    %5441 = vmatprep.subr.mxu0 0.0
    %5442 = vmatpush2.msra.mxu0 0.0
    %5443 = vmatprep.subr.mxu0 0.0
    %5444 = vmatpush2.msra.mxu0 0.0
    %5445 = vmatprep.subr.mxu0 0.0
    %5446 = vmatpush2.msra.mxu0 0.0
    %5447 = vmatprep.subr.mxu0 0.0
    %5448 = vmatpush2.msra.mxu0 0.0
    %5449 = vmatprep.subr.mxu0 0.0
    %5450 = vmatpush2.msra.mxu0 0.0
    %5451 = vmatprep.subr.mxu0 0.0
    %5452 = vmatpush2.msra.mxu0 0.0
    %5453 = vmatprep.subr.mxu0 0.0
    %5454 = vmatpush2.msra.mxu0 0.0
    %5455 = vmatprep.subr.mxu0 0.0
    %5456 = vmatpush2.msra.mxu0 0.0
    %5457 = vmatprep.subr.mxu0 0.0
    %5458 = vmatpush2.msra.mxu0 0.0
    %5459 = vmatprep.mubr.f32.mxu0 0.0
    %5460 = vmatmul.mubr.f32.gmra.mxu0 %v5393
    %v5461 = vpop.f32.mrf.mxu0
    %v5462 = vadd.f32 0.0, %v5461
    %v5463 = vpop.f32.mrf.mxu0
    %5464 = vdwg.mxu0
    %v5465 = vlaneseq
    %v5466 = vshrl.u32 %v5465, 7
    %v5467 = vsub.s32 0, %v5466
    %v5468 = vrot.slane %v5462, %v5467
    %v5469 = vsub.f32 %v5289, %v5468
    %v5470 = vmul.f32 %v5469, %v5469
    %v5471 = vsel %vm4811, %v5470, 0.0
    %v5472 = vrot.slane %v5471, 4
    %v5473 = vadd.f32 %v5471, %v5472
    %v5474 = vrot.slane %v5473, 2
    %v5475 = vadd.f32 %v5473, %v5474
    %v5476 = vrot.slane %v5475, 1
    %v5477 = vadd.f32 %v5475, %v5476
    %5478 = vmatprep.subr.mxu0 0.0
    %5479 = vmatpush1.msra.mxu0 %v5305
    %5480 = vmatprep.subr.mxu0 0.0
    %5481 = vmatpush1.msra.mxu0 %v5304
    %5482 = vmatprep.subr.mxu0 0.0
    %5483 = vmatpush1.msra.mxu0 %v5303
    %5484 = vmatprep.subr.mxu0 0.0
    %5485 = vmatpush1.msra.mxu0 %v5302
    %5486 = vmatprep.subr.mxu0 0.0
    %5487 = vmatpush1.msra.mxu0 %v5301
    %5488 = vmatprep.subr.mxu0 0.0
    %5489 = vmatpush1.msra.mxu0 %v5300
    %5490 = vmatprep.subr.mxu0 0.0
    %5491 = vmatpush1.msra.mxu0 %v5299
    %5492 = vmatprep.subr.mxu0 0.0
    %5493 = vmatpush1.msra.mxu0 %v5298
    %5494 = vmatprep.subr.mxu0 0.0
    %5495 = vmatpush1.msra.mxu0 %v5297
    %5496 = vmatprep.subr.mxu0 0.0
    %5497 = vmatpush1.msra.mxu0 %v5296
    %5498 = vmatprep.subr.mxu0 0.0
    %5499 = vmatpush1.msra.mxu0 %v5295
    %5500 = vmatprep.subr.mxu0 0.0
    %5501 = vmatpush1.msra.mxu0 %v5294
    %5502 = vmatprep.subr.mxu0 0.0
    %5503 = vmatpush1.msra.mxu0 %v5293
    %5504 = vmatprep.subr.mxu0 0.0
    %5505 = vmatpush1.msra.mxu0 %v5292
    %5506 = vmatprep.subr.mxu0 0.0
    %5507 = vmatpush1.msra.mxu0 %v5291
    %5508 = vmatprep.subr.mxu0 0.0
    %5509 = vmatpush1.msra.mxu0 %v5290
    %5510 = vmatprep.subr.mxu0 0.0
    %5511 = vmatpush2.msra.mxu0 0.0
    %5512 = vmatprep.subr.mxu0 0.0
    %5513 = vmatpush2.msra.mxu0 0.0
    %5514 = vmatprep.subr.mxu0 0.0
    %5515 = vmatpush2.msra.mxu0 0.0
    %5516 = vmatprep.subr.mxu0 0.0
    %5517 = vmatpush2.msra.mxu0 0.0
    %5518 = vmatprep.subr.mxu0 0.0
    %5519 = vmatpush2.msra.mxu0 0.0
    %5520 = vmatprep.subr.mxu0 0.0
    %5521 = vmatpush2.msra.mxu0 0.0
    %5522 = vmatprep.subr.mxu0 0.0
    %5523 = vmatpush2.msra.mxu0 0.0
    %5524 = vmatprep.subr.mxu0 0.0
    %5525 = vmatpush2.msra.mxu0 0.0
    %5526 = vmatprep.subr.mxu0 0.0
    %5527 = vmatpush2.msra.mxu0 0.0
    %5528 = vmatprep.subr.mxu0 0.0
    %5529 = vmatpush2.msra.mxu0 0.0
    %5530 = vmatprep.subr.mxu0 0.0
    %5531 = vmatpush2.msra.mxu0 0.0
    %5532 = vmatprep.subr.mxu0 0.0
    %5533 = vmatpush2.msra.mxu0 0.0
    %5534 = vmatprep.subr.mxu0 0.0
    %5535 = vmatpush2.msra.mxu0 0.0
    %5536 = vmatprep.subr.mxu0 0.0
    %5537 = vmatpush2.msra.mxu0 0.0
    %5538 = vmatprep.subr.mxu0 0.0
    %5539 = vmatpush2.msra.mxu0 0.0
    %5540 = vmatprep.subr.mxu0 0.0
    %5541 = vmatpush2.msra.mxu0 0.0
    %5542 = vmatprep.mubr.f32.mxu0 0.0
    %5543 = vmatmul.mubr.f32.gmra.mxu0 %v5477
    %v5544 = vpop.f32.mrf.mxu0
    %v5545 = vadd.f32 0.0, %v5544
    %v5546 = vpop.f32.mrf.mxu0
    %5547 = vdwg.mxu0
    %v5548 = vmul.f32 %v5545, 0.125
    %v5549 = vld [vmem:[#allocation38] sm:$0x1]
    %v5550 = vadd.f32 %v5548, 1e-05
    %v5551 = vrsqrt.pop %v5550
    %v5552 = vmul.f32 %v5549, %v5551
    %v5554 = vsel %vm4977, %v5552, 0
    %5556 = vmatprep.subr.mxu0 0.0
    %5557 = vmatpush1.msra.mxu0 0.0
    %5558 = vmatprep.subr.mxu0 0.0
    %5559 = vmatpush1.msra.mxu0 0.0
    %5560 = vmatprep.subr.mxu0 0.0
    %5561 = vmatpush1.msra.mxu0 0.0
    %5562 = vmatprep.subr.mxu0 0.0
    %5563 = vmatpush1.msra.mxu0 0.0
    %5564 = vmatprep.subr.mxu0 0.0
    %5565 = vmatpush1.msra.mxu0 0.0
    %5566 = vmatprep.subr.mxu0 0.0
    %5567 = vmatpush1.msra.mxu0 0.0
    %5568 = vmatprep.subr.mxu0 0.0
    %5569 = vmatpush1.msra.mxu0 0.0
    %5570 = vmatprep.subr.mxu0 0.0
    %5571 = vmatpush1.msra.mxu0 0.0
    %5572 = vmatprep.subr.mxu0 0.0
    %5573 = vmatpush1.msra.mxu0 %v5313
    %5574 = vmatprep.subr.mxu0 0.0
    %5575 = vmatpush1.msra.mxu0 %v5312
    %5576 = vmatprep.subr.mxu0 0.0
    %5577 = vmatpush1.msra.mxu0 %v5311
    %5578 = vmatprep.subr.mxu0 0.0
    %5579 = vmatpush1.msra.mxu0 %v5310
    %5580 = vmatprep.subr.mxu0 0.0
    %5581 = vmatpush1.msra.mxu0 %v5309
    %5582 = vmatprep.subr.mxu0 0.0
    %5583 = vmatpush1.msra.mxu0 %v5308
    %5584 = vmatprep.subr.mxu0 0.0
    %5585 = vmatpush1.msra.mxu0 %v5307
    %5586 = vmatprep.subr.mxu0 0.0
    %5587 = vmatpush1.msra.mxu0 %v5306
    %5588 = vmatprep.subr.mxu0 0.0
    %5589 = vmatpush2.msra.mxu0 0.0
    %5590 = vmatprep.subr.mxu0 0.0
    %5591 = vmatpush2.msra.mxu0 0.0
    %5592 = vmatprep.subr.mxu0 0.0
    %5593 = vmatpush2.msra.mxu0 0.0
    %5594 = vmatprep.subr.mxu0 0.0
    %5595 = vmatpush2.msra.mxu0 0.0
    %5596 = vmatprep.subr.mxu0 0.0
    %5597 = vmatpush2.msra.mxu0 0.0
    %5598 = vmatprep.subr.mxu0 0.0
    %5599 = vmatpush2.msra.mxu0 0.0
    %5600 = vmatprep.subr.mxu0 0.0
    %5601 = vmatpush2.msra.mxu0 0.0
    %5602 = vmatprep.subr.mxu0 0.0
    %5603 = vmatpush2.msra.mxu0 0.0
    %5604 = vmatprep.subr.mxu0 0.0
    %5605 = vmatpush2.msra.mxu0 0.0
    %5606 = vmatprep.subr.mxu0 0.0
    %5607 = vmatpush2.msra.mxu0 0.0
    %5608 = vmatprep.subr.mxu0 0.0
    %5609 = vmatpush2.msra.mxu0 0.0
    %5610 = vmatprep.subr.mxu0 0.0
    %5611 = vmatpush2.msra.mxu0 0.0
    %5612 = vmatprep.subr.mxu0 0.0
    %5613 = vmatpush2.msra.mxu0 0.0
    %5614 = vmatprep.subr.mxu0 0.0
    %5615 = vmatpush2.msra.mxu0 0.0
    %5616 = vmatprep.subr.mxu0 0.0
    %5617 = vmatpush2.msra.mxu0 0.0
    %5618 = vmatprep.subr.mxu0 0.0
    %5619 = vmatpush2.msra.mxu0 0.0
    %5620 = vmatprep.mubr.f32.mxu0 0.0
    %5621 = vmatmul.mubr.f32.gmra.mxu0 %v5554
    %v5622 = vpop.f32.mrf.mxu0
    %v5623 = vadd.f32 0.0, %v5622
    %v5624 = vpop.f32.mrf.mxu0
    %5625 = vdwg.mxu0
    %v5626 = vlaneseq
    %v5627 = vshrl.u32 %v5626, 7
    %v5628 = vsub.s32 0, %v5627
    %v5629 = vrot.slane %v5623, %v5628
    %v5630 = vmul.f32 %v5469, %v5629
    %v5631 = vld [vmem:[#allocation40] sm:$0x1]
    %v5633 = vsel %vm4977, %v5631, 0
    %5635 = vmatprep.subr.mxu0 0.0
    %5636 = vmatpush1.msra.mxu0 0.0
    %5637 = vmatprep.subr.mxu0 0.0
    %5638 = vmatpush1.msra.mxu0 0.0
    %5639 = vmatprep.subr.mxu0 0.0
    %5640 = vmatpush1.msra.mxu0 0.0
    %5641 = vmatprep.subr.mxu0 0.0
    %5642 = vmatpush1.msra.mxu0 0.0
    %5643 = vmatprep.subr.mxu0 0.0
    %5644 = vmatpush1.msra.mxu0 0.0
    %5645 = vmatprep.subr.mxu0 0.0
    %5646 = vmatpush1.msra.mxu0 0.0
    %5647 = vmatprep.subr.mxu0 0.0
    %5648 = vmatpush1.msra.mxu0 0.0
    %5649 = vmatprep.subr.mxu0 0.0
    %5650 = vmatpush1.msra.mxu0 0.0
    %5651 = vmatprep.subr.mxu0 0.0
    %5652 = vmatpush1.msra.mxu0 %v5313
    %5653 = vmatprep.subr.mxu0 0.0
    %5654 = vmatpush1.msra.mxu0 %v5312
    %5655 = vmatprep.subr.mxu0 0.0
    %5656 = vmatpush1.msra.mxu0 %v5311
    %5657 = vmatprep.subr.mxu0 0.0
    %5658 = vmatpush1.msra.mxu0 %v5310
    %5659 = vmatprep.subr.mxu0 0.0
    %5660 = vmatpush1.msra.mxu0 %v5309
    %5661 = vmatprep.subr.mxu0 0.0
    %5662 = vmatpush1.msra.mxu0 %v5308
    %5663 = vmatprep.subr.mxu0 0.0
    %5664 = vmatpush1.msra.mxu0 %v5307
    %5665 = vmatprep.subr.mxu0 0.0
    %5666 = vmatpush1.msra.mxu0 %v5306
    %5667 = vmatprep.subr.mxu0 0.0
    %5668 = vmatpush2.msra.mxu0 0.0
    %5669 = vmatprep.subr.mxu0 0.0
    %5670 = vmatpush2.msra.mxu0 0.0
    %5671 = vmatprep.subr.mxu0 0.0
    %5672 = vmatpush2.msra.mxu0 0.0
    %5673 = vmatprep.subr.mxu0 0.0
    %5674 = vmatpush2.msra.mxu0 0.0
    %5675 = vmatprep.subr.mxu0 0.0
    %5676 = vmatpush2.msra.mxu0 0.0
    %5677 = vmatprep.subr.mxu0 0.0
    %5678 = vmatpush2.msra.mxu0 0.0
    %5679 = vmatprep.subr.mxu0 0.0
    %5680 = vmatpush2.msra.mxu0 0.0
    %5681 = vmatprep.subr.mxu0 0.0
    %5682 = vmatpush2.msra.mxu0 0.0
    %5683 = vmatprep.subr.mxu0 0.0
    %5684 = vmatpush2.msra.mxu0 0.0
    %5685 = vmatprep.subr.mxu0 0.0
    %5686 = vmatpush2.msra.mxu0 0.0
    %5687 = vmatprep.subr.mxu0 0.0
    %5688 = vmatpush2.msra.mxu0 0.0
    %5689 = vmatprep.subr.mxu0 0.0
    %5690 = vmatpush2.msra.mxu0 0.0
    %5691 = vmatprep.subr.mxu0 0.0
    %5692 = vmatpush2.msra.mxu0 0.0
    %5693 = vmatprep.subr.mxu0 0.0
    %5694 = vmatpush2.msra.mxu0 0.0
    %5695 = vmatprep.subr.mxu0 0.0
    %5696 = vmatpush2.msra.mxu0 0.0
    %5697 = vmatprep.subr.mxu0 0.0
    %5698 = vmatpush2.msra.mxu0 0.0
    %5699 = vmatprep.mubr.f32.mxu0 0.0
    %5700 = vmatmul.mubr.f32.gmra.mxu0 %v5633
    %v5701 = vpop.f32.mrf.mxu0
    %v5702 = vadd.f32 0.0, %v5701
    %v5703 = vpop.f32.mrf.mxu0
    %5704 = vdwg.mxu0
    %v5705 = vlaneseq
    %v5706 = vshrl.u32 %v5705, 7
    %v5707 = vsub.s32 0, %v5706
    %v5708 = vrot.slane %v5702, %v5707
    %v5709 = vadd.f32 %v5630, %v5708
    %v5710 = vmax.f32 %v5709, 0.0
    %v5711 = vld [vmem:[#allocation43] sm:$0x3]
    %v5713 = vsel %vm4807, %v5711, 0
    %v5716 = vsel %vm4811, %v5710, 0
    %5718 = vmatprep.subr.mxu0 0.0
    %5719 = vmatpush1.msra.mxu0 0.0
    %5720 = vmatprep.subr.mxu0 0.0
    %5721 = vmatpush1.msra.mxu0 0.0
    %5722 = vmatprep.subr.mxu0 0.0
    %5723 = vmatpush1.msra.mxu0 0.0
    %5724 = vmatprep.subr.mxu0 0.0
    %5725 = vmatpush1.msra.mxu0 0.0
    %5726 = vmatprep.subr.mxu0 0.0
    %5727 = vmatpush1.msra.mxu0 0.0
    %5728 = vmatprep.subr.mxu0 0.0
    %5729 = vmatpush1.msra.mxu0 0.0
    %5730 = vmatprep.subr.mxu0 0.0
    %5731 = vmatpush1.msra.mxu0 0.0
    %5732 = vmatprep.subr.mxu0 0.0
    %5733 = vmatpush1.msra.mxu0 0.0
    %5734 = vmatprep.subr.mxu0 0.0
    %5735 = vmatpush1.msra.mxu0 0.0
    %5736 = vmatprep.subr.mxu0 0.0
    %5737 = vmatpush1.msra.mxu0 0.0
    %5738 = vmatprep.subr.mxu0 0.0
    %5739 = vmatpush1.msra.mxu0 0.0
    %5740 = vmatprep.subr.mxu0 0.0
    %5741 = vmatpush1.msra.mxu0 0.0
    %5742 = vmatprep.subr.mxu0 0.0
    %5743 = vmatpush1.msra.mxu0 0.0
    %5744 = vmatprep.subr.mxu0 0.0
    %5745 = vmatpush1.msra.mxu0 0.0
    %5746 = vmatprep.subr.mxu0 0.0
    %5747 = vmatpush1.msra.mxu0 0.0
    %5748 = vmatprep.subr.mxu0 0.0
    %5749 = vmatpush1.msra.mxu0 %v5716
    %5750 = vmatprep.subr.mxu0 0.0
    %5751 = vmatpush2.msra.mxu0 0.0
    %5752 = vmatprep.subr.mxu0 0.0
    %5753 = vmatpush2.msra.mxu0 0.0
    %5754 = vmatprep.subr.mxu0 0.0
    %5755 = vmatpush2.msra.mxu0 0.0
    %5756 = vmatprep.subr.mxu0 0.0
    %5757 = vmatpush2.msra.mxu0 0.0
    %5758 = vmatprep.subr.mxu0 0.0
    %5759 = vmatpush2.msra.mxu0 0.0
    %5760 = vmatprep.subr.mxu0 0.0
    %5761 = vmatpush2.msra.mxu0 0.0
    %5762 = vmatprep.subr.mxu0 0.0
    %5763 = vmatpush2.msra.mxu0 0.0
    %5764 = vmatprep.subr.mxu0 0.0
    %5765 = vmatpush2.msra.mxu0 0.0
    %5766 = vmatprep.subr.mxu0 0.0
    %5767 = vmatpush2.msra.mxu0 0.0
    %5768 = vmatprep.subr.mxu0 0.0
    %5769 = vmatpush2.msra.mxu0 0.0
    %5770 = vmatprep.subr.mxu0 0.0
    %5771 = vmatpush2.msra.mxu0 0.0
    %5772 = vmatprep.subr.mxu0 0.0
    %5773 = vmatpush2.msra.mxu0 0.0
    %5774 = vmatprep.subr.mxu0 0.0
    %5775 = vmatpush2.msra.mxu0 0.0
    %5776 = vmatprep.subr.mxu0 0.0
    %5777 = vmatpush2.msra.mxu0 0.0
    %5778 = vmatprep.subr.mxu0 0.0
    %5779 = vmatpush2.msra.mxu0 0.0
    %5780 = vmatprep.subr.mxu0 0.0
    %5781 = vmatpush2.msra.mxu0 0.0
    %5782 = vmatprep.mubr.f32.mxu0 0.0
    %5783 = vmatmul.mubr.f32.gmra.mxu0 %v5713
    %v5784 = vpop.f32.mrf.mxu0
    %v5785 = vadd.f32 0.0, %v5784
    %v5786 = vpop.f32.mrf.mxu0
    %5787 = vdwg.mxu0
    %s5788 = scalar_lea.vmem [#allocation43], 2
    %v5789 = vld [vmem:[%s5788] sm:$0x3]
    %v5791 = vsel %vm4807, %v5789, 0
    %5793 = vmatprep.subr.mxu0 0.0
    %5794 = vmatpush1.msra.mxu0 0.0
    %5795 = vmatprep.subr.mxu0 0.0
    %5796 = vmatpush1.msra.mxu0 0.0
    %5797 = vmatprep.subr.mxu0 0.0
    %5798 = vmatpush1.msra.mxu0 0.0
    %5799 = vmatprep.subr.mxu0 0.0
    %5800 = vmatpush1.msra.mxu0 0.0
    %5801 = vmatprep.subr.mxu0 0.0
    %5802 = vmatpush1.msra.mxu0 0.0
    %5803 = vmatprep.subr.mxu0 0.0
    %5804 = vmatpush1.msra.mxu0 0.0
    %5805 = vmatprep.subr.mxu0 0.0
    %5806 = vmatpush1.msra.mxu0 0.0
    %5807 = vmatprep.subr.mxu0 0.0
    %5808 = vmatpush1.msra.mxu0 0.0
    %5809 = vmatprep.subr.mxu0 0.0
    %5810 = vmatpush1.msra.mxu0 0.0
    %5811 = vmatprep.subr.mxu0 0.0
    %5812 = vmatpush1.msra.mxu0 0.0
    %5813 = vmatprep.subr.mxu0 0.0
    %5814 = vmatpush1.msra.mxu0 0.0
    %5815 = vmatprep.subr.mxu0 0.0
    %5816 = vmatpush1.msra.mxu0 0.0
    %5817 = vmatprep.subr.mxu0 0.0
    %5818 = vmatpush1.msra.mxu0 0.0
    %5819 = vmatprep.subr.mxu0 0.0
    %5820 = vmatpush1.msra.mxu0 0.0
    %5821 = vmatprep.subr.mxu0 0.0
    %5822 = vmatpush1.msra.mxu0 0.0
    %5823 = vmatprep.subr.mxu0 0.0
    %5824 = vmatpush1.msra.mxu0 %v5716
    %5825 = vmatprep.subr.mxu0 0.0
    %5826 = vmatpush2.msra.mxu0 0.0
    %5827 = vmatprep.subr.mxu0 0.0
    %5828 = vmatpush2.msra.mxu0 0.0
    %5829 = vmatprep.subr.mxu0 0.0
    %5830 = vmatpush2.msra.mxu0 0.0
    %5831 = vmatprep.subr.mxu0 0.0
    %5832 = vmatpush2.msra.mxu0 0.0
    %5833 = vmatprep.subr.mxu0 0.0
    %5834 = vmatpush2.msra.mxu0 0.0
    %5835 = vmatprep.subr.mxu0 0.0
    %5836 = vmatpush2.msra.mxu0 0.0
    %5837 = vmatprep.subr.mxu0 0.0
    %5838 = vmatpush2.msra.mxu0 0.0
    %5839 = vmatprep.subr.mxu0 0.0
    %5840 = vmatpush2.msra.mxu0 0.0
    %5841 = vmatprep.subr.mxu0 0.0
    %5842 = vmatpush2.msra.mxu0 0.0
    %5843 = vmatprep.subr.mxu0 0.0
    %5844 = vmatpush2.msra.mxu0 0.0
    %5845 = vmatprep.subr.mxu0 0.0
    %5846 = vmatpush2.msra.mxu0 0.0
    %5847 = vmatprep.subr.mxu0 0.0
    %5848 = vmatpush2.msra.mxu0 0.0
    %5849 = vmatprep.subr.mxu0 0.0
    %5850 = vmatpush2.msra.mxu0 0.0
    %5851 = vmatprep.subr.mxu0 0.0
    %5852 = vmatpush2.msra.mxu0 0.0
    %5853 = vmatprep.subr.mxu0 0.0
    %5854 = vmatpush2.msra.mxu0 0.0
    %5855 = vmatprep.subr.mxu0 0.0
    %5856 = vmatpush2.msra.mxu0 0.0
    %5857 = vmatprep.mubr.f32.mxu0 0.0
    %5858 = vmatmul.mubr.f32.gmra.mxu0 %v5791
    %v5859 = vpop.f32.mrf.mxu0
    %v5860 = vadd.f32 0.0, %v5859
    %v5861 = vpop.f32.mrf.mxu0
    %5862 = vdwg.mxu0
    %v5863 = vmax.f32 %v5785, %v5860
    %v5864 = vld [vmem:[%s73] sm:$0xff]
    %v5865 = vld [vmem:[%s73 + $0x8] sm:$0xff]
    %v5866 = vld [vmem:[%s73 + $0x10] sm:$0xff]
    %v5867 = vld [vmem:[%s73 + $0x18] sm:$0xff]
    %v5868 = vld [vmem:[%s73 + $0x20] sm:$0xff]
    %v5869 = vld [vmem:[%s73 + $0x28] sm:$0xff]
    %v5870 = vld [vmem:[%s73 + $0x30] sm:$0xff]
    %v5871 = vld [vmem:[%s73 + $0x38] sm:$0xff]
    %v5872 = vld [vmem:[%s73 + $0x40] sm:$0xff]
    %v5873 = vld [vmem:[%s73 + $0x48] sm:$0xff]
    %v5874 = vld [vmem:[%s73 + $0x50] sm:$0xff]
    %v5875 = vld [vmem:[%s73 + $0x58] sm:$0xff]
    %v5876 = vld [vmem:[%s73 + $0x60] sm:$0xff]
    %v5877 = vld [vmem:[%s73 + $0x68] sm:$0xff]
    %v5878 = vld [vmem:[%s73 + $0x70] sm:$0xff]
    %v5879 = vld [vmem:[%s73 + $0x78] sm:$0xff]
    %5880 = vmatprep.subr.mxu0 0.0
    %5881 = vmatpush1.msra.mxu0 %v5879
    %5882 = vmatprep.subr.mxu0 0.0
    %5883 = vmatpush1.msra.mxu0 %v5878
    %5884 = vmatprep.subr.mxu0 0.0
    %5885 = vmatpush1.msra.mxu0 %v5877
    %5886 = vmatprep.subr.mxu0 0.0
    %5887 = vmatpush1.msra.mxu0 %v5876
    %5888 = vmatprep.subr.mxu0 0.0
    %5889 = vmatpush1.msra.mxu0 %v5875
    %5890 = vmatprep.subr.mxu0 0.0
    %5891 = vmatpush1.msra.mxu0 %v5874
    %5892 = vmatprep.subr.mxu0 0.0
    %5893 = vmatpush1.msra.mxu0 %v5873
    %5894 = vmatprep.subr.mxu0 0.0
    %5895 = vmatpush1.msra.mxu0 %v5872
    %5896 = vmatprep.subr.mxu0 0.0
    %5897 = vmatpush1.msra.mxu0 %v5871
    %5898 = vmatprep.subr.mxu0 0.0
    %5899 = vmatpush1.msra.mxu0 %v5870
    %5900 = vmatprep.subr.mxu0 0.0
    %5901 = vmatpush1.msra.mxu0 %v5869
    %5902 = vmatprep.subr.mxu0 0.0
    %5903 = vmatpush1.msra.mxu0 %v5868
    %5904 = vmatprep.subr.mxu0 0.0
    %5905 = vmatpush1.msra.mxu0 %v5867
    %5906 = vmatprep.subr.mxu0 0.0
    %5907 = vmatpush1.msra.mxu0 %v5866
    %5908 = vmatprep.subr.mxu0 0.0
    %5909 = vmatpush1.msra.mxu0 %v5865
    %5910 = vmatprep.subr.mxu0 0.0
    %5911 = vmatpush1.msra.mxu0 %v5864
    %5912 = vmatprep.subr.mxu0 0.0
    %5913 = vmatpush2.msra.mxu0 0.0
    %5914 = vmatprep.subr.mxu0 0.0
    %5915 = vmatpush2.msra.mxu0 0.0
    %5916 = vmatprep.subr.mxu0 0.0
    %5917 = vmatpush2.msra.mxu0 0.0
    %5918 = vmatprep.subr.mxu0 0.0
    %5919 = vmatpush2.msra.mxu0 0.0
    %5920 = vmatprep.subr.mxu0 0.0
    %5921 = vmatpush2.msra.mxu0 0.0
    %5922 = vmatprep.subr.mxu0 0.0
    %5923 = vmatpush2.msra.mxu0 0.0
    %5924 = vmatprep.subr.mxu0 0.0
    %5925 = vmatpush2.msra.mxu0 0.0
    %5926 = vmatprep.subr.mxu0 0.0
    %5927 = vmatpush2.msra.mxu0 0.0
    %5928 = vmatprep.subr.mxu0 0.0
    %5929 = vmatpush2.msra.mxu0 0.0
    %5930 = vmatprep.subr.mxu0 0.0
    %5931 = vmatpush2.msra.mxu0 0.0
    %5932 = vmatprep.subr.mxu0 0.0
    %5933 = vmatpush2.msra.mxu0 0.0
    %5934 = vmatprep.subr.mxu0 0.0
    %5935 = vmatpush2.msra.mxu0 0.0
    %5936 = vmatprep.subr.mxu0 0.0
    %5937 = vmatpush2.msra.mxu0 0.0
    %5938 = vmatprep.subr.mxu0 0.0
    %5939 = vmatpush2.msra.mxu0 0.0
    %5940 = vmatprep.subr.mxu0 0.0
    %5941 = vmatpush2.msra.mxu0 0.0
    %5942 = vmatprep.subr.mxu0 0.0
    %5943 = vmatpush2.msra.mxu0 0.0
    %5944 = vmatprep.mubr.f32.mxu0 0.0
    %5945 = vmatmul.mubr.f32.gmra.mxu0 %v5863
    %v5946 = vpop.f32.mrf.mxu0
    %v5947 = vadd.f32 0.0, %v5946
    %v5948 = vpop.f32.mrf.mxu0
    %5949 = vdwg.mxu0
    %s5950 = scalar_lea.vmem %s73, 128
    %v5951 = vld [vmem:[%s5950] sm:$0xff]
    %v5952 = vld [vmem:[%s5950 + $0x8] sm:$0xff]
    %v5953 = vld [vmem:[%s5950 + $0x10] sm:$0xff]
    %v5954 = vld [vmem:[%s5950 + $0x18] sm:$0xff]
    %v5955 = vld [vmem:[%s5950 + $0x20] sm:$0xff]
    %v5956 = vld [vmem:[%s5950 + $0x28] sm:$0xff]
    %v5957 = vld [vmem:[%s5950 + $0x30] sm:$0xff]
    %v5958 = vld [vmem:[%s5950 + $0x38] sm:$0xff]
    %v5959 = vld [vmem:[%s5950 + $0x40] sm:$0xff]
    %v5960 = vld [vmem:[%s5950 + $0x48] sm:$0xff]
    %v5961 = vld [vmem:[%s5950 + $0x50] sm:$0xff]
    %v5962 = vld [vmem:[%s5950 + $0x58] sm:$0xff]
    %v5963 = vld [vmem:[%s5950 + $0x60] sm:$0xff]
    %v5964 = vld [vmem:[%s5950 + $0x68] sm:$0xff]
    %v5965 = vld [vmem:[%s5950 + $0x70] sm:$0xff]
    %v5966 = vld [vmem:[%s5950 + $0x78] sm:$0xff]
    %5967 = vmatprep.subr.mxu0 0.0
    %5968 = vmatpush1.msra.mxu0 %v5966
    %5969 = vmatprep.subr.mxu0 0.0
    %5970 = vmatpush1.msra.mxu0 %v5965
    %5971 = vmatprep.subr.mxu0 0.0
    %5972 = vmatpush1.msra.mxu0 %v5964
    %5973 = vmatprep.subr.mxu0 0.0
    %5974 = vmatpush1.msra.mxu0 %v5963
    %5975 = vmatprep.subr.mxu0 0.0
    %5976 = vmatpush1.msra.mxu0 %v5962
    %5977 = vmatprep.subr.mxu0 0.0
    %5978 = vmatpush1.msra.mxu0 %v5961
    %5979 = vmatprep.subr.mxu0 0.0
    %5980 = vmatpush1.msra.mxu0 %v5960
    %5981 = vmatprep.subr.mxu0 0.0
    %5982 = vmatpush1.msra.mxu0 %v5959
    %5983 = vmatprep.subr.mxu0 0.0
    %5984 = vmatpush1.msra.mxu0 %v5958
    %5985 = vmatprep.subr.mxu0 0.0
    %5986 = vmatpush1.msra.mxu0 %v5957
    %5987 = vmatprep.subr.mxu0 0.0
    %5988 = vmatpush1.msra.mxu0 %v5956
    %5989 = vmatprep.subr.mxu0 0.0
    %5990 = vmatpush1.msra.mxu0 %v5955
    %5991 = vmatprep.subr.mxu0 0.0
    %5992 = vmatpush1.msra.mxu0 %v5954
    %5993 = vmatprep.subr.mxu0 0.0
    %5994 = vmatpush1.msra.mxu0 %v5953
    %5995 = vmatprep.subr.mxu0 0.0
    %5996 = vmatpush1.msra.mxu0 %v5952
    %5997 = vmatprep.subr.mxu0 0.0
    %5998 = vmatpush1.msra.mxu0 %v5951
    %5999 = vmatprep.subr.mxu0 0.0
    %6000 = vmatpush2.msra.mxu0 0.0
    %6001 = vmatprep.subr.mxu0 0.0
    %6002 = vmatpush2.msra.mxu0 0.0
    %6003 = vmatprep.subr.mxu0 0.0
    %6004 = vmatpush2.msra.mxu0 0.0
    %6005 = vmatprep.subr.mxu0 0.0
    %6006 = vmatpush2.msra.mxu0 0.0
    %6007 = vmatprep.subr.mxu0 0.0
    %6008 = vmatpush2.msra.mxu0 0.0
    %6009 = vmatprep.subr.mxu0 0.0
    %6010 = vmatpush2.msra.mxu0 0.0
    %6011 = vmatprep.subr.mxu0 0.0
    %6012 = vmatpush2.msra.mxu0 0.0
    %6013 = vmatprep.subr.mxu0 0.0
    %6014 = vmatpush2.msra.mxu0 0.0
    %6015 = vmatprep.subr.mxu0 0.0
    %6016 = vmatpush2.msra.mxu0 0.0
    %6017 = vmatprep.subr.mxu0 0.0
    %6018 = vmatpush2.msra.mxu0 0.0
    %6019 = vmatprep.subr.mxu0 0.0
    %6020 = vmatpush2.msra.mxu0 0.0
    %6021 = vmatprep.subr.mxu0 0.0
    %6022 = vmatpush2.msra.mxu0 0.0
    %6023 = vmatprep.subr.mxu0 0.0
    %6024 = vmatpush2.msra.mxu0 0.0
    %6025 = vmatprep.subr.mxu0 0.0
    %6026 = vmatpush2.msra.mxu0 0.0
    %6027 = vmatprep.subr.mxu0 0.0
    %6028 = vmatpush2.msra.mxu0 0.0
    %6029 = vmatprep.subr.mxu0 0.0
    %6030 = vmatpush2.msra.mxu0 0.0
    %6031 = vmatprep.mubr.f32.mxu0 0.0
    %6032 = vmatmul.mubr.f32.gmra.mxu0 %v5863
    %v6033 = vpop.f32.mrf.mxu0
    %v6034 = vadd.f32 0.0, %v6033
    %v6035 = vpop.f32.mrf.mxu0
    %6036 = vdwg.mxu0
    %v6037 = vmax.f32 %v5947, %v6034
    %v6038 = vld [vmem:[#allocation44] sm:$0xff]
    %v6039 = vld [vmem:[#allocation44 + $0x8] sm:$0xff]
    %v6040 = vld [vmem:[#allocation44 + $0x10] sm:$0xff]
    %v6041 = vld [vmem:[#allocation44 + $0x18] sm:$0xff]
    %v6042 = vld [vmem:[#allocation44 + $0x20] sm:$0xff]
    %v6043 = vld [vmem:[#allocation44 + $0x28] sm:$0xff]
    %v6044 = vld [vmem:[#allocation44 + $0x30] sm:$0xff]
    %v6045 = vld [vmem:[#allocation44 + $0x38] sm:$0xff]
    %v6046 = vld [vmem:[#allocation46] sm:$0x1]
    %v6048 = vlaneseq
    %v6049 = vshrl.u32 %v6048, 7
    %v6050 = vsub.s32 0, %v6049
    %v6051 = vrot.slane %v6046, %v6050
    %v6054 = vsel %vm4977, %v6037, 0
    %6056 = vmatprep.subr.mxu0 0.0
    %6057 = vmatpush1.msra.mxu0 0.0
    %6058 = vmatprep.subr.mxu0 0.0
    %6059 = vmatpush1.msra.mxu0 0.0
    %6060 = vmatprep.subr.mxu0 0.0
    %6061 = vmatpush1.msra.mxu0 0.0
    %6062 = vmatprep.subr.mxu0 0.0
    %6063 = vmatpush1.msra.mxu0 0.0
    %6064 = vmatprep.subr.mxu0 0.0
    %6065 = vmatpush1.msra.mxu0 0.0
    %6066 = vmatprep.subr.mxu0 0.0
    %6067 = vmatpush1.msra.mxu0 0.0
    %6068 = vmatprep.subr.mxu0 0.0
    %6069 = vmatpush1.msra.mxu0 0.0
    %6070 = vmatprep.subr.mxu0 0.0
    %6071 = vmatpush1.msra.mxu0 0.0
    %6072 = vmatprep.subr.mxu0 0.0
    %6073 = vmatpush1.msra.mxu0 %v6045
    %6074 = vmatprep.subr.mxu0 0.0
    %6075 = vmatpush1.msra.mxu0 %v6044
    %6076 = vmatprep.subr.mxu0 0.0
    %6077 = vmatpush1.msra.mxu0 %v6043
    %6078 = vmatprep.subr.mxu0 0.0
    %6079 = vmatpush1.msra.mxu0 %v6042
    %6080 = vmatprep.subr.mxu0 0.0
    %6081 = vmatpush1.msra.mxu0 %v6041
    %6082 = vmatprep.subr.mxu0 0.0
    %6083 = vmatpush1.msra.mxu0 %v6040
    %6084 = vmatprep.subr.mxu0 0.0
    %6085 = vmatpush1.msra.mxu0 %v6039
    %6086 = vmatprep.subr.mxu0 0.0
    %6087 = vmatpush1.msra.mxu0 %v6038
    %6088 = vmatprep.subr.mxu0 0.0
    %6089 = vmatpush2.msra.mxu0 0.0
    %6090 = vmatprep.subr.mxu0 0.0
    %6091 = vmatpush2.msra.mxu0 0.0
    %6092 = vmatprep.subr.mxu0 0.0
    %6093 = vmatpush2.msra.mxu0 0.0
    %6094 = vmatprep.subr.mxu0 0.0
    %6095 = vmatpush2.msra.mxu0 0.0
    %6096 = vmatprep.subr.mxu0 0.0
    %6097 = vmatpush2.msra.mxu0 0.0
    %6098 = vmatprep.subr.mxu0 0.0
    %6099 = vmatpush2.msra.mxu0 0.0
    %6100 = vmatprep.subr.mxu0 0.0
    %6101 = vmatpush2.msra.mxu0 0.0
    %6102 = vmatprep.subr.mxu0 0.0
    %6103 = vmatpush2.msra.mxu0 0.0
    %6104 = vmatprep.subr.mxu0 0.0
    %6105 = vmatpush2.msra.mxu0 0.0
    %6106 = vmatprep.subr.mxu0 0.0
    %6107 = vmatpush2.msra.mxu0 0.0
    %6108 = vmatprep.subr.mxu0 0.0
    %6109 = vmatpush2.msra.mxu0 0.0
    %6110 = vmatprep.subr.mxu0 0.0
    %6111 = vmatpush2.msra.mxu0 0.0
    %6112 = vmatprep.subr.mxu0 0.0
    %6113 = vmatpush2.msra.mxu0 0.0
    %6114 = vmatprep.subr.mxu0 0.0
    %6115 = vmatpush2.msra.mxu0 0.0
    %6116 = vmatprep.subr.mxu0 0.0
    %6117 = vmatpush2.msra.mxu0 0.0
    %6118 = vmatprep.subr.mxu0 0.0
    %6119 = vmatpush2.msra.mxu0 0.0
    %6120 = vmatprep.mubr.f32.mxu0 0.0
    %6121 = vmatmul.mubr.f32.gmra.mxu0 %v6054
    %v6122 = vpop.f32.mrf.mxu0
    %v6123 = vadd.f32 %v6051, %v6122
    %v6124 = vpop.f32.mrf.mxu0
    %6125 = vdwg.mxu0
    %vm6126 = vcmask 517120
    %v6127 = vsel %vm6126, %v6123, 0.0
    %v6128 = vrot.slane %v6127, 4
    %v6129 = vadd.f32 %v6127, %v6128
    %v6130 = vrot.slane %v6129, 2
    %v6131 = vadd.f32 %v6129, %v6130
    %v6132 = vrot.slane %v6131, 1
    %v6133 = vadd.f32 %v6131, %v6132
    %v6134 = vmul.f32 %v6133, 0.5
    %v6135 = vsub.f32 %v6123, %v6134
    %v6136 = vmul.f32 %v6135, %v6135
    %v6137 = vsel %vm6126, %v6136, 0.0
    %v6138 = vrot.slane %v6137, 4
    %v6139 = vadd.f32 %v6137, %v6138
    %v6140 = vrot.slane %v6139, 2
    %v6141 = vadd.f32 %v6139, %v6140
    %v6142 = vrot.slane %v6141, 1
    %v6143 = vadd.f32 %v6141, %v6142
    %v6144 = vmul.f32 %v6143, 0.5
    %v6145 = vld [vmem:[#allocation47] sm:$0x1]
    %v6147 = vlaneseq
    %v6148 = vshrl.u32 %v6147, 7
    %v6149 = vsub.s32 0, %v6148
    %v6150 = vrot.slane %v6145, %v6149
    %v6152 = vmul.f32 %v6150, %v6135
    %v6153 = vadd.f32 %v6144, 1e-05
    %v6154 = vrsqrt.pop %v6153
    %v6155 = vmul.f32 %v6152, %v6154
    %v6156 = vld [vmem:[#allocation49] sm:$0x1]
    %v6158 = vlaneseq
    %v6159 = vshrl.u32 %v6158, 7
    %v6160 = vsub.s32 0, %v6159
    %v6161 = vrot.slane %v6156, %v6160
    %v6163 = vadd.f32 %v6155, %v6161
    %vm6164 = vcmp.gt.f32.partialorder %v6163, 0.0
    %v6165 = vmul.f32 %v6163, 0.01
    %v6166 = vsel %vm6164, %v6163, %v6165
    %v6167 = vld [vmem:[%s83] sm:$0xff]
    %v6168 = vld [vmem:[%s83 + $0x8] sm:$0xff]
    %v6169 = vld [vmem:[%s83 + $0x10] sm:$0xff]
    %v6170 = vld [vmem:[%s83 + $0x18] sm:$0xff]
    %v6171 = vld [vmem:[%s83 + $0x20] sm:$0xff]
    %v6172 = vld [vmem:[%s83 + $0x28] sm:$0xff]
    %v6173 = vld [vmem:[%s83 + $0x30] sm:$0xff]
    %v6174 = vld [vmem:[%s83 + $0x38] sm:$0xff]
    %v6175 = vld [vmem:[#allocation50] sm:$0x1]
    %v6177 = vlaneseq
    %v6178 = vshrl.u32 %v6177, 7
    %v6179 = vsub.s32 0, %v6178
    %v6180 = vrot.slane %v6175, %v6179
    %v6183 = vsel %vm4977, %v6166, 0
    %6185 = vmatprep.subr.mxu0 0.0
    %6186 = vmatpush1.msra.mxu0 0.0
    %6187 = vmatprep.subr.mxu0 0.0
    %6188 = vmatpush1.msra.mxu0 0.0
    %6189 = vmatprep.subr.mxu0 0.0
    %6190 = vmatpush1.msra.mxu0 0.0
    %6191 = vmatprep.subr.mxu0 0.0
    %6192 = vmatpush1.msra.mxu0 0.0
    %6193 = vmatprep.subr.mxu0 0.0
    %6194 = vmatpush1.msra.mxu0 0.0
    %6195 = vmatprep.subr.mxu0 0.0
    %6196 = vmatpush1.msra.mxu0 0.0
    %6197 = vmatprep.subr.mxu0 0.0
    %6198 = vmatpush1.msra.mxu0 0.0
    %6199 = vmatprep.subr.mxu0 0.0
    %6200 = vmatpush1.msra.mxu0 0.0
    %6201 = vmatprep.subr.mxu0 0.0
    %6202 = vmatpush1.msra.mxu0 %v6174
    %6203 = vmatprep.subr.mxu0 0.0
    %6204 = vmatpush1.msra.mxu0 %v6173
    %6205 = vmatprep.subr.mxu0 0.0
    %6206 = vmatpush1.msra.mxu0 %v6172
    %6207 = vmatprep.subr.mxu0 0.0
    %6208 = vmatpush1.msra.mxu0 %v6171
    %6209 = vmatprep.subr.mxu0 0.0
    %6210 = vmatpush1.msra.mxu0 %v6170
    %6211 = vmatprep.subr.mxu0 0.0
    %6212 = vmatpush1.msra.mxu0 %v6169
    %6213 = vmatprep.subr.mxu0 0.0
    %6214 = vmatpush1.msra.mxu0 %v6168
    %6215 = vmatprep.subr.mxu0 0.0
    %6216 = vmatpush1.msra.mxu0 %v6167
    %6217 = vmatprep.subr.mxu0 0.0
    %6218 = vmatpush2.msra.mxu0 0.0
    %6219 = vmatprep.subr.mxu0 0.0
    %6220 = vmatpush2.msra.mxu0 0.0
    %6221 = vmatprep.subr.mxu0 0.0
    %6222 = vmatpush2.msra.mxu0 0.0
    %6223 = vmatprep.subr.mxu0 0.0
    %6224 = vmatpush2.msra.mxu0 0.0
    %6225 = vmatprep.subr.mxu0 0.0
    %6226 = vmatpush2.msra.mxu0 0.0
    %6227 = vmatprep.subr.mxu0 0.0
    %6228 = vmatpush2.msra.mxu0 0.0
    %6229 = vmatprep.subr.mxu0 0.0
    %6230 = vmatpush2.msra.mxu0 0.0
    %6231 = vmatprep.subr.mxu0 0.0
    %6232 = vmatpush2.msra.mxu0 0.0
    %6233 = vmatprep.subr.mxu0 0.0
    %6234 = vmatpush2.msra.mxu0 0.0
    %6235 = vmatprep.subr.mxu0 0.0
    %6236 = vmatpush2.msra.mxu0 0.0
    %6237 = vmatprep.subr.mxu0 0.0
    %6238 = vmatpush2.msra.mxu0 0.0
    %6239 = vmatprep.subr.mxu0 0.0
    %6240 = vmatpush2.msra.mxu0 0.0
    %6241 = vmatprep.subr.mxu0 0.0
    %6242 = vmatpush2.msra.mxu0 0.0
    %6243 = vmatprep.subr.mxu0 0.0
    %6244 = vmatpush2.msra.mxu0 0.0
    %6245 = vmatprep.subr.mxu0 0.0
    %6246 = vmatpush2.msra.mxu0 0.0
    %6247 = vmatprep.subr.mxu0 0.0
    %6248 = vmatpush2.msra.mxu0 0.0
    %6249 = vmatprep.mubr.f32.mxu0 0.0
    %6250 = vmatmul.mubr.f32.gmra.mxu0 %v6183
    %v6251 = vpop.f32.mrf.mxu0
    %v6252 = vadd.f32 %v6180, %v6251
    %v6253 = vpop.f32.mrf.mxu0
    %6254 = vdwg.mxu0
    %vm6255 = vcmask 287744
    %v6256 = vsel %vm6255, %v6252, -inf
    %6257 = vmax.xlane.f32.xlu0 %v6256
    %v6258 = vpop.xlane.xlu0 %6257
    %v6259 = vsub.f32 %v6252, %v6258
    %v6260 = vmul.f32 %v6259, 1.442695
    %v6261 = vpow.pop %v6260
    %v6262 = vsel %vm6255, %v6261, 0.0
    %6263 = vadd.xlane.f32.xlu0 %v6262
    %v6264 = vpop.xlane.xlu0 %6263
    %v6265 = vrcp.pop %v6264
    %v6266 = vmul.f32 %v6261, %v6265
    %6267 = vst.msk [vmem:[#allocation52] sm:$0x3] %vm6255, %v6266
    // Predicated region
    $region302: #{recognition_forward.1} parent=1 // pred_check
      _
    $region303: #{recognition_forward.1} parent=1 // pred_check_branch
      %6269 = sbr.rel (0) target = $region305
    $region304: #{recognition_forward.1} parent=1 // pred_region
      %s6271 = ssub.s32 32, 32
      %6272 = vsyncadd [#allocation4], %s6271
      %s6274 = sshll.u32 [#allocation52], 4
      %s6275 = int_to_ptr.vmem [resolvable:$true] %s6274
      %6277 = dma.vmem_to_hbm [thread:$0]  %s6275, 32, %s87, [#allocation4]
    $region305: #{recognition_forward.1} parent=1 // pred_fallthru
      _
    // Predicated region
    $region306: #{recognition_forward.1} parent=1 // pred_check
      _
    $region307: #{recognition_forward.1} parent=1 // pred_check_branch
      %6279 = sbr.rel (0) target = $region309
    $region308: #{recognition_forward.1} parent=1 // pred_region
      %6280 = dma.done [#allocation4], 32
    $region309: #{recognition_forward.1} parent=1 // pred_fallthru
      _
    %6281 = vsyncpa [#allocation3], 1
    %6282 = vsyncpa [#allocation6], 1
    %6283 = vsyncpa [#allocation9], 1
    %6284 = vsyncpa [#allocation12], 1
    %6285 = vsyncpa [#allocation15], 1
    %6286 = vsyncpa [#allocation18], 1
    %6287 = vsyncpa [#allocation21], 1
    %6288 = vsyncpa [#allocation24], 1
    %6289 = vsyncpa [#allocation27], 1
    %6290 = vsyncpa [#allocation30], 1
    %6291 = vsyncpa [#allocation33], 1
    %6292 = vsyncpa [#allocation36], 1
    %6293 = vsyncpa [#allocation39], 1
    %6294 = vsyncpa [#allocation42], 1
    %6295 = vsyncpa [#allocation45], 1
    %6296 = vsyncpa [#allocation48], 1
    %6297 = vsyncpa [#allocation51], 1
    %6298 = vsyncpa [#allocation4], 1

</llo_original>
